<compile_context>
chip_gen: v6e
topology: v6e:2x2x1
jax: 0.10.0
libtpu: 0.0.40
codegen_flags: <defaults>
</compile_context>

<pallas_src>
import functools

import jax
import jax.numpy as jnp
from jax.experimental import pallas as pl
from jax.experimental.pallas import tpu as pltpu

EPS = 1e-5
MM_DTYPE = jnp.bfloat16   # MXU operand / HBM storage dtype (accumulate in f32)


def _round_up(x, m):
    return ((x + m - 1) // m) * m


def _pick_tile_rows(rows, k, cout, cap_bytes=6 * 1024 * 1024, tr_max=512):
    """Largest row tile (multiple of 8, <= tr_max) keeping the f32 (k*tr, Cout)
    matmul result under cap_bytes (VMEM-safe on all generations incl. v7x)."""
    tr = tr_max
    while tr > 8 and k * tr * cout * 4 > cap_bytes:
        tr //= 2
    return max(8, min(tr, _round_up(rows, 8)))


# --------------------------------------------------------------------------
# Pallas kernels
# --------------------------------------------------------------------------
def _edge_stats_kernel(nbr_ref, ctr_ref, wl_ref, wd_ref, sum_ref, ssq_ref):
    """Factorized edge conv (one stacked MXU matmul) + fused BN sum / sum-sq.

    nbr_ref: (k, tr, C) bf16, ctr_ref: (tr, C) bf16, wl/wd: (C, Cout) bf16.
    sum_ref/ssq_ref: (1, 8, Cout) f32 partial accumulators (one per row split).
    """
    @pl.when(pl.program_id(1) == 0)
    def _():
        sum_ref[...] = jnp.zeros_like(sum_ref)
        ssq_ref[...] = jnp.zeros_like(ssq_ref)

    k, tr, c = nbr_ref.shape
    cout = wl_ref.shape[1]
    # single big matmul over all k neighbours of the tile (M = k*tr rows)
    y_n = jnp.dot(nbr_ref[...].reshape(k * tr, c), wl_ref[...],
                  preferred_element_type=jnp.float32).reshape(k, tr, cout)
    y_c = jnp.dot(ctr_ref[...], wd_ref[...], preferred_element_type=jnp.float32)

    # y[j] = y_n[j] + y_c ; accumulate sum / sum-of-squares without materializing y
    a = jnp.sum(y_n, axis=0)                 # (tr, Cout)
    q = jnp.sum(y_n * y_n, axis=0)           # (tr, Cout)
    s_rows = a + k * y_c
    q_rows = q + 2.0 * y_c * a + k * (y_c * y_c)
    sum_ref[...] += jnp.sum(s_rows.reshape(tr // 8, 8, cout), axis=0)[None]
    ssq_ref[...] += jnp.sum(q_rows.reshape(tr // 8, 8, cout), axis=0)[None]


def _edge_apply_kernel(nbr_ref, ctr_ref, wl_ref, wd_ref, s_ref, b_ref, o_ref):
    """Factorized edge conv + BN + tanh + max over k.

    tanh / BN affine hoisted out of the k reduction via monotonicity:
      max_k tanh(s*y_k + b) = tanh(s * (max_k y_k if s>=0 else min_k y_k) + b)
    (the where() guard keeps this correct for negative BN gammas).
    """
    k, tr, c = nbr_ref.shape
    cout = wl_ref.shape[1]
    y_n = jnp.dot(nbr_ref[...].reshape(k * tr, c), wl_ref[...],
                  preferred_element_type=jnp.float32).reshape(k, tr, cout)
    y_c = jnp.dot(ctr_ref[...], wd_ref[...], preferred_element_type=jnp.float32)
    ymax = jnp.max(y_n, axis=0)
    ymin = jnp.min(y_n, axis=0)
    scale = s_ref[...]
    shift = b_ref[...]
    ysel = jnp.where(scale >= 0.0, ymax, ymin) + y_c
    o_ref[...] = jnp.tanh(ysel * scale + shift).astype(o_ref.dtype)


def _final_stats_kernel(f1_ref, f2_ref, f3_ref, f4_ref,
                        w1_ref, w2_ref, w3_ref, w4_ref, sum_ref, ssq_ref):
    """conv5 as 4 fused matmuls (no concat) + fused BN sum / sum-of-squares."""
    @pl.when(pl.program_id(1) == 0)
    def _():
        sum_ref[...] = jnp.zeros_like(sum_ref)
        ssq_ref[...] = jnp.zeros_like(ssq_ref)

    e = w1_ref.shape[1]
    tn = f1_ref.shape[1]
    y = (jnp.dot(f1_ref[0], w1_ref[...], preferred_element_type=jnp.float32)
         + jnp.dot(f2_ref[0], w2_ref[...], preferred_element_type=jnp.float32)
         + jnp.dot(f3_ref[0], w3_ref[...], preferred_element_type=jnp.float32)
         + jnp.dot(f4_ref[0], w4_ref[...], preferred_element_type=jnp.float32))
    sum_ref[...] += jnp.sum(y.reshape(tn // 8, 8, e), axis=0)[None]
    ssq_ref[...] += jnp.sum((y * y).reshape(tn // 8, 8, e), axis=0)[None]


def _final_apply_kernel(f1_ref, f2_ref, f3_ref, f4_ref,
                        w1_ref, w2_ref, w3_ref, w4_ref,
                        s_ref, b_ref, omax_ref, oavg_ref, *, n_true, tn):
    """conv5 (4 fused matmuls) + BN + tanh, running max / sum over the N axis."""
    j = pl.program_id(1)

    @pl.when(j == 0)
    def _():
        omax_ref[...] = jnp.full(omax_ref.shape, -jnp.inf, omax_ref.dtype)
        oavg_ref[...] = jnp.zeros_like(oavg_ref)

    y = (jnp.dot(f1_ref[0], w1_ref[...], preferred_element_type=jnp.float32)
         + jnp.dot(f2_ref[0], w2_ref[...], preferred_element_type=jnp.float32)
         + jnp.dot(f3_ref[0], w3_ref[...], preferred_element_type=jnp.float32)
         + jnp.dot(f4_ref[0], w4_ref[...], preferred_element_type=jnp.float32))
    z = jnp.tanh(y * s_ref[...] + b_ref[...])
    rows = j * tn + jax.lax.broadcasted_iota(jnp.int32, (tn, 1), 0)
    valid = rows < n_true                                  # mask padded N rows
    zmax = jnp.where(valid, z, -jnp.inf)
    zsum = jnp.where(valid, z, 0.0)
    omax_ref[...] = jnp.maximum(omax_ref[...], jnp.max(zmax, axis=0)[None, None, :])
    oavg_ref[...] = oavg_ref[...] + jnp.sum(zsum, axis=0)[None, None, :]

    @pl.when(j == pl.num_programs(1) - 1)
    def _():
        oavg_ref[...] = oavg_ref[...] * (1.0 / n_true)     # divide by the TRUE N


# --------------------------------------------------------------------------
# Layer wrappers
# --------------------------------------------------------------------------
def edge_conv(feat_bnc, idx_g, wl_t, wd_t, gamma, beta):
    """One (Conv2d 1x1 -> BN2d -> Tanh -> max over k) block, factorized.

    feat_bnc: (B, N, C) MM_DTYPE; idx_g: (k, B*N) global row indices;
    wl_t/wd_t: (C, Cout) MM_DTYPE; gamma/beta: (Cout,) f32.
    """
    B, N, C = feat_bnc.shape
    k = idx_g.shape[0]
    Cout = wl_t.shape[1]
    R = B * N

    tr = _pick_tile_rows(R, k, Cout)
    ntiles = pl.cdiv(R, tr)
    nsplit = 2 if ntiles >= 2 else 1          # leading "parallel" axis (v7x megacore)
    Rp = _round_up(R, nsplit * tr)
    tps = Rp // (nsplit * tr)                 # tiles per split

    feat_flat = feat_bnc.reshape(R, C)
    if Rp != R:
        # Pad the small (R, C) feature matrix with zero rows and point padded
        # neighbour indices at a zero row: padded rows contribute exactly 0 to the
        # BN statistics, so no in-kernel masking and no pad of the big nbr tensor.
        ctr = jnp.pad(feat_flat, ((0, Rp - R), (0, 0)))
        idx_p = jnp.pad(idx_g, ((0, 0), (0, Rp - R)), constant_values=R)
    else:
        ctr = feat_flat
        idx_p = idx_g

    # neighbour gather (k leading so kernels see dense (k, tr, C) slabs)
    # TODO(synk): the data-dependent row gather stays in XLA; an in-kernel
    #             scalar-prefetch / manual-DMA gather would remove this HBM pass.
    nbr = ctr[idx_p]                                      # (k, Rp, C)

    nbr_spec_s = pl.BlockSpec((k, tr, C), lambda s, i: (0, s * tps + i, 0))
    ctr_spec_s = pl.BlockSpec((tr, C), lambda s, i: (s * tps + i, 0))
    w_spec_s = pl.BlockSpec((C, Cout), lambda s, i: (0, 0))
    acc_spec = pl.BlockSpec((1, 8, Cout), lambda s, i: (s, 0, 0))

    # pass 1: stacked matmul + fused BN statistics (per-split partial accumulators)
    sums, ssqs = pl.pallas_call(
        _edge_stats_kernel,
        out_shape=(jax.ShapeDtypeStruct((nsplit, 8, Cout), jnp.float32),
                   jax.ShapeDtypeStruct((nsplit, 8, Cout), jnp.float32)),
        grid=(nsplit, tps),
        in_specs=[nbr_spec_s, ctr_spec_s, w_spec_s, w_spec_s],
        out_specs=(acc_spec, acc_spec),
        compiler_params=pltpu.CompilerParams(
            dimension_semantics=("parallel", "arbitrary")),
    )(nbr, ctr, wl_t, wd_t)

    cnt = float(R * k)                                     # true count (padding is zero)
    s_tot = jnp.sum(sums, axis=(0, 1))
    q_tot = jnp.sum(ssqs, axis=(0, 1))
    mean = s_tot / cnt
    var = jnp.maximum(q_tot / cnt - mean * mean, 0.0)      # biased, as PyTorch BN (train)
    scale = (gamma / jnp.sqrt(var + EPS)).reshape(1, Cout)
    shift = beta.reshape(1, Cout) - mean.reshape(1, Cout) * scale

    # pass 2: recompute conv, BN + tanh hoisted out of the k-max, fully parallel grid
    out = pl.pallas_call(
        _edge_apply_kernel,
        out_shape=jax.ShapeDtypeStruct((Rp, Cout), MM_DTYPE),
        grid=(Rp // tr,),
        in_specs=[pl.BlockSpec((k, tr, C), lambda i: (0, i, 0)),
                  pl.BlockSpec((tr, C), lambda i: (i, 0)),
                  pl.BlockSpec((C, Cout), lambda i: (0, 0)),
                  pl.BlockSpec((C, Cout), lambda i: (0, 0)),
                  pl.BlockSpec((1, Cout), lambda i: (0, 0)),
                  pl.BlockSpec((1, Cout), lambda i: (0, 0))],
        out_specs=pl.BlockSpec((tr, Cout), lambda i: (i, 0)),
        compiler_params=pltpu.CompilerParams(dimension_semantics=("parallel",)),
    )(nbr, ctr, wl_t, wd_t, scale, shift)

    if Rp != R:
        out = out[:R]
    return out.reshape(B, N, Cout)


def final_conv(f1, f2, f3, f4, w_chunks, gamma, beta, *, tn_target=512):
    """conv5 (1x1) -> BN1d -> tanh -> [max over N, mean over N] pooling.

    The 512-channel concat is never built: W5 is split column-wise into
    w_chunks = (64, 64, 128, 256)-row pieces and the conv becomes 4 fused matmuls.
    """
    B, N, _ = f1.shape
    E = w_chunks[0].shape[1]

    tn = min(tn_target, _round_up(N, 8))
    Np = _round_up(N, tn)
    fs = [f1, f2, f3, f4]
    if Np != N:
        fs = [jnp.pad(f, ((0, 0), (0, Np - N), (0, 0))) for f in fs]  # zeros -> stats-safe

    f_specs = [pl.BlockSpec((1, tn, f.shape[2]), lambda b, j: (b, j, 0)) for f in fs]
    w_specs = [pl.BlockSpec((w.shape[0], E), lambda b, j: (0, 0)) for w in w_chunks]
    acc_spec = pl.BlockSpec((1, 8, E), lambda b, j: (b, 0, 0))

    # pass 1: fused matmuls + BN statistics (per-batch partials -> megacore parallel)
    sums, ssqs = pl.pallas_call(
        _final_stats_kernel,
        out_shape=(jax.ShapeDtypeStruct((B, 8, E), jnp.float32),
                   jax.ShapeDtypeStruct((B, 8, E), jnp.float32)),
        grid=(B, Np // tn),
        in_specs=f_specs + w_specs,
        out_specs=(acc_spec, acc_spec),
        compiler_params=pltpu.CompilerParams(
            dimension_semantics=("parallel", "arbitrary")),
    )(*fs, *w_chunks)

    cnt = float(B * N)
    s_tot = jnp.sum(sums, axis=(0, 1))
    q_tot = jnp.sum(ssqs, axis=(0, 1))
    mean = s_tot / cnt
    var = jnp.maximum(q_tot / cnt - mean * mean, 0.0)
    scale = (gamma / jnp.sqrt(var + EPS)).reshape(1, E)
    shift = beta.reshape(1, E) - mean.reshape(1, E) * scale

    # pass 2: recompute conv, BN + tanh, running max / running mean over N tiles
    kernel = functools.partial(_final_apply_kernel, n_true=N, tn=tn)
    omax, oavg = pl.pallas_call(
        kernel,
        out_shape=(jax.ShapeDtypeStruct((B, 1, E), jnp.float32),
                   jax.ShapeDtypeStruct((B, 1, E), jnp.float32)),
        grid=(B, Np // tn),
        in_specs=f_specs + w_specs + [pl.BlockSpec((1, E), lambda b, j: (0, 0)),
                                      pl.BlockSpec((1, E), lambda b, j: (0, 0))],
        out_specs=(pl.BlockSpec((1, 1, E), lambda b, j: (b, 0, 0)),
                   pl.BlockSpec((1, 1, E), lambda b, j: (b, 0, 0))),
        compiler_params=pltpu.CompilerParams(
            dimension_semantics=("parallel", "arbitrary")),
    )(*fs, *w_chunks, scale, shift)

    return jnp.concatenate([omax[:, 0, :], oavg[:, 0, :]], axis=1)   # (B, 2E)


# --------------------------------------------------------------------------
# Host-side glue (knn index construction) and forward pass
# --------------------------------------------------------------------------
def knn_idx(x_bdn, k):
    """x: (B, D, N) -> indices of k nearest neighbours (B, N, k)."""
    # TODO(synk): top-k neighbour index construction has no clean Pallas
    #             equivalent; done with jax.lax.top_k in XLA.
    xt = jnp.transpose(x_bdn, (0, 2, 1))                  # (B, N, D)
    inner = -2.0 * jnp.einsum('bnd,bdm->bnm', xt, x_bdn)  # (B, N, N)
    xx = jnp.sum(x_bdn ** 2, axis=1, keepdims=True)       # (B, 1, N)
    pd = -xx - inner - jnp.transpose(xx, (0, 2, 1))       # -||xi - xj||^2
    _, idx = jax.lax.top_k(pd, k)
    return idx                                            # (B, N, k)


def shared_module_gcn_forward(x_bnd, feat_bnc, params, k):
    """x: (B, N, D), features: (B, N, feature_dims) -> (B, 2*emb_dims)."""
    B, N, _ = x_bnd.shape
    x_bdn = jnp.transpose(x_bnd, (0, 2, 1))               # matches x.permute(0, 2, 1)
    idx = knn_idx(x_bdn, k)                               # same graph for every layer
    idx_g = idx + (jnp.arange(B, dtype=idx.dtype) * N)[:, None, None]
    idx_g = jnp.transpose(idx_g, (2, 0, 1)).reshape(k, B * N)   # (k, B*N) global rows

    feat = feat_bnc.astype(MM_DTYPE)
    f1 = edge_conv(feat, idx_g, params['Wl1'], params['Wd1'], params['g1'], params['b1'])
    f2 = edge_conv(f1, idx_g, params['Wl2'], params['Wd2'], params['g2'], params['b2'])
    f3 = edge_conv(f2, idx_g, params['Wl3'], params['Wd3'], params['g3'], params['b3'])
    f4 = edge_conv(f3, idx_g, params['Wl4'], params['Wd4'], params['g4'], params['b4'])

    # conv5 consumes f1..f4 directly (W5 split column-wise) -> no (R, 512) concat in HBM
    return final_conv(f1, f2, f3, f4,
                      (params['W5T1'], params['W5T2'], params['W5T3'], params['W5T4']),
                      params['g5'], params['b5'])


# --------------------------------------------------------------------------
# Parameters
# --------------------------------------------------------------------------
def init_params(key, feature_dims, emb_dims):
    ks = jax.random.split(key, 5)

    def w(kk, cout, cin):
        return jax.random.normal(kk, (cout, cin), jnp.float32) * 0.1

    p = {
        'W1': w(ks[0], 64, 2 * feature_dims),
        'W2': w(ks[1], 64, 2 * 64),
        'W3': w(ks[2], 128, 2 * 64),
        'W4': w(ks[3], 256, 2 * 128),
        'W5': w(ks[4], emb_dims, 512),
    }
    for name, c in (('1', 64), ('2', 64), ('3', 128), ('4', 256), ('5', emb_dims)):
        p['g' + name] = jnp.ones((c,), jnp.float32)       # BN gamma (PyTorch default)
        p['b' + name] = jnp.zeros((c,), jnp.float32)      # BN beta  (PyTorch default)
    return p


def prepare_params(raw):
    """Factorize edge weights (cat(nbr-ctr, ctr)@W^T == nbr@Wl^T + ctr@(Wr-Wl)^T)
    and split W5 column-wise so conv5 can consume f1..f4 without a concat."""
    p = {}
    for name in ('1', '2', '3', '4'):
        W = raw['W' + name]                               # (Cout, 2C)
        C = W.shape[1] // 2
        Wl, Wr = W[:, :C], W[:, C:]
        p['Wl' + name] = Wl.T.astype(MM_DTYPE)            # (C, Cout)
        p['Wd' + name] = (Wr - Wl).T.astype(MM_DTYPE)     # (C, Cout)
        p['g' + name] = raw['g' + name]
        p['b' + name] = raw['b' + name]
    W5T = raw['W5'].T.astype(MM_DTYPE)                    # (512, emb), rows = [f1,f2,f3,f4]
    p['W5T1'] = W5T[0:64]
    p['W5T2'] = W5T[64:128]
    p['W5T3'] = W5T[128:256]
    p['W5T4'] = W5T[256:512]
    p['g5'] = raw['g5']
    p['b5'] = raw['b5']
    return p


if __name__ == "__main__":
    B, N, D, FEAT_DIMS, K, EMB_DIMS = 2, 16, 3, 4, 4, 32

    key = jax.random.PRNGKey(0)
    kx, kf, kp = jax.random.split(key, 3)
    x = jax.random.normal(kx, (B, N, D), jnp.float32)              # point coords
    features = jax.random.normal(kf, (B, N, FEAT_DIMS), jnp.float32)
    params = prepare_params(init_params(kp, FEAT_DIMS, EMB_DIMS))

    fwd = jax.jit(functools.partial(shared_module_gcn_forward, k=K))
    out = jax.block_until_ready(fwd(x, features, params))

    assert out.shape == (B, 2 * EMB_DIMS), out.shape
    assert bool(jnp.all(jnp.isfinite(out)))
    print("KERNEL_OK")
</pallas_src>

<mosaic_0001>
module attributes {stable_mosaic.version = 11 : i64} {
  func.func @_edge_stats_kernel(%arg0: i32, %arg1: i32, %arg2: memref<4x32x4xbf16, #tpu.memory_space<vmem>>, %arg3: memref<32x4xbf16, #tpu.memory_space<vmem>>, %arg4: memref<4x64xbf16, #tpu.memory_space<vmem>>, %arg5: memref<4x64xbf16, #tpu.memory_space<vmem>>, %arg6: memref<1x8x64xf32, #tpu.memory_space<vmem>>, %arg7: memref<1x8x64xf32, #tpu.memory_space<vmem>>) attributes {dimension_semantics = [#tpu.dimension_semantics<parallel>, #tpu.dimension_semantics<arbitrary>], iteration_bounds = array<i64: 1, 1>, scalar_prefetch = 0 : i64, scratch_operands = 0 : i64, tpu.core_type = #tpu.core_type<tc>, window_params = [{transform_indices = @transform_0, window_bounds = array<i64: 4, 32, 4>}, {transform_indices = @transform_1, window_bounds = array<i64: 32, 4>}, {pipeline_mode = #tpu.pipeline_mode<synchronous>, transform_indices = @transform_2, window_bounds = array<i64: 4, 64>}, {pipeline_mode = #tpu.pipeline_mode<synchronous>, transform_indices = @transform_3, window_bounds = array<i64: 4, 64>}, {transform_indices = @transform_4, window_bounds = array<i64: 1, 8, 64>}, {transform_indices = @transform_5, window_bounds = array<i64: 1, 8, 64>}]} {
    %c0_i32 = arith.constant 0 : i32
    %0 = arith.cmpi eq, %arg1, %c0_i32 : i32
    %1 = arith.extui %0 : i1 to i32
    %c0_i32_0 = arith.constant 0 : i32
    %2 = arith.cmpi ne, %1, %c0_i32_0 : i32
    scf.if %2 {
      %cst_29 = arith.constant 0.000000e+00 : f32
      %37 = vector.broadcast %cst_29 : f32 to vector<1x8x64xf32>
      %c0_30 = arith.constant 0 : index
      %c0_31 = arith.constant 0 : index
      %c0_32 = arith.constant 0 : index
      %38 = vector.load %arg6[%c0_30, %c0_31, %c0_32] : memref<1x8x64xf32, #tpu.memory_space<vmem>>, vector<1x8x64xf32>
      tpu.vector_store %arg6[%c0_30, %c0_31, %c0_32], %37 {strides = array<i32>} : memref<1x8x64xf32, #tpu.memory_space<vmem>>, vector<1x8x64xf32>,
      %cst_33 = arith.constant 0.000000e+00 : f32
      %39 = vector.broadcast %cst_33 : f32 to vector<1x8x64xf32>
      %c0_34 = arith.constant 0 : index
      %c0_35 = arith.constant 0 : index
      %c0_36 = arith.constant 0 : index
      %40 = vector.load %arg7[%c0_34, %c0_35, %c0_36] : memref<1x8x64xf32, #tpu.memory_space<vmem>>, vector<1x8x64xf32>
      tpu.vector_store %arg7[%c0_34, %c0_35, %c0_36], %39 {strides = array<i32>} : memref<1x8x64xf32, #tpu.memory_space<vmem>>, vector<1x8x64xf32>,
    } else {
    }
    %c0 = arith.constant 0 : index
    %c0_1 = arith.constant 0 : index
    %c0_2 = arith.constant 0 : index
    %3 = vector.load %arg2[%c0, %c0_1, %c0_2] : memref<4x32x4xbf16, #tpu.memory_space<vmem>>, vector<4x32x4xbf16>
    %4 = vector.shape_cast %3 : vector<4x32x4xbf16> to vector<128x4xbf16>
    %c0_3 = arith.constant 0 : index
    %c0_4 = arith.constant 0 : index
    %5 = vector.load %arg4[%c0_3, %c0_4] : memref<4x64xbf16, #tpu.memory_space<vmem>>, vector<4x64xbf16>
    %cst = arith.constant dense<0.000000e+00> : vector<128x64xf32>
    %6 = tpu.matmul %4, %5, %cst {dimension_numbers = #tpu.dot_dimension_numbers<[1], [0], [0], [1], [0, 0, 1, 1], [], []>} : vector<128x4xbf16>, vector<4x64xbf16>, vector<128x64xf32> -> vector<128x64xf32>
    %7 = vector.shape_cast %6 : vector<128x64xf32> to vector<4x32x64xf32>
    %c0_5 = arith.constant 0 : index
    %c0_6 = arith.constant 0 : index
    %8 = vector.load %arg3[%c0_5, %c0_6] : memref<32x4xbf16, #tpu.memory_space<vmem>>, vector<32x4xbf16>
    %c0_7 = arith.constant 0 : index
    %c0_8 = arith.constant 0 : index
    %9 = vector.load %arg5[%c0_7, %c0_8] : memref<4x64xbf16, #tpu.memory_space<vmem>>, vector<4x64xbf16>
    %cst_9 = arith.constant dense<0.000000e+00> : vector<32x64xf32>
    %10 = tpu.matmul %8, %9, %cst_9 {dimension_numbers = #tpu.dot_dimension_numbers<[1], [0], [0], [1], [0, 0, 1, 1], [], []>} : vector<32x4xbf16>, vector<4x64xbf16>, vector<32x64xf32> -> vector<32x64xf32>
    %cst_10 = arith.constant dense<0.000000e+00> : vector<32x64xf32>
    %11 = vector.multi_reduction <add>, %7, %cst_10 [0] : vector<4x32x64xf32> to vector<32x64xf32>
    %12 = arith.mulf %7, %7 : vector<4x32x64xf32>
    %cst_11 = arith.constant dense<0.000000e+00> : vector<32x64xf32>
    %13 = vector.multi_reduction <add>, %12, %cst_11 [0] : vector<4x32x64xf32> to vector<32x64xf32>
    %cst_12 = arith.constant 4.000000e+00 : f32
    %14 = vector.broadcast %cst_12 : f32 to vector<32x64xf32>
    %15 = arith.mulf %14, %10 : vector<32x64xf32>
    %16 = arith.addf %11, %15 : vector<32x64xf32>
    %cst_13 = arith.constant 2.000000e+00 : f32
    %17 = vector.broadcast %cst_13 : f32 to vector<32x64xf32>
    %18 = arith.mulf %17, %10 : vector<32x64xf32>
    %19 = arith.mulf %18, %11 : vector<32x64xf32>
    %20 = arith.addf %13, %19 : vector<32x64xf32>
    %21 = arith.mulf %10, %10 : vector<32x64xf32>
    %cst_14 = arith.constant 4.000000e+00 : f32
    %22 = vector.broadcast %cst_14 : f32 to vector<32x64xf32>
    %23 = arith.mulf %22, %21 : vector<32x64xf32>
    %24 = arith.addf %20, %23 : vector<32x64xf32>
    %c0_15 = arith.constant 0 : index
    %c0_16 = arith.constant 0 : index
    %c0_17 = arith.constant 0 : index
    %25 = vector.load %arg6[%c0_15, %c0_16, %c0_17] : memref<1x8x64xf32, #tpu.memory_space<vmem>>, vector<1x8x64xf32>
    %26 = vector.shape_cast %16 : vector<32x64xf32> to vector<4x8x64xf32>
    %cst_18 = arith.constant dense<0.000000e+00> : vector<8x64xf32>
    %27 = vector.multi_reduction <add>, %26, %cst_18 [0] : vector<4x8x64xf32> to vector<8x64xf32>
    %28 = vector.shape_cast %27 : vector<8x64xf32> to vector<1x8x64xf32>
    %29 = arith.addf %25, %28 : vector<1x8x64xf32>
    %c0_19 = arith.constant 0 : index
    %c0_20 = arith.constant 0 : index
    %c0_21 = arith.constant 0 : index
    %30 = vector.load %arg6[%c0_19, %c0_20, %c0_21] : memref<1x8x64xf32, #tpu.memory_space<vmem>>, vector<1x8x64xf32>
    tpu.vector_store %arg6[%c0_19, %c0_20, %c0_21], %29 {strides = array<i32>} : memref<1x8x64xf32, #tpu.memory_space<vmem>>, vector<1x8x64xf32>,
    %c0_22 = arith.constant 0 : index
    %c0_23 = arith.constant 0 : index
    %c0_24 = arith.constant 0 : index
    %31 = vector.load %arg7[%c0_22, %c0_23, %c0_24] : memref<1x8x64xf32, #tpu.memory_space<vmem>>, vector<1x8x64xf32>
    %32 = vector.shape_cast %24 : vector<32x64xf32> to vector<4x8x64xf32>
    %cst_25 = arith.constant dense<0.000000e+00> : vector<8x64xf32>
    %33 = vector.multi_reduction <add>, %32, %cst_25 [0] : vector<4x8x64xf32> to vector<8x64xf32>
    %34 = vector.shape_cast %33 : vector<8x64xf32> to vector<1x8x64xf32>
    %35 = arith.addf %31, %34 : vector<1x8x64xf32>
    %c0_26 = arith.constant 0 : index
    %c0_27 = arith.constant 0 : index
    %c0_28 = arith.constant 0 : index
    %36 = vector.load %arg7[%c0_26, %c0_27, %c0_28] : memref<1x8x64xf32, #tpu.memory_space<vmem>>, vector<1x8x64xf32>
    tpu.vector_store %arg7[%c0_26, %c0_27, %c0_28], %35 {strides = array<i32>} : memref<1x8x64xf32, #tpu.memory_space<vmem>>, vector<1x8x64xf32>,
    return
  }
  func.func @transform_0(%arg0: i32, %arg1: i32) -> (i32, i32, i32) {
    %c1_i32 = arith.constant 1 : i32
    %0 = arith.muli %arg0, %c1_i32 : i32
    %1 = arith.addi %0, %arg1 : i32
    %c0_i32 = arith.constant 0 : i32
    %c0_i32_0 = arith.constant 0 : i32
    %c0_i32_1 = arith.constant 0 : i32
    return %c0_i32, %1, %c0_i32_0 : i32, i32, i32
  }
  func.func @transform_1(%arg0: i32, %arg1: i32) -> (i32, i32) {
    %c1_i32 = arith.constant 1 : i32
    %0 = arith.muli %arg0, %c1_i32 : i32
    %1 = arith.addi %0, %arg1 : i32
    %c0_i32 = arith.constant 0 : i32
    %c0_i32_0 = arith.constant 0 : i32
    return %1, %c0_i32 : i32, i32
  }
  func.func @transform_2(%arg0: i32, %arg1: i32) -> (i32, i32) {
    %c0_i32 = arith.constant 0 : i32
    %c0_i32_0 = arith.constant 0 : i32
    %c0_i32_1 = arith.constant 0 : i32
    return %c0_i32, %c0_i32_0 : i32, i32
  }
  func.func @transform_3(%arg0: i32, %arg1: i32) -> (i32, i32) {
    %c0_i32 = arith.constant 0 : i32
    %c0_i32_0 = arith.constant 0 : i32
    %c0_i32_1 = arith.constant 0 : i32
    return %c0_i32, %c0_i32_0 : i32, i32
  }
  func.func @transform_4(%arg0: i32, %arg1: i32) -> (i32, i32, i32) {
    %c0_i32 = arith.constant 0 : i32
    %c0_i32_0 = arith.constant 0 : i32
    %c0_i32_1 = arith.constant 0 : i32
    return %arg0, %c0_i32, %c0_i32_0 : i32, i32, i32
  }
  func.func @transform_5(%arg0: i32, %arg1: i32) -> (i32, i32, i32) {
    %c0_i32 = arith.constant 0 : i32
    %c0_i32_0 = arith.constant 0 : i32
    %c0_i32_1 = arith.constant 0 : i32
    return %arg0, %c0_i32, %c0_i32_0 : i32, i32, i32
  }
}

module attributes {stable_mosaic.version = 11 : i64} {
  func.func @_edge_apply_kernel(%arg0: i32, %arg1: memref<4x32x4xbf16, #tpu.memory_space<vmem>>, %arg2: memref<32x4xbf16, #tpu.memory_space<vmem>>, %arg3: memref<4x64xbf16, #tpu.memory_space<vmem>>, %arg4: memref<4x64xbf16, #tpu.memory_space<vmem>>, %arg5: memref<1x64xf32, #tpu.memory_space<vmem>>, %arg6: memref<1x64xf32, #tpu.memory_space<vmem>>, %arg7: memref<32x64xbf16, #tpu.memory_space<vmem>>) attributes {dimension_semantics = [#tpu.dimension_semantics<parallel>], iteration_bounds = array<i64: 1>, scalar_prefetch = 0 : i64, scratch_operands = 0 : i64, tpu.core_type = #tpu.core_type<tc>, window_params = [{transform_indices = @transform_0, window_bounds = array<i64: 4, 32, 4>}, {transform_indices = @transform_1, window_bounds = array<i64: 32, 4>}, {pipeline_mode = #tpu.pipeline_mode<synchronous>, transform_indices = @transform_2, window_bounds = array<i64: 4, 64>}, {pipeline_mode = #tpu.pipeline_mode<synchronous>, transform_indices = @transform_3, window_bounds = array<i64: 4, 64>}, {pipeline_mode = #tpu.pipeline_mode<synchronous>, transform_indices = @transform_4, window_bounds = array<i64: 1, 64>}, {pipeline_mode = #tpu.pipeline_mode<synchronous>, transform_indices = @transform_5, window_bounds = array<i64: 1, 64>}, {transform_indices = @transform_6, window_bounds = array<i64: 32, 64>}]} {
    %c0 = arith.constant 0 : index
    %c0_0 = arith.constant 0 : index
    %c0_1 = arith.constant 0 : index
    %0 = vector.load %arg1[%c0, %c0_0, %c0_1] : memref<4x32x4xbf16, #tpu.memory_space<vmem>>, vector<4x32x4xbf16>
    %1 = vector.shape_cast %0 : vector<4x32x4xbf16> to vector<128x4xbf16>
    %c0_2 = arith.constant 0 : index
    %c0_3 = arith.constant 0 : index
    %2 = vector.load %arg3[%c0_2, %c0_3] : memref<4x64xbf16, #tpu.memory_space<vmem>>, vector<4x64xbf16>
    %cst = arith.constant dense<0.000000e+00> : vector<128x64xf32>
    %3 = tpu.matmul %1, %2, %cst {dimension_numbers = #tpu.dot_dimension_numbers<[1], [0], [0], [1], [0, 0, 1, 1], [], []>} : vector<128x4xbf16>, vector<4x64xbf16>, vector<128x64xf32> -> vector<128x64xf32>
    %4 = vector.shape_cast %3 : vector<128x64xf32> to vector<4x32x64xf32>
    %c0_4 = arith.constant 0 : index
    %c0_5 = arith.constant 0 : index
    %5 = vector.load %arg2[%c0_4, %c0_5] : memref<32x4xbf16, #tpu.memory_space<vmem>>, vector<32x4xbf16>
    %c0_6 = arith.constant 0 : index
    %c0_7 = arith.constant 0 : index
    %6 = vector.load %arg4[%c0_6, %c0_7] : memref<4x64xbf16, #tpu.memory_space<vmem>>, vector<4x64xbf16>
    %cst_8 = arith.constant dense<0.000000e+00> : vector<32x64xf32>
    %7 = tpu.matmul %5, %6, %cst_8 {dimension_numbers = #tpu.dot_dimension_numbers<[1], [0], [0], [1], [0, 0, 1, 1], [], []>} : vector<32x4xbf16>, vector<4x64xbf16>, vector<32x64xf32> -> vector<32x64xf32>
    %cst_9 = arith.constant dense<0xFF800000> : vector<32x64xf32>
    %8 = vector.multi_reduction <maximumf>, %4, %cst_9 [0] : vector<4x32x64xf32> to vector<32x64xf32>
    %cst_10 = arith.constant dense<0x7F800000> : vector<32x64xf32>
    %9 = vector.multi_reduction <minimumf>, %4, %cst_10 [0] : vector<4x32x64xf32> to vector<32x64xf32>
    %c0_11 = arith.constant 0 : index
    %c0_12 = arith.constant 0 : index
    %10 = vector.load %arg5[%c0_11, %c0_12] : memref<1x64xf32, #tpu.memory_space<vmem>>, vector<1x64xf32>
    %c0_13 = arith.constant 0 : index
    %c0_14 = arith.constant 0 : index
    %11 = vector.load %arg6[%c0_13, %c0_14] : memref<1x64xf32, #tpu.memory_space<vmem>>, vector<1x64xf32>
    %cst_15 = arith.constant 0.000000e+00 : f32
    %12 = vector.broadcast %cst_15 : f32 to vector<1x64xf32>
    %13 = arith.cmpf oge, %10, %12 : vector<1x64xf32>
    %14 = vector.shape_cast %13 : vector<1x64xi1> to vector<1x64xi1>
    %15 = vector.broadcast %14 : vector<1x64xi1> to vector<32x64xi1>
    %16 = arith.select %15, %8, %9 : vector<32x64xi1>, vector<32x64xf32>
    %17 = arith.addf %16, %7 : vector<32x64xf32>
    %18 = vector.broadcast %10 : vector<1x64xf32> to vector<32x64xf32>
    %19 = arith.mulf %17, %18 : vector<32x64xf32>
    %20 = vector.broadcast %11 : vector<1x64xf32> to vector<32x64xf32>
    %21 = arith.addf %19, %20 : vector<32x64xf32>
    %22 = math.tanh %21 : vector<32x64xf32>
    %23 = arith.truncf %22 : vector<32x64xf32> to vector<32x64xbf16>
    %c0_16 = arith.constant 0 : index
    %c0_17 = arith.constant 0 : index
    %24 = vector.load %arg7[%c0_16, %c0_17] : memref<32x64xbf16, #tpu.memory_space<vmem>>, vector<32x64xbf16>
    tpu.vector_store %arg7[%c0_16, %c0_17], %23 {strides = array<i32>} : memref<32x64xbf16, #tpu.memory_space<vmem>>, vector<32x64xbf16>,
    return
  }
  func.func @transform_0(%arg0: i32) -> (i32, i32, i32) {
    %c0_i32 = arith.constant 0 : i32
    %c0_i32_0 = arith.constant 0 : i32
    %c0_i32_1 = arith.constant 0 : i32
    return %c0_i32, %arg0, %c0_i32_0 : i32, i32, i32
  }
  func.func @transform_1(%arg0: i32) -> (i32, i32) {
    %c0_i32 = arith.constant 0 : i32
    %c0_i32_0 = arith.constant 0 : i32
    return %arg0, %c0_i32 : i32, i32
  }
  func.func @transform_2(%arg0: i32) -> (i32, i32) {
    %c0_i32 = arith.constant 0 : i32
    %c0_i32_0 = arith.constant 0 : i32
    %c0_i32_1 = arith.constant 0 : i32
    return %c0_i32, %c0_i32_0 : i32, i32
  }
  func.func @transform_3(%arg0: i32) -> (i32, i32) {
    %c0_i32 = arith.constant 0 : i32
    %c0_i32_0 = arith.constant 0 : i32
    %c0_i32_1 = arith.constant 0 : i32
    return %c0_i32, %c0_i32_0 : i32, i32
  }
  func.func @transform_4(%arg0: i32) -> (i32, i32) {
    %c0_i32 = arith.constant 0 : i32
    %c0_i32_0 = arith.constant 0 : i32
    %c0_i32_1 = arith.constant 0 : i32
    return %c0_i32, %c0_i32_0 : i32, i32
  }
  func.func @transform_5(%arg0: i32) -> (i32, i32) {
    %c0_i32 = arith.constant 0 : i32
    %c0_i32_0 = arith.constant 0 : i32
    %c0_i32_1 = arith.constant 0 : i32
    return %c0_i32, %c0_i32_0 : i32, i32
  }
  func.func @transform_6(%arg0: i32) -> (i32, i32) {
    %c0_i32 = arith.constant 0 : i32
    %c0_i32_0 = arith.constant 0 : i32
    return %arg0, %c0_i32 : i32, i32
  }
}

module attributes {stable_mosaic.version = 11 : i64} {
  func.func @_edge_stats_kernel(%arg0: i32, %arg1: i32, %arg2: memref<4x32x64xbf16, #tpu.memory_space<vmem>>, %arg3: memref<32x64xbf16, #tpu.memory_space<vmem>>, %arg4: memref<64x64xbf16, #tpu.memory_space<vmem>>, %arg5: memref<64x64xbf16, #tpu.memory_space<vmem>>, %arg6: memref<1x8x64xf32, #tpu.memory_space<vmem>>, %arg7: memref<1x8x64xf32, #tpu.memory_space<vmem>>) attributes {dimension_semantics = [#tpu.dimension_semantics<parallel>, #tpu.dimension_semantics<arbitrary>], iteration_bounds = array<i64: 1, 1>, scalar_prefetch = 0 : i64, scratch_operands = 0 : i64, tpu.core_type = #tpu.core_type<tc>, window_params = [{transform_indices = @transform_0, window_bounds = array<i64: 4, 32, 64>}, {transform_indices = @transform_1, window_bounds = array<i64: 32, 64>}, {pipeline_mode = #tpu.pipeline_mode<synchronous>, transform_indices = @transform_2, window_bounds = array<i64: 64, 64>}, {pipeline_mode = #tpu.pipeline_mode<synchronous>, transform_indices = @transform_3, window_bounds = array<i64: 64, 64>}, {transform_indices = @transform_4, window_bounds = array<i64: 1, 8, 64>}, {transform_indices = @transform_5, window_bounds = array<i64: 1, 8, 64>}]} {
    %c0_i32 = arith.constant 0 : i32
    %0 = arith.cmpi eq, %arg1, %c0_i32 : i32
    %1 = arith.extui %0 : i1 to i32
    %c0_i32_0 = arith.constant 0 : i32
    %2 = arith.cmpi ne, %1, %c0_i32_0 : i32
    scf.if %2 {
      %cst_29 = arith.constant 0.000000e+00 : f32
      %37 = vector.broadcast %cst_29 : f32 to vector<1x8x64xf32>
      %c0_30 = arith.constant 0 : index
      %c0_31 = arith.constant 0 : index
      %c0_32 = arith.constant 0 : index
      %38 = vector.load %arg6[%c0_30, %c0_31, %c0_32] : memref<1x8x64xf32, #tpu.memory_space<vmem>>, vector<1x8x64xf32>
      tpu.vector_store %arg6[%c0_30, %c0_31, %c0_32], %37 {strides = array<i32>} : memref<1x8x64xf32, #tpu.memory_space<vmem>>, vector<1x8x64xf32>,
      %cst_33 = arith.constant 0.000000e+00 : f32
      %39 = vector.broadcast %cst_33 : f32 to vector<1x8x64xf32>
      %c0_34 = arith.constant 0 : index
      %c0_35 = arith.constant 0 : index
      %c0_36 = arith.constant 0 : index
      %40 = vector.load %arg7[%c0_34, %c0_35, %c0_36] : memref<1x8x64xf32, #tpu.memory_space<vmem>>, vector<1x8x64xf32>
      tpu.vector_store %arg7[%c0_34, %c0_35, %c0_36], %39 {strides = array<i32>} : memref<1x8x64xf32, #tpu.memory_space<vmem>>, vector<1x8x64xf32>,
    } else {
    }
    %c0 = arith.constant 0 : index
    %c0_1 = arith.constant 0 : index
    %c0_2 = arith.constant 0 : index
    %3 = vector.load %arg2[%c0, %c0_1, %c0_2] : memref<4x32x64xbf16, #tpu.memory_space<vmem>>, vector<4x32x64xbf16>
    %4 = vector.shape_cast %3 : vector<4x32x64xbf16> to vector<128x64xbf16>
    %c0_3 = arith.constant 0 : index
    %c0_4 = arith.constant 0 : index
    %5 = vector.load %arg4[%c0_3, %c0_4] : memref<64x64xbf16, #tpu.memory_space<vmem>>, vector<64x64xbf16>
    %cst = arith.constant dense<0.000000e+00> : vector<128x64xf32>
    %6 = tpu.matmul %4, %5, %cst {dimension_numbers = #tpu.dot_dimension_numbers<[1], [0], [0], [1], [0, 0, 1, 1], [], []>} : vector<128x64xbf16>, vector<64x64xbf16>, vector<128x64xf32> -> vector<128x64xf32>
    %7 = vector.shape_cast %6 : vector<128x64xf32> to vector<4x32x64xf32>
    %c0_5 = arith.constant 0 : index
    %c0_6 = arith.constant 0 : index
    %8 = vector.load %arg3[%c0_5, %c0_6] : memref<32x64xbf16, #tpu.memory_space<vmem>>, vector<32x64xbf16>
    %c0_7 = arith.constant 0 : index
    %c0_8 = arith.constant 0 : index
    %9 = vector.load %arg5[%c0_7, %c0_8] : memref<64x64xbf16, #tpu.memory_space<vmem>>, vector<64x64xbf16>
    %cst_9 = arith.constant dense<0.000000e+00> : vector<32x64xf32>
    %10 = tpu.matmul %8, %9, %cst_9 {dimension_numbers = #tpu.dot_dimension_numbers<[1], [0], [0], [1], [0, 0, 1, 1], [], []>} : vector<32x64xbf16>, vector<64x64xbf16>, vector<32x64xf32> -> vector<32x64xf32>
    %cst_10 = arith.constant dense<0.000000e+00> : vector<32x64xf32>
    %11 = vector.multi_reduction <add>, %7, %cst_10 [0] : vector<4x32x64xf32> to vector<32x64xf32>
    %12 = arith.mulf %7, %7 : vector<4x32x64xf32>
    %cst_11 = arith.constant dense<0.000000e+00> : vector<32x64xf32>
    %13 = vector.multi_reduction <add>, %12, %cst_11 [0] : vector<4x32x64xf32> to vector<32x64xf32>
    %cst_12 = arith.constant 4.000000e+00 : f32
    %14 = vector.broadcast %cst_12 : f32 to vector<32x64xf32>
    %15 = arith.mulf %14, %10 : vector<32x64xf32>
    %16 = arith.addf %11, %15 : vector<32x64xf32>
    %cst_13 = arith.constant 2.000000e+00 : f32
    %17 = vector.broadcast %cst_13 : f32 to vector<32x64xf32>
    %18 = arith.mulf %17, %10 : vector<32x64xf32>
    %19 = arith.mulf %18, %11 : vector<32x64xf32>
    %20 = arith.addf %13, %19 : vector<32x64xf32>
    %21 = arith.mulf %10, %10 : vector<32x64xf32>
    %cst_14 = arith.constant 4.000000e+00 : f32
    %22 = vector.broadcast %cst_14 : f32 to vector<32x64xf32>
    %23 = arith.mulf %22, %21 : vector<32x64xf32>
    %24 = arith.addf %20, %23 : vector<32x64xf32>
    %c0_15 = arith.constant 0 : index
    %c0_16 = arith.constant 0 : index
    %c0_17 = arith.constant 0 : index
    %25 = vector.load %arg6[%c0_15, %c0_16, %c0_17] : memref<1x8x64xf32, #tpu.memory_space<vmem>>, vector<1x8x64xf32>
    %26 = vector.shape_cast %16 : vector<32x64xf32> to vector<4x8x64xf32>
    %cst_18 = arith.constant dense<0.000000e+00> : vector<8x64xf32>
    %27 = vector.multi_reduction <add>, %26, %cst_18 [0] : vector<4x8x64xf32> to vector<8x64xf32>
    %28 = vector.shape_cast %27 : vector<8x64xf32> to vector<1x8x64xf32>
    %29 = arith.addf %25, %28 : vector<1x8x64xf32>
    %c0_19 = arith.constant 0 : index
    %c0_20 = arith.constant 0 : index
    %c0_21 = arith.constant 0 : index
    %30 = vector.load %arg6[%c0_19, %c0_20, %c0_21] : memref<1x8x64xf32, #tpu.memory_space<vmem>>, vector<1x8x64xf32>
    tpu.vector_store %arg6[%c0_19, %c0_20, %c0_21], %29 {strides = array<i32>} : memref<1x8x64xf32, #tpu.memory_space<vmem>>, vector<1x8x64xf32>,
    %c0_22 = arith.constant 0 : index
    %c0_23 = arith.constant 0 : index
    %c0_24 = arith.constant 0 : index
    %31 = vector.load %arg7[%c0_22, %c0_23, %c0_24] : memref<1x8x64xf32, #tpu.memory_space<vmem>>, vector<1x8x64xf32>
    %32 = vector.shape_cast %24 : vector<32x64xf32> to vector<4x8x64xf32>
    %cst_25 = arith.constant dense<0.000000e+00> : vector<8x64xf32>
    %33 = vector.multi_reduction <add>, %32, %cst_25 [0] : vector<4x8x64xf32> to vector<8x64xf32>
    %34 = vector.shape_cast %33 : vector<8x64xf32> to vector<1x8x64xf32>
    %35 = arith.addf %31, %34 : vector<1x8x64xf32>
    %c0_26 = arith.constant 0 : index
    %c0_27 = arith.constant 0 : index
    %c0_28 = arith.constant 0 : index
    %36 = vector.load %arg7[%c0_26, %c0_27, %c0_28] : memref<1x8x64xf32, #tpu.memory_space<vmem>>, vector<1x8x64xf32>
    tpu.vector_store %arg7[%c0_26, %c0_27, %c0_28], %35 {strides = array<i32>} : memref<1x8x64xf32, #tpu.memory_space<vmem>>, vector<1x8x64xf32>,
    return
  }
  func.func @transform_0(%arg0: i32, %arg1: i32) -> (i32, i32, i32) {
    %c1_i32 = arith.constant 1 : i32
    %0 = arith.muli %arg0, %c1_i32 : i32
    %1 = arith.addi %0, %arg1 : i32
    %c0_i32 = arith.constant 0 : i32
    %c0_i32_0 = arith.constant 0 : i32
    %c0_i32_1 = arith.constant 0 : i32
    return %c0_i32, %1, %c0_i32_0 : i32, i32, i32
  }
  func.func @transform_1(%arg0: i32, %arg1: i32) -> (i32, i32) {
    %c1_i32 = arith.constant 1 : i32
    %0 = arith.muli %arg0, %c1_i32 : i32
    %1 = arith.addi %0, %arg1 : i32
    %c0_i32 = arith.constant 0 : i32
    %c0_i32_0 = arith.constant 0 : i32
    return %1, %c0_i32 : i32, i32
  }
  func.func @transform_2(%arg0: i32, %arg1: i32) -> (i32, i32) {
    %c0_i32 = arith.constant 0 : i32
    %c0_i32_0 = arith.constant 0 : i32
    %c0_i32_1 = arith.constant 0 : i32
    return %c0_i32, %c0_i32_0 : i32, i32
  }
  func.func @transform_3(%arg0: i32, %arg1: i32) -> (i32, i32) {
    %c0_i32 = arith.constant 0 : i32
    %c0_i32_0 = arith.constant 0 : i32
    %c0_i32_1 = arith.constant 0 : i32
    return %c0_i32, %c0_i32_0 : i32, i32
  }
  func.func @transform_4(%arg0: i32, %arg1: i32) -> (i32, i32, i32) {
    %c0_i32 = arith.constant 0 : i32
    %c0_i32_0 = arith.constant 0 : i32
    %c0_i32_1 = arith.constant 0 : i32
    return %arg0, %c0_i32, %c0_i32_0 : i32, i32, i32
  }
  func.func @transform_5(%arg0: i32, %arg1: i32) -> (i32, i32, i32) {
    %c0_i32 = arith.constant 0 : i32
    %c0_i32_0 = arith.constant 0 : i32
    %c0_i32_1 = arith.constant 0 : i32
    return %arg0, %c0_i32, %c0_i32_0 : i32, i32, i32
  }
}

module attributes {stable_mosaic.version = 11 : i64} {
  func.func @_edge_apply_kernel(%arg0: i32, %arg1: memref<4x32x64xbf16, #tpu.memory_space<vmem>>, %arg2: memref<32x64xbf16, #tpu.memory_space<vmem>>, %arg3: memref<64x64xbf16, #tpu.memory_space<vmem>>, %arg4: memref<64x64xbf16, #tpu.memory_space<vmem>>, %arg5: memref<1x64xf32, #tpu.memory_space<vmem>>, %arg6: memref<1x64xf32, #tpu.memory_space<vmem>>, %arg7: memref<32x64xbf16, #tpu.memory_space<vmem>>) attributes {dimension_semantics = [#tpu.dimension_semantics<parallel>], iteration_bounds = array<i64: 1>, scalar_prefetch = 0 : i64, scratch_operands = 0 : i64, tpu.core_type = #tpu.core_type<tc>, window_params = [{transform_indices = @transform_0, window_bounds = array<i64: 4, 32, 64>}, {transform_indices = @transform_1, window_bounds = array<i64: 32, 64>}, {pipeline_mode = #tpu.pipeline_mode<synchronous>, transform_indices = @transform_2, window_bounds = array<i64: 64, 64>}, {pipeline_mode = #tpu.pipeline_mode<synchronous>, transform_indices = @transform_3, window_bounds = array<i64: 64, 64>}, {pipeline_mode = #tpu.pipeline_mode<synchronous>, transform_indices = @transform_4, window_bounds = array<i64: 1, 64>}, {pipeline_mode = #tpu.pipeline_mode<synchronous>, transform_indices = @transform_5, window_bounds = array<i64: 1, 64>}, {transform_indices = @transform_6, window_bounds = array<i64: 32, 64>}]} {
    %c0 = arith.constant 0 : index
    %c0_0 = arith.constant 0 : index
    %c0_1 = arith.constant 0 : index
    %0 = vector.load %arg1[%c0, %c0_0, %c0_1] : memref<4x32x64xbf16, #tpu.memory_space<vmem>>, vector<4x32x64xbf16>
    %1 = vector.shape_cast %0 : vector<4x32x64xbf16> to vector<128x64xbf16>
    %c0_2 = arith.constant 0 : index
    %c0_3 = arith.constant 0 : index
    %2 = vector.load %arg3[%c0_2, %c0_3] : memref<64x64xbf16, #tpu.memory_space<vmem>>, vector<64x64xbf16>
    %cst = arith.constant dense<0.000000e+00> : vector<128x64xf32>
    %3 = tpu.matmul %1, %2, %cst {dimension_numbers = #tpu.dot_dimension_numbers<[1], [0], [0], [1], [0, 0, 1, 1], [], []>} : vector<128x64xbf16>, vector<64x64xbf16>, vector<128x64xf32> -> vector<128x64xf32>
    %4 = vector.shape_cast %3 : vector<128x64xf32> to vector<4x32x64xf32>
    %c0_4 = arith.constant 0 : index
    %c0_5 = arith.constant 0 : index
    %5 = vector.load %arg2[%c0_4, %c0_5] : memref<32x64xbf16, #tpu.memory_space<vmem>>, vector<32x64xbf16>
    %c0_6 = arith.constant 0 : index
    %c0_7 = arith.constant 0 : index
    %6 = vector.load %arg4[%c0_6, %c0_7] : memref<64x64xbf16, #tpu.memory_space<vmem>>, vector<64x64xbf16>
    %cst_8 = arith.constant dense<0.000000e+00> : vector<32x64xf32>
    %7 = tpu.matmul %5, %6, %cst_8 {dimension_numbers = #tpu.dot_dimension_numbers<[1], [0], [0], [1], [0, 0, 1, 1], [], []>} : vector<32x64xbf16>, vector<64x64xbf16>, vector<32x64xf32> -> vector<32x64xf32>
    %cst_9 = arith.constant dense<0xFF800000> : vector<32x64xf32>
    %8 = vector.multi_reduction <maximumf>, %4, %cst_9 [0] : vector<4x32x64xf32> to vector<32x64xf32>
    %cst_10 = arith.constant dense<0x7F800000> : vector<32x64xf32>
    %9 = vector.multi_reduction <minimumf>, %4, %cst_10 [0] : vector<4x32x64xf32> to vector<32x64xf32>
    %c0_11 = arith.constant 0 : index
    %c0_12 = arith.constant 0 : index
    %10 = vector.load %arg5[%c0_11, %c0_12] : memref<1x64xf32, #tpu.memory_space<vmem>>, vector<1x64xf32>
    %c0_13 = arith.constant 0 : index
    %c0_14 = arith.constant 0 : index
    %11 = vector.load %arg6[%c0_13, %c0_14] : memref<1x64xf32, #tpu.memory_space<vmem>>, vector<1x64xf32>
    %cst_15 = arith.constant 0.000000e+00 : f32
    %12 = vector.broadcast %cst_15 : f32 to vector<1x64xf32>
    %13 = arith.cmpf oge, %10, %12 : vector<1x64xf32>
    %14 = vector.shape_cast %13 : vector<1x64xi1> to vector<1x64xi1>
    %15 = vector.broadcast %14 : vector<1x64xi1> to vector<32x64xi1>
    %16 = arith.select %15, %8, %9 : vector<32x64xi1>, vector<32x64xf32>
    %17 = arith.addf %16, %7 : vector<32x64xf32>
    %18 = vector.broadcast %10 : vector<1x64xf32> to vector<32x64xf32>
    %19 = arith.mulf %17, %18 : vector<32x64xf32>
    %20 = vector.broadcast %11 : vector<1x64xf32> to vector<32x64xf32>
    %21 = arith.addf %19, %20 : vector<32x64xf32>
    %22 = math.tanh %21 : vector<32x64xf32>
    %23 = arith.truncf %22 : vector<32x64xf32> to vector<32x64xbf16>
    %c0_16 = arith.constant 0 : index
    %c0_17 = arith.constant 0 : index
    %24 = vector.load %arg7[%c0_16, %c0_17] : memref<32x64xbf16, #tpu.memory_space<vmem>>, vector<32x64xbf16>
    tpu.vector_store %arg7[%c0_16, %c0_17], %23 {strides = array<i32>} : memref<32x64xbf16, #tpu.memory_space<vmem>>, vector<32x64xbf16>,
    return
  }
  func.func @transform_0(%arg0: i32) -> (i32, i32, i32) {
    %c0_i32 = arith.constant 0 : i32
    %c0_i32_0 = arith.constant 0 : i32
    %c0_i32_1 = arith.constant 0 : i32
    return %c0_i32, %arg0, %c0_i32_0 : i32, i32, i32
  }
  func.func @transform_1(%arg0: i32) -> (i32, i32) {
    %c0_i32 = arith.constant 0 : i32
    %c0_i32_0 = arith.constant 0 : i32
    return %arg0, %c0_i32 : i32, i32
  }
  func.func @transform_2(%arg0: i32) -> (i32, i32) {
    %c0_i32 = arith.constant 0 : i32
    %c0_i32_0 = arith.constant 0 : i32
    %c0_i32_1 = arith.constant 0 : i32
    return %c0_i32, %c0_i32_0 : i32, i32
  }
  func.func @transform_3(%arg0: i32) -> (i32, i32) {
    %c0_i32 = arith.constant 0 : i32
    %c0_i32_0 = arith.constant 0 : i32
    %c0_i32_1 = arith.constant 0 : i32
    return %c0_i32, %c0_i32_0 : i32, i32
  }
  func.func @transform_4(%arg0: i32) -> (i32, i32) {
    %c0_i32 = arith.constant 0 : i32
    %c0_i32_0 = arith.constant 0 : i32
    %c0_i32_1 = arith.constant 0 : i32
    return %c0_i32, %c0_i32_0 : i32, i32
  }
  func.func @transform_5(%arg0: i32) -> (i32, i32) {
    %c0_i32 = arith.constant 0 : i32
    %c0_i32_0 = arith.constant 0 : i32
    %c0_i32_1 = arith.constant 0 : i32
    return %c0_i32, %c0_i32_0 : i32, i32
  }
  func.func @transform_6(%arg0: i32) -> (i32, i32) {
    %c0_i32 = arith.constant 0 : i32
    %c0_i32_0 = arith.constant 0 : i32
    return %arg0, %c0_i32 : i32, i32
  }
}

module attributes {stable_mosaic.version = 11 : i64} {
  func.func @_edge_stats_kernel(%arg0: i32, %arg1: i32, %arg2: memref<4x32x64xbf16, #tpu.memory_space<vmem>>, %arg3: memref<32x64xbf16, #tpu.memory_space<vmem>>, %arg4: memref<64x128xbf16, #tpu.memory_space<vmem>>, %arg5: memref<64x128xbf16, #tpu.memory_space<vmem>>, %arg6: memref<1x8x128xf32, #tpu.memory_space<vmem>>, %arg7: memref<1x8x128xf32, #tpu.memory_space<vmem>>) attributes {dimension_semantics = [#tpu.dimension_semantics<parallel>, #tpu.dimension_semantics<arbitrary>], iteration_bounds = array<i64: 1, 1>, scalar_prefetch = 0 : i64, scratch_operands = 0 : i64, tpu.core_type = #tpu.core_type<tc>, window_params = [{transform_indices = @transform_0, window_bounds = array<i64: 4, 32, 64>}, {transform_indices = @transform_1, window_bounds = array<i64: 32, 64>}, {pipeline_mode = #tpu.pipeline_mode<synchronous>, transform_indices = @transform_2, window_bounds = array<i64: 64, 128>}, {pipeline_mode = #tpu.pipeline_mode<synchronous>, transform_indices = @transform_3, window_bounds = array<i64: 64, 128>}, {transform_indices = @transform_4, window_bounds = array<i64: 1, 8, 128>}, {transform_indices = @transform_5, window_bounds = array<i64: 1, 8, 128>}]} {
    %c0_i32 = arith.constant 0 : i32
    %0 = arith.cmpi eq, %arg1, %c0_i32 : i32
    %1 = arith.extui %0 : i1 to i32
    %c0_i32_0 = arith.constant 0 : i32
    %2 = arith.cmpi ne, %1, %c0_i32_0 : i32
    scf.if %2 {
      %cst_29 = arith.constant 0.000000e+00 : f32
      %37 = vector.broadcast %cst_29 : f32 to vector<1x8x128xf32>
      %c0_30 = arith.constant 0 : index
      %c0_31 = arith.constant 0 : index
      %c0_32 = arith.constant 0 : index
      %38 = vector.load %arg6[%c0_30, %c0_31, %c0_32] : memref<1x8x128xf32, #tpu.memory_space<vmem>>, vector<1x8x128xf32>
      tpu.vector_store %arg6[%c0_30, %c0_31, %c0_32], %37 {strides = array<i32>} : memref<1x8x128xf32, #tpu.memory_space<vmem>>, vector<1x8x128xf32>,
      %cst_33 = arith.constant 0.000000e+00 : f32
      %39 = vector.broadcast %cst_33 : f32 to vector<1x8x128xf32>
      %c0_34 = arith.constant 0 : index
      %c0_35 = arith.constant 0 : index
      %c0_36 = arith.constant 0 : index
      %40 = vector.load %arg7[%c0_34, %c0_35, %c0_36] : memref<1x8x128xf32, #tpu.memory_space<vmem>>, vector<1x8x128xf32>
      tpu.vector_store %arg7[%c0_34, %c0_35, %c0_36], %39 {strides = array<i32>} : memref<1x8x128xf32, #tpu.memory_space<vmem>>, vector<1x8x128xf32>,
    } else {
    }
    %c0 = arith.constant 0 : index
    %c0_1 = arith.constant 0 : index
    %c0_2 = arith.constant 0 : index
    %3 = vector.load %arg2[%c0, %c0_1, %c0_2] : memref<4x32x64xbf16, #tpu.memory_space<vmem>>, vector<4x32x64xbf16>
    %4 = vector.shape_cast %3 : vector<4x32x64xbf16> to vector<128x64xbf16>
    %c0_3 = arith.constant 0 : index
    %c0_4 = arith.constant 0 : index
    %5 = vector.load %arg4[%c0_3, %c0_4] : memref<64x128xbf16, #tpu.memory_space<vmem>>, vector<64x128xbf16>
    %cst = arith.constant dense<0.000000e+00> : vector<128x128xf32>
    %6 = tpu.matmul %4, %5, %cst {dimension_numbers = #tpu.dot_dimension_numbers<[1], [0], [0], [1], [0, 0, 1, 1], [], []>} : vector<128x64xbf16>, vector<64x128xbf16>, vector<128x128xf32> -> vector<128x128xf32>
    %7 = vector.shape_cast %6 : vector<128x128xf32> to vector<4x32x128xf32>
    %c0_5 = arith.constant 0 : index
    %c0_6 = arith.constant 0 : index
    %8 = vector.load %arg3[%c0_5, %c0_6] : memref<32x64xbf16, #tpu.memory_space<vmem>>, vector<32x64xbf16>
    %c0_7 = arith.constant 0 : index
    %c0_8 = arith.constant 0 : index
    %9 = vector.load %arg5[%c0_7, %c0_8] : memref<64x128xbf16, #tpu.memory_space<vmem>>, vector<64x128xbf16>
    %cst_9 = arith.constant dense<0.000000e+00> : vector<32x128xf32>
    %10 = tpu.matmul %8, %9, %cst_9 {dimension_numbers = #tpu.dot_dimension_numbers<[1], [0], [0], [1], [0, 0, 1, 1], [], []>} : vector<32x64xbf16>, vector<64x128xbf16>, vector<32x128xf32> -> vector<32x128xf32>
    %cst_10 = arith.constant dense<0.000000e+00> : vector<32x128xf32>
    %11 = vector.multi_reduction <add>, %7, %cst_10 [0] : vector<4x32x128xf32> to vector<32x128xf32>
    %12 = arith.mulf %7, %7 : vector<4x32x128xf32>
    %cst_11 = arith.constant dense<0.000000e+00> : vector<32x128xf32>
    %13 = vector.multi_reduction <add>, %12, %cst_11 [0] : vector<4x32x128xf32> to vector<32x128xf32>
    %cst_12 = arith.constant 4.000000e+00 : f32
    %14 = vector.broadcast %cst_12 : f32 to vector<32x128xf32>
    %15 = arith.mulf %14, %10 : vector<32x128xf32>
    %16 = arith.addf %11, %15 : vector<32x128xf32>
    %cst_13 = arith.constant 2.000000e+00 : f32
    %17 = vector.broadcast %cst_13 : f32 to vector<32x128xf32>
    %18 = arith.mulf %17, %10 : vector<32x128xf32>
    %19 = arith.mulf %18, %11 : vector<32x128xf32>
    %20 = arith.addf %13, %19 : vector<32x128xf32>
    %21 = arith.mulf %10, %10 : vector<32x128xf32>
    %cst_14 = arith.constant 4.000000e+00 : f32
    %22 = vector.broadcast %cst_14 : f32 to vector<32x128xf32>
    %23 = arith.mulf %22, %21 : vector<32x128xf32>
    %24 = arith.addf %20, %23 : vector<32x128xf32>
    %c0_15 = arith.constant 0 : index
    %c0_16 = arith.constant 0 : index
    %c0_17 = arith.constant 0 : index
    %25 = vector.load %arg6[%c0_15, %c0_16, %c0_17] : memref<1x8x128xf32, #tpu.memory_space<vmem>>, vector<1x8x128xf32>
    %26 = vector.shape_cast %16 : vector<32x128xf32> to vector<4x8x128xf32>
    %cst_18 = arith.constant dense<0.000000e+00> : vector<8x128xf32>
    %27 = vector.multi_reduction <add>, %26, %cst_18 [0] : vector<4x8x128xf32> to vector<8x128xf32>
    %28 = vector.shape_cast %27 : vector<8x128xf32> to vector<1x8x128xf32>
    %29 = arith.addf %25, %28 : vector<1x8x128xf32>
    %c0_19 = arith.constant 0 : index
    %c0_20 = arith.constant 0 : index
    %c0_21 = arith.constant 0 : index
    %30 = vector.load %arg6[%c0_19, %c0_20, %c0_21] : memref<1x8x128xf32, #tpu.memory_space<vmem>>, vector<1x8x128xf32>
    tpu.vector_store %arg6[%c0_19, %c0_20, %c0_21], %29 {strides = array<i32>} : memref<1x8x128xf32, #tpu.memory_space<vmem>>, vector<1x8x128xf32>,
    %c0_22 = arith.constant 0 : index
    %c0_23 = arith.constant 0 : index
    %c0_24 = arith.constant 0 : index
    %31 = vector.load %arg7[%c0_22, %c0_23, %c0_24] : memref<1x8x128xf32, #tpu.memory_space<vmem>>, vector<1x8x128xf32>
    %32 = vector.shape_cast %24 : vector<32x128xf32> to vector<4x8x128xf32>
    %cst_25 = arith.constant dense<0.000000e+00> : vector<8x128xf32>
    %33 = vector.multi_reduction <add>, %32, %cst_25 [0] : vector<4x8x128xf32> to vector<8x128xf32>
    %34 = vector.shape_cast %33 : vector<8x128xf32> to vector<1x8x128xf32>
    %35 = arith.addf %31, %34 : vector<1x8x128xf32>
    %c0_26 = arith.constant 0 : index
    %c0_27 = arith.constant 0 : index
    %c0_28 = arith.constant 0 : index
    %36 = vector.load %arg7[%c0_26, %c0_27, %c0_28] : memref<1x8x128xf32, #tpu.memory_space<vmem>>, vector<1x8x128xf32>
    tpu.vector_store %arg7[%c0_26, %c0_27, %c0_28], %35 {strides = array<i32>} : memref<1x8x128xf32, #tpu.memory_space<vmem>>, vector<1x8x128xf32>,
    return
  }
  func.func @transform_0(%arg0: i32, %arg1: i32) -> (i32, i32, i32) {
    %c1_i32 = arith.constant 1 : i32
    %0 = arith.muli %arg0, %c1_i32 : i32
    %1 = arith.addi %0, %arg1 : i32
    %c0_i32 = arith.constant 0 : i32
    %c0_i32_0 = arith.constant 0 : i32
    %c0_i32_1 = arith.constant 0 : i32
    return %c0_i32, %1, %c0_i32_0 : i32, i32, i32
  }
  func.func @transform_1(%arg0: i32, %arg1: i32) -> (i32, i32) {
    %c1_i32 = arith.constant 1 : i32
    %0 = arith.muli %arg0, %c1_i32 : i32
    %1 = arith.addi %0, %arg1 : i32
    %c0_i32 = arith.constant 0 : i32
    %c0_i32_0 = arith.constant 0 : i32
    return %1, %c0_i32 : i32, i32
  }
  func.func @transform_2(%arg0: i32, %arg1: i32) -> (i32, i32) {
    %c0_i32 = arith.constant 0 : i32
    %c0_i32_0 = arith.constant 0 : i32
    %c0_i32_1 = arith.constant 0 : i32
    return %c0_i32, %c0_i32_0 : i32, i32
  }
  func.func @transform_3(%arg0: i32, %arg1: i32) -> (i32, i32) {
    %c0_i32 = arith.constant 0 : i32
    %c0_i32_0 = arith.constant 0 : i32
    %c0_i32_1 = arith.constant 0 : i32
    return %c0_i32, %c0_i32_0 : i32, i32
  }
  func.func @transform_4(%arg0: i32, %arg1: i32) -> (i32, i32, i32) {
    %c0_i32 = arith.constant 0 : i32
    %c0_i32_0 = arith.constant 0 : i32
    %c0_i32_1 = arith.constant 0 : i32
    return %arg0, %c0_i32, %c0_i32_0 : i32, i32, i32
  }
  func.func @transform_5(%arg0: i32, %arg1: i32) -> (i32, i32, i32) {
    %c0_i32 = arith.constant 0 : i32
    %c0_i32_0 = arith.constant 0 : i32
    %c0_i32_1 = arith.constant 0 : i32
    return %arg0, %c0_i32, %c0_i32_0 : i32, i32, i32
  }
}

module attributes {stable_mosaic.version = 11 : i64} {
  func.func @_edge_apply_kernel(%arg0: i32, %arg1: memref<4x32x64xbf16, #tpu.memory_space<vmem>>, %arg2: memref<32x64xbf16, #tpu.memory_space<vmem>>, %arg3: memref<64x128xbf16, #tpu.memory_space<vmem>>, %arg4: memref<64x128xbf16, #tpu.memory_space<vmem>>, %arg5: memref<1x128xf32, #tpu.memory_space<vmem>>, %arg6: memref<1x128xf32, #tpu.memory_space<vmem>>, %arg7: memref<32x128xbf16, #tpu.memory_space<vmem>>) attributes {dimension_semantics = [#tpu.dimension_semantics<parallel>], iteration_bounds = array<i64: 1>, scalar_prefetch = 0 : i64, scratch_operands = 0 : i64, tpu.core_type = #tpu.core_type<tc>, window_params = [{transform_indices = @transform_0, window_bounds = array<i64: 4, 32, 64>}, {transform_indices = @transform_1, window_bounds = array<i64: 32, 64>}, {pipeline_mode = #tpu.pipeline_mode<synchronous>, transform_indices = @transform_2, window_bounds = array<i64: 64, 128>}, {pipeline_mode = #tpu.pipeline_mode<synchronous>, transform_indices = @transform_3, window_bounds = array<i64: 64, 128>}, {pipeline_mode = #tpu.pipeline_mode<synchronous>, transform_indices = @transform_4, window_bounds = array<i64: 1, 128>}, {pipeline_mode = #tpu.pipeline_mode<synchronous>, transform_indices = @transform_5, window_bounds = array<i64: 1, 128>}, {transform_indices = @transform_6, window_bounds = array<i64: 32, 128>}]} {
    %c0 = arith.constant 0 : index
    %c0_0 = arith.constant 0 : index
    %c0_1 = arith.constant 0 : index
    %0 = vector.load %arg1[%c0, %c0_0, %c0_1] : memref<4x32x64xbf16, #tpu.memory_space<vmem>>, vector<4x32x64xbf16>
    %1 = vector.shape_cast %0 : vector<4x32x64xbf16> to vector<128x64xbf16>
    %c0_2 = arith.constant 0 : index
    %c0_3 = arith.constant 0 : index
    %2 = vector.load %arg3[%c0_2, %c0_3] : memref<64x128xbf16, #tpu.memory_space<vmem>>, vector<64x128xbf16>
    %cst = arith.constant dense<0.000000e+00> : vector<128x128xf32>
    %3 = tpu.matmul %1, %2, %cst {dimension_numbers = #tpu.dot_dimension_numbers<[1], [0], [0], [1], [0, 0, 1, 1], [], []>} : vector<128x64xbf16>, vector<64x128xbf16>, vector<128x128xf32> -> vector<128x128xf32>
    %4 = vector.shape_cast %3 : vector<128x128xf32> to vector<4x32x128xf32>
    %c0_4 = arith.constant 0 : index
    %c0_5 = arith.constant 0 : index
    %5 = vector.load %arg2[%c0_4, %c0_5] : memref<32x64xbf16, #tpu.memory_space<vmem>>, vector<32x64xbf16>
    %c0_6 = arith.constant 0 : index
    %c0_7 = arith.constant 0 : index
    %6 = vector.load %arg4[%c0_6, %c0_7] : memref<64x128xbf16, #tpu.memory_space<vmem>>, vector<64x128xbf16>
    %cst_8 = arith.constant dense<0.000000e+00> : vector<32x128xf32>
    %7 = tpu.matmul %5, %6, %cst_8 {dimension_numbers = #tpu.dot_dimension_numbers<[1], [0], [0], [1], [0, 0, 1, 1], [], []>} : vector<32x64xbf16>, vector<64x128xbf16>, vector<32x128xf32> -> vector<32x128xf32>
    %cst_9 = arith.constant dense<0xFF800000> : vector<32x128xf32>
    %8 = vector.multi_reduction <maximumf>, %4, %cst_9 [0] : vector<4x32x128xf32> to vector<32x128xf32>
    %cst_10 = arith.constant dense<0x7F800000> : vector<32x128xf32>
    %9 = vector.multi_reduction <minimumf>, %4, %cst_10 [0] : vector<4x32x128xf32> to vector<32x128xf32>
    %c0_11 = arith.constant 0 : index
    %c0_12 = arith.constant 0 : index
    %10 = vector.load %arg5[%c0_11, %c0_12] : memref<1x128xf32, #tpu.memory_space<vmem>>, vector<1x128xf32>
    %c0_13 = arith.constant 0 : index
    %c0_14 = arith.constant 0 : index
    %11 = vector.load %arg6[%c0_13, %c0_14] : memref<1x128xf32, #tpu.memory_space<vmem>>, vector<1x128xf32>
    %cst_15 = arith.constant 0.000000e+00 : f32
    %12 = vector.broadcast %cst_15 : f32 to vector<1x128xf32>
    %13 = arith.cmpf oge, %10, %12 : vector<1x128xf32>
    %14 = vector.shape_cast %13 : vector<1x128xi1> to vector<1x128xi1>
    %15 = vector.broadcast %14 : vector<1x128xi1> to vector<32x128xi1>
    %16 = arith.select %15, %8, %9 : vector<32x128xi1>, vector<32x128xf32>
    %17 = arith.addf %16, %7 : vector<32x128xf32>
    %18 = vector.broadcast %10 : vector<1x128xf32> to vector<32x128xf32>
    %19 = arith.mulf %17, %18 : vector<32x128xf32>
    %20 = vector.broadcast %11 : vector<1x128xf32> to vector<32x128xf32>
    %21 = arith.addf %19, %20 : vector<32x128xf32>
    %22 = math.tanh %21 : vector<32x128xf32>
    %23 = arith.truncf %22 : vector<32x128xf32> to vector<32x128xbf16>
    %c0_16 = arith.constant 0 : index
    %c0_17 = arith.constant 0 : index
    %24 = vector.load %arg7[%c0_16, %c0_17] : memref<32x128xbf16, #tpu.memory_space<vmem>>, vector<32x128xbf16>
    tpu.vector_store %arg7[%c0_16, %c0_17], %23 {strides = array<i32>} : memref<32x128xbf16, #tpu.memory_space<vmem>>, vector<32x128xbf16>,
    return
  }
  func.func @transform_0(%arg0: i32) -> (i32, i32, i32) {
    %c0_i32 = arith.constant 0 : i32
    %c0_i32_0 = arith.constant 0 : i32
    %c0_i32_1 = arith.constant 0 : i32
    return %c0_i32, %arg0, %c0_i32_0 : i32, i32, i32
  }
  func.func @transform_1(%arg0: i32) -> (i32, i32) {
    %c0_i32 = arith.constant 0 : i32
    %c0_i32_0 = arith.constant 0 : i32
    return %arg0, %c0_i32 : i32, i32
  }
  func.func @transform_2(%arg0: i32) -> (i32, i32) {
    %c0_i32 = arith.constant 0 : i32
    %c0_i32_0 = arith.constant 0 : i32
    %c0_i32_1 = arith.constant 0 : i32
    return %c0_i32, %c0_i32_0 : i32, i32
  }
  func.func @transform_3(%arg0: i32) -> (i32, i32) {
    %c0_i32 = arith.constant 0 : i32
    %c0_i32_0 = arith.constant 0 : i32
    %c0_i32_1 = arith.constant 0 : i32
    return %c0_i32, %c0_i32_0 : i32, i32
  }
  func.func @transform_4(%arg0: i32) -> (i32, i32) {
    %c0_i32 = arith.constant 0 : i32
    %c0_i32_0 = arith.constant 0 : i32
    %c0_i32_1 = arith.constant 0 : i32
    return %c0_i32, %c0_i32_0 : i32, i32
  }
  func.func @transform_5(%arg0: i32) -> (i32, i32) {
    %c0_i32 = arith.constant 0 : i32
    %c0_i32_0 = arith.constant 0 : i32
    %c0_i32_1 = arith.constant 0 : i32
    return %c0_i32, %c0_i32_0 : i32, i32
  }
  func.func @transform_6(%arg0: i32) -> (i32, i32) {
    %c0_i32 = arith.constant 0 : i32
    %c0_i32_0 = arith.constant 0 : i32
    return %arg0, %c0_i32 : i32, i32
  }
}

module attributes {stable_mosaic.version = 11 : i64} {
  func.func @_edge_stats_kernel(%arg0: i32, %arg1: i32, %arg2: memref<4x32x128xbf16, #tpu.memory_space<vmem>>, %arg3: memref<32x128xbf16, #tpu.memory_space<vmem>>, %arg4: memref<128x256xbf16, #tpu.memory_space<vmem>>, %arg5: memref<128x256xbf16, #tpu.memory_space<vmem>>, %arg6: memref<1x8x256xf32, #tpu.memory_space<vmem>>, %arg7: memref<1x8x256xf32, #tpu.memory_space<vmem>>) attributes {dimension_semantics = [#tpu.dimension_semantics<parallel>, #tpu.dimension_semantics<arbitrary>], iteration_bounds = array<i64: 1, 1>, scalar_prefetch = 0 : i64, scratch_operands = 0 : i64, tpu.core_type = #tpu.core_type<tc>, window_params = [{transform_indices = @transform_0, window_bounds = array<i64: 4, 32, 128>}, {transform_indices = @transform_1, window_bounds = array<i64: 32, 128>}, {pipeline_mode = #tpu.pipeline_mode<synchronous>, transform_indices = @transform_2, window_bounds = array<i64: 128, 256>}, {pipeline_mode = #tpu.pipeline_mode<synchronous>, transform_indices = @transform_3, window_bounds = array<i64: 128, 256>}, {transform_indices = @transform_4, window_bounds = array<i64: 1, 8, 256>}, {transform_indices = @transform_5, window_bounds = array<i64: 1, 8, 256>}]} {
    %c0_i32 = arith.constant 0 : i32
    %0 = arith.cmpi eq, %arg1, %c0_i32 : i32
    %1 = arith.extui %0 : i1 to i32
    %c0_i32_0 = arith.constant 0 : i32
    %2 = arith.cmpi ne, %1, %c0_i32_0 : i32
    scf.if %2 {
      %cst_29 = arith.constant 0.000000e+00 : f32
      %37 = vector.broadcast %cst_29 : f32 to vector<1x8x256xf32>
      %c0_30 = arith.constant 0 : index
      %c0_31 = arith.constant 0 : index
      %c0_32 = arith.constant 0 : index
      %38 = vector.load %arg6[%c0_30, %c0_31, %c0_32] : memref<1x8x256xf32, #tpu.memory_space<vmem>>, vector<1x8x256xf32>
      tpu.vector_store %arg6[%c0_30, %c0_31, %c0_32], %37 {strides = array<i32>} : memref<1x8x256xf32, #tpu.memory_space<vmem>>, vector<1x8x256xf32>,
      %cst_33 = arith.constant 0.000000e+00 : f32
      %39 = vector.broadcast %cst_33 : f32 to vector<1x8x256xf32>
      %c0_34 = arith.constant 0 : index
      %c0_35 = arith.constant 0 : index
      %c0_36 = arith.constant 0 : index
      %40 = vector.load %arg7[%c0_34, %c0_35, %c0_36] : memref<1x8x256xf32, #tpu.memory_space<vmem>>, vector<1x8x256xf32>
      tpu.vector_store %arg7[%c0_34, %c0_35, %c0_36], %39 {strides = array<i32>} : memref<1x8x256xf32, #tpu.memory_space<vmem>>, vector<1x8x256xf32>,
    } else {
    }
    %c0 = arith.constant 0 : index
    %c0_1 = arith.constant 0 : index
    %c0_2 = arith.constant 0 : index
    %3 = vector.load %arg2[%c0, %c0_1, %c0_2] : memref<4x32x128xbf16, #tpu.memory_space<vmem>>, vector<4x32x128xbf16>
    %4 = vector.shape_cast %3 : vector<4x32x128xbf16> to vector<128x128xbf16>
    %c0_3 = arith.constant 0 : index
    %c0_4 = arith.constant 0 : index
    %5 = vector.load %arg4[%c0_3, %c0_4] : memref<128x256xbf16, #tpu.memory_space<vmem>>, vector<128x256xbf16>
    %cst = arith.constant dense<0.000000e+00> : vector<128x256xf32>
    %6 = tpu.matmul %4, %5, %cst {dimension_numbers = #tpu.dot_dimension_numbers<[1], [0], [0], [1], [0, 0, 1, 1], [], []>} : vector<128x128xbf16>, vector<128x256xbf16>, vector<128x256xf32> -> vector<128x256xf32>
    %7 = vector.shape_cast %6 : vector<128x256xf32> to vector<4x32x256xf32>
    %c0_5 = arith.constant 0 : index
    %c0_6 = arith.constant 0 : index
    %8 = vector.load %arg3[%c0_5, %c0_6] : memref<32x128xbf16, #tpu.memory_space<vmem>>, vector<32x128xbf16>
    %c0_7 = arith.constant 0 : index
    %c0_8 = arith.constant 0 : index
    %9 = vector.load %arg5[%c0_7, %c0_8] : memref<128x256xbf16, #tpu.memory_space<vmem>>, vector<128x256xbf16>
    %cst_9 = arith.constant dense<0.000000e+00> : vector<32x256xf32>
    %10 = tpu.matmul %8, %9, %cst_9 {dimension_numbers = #tpu.dot_dimension_numbers<[1], [0], [0], [1], [0, 0, 1, 1], [], []>} : vector<32x128xbf16>, vector<128x256xbf16>, vector<32x256xf32> -> vector<32x256xf32>
    %cst_10 = arith.constant dense<0.000000e+00> : vector<32x256xf32>
    %11 = vector.multi_reduction <add>, %7, %cst_10 [0] : vector<4x32x256xf32> to vector<32x256xf32>
    %12 = arith.mulf %7, %7 : vector<4x32x256xf32>
    %cst_11 = arith.constant dense<0.000000e+00> : vector<32x256xf32>
    %13 = vector.multi_reduction <add>, %12, %cst_11 [0] : vector<4x32x256xf32> to vector<32x256xf32>
    %cst_12 = arith.constant 4.000000e+00 : f32
    %14 = vector.broadcast %cst_12 : f32 to vector<32x256xf32>
    %15 = arith.mulf %14, %10 : vector<32x256xf32>
    %16 = arith.addf %11, %15 : vector<32x256xf32>
    %cst_13 = arith.constant 2.000000e+00 : f32
    %17 = vector.broadcast %cst_13 : f32 to vector<32x256xf32>
    %18 = arith.mulf %17, %10 : vector<32x256xf32>
    %19 = arith.mulf %18, %11 : vector<32x256xf32>
    %20 = arith.addf %13, %19 : vector<32x256xf32>
    %21 = arith.mulf %10, %10 : vector<32x256xf32>
    %cst_14 = arith.constant 4.000000e+00 : f32
    %22 = vector.broadcast %cst_14 : f32 to vector<32x256xf32>
    %23 = arith.mulf %22, %21 : vector<32x256xf32>
    %24 = arith.addf %20, %23 : vector<32x256xf32>
    %c0_15 = arith.constant 0 : index
    %c0_16 = arith.constant 0 : index
    %c0_17 = arith.constant 0 : index
    %25 = vector.load %arg6[%c0_15, %c0_16, %c0_17] : memref<1x8x256xf32, #tpu.memory_space<vmem>>, vector<1x8x256xf32>
    %26 = vector.shape_cast %16 : vector<32x256xf32> to vector<4x8x256xf32>
    %cst_18 = arith.constant dense<0.000000e+00> : vector<8x256xf32>
    %27 = vector.multi_reduction <add>, %26, %cst_18 [0] : vector<4x8x256xf32> to vector<8x256xf32>
    %28 = vector.shape_cast %27 : vector<8x256xf32> to vector<1x8x256xf32>
    %29 = arith.addf %25, %28 : vector<1x8x256xf32>
    %c0_19 = arith.constant 0 : index
    %c0_20 = arith.constant 0 : index
    %c0_21 = arith.constant 0 : index
    %30 = vector.load %arg6[%c0_19, %c0_20, %c0_21] : memref<1x8x256xf32, #tpu.memory_space<vmem>>, vector<1x8x256xf32>
    tpu.vector_store %arg6[%c0_19, %c0_20, %c0_21], %29 {strides = array<i32>} : memref<1x8x256xf32, #tpu.memory_space<vmem>>, vector<1x8x256xf32>,
    %c0_22 = arith.constant 0 : index
    %c0_23 = arith.constant 0 : index
    %c0_24 = arith.constant 0 : index
    %31 = vector.load %arg7[%c0_22, %c0_23, %c0_24] : memref<1x8x256xf32, #tpu.memory_space<vmem>>, vector<1x8x256xf32>
    %32 = vector.shape_cast %24 : vector<32x256xf32> to vector<4x8x256xf32>
    %cst_25 = arith.constant dense<0.000000e+00> : vector<8x256xf32>
    %33 = vector.multi_reduction <add>, %32, %cst_25 [0] : vector<4x8x256xf32> to vector<8x256xf32>
    %34 = vector.shape_cast %33 : vector<8x256xf32> to vector<1x8x256xf32>
    %35 = arith.addf %31, %34 : vector<1x8x256xf32>
    %c0_26 = arith.constant 0 : index
    %c0_27 = arith.constant 0 : index
    %c0_28 = arith.constant 0 : index
    %36 = vector.load %arg7[%c0_26, %c0_27, %c0_28] : memref<1x8x256xf32, #tpu.memory_space<vmem>>, vector<1x8x256xf32>
    tpu.vector_store %arg7[%c0_26, %c0_27, %c0_28], %35 {strides = array<i32>} : memref<1x8x256xf32, #tpu.memory_space<vmem>>, vector<1x8x256xf32>,
    return
  }
  func.func @transform_0(%arg0: i32, %arg1: i32) -> (i32, i32, i32) {
    %c1_i32 = arith.constant 1 : i32
    %0 = arith.muli %arg0, %c1_i32 : i32
    %1 = arith.addi %0, %arg1 : i32
    %c0_i32 = arith.constant 0 : i32
    %c0_i32_0 = arith.constant 0 : i32
    %c0_i32_1 = arith.constant 0 : i32
    return %c0_i32, %1, %c0_i32_0 : i32, i32, i32
  }
  func.func @transform_1(%arg0: i32, %arg1: i32) -> (i32, i32) {
    %c1_i32 = arith.constant 1 : i32
    %0 = arith.muli %arg0, %c1_i32 : i32
    %1 = arith.addi %0, %arg1 : i32
    %c0_i32 = arith.constant 0 : i32
    %c0_i32_0 = arith.constant 0 : i32
    return %1, %c0_i32 : i32, i32
  }
  func.func @transform_2(%arg0: i32, %arg1: i32) -> (i32, i32) {
    %c0_i32 = arith.constant 0 : i32
    %c0_i32_0 = arith.constant 0 : i32
    %c0_i32_1 = arith.constant 0 : i32
    return %c0_i32, %c0_i32_0 : i32, i32
  }
  func.func @transform_3(%arg0: i32, %arg1: i32) -> (i32, i32) {
    %c0_i32 = arith.constant 0 : i32
    %c0_i32_0 = arith.constant 0 : i32
    %c0_i32_1 = arith.constant 0 : i32
    return %c0_i32, %c0_i32_0 : i32, i32
  }
  func.func @transform_4(%arg0: i32, %arg1: i32) -> (i32, i32, i32) {
    %c0_i32 = arith.constant 0 : i32
    %c0_i32_0 = arith.constant 0 : i32
    %c0_i32_1 = arith.constant 0 : i32
    return %arg0, %c0_i32, %c0_i32_0 : i32, i32, i32
  }
  func.func @transform_5(%arg0: i32, %arg1: i32) -> (i32, i32, i32) {
    %c0_i32 = arith.constant 0 : i32
    %c0_i32_0 = arith.constant 0 : i32
    %c0_i32_1 = arith.constant 0 : i32
    return %arg0, %c0_i32, %c0_i32_0 : i32, i32, i32
  }
}

module attributes {stable_mosaic.version = 11 : i64} {
  func.func @_final_stats_kernel(%arg0: i32, %arg1: i32, %arg2: memref<1x16x64xbf16, #tpu.memory_space<vmem>>, %arg3: memref<1x16x64xbf16, #tpu.memory_space<vmem>>, %arg4: memref<1x16x128xbf16, #tpu.memory_space<vmem>>, %arg5: memref<1x16x256xbf16, #tpu.memory_space<vmem>>, %arg6: memref<64x32xbf16, #tpu.memory_space<vmem>>, %arg7: memref<64x32xbf16, #tpu.memory_space<vmem>>, %arg8: memref<128x32xbf16, #tpu.memory_space<vmem>>, %arg9: memref<256x32xbf16, #tpu.memory_space<vmem>>, %arg10: memref<1x8x32xf32, #tpu.memory_space<vmem>>, %arg11: memref<1x8x32xf32, #tpu.memory_space<vmem>>) attributes {dimension_semantics = [#tpu.dimension_semantics<parallel>, #tpu.dimension_semantics<arbitrary>], iteration_bounds = array<i64: 2, 1>, scalar_prefetch = 0 : i64, scratch_operands = 0 : i64, tpu.core_type = #tpu.core_type<tc>, window_params = [{transform_indices = @transform_0, window_bounds = array<i64: 1, 16, 64>}, {transform_indices = @transform_1, window_bounds = array<i64: 1, 16, 64>}, {transform_indices = @transform_2, window_bounds = array<i64: 1, 16, 128>}, {transform_indices = @transform_3, window_bounds = array<i64: 1, 16, 256>}, {pipeline_mode = #tpu.pipeline_mode<synchronous>, transform_indices = @transform_4, window_bounds = array<i64: 64, 32>}, {pipeline_mode = #tpu.pipeline_mode<synchronous>, transform_indices = @transform_5, window_bounds = array<i64: 64, 32>}, {pipeline_mode = #tpu.pipeline_mode<synchronous>, transform_indices = @transform_6, window_bounds = array<i64: 128, 32>}, {pipeline_mode = #tpu.pipeline_mode<synchronous>, transform_indices = @transform_7, window_bounds = array<i64: 256, 32>}, {transform_indices = @transform_8, window_bounds = array<i64: 1, 8, 32>}, {transform_indices = @transform_9, window_bounds = array<i64: 1, 8, 32>}]} {
    %c0_i32 = arith.constant 0 : i32
    %0 = arith.cmpi eq, %arg1, %c0_i32 : i32
    %1 = arith.extui %0 : i1 to i32
    %c0_i32_0 = arith.constant 0 : i32
    %2 = arith.cmpi ne, %1, %c0_i32_0 : i32
    scf.if %2 {
      %cst_37 = arith.constant 0.000000e+00 : f32
      %35 = vector.broadcast %cst_37 : f32 to vector<1x8x32xf32>
      %c0_38 = arith.constant 0 : index
      %c0_39 = arith.constant 0 : index
      %c0_40 = arith.constant 0 : index
      %36 = vector.load %arg10[%c0_38, %c0_39, %c0_40] : memref<1x8x32xf32, #tpu.memory_space<vmem>>, vector<1x8x32xf32>
      tpu.vector_store %arg10[%c0_38, %c0_39, %c0_40], %35 {strides = array<i32>} : memref<1x8x32xf32, #tpu.memory_space<vmem>>, vector<1x8x32xf32>,
      %cst_41 = arith.constant 0.000000e+00 : f32
      %37 = vector.broadcast %cst_41 : f32 to vector<1x8x32xf32>
      %c0_42 = arith.constant 0 : index
      %c0_43 = arith.constant 0 : index
      %c0_44 = arith.constant 0 : index
      %38 = vector.load %arg11[%c0_42, %c0_43, %c0_44] : memref<1x8x32xf32, #tpu.memory_space<vmem>>, vector<1x8x32xf32>
      tpu.vector_store %arg11[%c0_42, %c0_43, %c0_44], %37 {strides = array<i32>} : memref<1x8x32xf32, #tpu.memory_space<vmem>>, vector<1x8x32xf32>,
    } else {
    }
    %c0 = arith.constant 0 : index
    %c0_1 = arith.constant 0 : index
    %c0_2 = arith.constant 0 : index
    %3 = vector.load %arg2[%c0, %c0_1, %c0_2] : memref<1x16x64xbf16, #tpu.memory_space<vmem>>, vector<1x16x64xbf16>
    %4 = vector.shape_cast %3 : vector<1x16x64xbf16> to vector<16x64xbf16>
    %c0_3 = arith.constant 0 : index
    %c0_4 = arith.constant 0 : index
    %5 = vector.load %arg6[%c0_3, %c0_4] : memref<64x32xbf16, #tpu.memory_space<vmem>>, vector<64x32xbf16>
    %cst = arith.constant dense<0.000000e+00> : vector<16x32xf32>
    %6 = tpu.matmul %4, %5, %cst {dimension_numbers = #tpu.dot_dimension_numbers<[1], [0], [0], [1], [0, 0, 1, 1], [], []>} : vector<16x64xbf16>, vector<64x32xbf16>, vector<16x32xf32> -> vector<16x32xf32>
    %c0_5 = arith.constant 0 : index
    %c0_6 = arith.constant 0 : index
    %c0_7 = arith.constant 0 : index
    %7 = vector.load %arg3[%c0_5, %c0_6, %c0_7] : memref<1x16x64xbf16, #tpu.memory_space<vmem>>, vector<1x16x64xbf16>
    %8 = vector.shape_cast %7 : vector<1x16x64xbf16> to vector<16x64xbf16>
    %c0_8 = arith.constant 0 : index
    %c0_9 = arith.constant 0 : index
    %9 = vector.load %arg7[%c0_8, %c0_9] : memref<64x32xbf16, #tpu.memory_space<vmem>>, vector<64x32xbf16>
    %cst_10 = arith.constant dense<0.000000e+00> : vector<16x32xf32>
    %10 = tpu.matmul %8, %9, %cst_10 {dimension_numbers = #tpu.dot_dimension_numbers<[1], [0], [0], [1], [0, 0, 1, 1], [], []>} : vector<16x64xbf16>, vector<64x32xbf16>, vector<16x32xf32> -> vector<16x32xf32>
    %11 = arith.addf %6, %10 : vector<16x32xf32>
    %c0_11 = arith.constant 0 : index
    %c0_12 = arith.constant 0 : index
    %c0_13 = arith.constant 0 : index
    %12 = vector.load %arg4[%c0_11, %c0_12, %c0_13] : memref<1x16x128xbf16, #tpu.memory_space<vmem>>, vector<1x16x128xbf16>
    %13 = vector.shape_cast %12 : vector<1x16x128xbf16> to vector<16x128xbf16>
    %c0_14 = arith.constant 0 : index
    %c0_15 = arith.constant 0 : index
    %14 = vector.load %arg8[%c0_14, %c0_15] : memref<128x32xbf16, #tpu.memory_space<vmem>>, vector<128x32xbf16>
    %cst_16 = arith.constant dense<0.000000e+00> : vector<16x32xf32>
    %15 = tpu.matmul %13, %14, %cst_16 {dimension_numbers = #tpu.dot_dimension_numbers<[1], [0], [0], [1], [0, 0, 1, 1], [], []>} : vector<16x128xbf16>, vector<128x32xbf16>, vector<16x32xf32> -> vector<16x32xf32>
    %16 = arith.addf %11, %15 : vector<16x32xf32>
    %c0_17 = arith.constant 0 : index
    %c0_18 = arith.constant 0 : index
    %c0_19 = arith.constant 0 : index
    %17 = vector.load %arg5[%c0_17, %c0_18, %c0_19] : memref<1x16x256xbf16, #tpu.memory_space<vmem>>, vector<1x16x256xbf16>
    %18 = vector.shape_cast %17 : vector<1x16x256xbf16> to vector<16x256xbf16>
    %c0_20 = arith.constant 0 : index
    %c0_21 = arith.constant 0 : index
    %19 = vector.load %arg9[%c0_20, %c0_21] : memref<256x32xbf16, #tpu.memory_space<vmem>>, vector<256x32xbf16>
    %cst_22 = arith.constant dense<0.000000e+00> : vector<16x32xf32>
    %20 = tpu.matmul %18, %19, %cst_22 {dimension_numbers = #tpu.dot_dimension_numbers<[1], [0], [0], [1], [0, 0, 1, 1], [], []>} : vector<16x256xbf16>, vector<256x32xbf16>, vector<16x32xf32> -> vector<16x32xf32>
    %21 = arith.addf %16, %20 : vector<16x32xf32>
    %c0_23 = arith.constant 0 : index
    %c0_24 = arith.constant 0 : index
    %c0_25 = arith.constant 0 : index
    %22 = vector.load %arg10[%c0_23, %c0_24, %c0_25] : memref<1x8x32xf32, #tpu.memory_space<vmem>>, vector<1x8x32xf32>
    %23 = vector.shape_cast %21 : vector<16x32xf32> to vector<2x8x32xf32>
    %cst_26 = arith.constant dense<0.000000e+00> : vector<8x32xf32>
    %24 = vector.multi_reduction <add>, %23, %cst_26 [0] : vector<2x8x32xf32> to vector<8x32xf32>
    %25 = vector.shape_cast %24 : vector<8x32xf32> to vector<1x8x32xf32>
    %26 = arith.addf %22, %25 : vector<1x8x32xf32>
    %c0_27 = arith.constant 0 : index
    %c0_28 = arith.constant 0 : index
    %c0_29 = arith.constant 0 : index
    %27 = vector.load %arg10[%c0_27, %c0_28, %c0_29] : memref<1x8x32xf32, #tpu.memory_space<vmem>>, vector<1x8x32xf32>
    tpu.vector_store %arg10[%c0_27, %c0_28, %c0_29], %26 {strides = array<i32>} : memref<1x8x32xf32, #tpu.memory_space<vmem>>, vector<1x8x32xf32>,
    %c0_30 = arith.constant 0 : index
    %c0_31 = arith.constant 0 : index
    %c0_32 = arith.constant 0 : index
    %28 = vector.load %arg11[%c0_30, %c0_31, %c0_32] : memref<1x8x32xf32, #tpu.memory_space<vmem>>, vector<1x8x32xf32>
    %29 = arith.mulf %21, %21 : vector<16x32xf32>
    %30 = vector.shape_cast %29 : vector<16x32xf32> to vector<2x8x32xf32>
    %cst_33 = arith.constant dense<0.000000e+00> : vector<8x32xf32>
    %31 = vector.multi_reduction <add>, %30, %cst_33 [0] : vector<2x8x32xf32> to vector<8x32xf32>
    %32 = vector.shape_cast %31 : vector<8x32xf32> to vector<1x8x32xf32>
    %33 = arith.addf %28, %32 : vector<1x8x32xf32>
    %c0_34 = arith.constant 0 : index
    %c0_35 = arith.constant 0 : index
    %c0_36 = arith.constant 0 : index
    %34 = vector.load %arg11[%c0_34, %c0_35, %c0_36] : memref<1x8x32xf32, #tpu.memory_space<vmem>>, vector<1x8x32xf32>
    tpu.vector_store %arg11[%c0_34, %c0_35, %c0_36], %33 {strides = array<i32>} : memref<1x8x32xf32, #tpu.memory_space<vmem>>, vector<1x8x32xf32>,
    return
  }
  func.func @transform_0(%arg0: i32, %arg1: i32) -> (i32, i32, i32) {
    %c0_i32 = arith.constant 0 : i32
    %c0_i32_0 = arith.constant 0 : i32
    return %arg0, %arg1, %c0_i32 : i32, i32, i32
  }
  func.func @transform_1(%arg0: i32, %arg1: i32) -> (i32, i32, i32) {
    %c0_i32 = arith.constant 0 : i32
    %c0_i32_0 = arith.constant 0 : i32
    return %arg0, %arg1, %c0_i32 : i32, i32, i32
  }
  func.func @transform_2(%arg0: i32, %arg1: i32) -> (i32, i32, i32) {
    %c0_i32 = arith.constant 0 : i32
    %c0_i32_0 = arith.constant 0 : i32
    return %arg0, %arg1, %c0_i32 : i32, i32, i32
  }
  func.func @transform_3(%arg0: i32, %arg1: i32) -> (i32, i32, i32) {
    %c0_i32 = arith.constant 0 : i32
    %c0_i32_0 = arith.constant 0 : i32
    return %arg0, %arg1, %c0_i32 : i32, i32, i32
  }
  func.func @transform_4(%arg0: i32, %arg1: i32) -> (i32, i32) {
    %c0_i32 = arith.constant 0 : i32
    %c0_i32_0 = arith.constant 0 : i32
    %c0_i32_1 = arith.constant 0 : i32
    return %c0_i32, %c0_i32_0 : i32, i32
  }
  func.func @transform_5(%arg0: i32, %arg1: i32) -> (i32, i32) {
    %c0_i32 = arith.constant 0 : i32
    %c0_i32_0 = arith.constant 0 : i32
    %c0_i32_1 = arith.constant 0 : i32
    return %c0_i32, %c0_i32_0 : i32, i32
  }
  func.func @transform_6(%arg0: i32, %arg1: i32) -> (i32, i32) {
    %c0_i32 = arith.constant 0 : i32
    %c0_i32_0 = arith.constant 0 : i32
    %c0_i32_1 = arith.constant 0 : i32
    return %c0_i32, %c0_i32_0 : i32, i32
  }
  func.func @transform_7(%arg0: i32, %arg1: i32) -> (i32, i32) {
    %c0_i32 = arith.constant 0 : i32
    %c0_i32_0 = arith.constant 0 : i32
    %c0_i32_1 = arith.constant 0 : i32
    return %c0_i32, %c0_i32_0 : i32, i32
  }
  func.func @transform_8(%arg0: i32, %arg1: i32) -> (i32, i32, i32) {
    %c0_i32 = arith.constant 0 : i32
    %c0_i32_0 = arith.constant 0 : i32
    %c0_i32_1 = arith.constant 0 : i32
    return %arg0, %c0_i32, %c0_i32_0 : i32, i32, i32
  }
  func.func @transform_9(%arg0: i32, %arg1: i32) -> (i32, i32, i32) {
    %c0_i32 = arith.constant 0 : i32
    %c0_i32_0 = arith.constant 0 : i32
    %c0_i32_1 = arith.constant 0 : i32
    return %arg0, %c0_i32, %c0_i32_0 : i32, i32, i32
  }
}

module attributes {stable_mosaic.version = 11 : i64} {
  func.func @_edge_apply_kernel(%arg0: i32, %arg1: memref<4x32x128xbf16, #tpu.memory_space<vmem>>, %arg2: memref<32x128xbf16, #tpu.memory_space<vmem>>, %arg3: memref<128x256xbf16, #tpu.memory_space<vmem>>, %arg4: memref<128x256xbf16, #tpu.memory_space<vmem>>, %arg5: memref<1x256xf32, #tpu.memory_space<vmem>>, %arg6: memref<1x256xf32, #tpu.memory_space<vmem>>, %arg7: memref<32x256xbf16, #tpu.memory_space<vmem>>) attributes {dimension_semantics = [#tpu.dimension_semantics<parallel>], iteration_bounds = array<i64: 1>, scalar_prefetch = 0 : i64, scratch_operands = 0 : i64, tpu.core_type = #tpu.core_type<tc>, window_params = [{transform_indices = @transform_0, window_bounds = array<i64: 4, 32, 128>}, {transform_indices = @transform_1, window_bounds = array<i64: 32, 128>}, {pipeline_mode = #tpu.pipeline_mode<synchronous>, transform_indices = @transform_2, window_bounds = array<i64: 128, 256>}, {pipeline_mode = #tpu.pipeline_mode<synchronous>, transform_indices = @transform_3, window_bounds = array<i64: 128, 256>}, {pipeline_mode = #tpu.pipeline_mode<synchronous>, transform_indices = @transform_4, window_bounds = array<i64: 1, 256>}, {pipeline_mode = #tpu.pipeline_mode<synchronous>, transform_indices = @transform_5, window_bounds = array<i64: 1, 256>}, {transform_indices = @transform_6, window_bounds = array<i64: 32, 256>}]} {
    %c0 = arith.constant 0 : index
    %c0_0 = arith.constant 0 : index
    %c0_1 = arith.constant 0 : index
    %0 = vector.load %arg1[%c0, %c0_0, %c0_1] : memref<4x32x128xbf16, #tpu.memory_space<vmem>>, vector<4x32x128xbf16>
    %1 = vector.shape_cast %0 : vector<4x32x128xbf16> to vector<128x128xbf16>
    %c0_2 = arith.constant 0 : index
    %c0_3 = arith.constant 0 : index
    %2 = vector.load %arg3[%c0_2, %c0_3] : memref<128x256xbf16, #tpu.memory_space<vmem>>, vector<128x256xbf16>
    %cst = arith.constant dense<0.000000e+00> : vector<128x256xf32>
    %3 = tpu.matmul %1, %2, %cst {dimension_numbers = #tpu.dot_dimension_numbers<[1], [0], [0], [1], [0, 0, 1, 1], [], []>} : vector<128x128xbf16>, vector<128x256xbf16>, vector<128x256xf32> -> vector<128x256xf32>
    %4 = vector.shape_cast %3 : vector<128x256xf32> to vector<4x32x256xf32>
    %c0_4 = arith.constant 0 : index
    %c0_5 = arith.constant 0 : index
    %5 = vector.load %arg2[%c0_4, %c0_5] : memref<32x128xbf16, #tpu.memory_space<vmem>>, vector<32x128xbf16>
    %c0_6 = arith.constant 0 : index
    %c0_7 = arith.constant 0 : index
    %6 = vector.load %arg4[%c0_6, %c0_7] : memref<128x256xbf16, #tpu.memory_space<vmem>>, vector<128x256xbf16>
    %cst_8 = arith.constant dense<0.000000e+00> : vector<32x256xf32>
    %7 = tpu.matmul %5, %6, %cst_8 {dimension_numbers = #tpu.dot_dimension_numbers<[1], [0], [0], [1], [0, 0, 1, 1], [], []>} : vector<32x128xbf16>, vector<128x256xbf16>, vector<32x256xf32> -> vector<32x256xf32>
    %cst_9 = arith.constant dense<0xFF800000> : vector<32x256xf32>
    %8 = vector.multi_reduction <maximumf>, %4, %cst_9 [0] : vector<4x32x256xf32> to vector<32x256xf32>
    %cst_10 = arith.constant dense<0x7F800000> : vector<32x256xf32>
    %9 = vector.multi_reduction <minimumf>, %4, %cst_10 [0] : vector<4x32x256xf32> to vector<32x256xf32>
    %c0_11 = arith.constant 0 : index
    %c0_12 = arith.constant 0 : index
    %10 = vector.load %arg5[%c0_11, %c0_12] : memref<1x256xf32, #tpu.memory_space<vmem>>, vector<1x256xf32>
    %c0_13 = arith.constant 0 : index
    %c0_14 = arith.constant 0 : index
    %11 = vector.load %arg6[%c0_13, %c0_14] : memref<1x256xf32, #tpu.memory_space<vmem>>, vector<1x256xf32>
    %cst_15 = arith.constant 0.000000e+00 : f32
    %12 = vector.broadcast %cst_15 : f32 to vector<1x256xf32>
    %13 = arith.cmpf oge, %10, %12 : vector<1x256xf32>
    %14 = vector.shape_cast %13 : vector<1x256xi1> to vector<1x256xi1>
    %15 = vector.broadcast %14 : vector<1x256xi1> to vector<32x256xi1>
    %16 = arith.select %15, %8, %9 : vector<32x256xi1>, vector<32x256xf32>
    %17 = arith.addf %16, %7 : vector<32x256xf32>
    %18 = vector.broadcast %10 : vector<1x256xf32> to vector<32x256xf32>
    %19 = arith.mulf %17, %18 : vector<32x256xf32>
    %20 = vector.broadcast %11 : vector<1x256xf32> to vector<32x256xf32>
    %21 = arith.addf %19, %20 : vector<32x256xf32>
    %22 = math.tanh %21 : vector<32x256xf32>
    %23 = arith.truncf %22 : vector<32x256xf32> to vector<32x256xbf16>
    %c0_16 = arith.constant 0 : index
    %c0_17 = arith.constant 0 : index
    %24 = vector.load %arg7[%c0_16, %c0_17] : memref<32x256xbf16, #tpu.memory_space<vmem>>, vector<32x256xbf16>
    tpu.vector_store %arg7[%c0_16, %c0_17], %23 {strides = array<i32>} : memref<32x256xbf16, #tpu.memory_space<vmem>>, vector<32x256xbf16>,
    return
  }
  func.func @transform_0(%arg0: i32) -> (i32, i32, i32) {
    %c0_i32 = arith.constant 0 : i32
    %c0_i32_0 = arith.constant 0 : i32
    %c0_i32_1 = arith.constant 0 : i32
    return %c0_i32, %arg0, %c0_i32_0 : i32, i32, i32
  }
  func.func @transform_1(%arg0: i32) -> (i32, i32) {
    %c0_i32 = arith.constant 0 : i32
    %c0_i32_0 = arith.constant 0 : i32
    return %arg0, %c0_i32 : i32, i32
  }
  func.func @transform_2(%arg0: i32) -> (i32, i32) {
    %c0_i32 = arith.constant 0 : i32
    %c0_i32_0 = arith.constant 0 : i32
    %c0_i32_1 = arith.constant 0 : i32
    return %c0_i32, %c0_i32_0 : i32, i32
  }
  func.func @transform_3(%arg0: i32) -> (i32, i32) {
    %c0_i32 = arith.constant 0 : i32
    %c0_i32_0 = arith.constant 0 : i32
    %c0_i32_1 = arith.constant 0 : i32
    return %c0_i32, %c0_i32_0 : i32, i32
  }
  func.func @transform_4(%arg0: i32) -> (i32, i32) {
    %c0_i32 = arith.constant 0 : i32
    %c0_i32_0 = arith.constant 0 : i32
    %c0_i32_1 = arith.constant 0 : i32
    return %c0_i32, %c0_i32_0 : i32, i32
  }
  func.func @transform_5(%arg0: i32) -> (i32, i32) {
    %c0_i32 = arith.constant 0 : i32
    %c0_i32_0 = arith.constant 0 : i32
    %c0_i32_1 = arith.constant 0 : i32
    return %c0_i32, %c0_i32_0 : i32, i32
  }
  func.func @transform_6(%arg0: i32) -> (i32, i32) {
    %c0_i32 = arith.constant 0 : i32
    %c0_i32_0 = arith.constant 0 : i32
    return %arg0, %c0_i32 : i32, i32
  }
}

module attributes {stable_mosaic.version = 11 : i64} {
  func.func @_final_apply_kernel(%arg0: i32, %arg1: i32, %arg2: memref<1x16x64xbf16, #tpu.memory_space<vmem>>, %arg3: memref<1x16x64xbf16, #tpu.memory_space<vmem>>, %arg4: memref<1x16x128xbf16, #tpu.memory_space<vmem>>, %arg5: memref<1x16x256xbf16, #tpu.memory_space<vmem>>, %arg6: memref<64x32xbf16, #tpu.memory_space<vmem>>, %arg7: memref<64x32xbf16, #tpu.memory_space<vmem>>, %arg8: memref<128x32xbf16, #tpu.memory_space<vmem>>, %arg9: memref<256x32xbf16, #tpu.memory_space<vmem>>, %arg10: memref<1x32xf32, #tpu.memory_space<vmem>>, %arg11: memref<1x32xf32, #tpu.memory_space<vmem>>, %arg12: memref<1x1x32xf32, #tpu.memory_space<vmem>>, %arg13: memref<1x1x32xf32, #tpu.memory_space<vmem>>) attributes {dimension_semantics = [#tpu.dimension_semantics<parallel>, #tpu.dimension_semantics<arbitrary>], iteration_bounds = array<i64: 2, 1>, scalar_prefetch = 0 : i64, scratch_operands = 0 : i64, tpu.core_type = #tpu.core_type<tc>, window_params = [{transform_indices = @transform_0, window_bounds = array<i64: 1, 16, 64>}, {transform_indices = @transform_1, window_bounds = array<i64: 1, 16, 64>}, {transform_indices = @transform_2, window_bounds = array<i64: 1, 16, 128>}, {transform_indices = @transform_3, window_bounds = array<i64: 1, 16, 256>}, {pipeline_mode = #tpu.pipeline_mode<synchronous>, transform_indices = @transform_4, window_bounds = array<i64: 64, 32>}, {pipeline_mode = #tpu.pipeline_mode<synchronous>, transform_indices = @transform_5, window_bounds = array<i64: 64, 32>}, {pipeline_mode = #tpu.pipeline_mode<synchronous>, transform_indices = @transform_6, window_bounds = array<i64: 128, 32>}, {pipeline_mode = #tpu.pipeline_mode<synchronous>, transform_indices = @transform_7, window_bounds = array<i64: 256, 32>}, {pipeline_mode = #tpu.pipeline_mode<synchronous>, transform_indices = @transform_8, window_bounds = array<i64: 1, 32>}, {pipeline_mode = #tpu.pipeline_mode<synchronous>, transform_indices = @transform_9, window_bounds = array<i64: 1, 32>}, {transform_indices = @transform_10, window_bounds = array<i64: 1, 1, 32>}, {transform_indices = @transform_11, window_bounds = array<i64: 1, 1, 32>}]} {
    %c0_i32 = arith.constant 0 : i32
    %0 = arith.cmpi eq, %arg1, %c0_i32 : i32
    %1 = arith.extui %0 : i1 to i32
    %c0_i32_0 = arith.constant 0 : i32
    %2 = arith.cmpi ne, %1, %c0_i32_0 : i32
    scf.if %2 {
      %cst_46 = arith.constant 0xFF800000 : f32
      %56 = vector.broadcast %cst_46 : f32 to vector<1x1x32xf32>
      %c0_47 = arith.constant 0 : index
      %c0_48 = arith.constant 0 : index
      %c0_49 = arith.constant 0 : index
      %57 = vector.load %arg12[%c0_47, %c0_48, %c0_49] : memref<1x1x32xf32, #tpu.memory_space<vmem>>, vector<1x1x32xf32>
      tpu.vector_store %arg12[%c0_47, %c0_48, %c0_49], %56 {strides = array<i32>} : memref<1x1x32xf32, #tpu.memory_space<vmem>>, vector<1x1x32xf32>,
      %cst_50 = arith.constant 0.000000e+00 : f32
      %58 = vector.broadcast %cst_50 : f32 to vector<1x1x32xf32>
      %c0_51 = arith.constant 0 : index
      %c0_52 = arith.constant 0 : index
      %c0_53 = arith.constant 0 : index
      %59 = vector.load %arg13[%c0_51, %c0_52, %c0_53] : memref<1x1x32xf32, #tpu.memory_space<vmem>>, vector<1x1x32xf32>
      tpu.vector_store %arg13[%c0_51, %c0_52, %c0_53], %58 {strides = array<i32>} : memref<1x1x32xf32, #tpu.memory_space<vmem>>, vector<1x1x32xf32>,
    } else {
    }
    %c0 = arith.constant 0 : index
    %c0_1 = arith.constant 0 : index
    %c0_2 = arith.constant 0 : index
    %3 = vector.load %arg2[%c0, %c0_1, %c0_2] : memref<1x16x64xbf16, #tpu.memory_space<vmem>>, vector<1x16x64xbf16>
    %4 = vector.shape_cast %3 : vector<1x16x64xbf16> to vector<16x64xbf16>
    %c0_3 = arith.constant 0 : index
    %c0_4 = arith.constant 0 : index
    %5 = vector.load %arg6[%c0_3, %c0_4] : memref<64x32xbf16, #tpu.memory_space<vmem>>, vector<64x32xbf16>
    %cst = arith.constant dense<0.000000e+00> : vector<16x32xf32>
    %6 = tpu.matmul %4, %5, %cst {dimension_numbers = #tpu.dot_dimension_numbers<[1], [0], [0], [1], [0, 0, 1, 1], [], []>} : vector<16x64xbf16>, vector<64x32xbf16>, vector<16x32xf32> -> vector<16x32xf32>
    %c0_5 = arith.constant 0 : index
    %c0_6 = arith.constant 0 : index
    %c0_7 = arith.constant 0 : index
    %7 = vector.load %arg3[%c0_5, %c0_6, %c0_7] : memref<1x16x64xbf16, #tpu.memory_space<vmem>>, vector<1x16x64xbf16>
    %8 = vector.shape_cast %7 : vector<1x16x64xbf16> to vector<16x64xbf16>
    %c0_8 = arith.constant 0 : index
    %c0_9 = arith.constant 0 : index
    %9 = vector.load %arg7[%c0_8, %c0_9] : memref<64x32xbf16, #tpu.memory_space<vmem>>, vector<64x32xbf16>
    %cst_10 = arith.constant dense<0.000000e+00> : vector<16x32xf32>
    %10 = tpu.matmul %8, %9, %cst_10 {dimension_numbers = #tpu.dot_dimension_numbers<[1], [0], [0], [1], [0, 0, 1, 1], [], []>} : vector<16x64xbf16>, vector<64x32xbf16>, vector<16x32xf32> -> vector<16x32xf32>
    %11 = arith.addf %6, %10 : vector<16x32xf32>
    %c0_11 = arith.constant 0 : index
    %c0_12 = arith.constant 0 : index
    %c0_13 = arith.constant 0 : index
    %12 = vector.load %arg4[%c0_11, %c0_12, %c0_13] : memref<1x16x128xbf16, #tpu.memory_space<vmem>>, vector<1x16x128xbf16>
    %13 = vector.shape_cast %12 : vector<1x16x128xbf16> to vector<16x128xbf16>
    %c0_14 = arith.constant 0 : index
    %c0_15 = arith.constant 0 : index
    %14 = vector.load %arg8[%c0_14, %c0_15] : memref<128x32xbf16, #tpu.memory_space<vmem>>, vector<128x32xbf16>
    %cst_16 = arith.constant dense<0.000000e+00> : vector<16x32xf32>
    %15 = tpu.matmul %13, %14, %cst_16 {dimension_numbers = #tpu.dot_dimension_numbers<[1], [0], [0], [1], [0, 0, 1, 1], [], []>} : vector<16x128xbf16>, vector<128x32xbf16>, vector<16x32xf32> -> vector<16x32xf32>
    %16 = arith.addf %11, %15 : vector<16x32xf32>
    %c0_17 = arith.constant 0 : index
    %c0_18 = arith.constant 0 : index
    %c0_19 = arith.constant 0 : index
    %17 = vector.load %arg5[%c0_17, %c0_18, %c0_19] : memref<1x16x256xbf16, #tpu.memory_space<vmem>>, vector<1x16x256xbf16>
    %18 = vector.shape_cast %17 : vector<1x16x256xbf16> to vector<16x256xbf16>
    %c0_20 = arith.constant 0 : index
    %c0_21 = arith.constant 0 : index
    %19 = vector.load %arg9[%c0_20, %c0_21] : memref<256x32xbf16, #tpu.memory_space<vmem>>, vector<256x32xbf16>
    %cst_22 = arith.constant dense<0.000000e+00> : vector<16x32xf32>
    %20 = tpu.matmul %18, %19, %cst_22 {dimension_numbers = #tpu.dot_dimension_numbers<[1], [0], [0], [1], [0, 0, 1, 1], [], []>} : vector<16x256xbf16>, vector<256x32xbf16>, vector<16x32xf32> -> vector<16x32xf32>
    %21 = arith.addf %16, %20 : vector<16x32xf32>
    %c0_23 = arith.constant 0 : index
    %c0_24 = arith.constant 0 : index
    %22 = vector.load %arg10[%c0_23, %c0_24] : memref<1x32xf32, #tpu.memory_space<vmem>>, vector<1x32xf32>
    %23 = vector.broadcast %22 : vector<1x32xf32> to vector<16x32xf32>
    %24 = arith.mulf %21, %23 : vector<16x32xf32>
    %c0_25 = arith.constant 0 : index
    %c0_26 = arith.constant 0 : index
    %25 = vector.load %arg11[%c0_25, %c0_26] : memref<1x32xf32, #tpu.memory_space<vmem>>, vector<1x32xf32>
    %26 = vector.broadcast %25 : vector<1x32xf32> to vector<16x32xf32>
    %27 = arith.addf %24, %26 : vector<16x32xf32>
    %28 = math.tanh %27 : vector<16x32xf32>
    %c16_i32 = arith.constant 16 : i32
    %29 = arith.muli %arg1, %c16_i32 : i32
    %30 = tpu.iota {dimensions = array<i32: 0>} : vector<16x1xi32>
    %31 = vector.broadcast %29 : i32 to vector<16x1xi32>
    %32 = arith.addi %31, %30 : vector<16x1xi32>
    %c16_i32_27 = arith.constant 16 : i32
    %33 = vector.broadcast %c16_i32_27 : i32 to vector<16x1xi32>
    %34 = arith.cmpi slt, %32, %33 : vector<16x1xi32>
    %cst_28 = arith.constant 0xFF800000 : f32
    %35 = vector.shape_cast %34 : vector<16x1xi1> to vector<16x1xi1>
    %36 = vector.broadcast %35 : vector<16x1xi1> to vector<16x32xi1>
    %37 = vector.broadcast %cst_28 : f32 to vector<16x32xf32>
    %38 = arith.select %36, %28, %37 : vector<16x32xi1>, vector<16x32xf32>
    %cst_29 = arith.constant 0.000000e+00 : f32
    %39 = vector.shape_cast %34 : vector<16x1xi1> to vector<16x1xi1>
    %40 = vector.broadcast %39 : vector<16x1xi1> to vector<16x32xi1>
    %41 = vector.broadcast %cst_29 : f32 to vector<16x32xf32>
    %42 = arith.select %40, %28, %41 : vector<16x32xi1>, vector<16x32xf32>
    %c0_30 = arith.constant 0 : index
    %c0_31 = arith.constant 0 : index
    %c0_32 = arith.constant 0 : index
    %43 = vector.load %arg12[%c0_30, %c0_31, %c0_32] : memref<1x1x32xf32, #tpu.memory_space<vmem>>, vector<1x1x32xf32>
    %cst_33 = arith.constant dense<0xFF800000> : vector<32xf32>
    %44 = vector.multi_reduction <maximumf>, %38, %cst_33 [0] : vector<16x32xf32> to vector<32xf32>
    %45 = vector.shape_cast %44 : vector<32xf32> to vector<1x1x32xf32>
    %46 = arith.maximumf %43, %45 : vector<1x1x32xf32>
    %c0_34 = arith.constant 0 : index
    %c0_35 = arith.constant 0 : index
    %c0_36 = arith.constant 0 : index
    %47 = vector.load %arg12[%c0_34, %c0_35, %c0_36] : memref<1x1x32xf32, #tpu.memory_space<vmem>>, vector<1x1x32xf32>
    tpu.vector_store %arg12[%c0_34, %c0_35, %c0_36], %46 {strides = array<i32>} : memref<1x1x32xf32, #tpu.memory_space<vmem>>, vector<1x1x32xf32>,
    %c0_37 = arith.constant 0 : index
    %c0_38 = arith.constant 0 : index
    %c0_39 = arith.constant 0 : index
    %48 = vector.load %arg13[%c0_37, %c0_38, %c0_39] : memref<1x1x32xf32, #tpu.memory_space<vmem>>, vector<1x1x32xf32>
    %cst_40 = arith.constant dense<0.000000e+00> : vector<32xf32>
    %49 = vector.multi_reduction <add>, %42, %cst_40 [0] : vector<16x32xf32> to vector<32xf32>
    %50 = vector.shape_cast %49 : vector<32xf32> to vector<1x1x32xf32>
    %51 = arith.addf %48, %50 : vector<1x1x32xf32>
    %c0_41 = arith.constant 0 : index
    %c0_42 = arith.constant 0 : index
    %c0_43 = arith.constant 0 : index
    %52 = vector.load %arg13[%c0_41, %c0_42, %c0_43] : memref<1x1x32xf32, #tpu.memory_space<vmem>>, vector<1x1x32xf32>
    tpu.vector_store %arg13[%c0_41, %c0_42, %c0_43], %51 {strides = array<i32>} : memref<1x1x32xf32, #tpu.memory_space<vmem>>, vector<1x1x32xf32>,
    %c0_i32_44 = arith.constant 0 : i32
    %53 = arith.cmpi eq, %arg1, %c0_i32_44 : i32
    %54 = arith.extui %53 : i1 to i32
    %c0_i32_45 = arith.constant 0 : i32
    %55 = arith.cmpi ne, %54, %c0_i32_45 : i32
    scf.if %55 {
      %c0_46 = arith.constant 0 : index
      %c0_47 = arith.constant 0 : index
      %c0_48 = arith.constant 0 : index
      %56 = vector.load %arg13[%c0_46, %c0_47, %c0_48] : memref<1x1x32xf32, #tpu.memory_space<vmem>>, vector<1x1x32xf32>
      %cst_49 = arith.constant 6.250000e-02 : f32
      %57 = vector.broadcast %cst_49 : f32 to vector<1x1x32xf32>
      %58 = arith.mulf %56, %57 : vector<1x1x32xf32>
      %c0_50 = arith.constant 0 : index
      %c0_51 = arith.constant 0 : index
      %c0_52 = arith.constant 0 : index
      %59 = vector.load %arg13[%c0_50, %c0_51, %c0_52] : memref<1x1x32xf32, #tpu.memory_space<vmem>>, vector<1x1x32xf32>
      tpu.vector_store %arg13[%c0_50, %c0_51, %c0_52], %58 {strides = array<i32>} : memref<1x1x32xf32, #tpu.memory_space<vmem>>, vector<1x1x32xf32>,
    } else {
    }
    return
  }
  func.func @transform_0(%arg0: i32, %arg1: i32) -> (i32, i32, i32) {
    %c0_i32 = arith.constant 0 : i32
    %c0_i32_0 = arith.constant 0 : i32
    return %arg0, %arg1, %c0_i32 : i32, i32, i32
  }
  func.func @transform_1(%arg0: i32, %arg1: i32) -> (i32, i32, i32) {
    %c0_i32 = arith.constant 0 : i32
    %c0_i32_0 = arith.constant 0 : i32
    return %arg0, %arg1, %c0_i32 : i32, i32, i32
  }
  func.func @transform_2(%arg0: i32, %arg1: i32) -> (i32, i32, i32) {
    %c0_i32 = arith.constant 0 : i32
    %c0_i32_0 = arith.constant 0 : i32
    return %arg0, %arg1, %c0_i32 : i32, i32, i32
  }
  func.func @transform_3(%arg0: i32, %arg1: i32) -> (i32, i32, i32) {
    %c0_i32 = arith.constant 0 : i32
    %c0_i32_0 = arith.constant 0 : i32
    return %arg0, %arg1, %c0_i32 : i32, i32, i32
  }
  func.func @transform_4(%arg0: i32, %arg1: i32) -> (i32, i32) {
    %c0_i32 = arith.constant 0 : i32
    %c0_i32_0 = arith.constant 0 : i32
    %c0_i32_1 = arith.constant 0 : i32
    return %c0_i32, %c0_i32_0 : i32, i32
  }
  func.func @transform_5(%arg0: i32, %arg1: i32) -> (i32, i32) {
    %c0_i32 = arith.constant 0 : i32
    %c0_i32_0 = arith.constant 0 : i32
    %c0_i32_1 = arith.constant 0 : i32
    return %c0_i32, %c0_i32_0 : i32, i32
  }
  func.func @transform_6(%arg0: i32, %arg1: i32) -> (i32, i32) {
    %c0_i32 = arith.constant 0 : i32
    %c0_i32_0 = arith.constant 0 : i32
    %c0_i32_1 = arith.constant 0 : i32
    return %c0_i32, %c0_i32_0 : i32, i32
  }
  func.func @transform_7(%arg0: i32, %arg1: i32) -> (i32, i32) {
    %c0_i32 = arith.constant 0 : i32
    %c0_i32_0 = arith.constant 0 : i32
    %c0_i32_1 = arith.constant 0 : i32
    return %c0_i32, %c0_i32_0 : i32, i32
  }
  func.func @transform_8(%arg0: i32, %arg1: i32) -> (i32, i32) {
    %c0_i32 = arith.constant 0 : i32
    %c0_i32_0 = arith.constant 0 : i32
    %c0_i32_1 = arith.constant 0 : i32
    return %c0_i32, %c0_i32_0 : i32, i32
  }
  func.func @transform_9(%arg0: i32, %arg1: i32) -> (i32, i32) {
    %c0_i32 = arith.constant 0 : i32
    %c0_i32_0 = arith.constant 0 : i32
    %c0_i32_1 = arith.constant 0 : i32
    return %c0_i32, %c0_i32_0 : i32, i32
  }
  func.func @transform_10(%arg0: i32, %arg1: i32) -> (i32, i32, i32) {
    %c0_i32 = arith.constant 0 : i32
    %c0_i32_0 = arith.constant 0 : i32
    %c0_i32_1 = arith.constant 0 : i32
    return %arg0, %c0_i32, %c0_i32_0 : i32, i32, i32
  }
  func.func @transform_11(%arg0: i32, %arg1: i32) -> (i32, i32, i32) {
    %c0_i32 = arith.constant 0 : i32
    %c0_i32_0 = arith.constant 0 : i32
    %c0_i32_1 = arith.constant 0 : i32
    return %arg0, %c0_i32, %c0_i32_0 : i32, i32, i32
  }
}

</mosaic_0001>

<llo_original>
// kernel: neg.5
$region0: #{neg.5}
  #allocation0 [shape = 's32[1]{0}', space=sflag, size = 0x4, scoped, tag = 'scoped memory for neg.5']
  %s0 = inlined_call_operand.vmem [shape: f32[2,16], index: 0, kind: input, shape index: {}]
  %s1 = inlined_call_operand.vmem [shape: f32[2,16], index: 1, kind: output, shape index: {}]
  %v2 = vld [vmem:[%s0] sm:$0x3]
  %3 = xla_tuple %v2
  %4 = xla_tuple %3
  %v5 = vxor.u32 %v2, 2147483648
  %6 = xla_tuple %v5
  %7 = vst [vmem:[%s1] sm:$0x3] %v5

// kernel: shared_module_gcn_forward.11
$region0: #{shared_module_gcn_forward.11}
  #allocation0 [shape = 'u32[]', space=smem, size = 0x4, offset = 0x4, fixed_abs, tag = 'smem constant byte address 0x4 - core index']
  #allocation1 [shape = 'u32[144,128]{1,0:T(1,128)}', space=vmem, size = 0x12000, scoped, tag = 'internal scratch']
  %s0 = inlined_call_operand.vmem [shape: bf16[4,32,4], index: 0, kind: input, shape index: {}]
  %s1 = inlined_call_operand.vmem [shape: bf16[32,4], index: 1, kind: input, shape index: {}]
  %s2 = inlined_call_operand.vmem [shape: bf16[4,64], index: 2, kind: input, shape index: {}]
  %s3 = inlined_call_operand.vmem [shape: bf16[4,64], index: 3, kind: input, shape index: {}]
  %s4 = inlined_call_operand.vmem [shape: f32[1,64], index: 4, kind: input, shape index: {}]
  %s5 = inlined_call_operand.vmem [shape: f32[1,64], index: 5, kind: input, shape index: {}]
  %s6 = inlined_call_operand.vmem [shape: bf16[32,64], index: 6, kind: output, shape index: {}]
  %s7 = sld [smem:[#allocation0]]
  $region34: #{shared_module_gcn_forward.11} parent=0
    _
  %s9 = ssub.s32 1, %s7
  %s10 = scalar_select 0, %s9, %s7
  // Predicated region
  $region2: #{shared_module_gcn_forward.11} parent=0 // pred_check
    _
  $region3: #{shared_module_gcn_forward.11} parent=0 // pred_check_branch
    %12 = sbr.rel (0) target = $region5
  $region4: #{shared_module_gcn_forward.11} parent=0 // pred_region
    _
  $region5: #{shared_module_gcn_forward.11} parent=0 // pred_fallthru
    _
  // Predicated region
  $region6: #{shared_module_gcn_forward.11} parent=0 // pred_check
    _
  $region7: #{shared_module_gcn_forward.11} parent=0 // pred_check_branch
    %14 = sbr.rel (0) target = $region9
  $region8: #{shared_module_gcn_forward.11} parent=0 // pred_region
    _
  $region9: #{shared_module_gcn_forward.11} parent=0 // pred_fallthru
    _
  // Predicated region
  $region10: #{shared_module_gcn_forward.11} parent=0 // pred_check
    _
  $region11: #{shared_module_gcn_forward.11} parent=0 // pred_check_branch
    %16 = sbr.rel (0) target = $region13
  $region12: #{shared_module_gcn_forward.11} parent=0 // pred_region
    _
  $region13: #{shared_module_gcn_forward.11} parent=0 // pred_fallthru
    _
  // Predicated region
  $region14: #{shared_module_gcn_forward.11} parent=0 // pred_check
    _
  $region15: #{shared_module_gcn_forward.11} parent=0 // pred_check_branch
    %18 = sbr.rel (0) target = $region17
  $region16: #{shared_module_gcn_forward.11} parent=0 // pred_region
    _
  $region17: #{shared_module_gcn_forward.11} parent=0 // pred_fallthru
    _
  // Predicated region
  $region18: #{shared_module_gcn_forward.11} parent=0 // pred_check
    _
  $region19: #{shared_module_gcn_forward.11} parent=0 // pred_check_branch
    %20 = sbr.rel (0) target = $region21
  $region20: #{shared_module_gcn_forward.11} parent=0 // pred_region
    _
  $region21: #{shared_module_gcn_forward.11} parent=0 // pred_fallthru
    _
  // Predicated region
  $region22: #{shared_module_gcn_forward.11} parent=0 // pred_check
    _
  $region23: #{shared_module_gcn_forward.11} parent=0 // pred_check_branch
    %22 = sbr.rel (0) target = $region25
  $region24: #{shared_module_gcn_forward.11} parent=0 // pred_region
    _
  $region25: #{shared_module_gcn_forward.11} parent=0 // pred_fallthru
    _
  %v24 = vld [vmem:[%s0] sm:$0xf]
  %v25 = vld [vmem:[%s0 + $0x4] sm:$0xf]
  %v26 = vld [vmem:[%s0 + $0x8] sm:$0xf]
  %v27 = vld [vmem:[%s0 + $0xc] sm:$0xf]
  %v28 = vld [vmem:[%s0 + $0x10] sm:$0xf]
  %v29 = vld [vmem:[%s0 + $0x14] sm:$0xf]
  %v30 = vld [vmem:[%s0 + $0x18] sm:$0xf]
  %v31 = vld [vmem:[%s0 + $0x1c] sm:$0xf]
  %v32 = vld [vmem:[%s0 + $0x20] sm:$0xf]
  %v33 = vld [vmem:[%s0 + $0x24] sm:$0xf]
  %v34 = vld [vmem:[%s0 + $0x28] sm:$0xf]
  %v35 = vld [vmem:[%s0 + $0x2c] sm:$0xf]
  %v36 = vld [vmem:[%s0 + $0x30] sm:$0xf]
  %v37 = vld [vmem:[%s0 + $0x34] sm:$0xf]
  %v38 = vld [vmem:[%s0 + $0x38] sm:$0xf]
  %v39 = vld [vmem:[%s0 + $0x3c] sm:$0xf]
  %v40 = vld [vmem:[%s2] sm:$0x3]
  %v57 = vunpack.c.l.b16 %v24
  %v58 = vunpack.c.l.b16 %v25
  %v59 = vunpack.c.l.b16 %v26
  %v60 = vunpack.c.l.b16 %v27
  %v61 = vunpack.c.l.b16 %v28
  %v62 = vunpack.c.l.b16 %v29
  %v63 = vunpack.c.l.b16 %v30
  %v64 = vunpack.c.l.b16 %v31
  %v65 = vunpack.c.l.b16 %v32
  %v66 = vunpack.c.l.b16 %v33
  %v67 = vunpack.c.l.b16 %v34
  %v68 = vunpack.c.l.b16 %v35
  %v69 = vunpack.c.l.b16 %v36
  %v70 = vunpack.c.l.b16 %v37
  %v71 = vunpack.c.l.b16 %v38
  %v72 = vunpack.c.l.b16 %v39
  %v73 = vpack.c.b16 %v58, %v57
  %v74 = vpack.c.b16 %v60, %v59
  %v75 = vpack.c.b16 %v62, %v61
  %v76 = vpack.c.b16 %v64, %v63
  %v77 = vpack.c.b16 %v66, %v65
  %v78 = vpack.c.b16 %v68, %v67
  %v79 = vpack.c.b16 %v70, %v69
  %v80 = vpack.c.b16 %v72, %v71
  %vm81 = vcmask 31744
  %v83 = vsel %vm81, %v73, 0
  %v86 = vsel %vm81, %v74, 0
  %v89 = vsel %vm81, %v75, 0
  %v92 = vsel %vm81, %v76, 0
  %v95 = vsel %vm81, %v77, 0
  %v98 = vsel %vm81, %v78, 0
  %v101 = vsel %vm81, %v79, 0
  %v104 = vsel %vm81, %v80, 0
  %vm106 = vcmask 1041408
  %v108 = vsel %vm106, %v40, 0
  %110 = vmatprep.subr.bf16.mxu0 0
  %111 = vmatpush1.bf16.msra.mxu0 0
  %112 = vmatprep.subr.bf16.mxu0 0
  %113 = vmatpush1.bf16.msra.mxu0 0
  %114 = vmatprep.subr.bf16.mxu0 0
  %115 = vmatpush1.bf16.msra.mxu0 0
  %116 = vmatprep.subr.bf16.mxu0 0
  %117 = vmatpush1.bf16.msra.mxu0 0
  %118 = vmatprep.subr.bf16.mxu0 0
  %119 = vmatpush1.bf16.msra.mxu0 0
  %120 = vmatprep.subr.bf16.mxu0 0
  %121 = vmatpush1.bf16.msra.mxu0 0
  %122 = vmatprep.subr.bf16.mxu0 0
  %123 = vmatpush1.bf16.msra.mxu0 0
  %124 = vmatprep.subr.bf16.mxu0 0
  %125 = vmatpush1.bf16.msra.mxu0 %v108
  %126 = vmatprep.subr.bf16.mxu0 0
  %127 = vmatpush2.bf16.msra.mxu0 0
  %128 = vmatprep.subr.bf16.mxu0 0
  %129 = vmatpush2.bf16.msra.mxu0 0
  %130 = vmatprep.subr.bf16.mxu0 0
  %131 = vmatpush2.bf16.msra.mxu0 0
  %132 = vmatprep.subr.bf16.mxu0 0
  %133 = vmatpush2.bf16.msra.mxu0 0
  %134 = vmatprep.subr.bf16.mxu0 0
  %135 = vmatpush2.bf16.msra.mxu0 0
  %136 = vmatprep.subr.bf16.mxu0 0
  %137 = vmatpush2.bf16.msra.mxu0 0
  %138 = vmatprep.subr.bf16.mxu0 0
  %139 = vmatpush2.bf16.msra.mxu0 0
  %140 = vmatprep.subr.bf16.mxu0 0
  %141 = vmatpush2.bf16.msra.mxu0 0
  %142 = vmatprep.mubr.bf16.mxu0 0
  %143 = vmatmul.mubr.bf16.gmra.mxu0 %v83
  %v144 = vpop.f32.mrf.mxu0
  %v145 = vadd.f32 0.0, %v144
  %v146 = vpop.f32.mrf.mxu0
  %v147 = vpop.f32.mrf.mxu0
  %v148 = vadd.f32 0.0, %v147
  %v149 = vpop.f32.mrf.mxu0
  %150 = vmatprep.mubr.bf16.mxu0 0
  %151 = vmatmul.mubr.bf16.gmra.mxu0 %v86
  %v152 = vpop.f32.mrf.mxu0
  %v153 = vadd.f32 0.0, %v152
  %v154 = vpop.f32.mrf.mxu0
  %v155 = vpop.f32.mrf.mxu0
  %v156 = vadd.f32 0.0, %v155
  %v157 = vpop.f32.mrf.mxu0
  %158 = vmatprep.mubr.bf16.mxu0 0
  %159 = vmatmul.mubr.bf16.gmra.mxu0 %v89
  %v160 = vpop.f32.mrf.mxu0
  %v161 = vadd.f32 0.0, %v160
  %v162 = vpop.f32.mrf.mxu0
  %v163 = vpop.f32.mrf.mxu0
  %v164 = vadd.f32 0.0, %v163
  %v165 = vpop.f32.mrf.mxu0
  %166 = vmatprep.mubr.bf16.mxu0 0
  %167 = vmatmul.mubr.bf16.gmra.mxu0 %v92
  %v168 = vpop.f32.mrf.mxu0
  %v169 = vadd.f32 0.0, %v168
  %v170 = vpop.f32.mrf.mxu0
  %v171 = vpop.f32.mrf.mxu0
  %v172 = vadd.f32 0.0, %v171
  %v173 = vpop.f32.mrf.mxu0
  %174 = vmatprep.mubr.bf16.mxu0 0
  %175 = vmatmul.mubr.bf16.gmra.mxu0 %v95
  %v176 = vpop.f32.mrf.mxu0
  %v177 = vadd.f32 0.0, %v176
  %v178 = vpop.f32.mrf.mxu0
  %v179 = vpop.f32.mrf.mxu0
  %v180 = vadd.f32 0.0, %v179
  %v181 = vpop.f32.mrf.mxu0
  %182 = vmatprep.mubr.bf16.mxu0 0
  %183 = vmatmul.mubr.bf16.gmra.mxu0 %v98
  %v184 = vpop.f32.mrf.mxu0
  %v185 = vadd.f32 0.0, %v184
  %v186 = vpop.f32.mrf.mxu0
  %v187 = vpop.f32.mrf.mxu0
  %v188 = vadd.f32 0.0, %v187
  %v189 = vpop.f32.mrf.mxu0
  %190 = vmatprep.mubr.bf16.mxu0 0
  %191 = vmatmul.mubr.bf16.gmra.mxu0 %v101
  %v192 = vpop.f32.mrf.mxu0
  %v193 = vadd.f32 0.0, %v192
  %v194 = vpop.f32.mrf.mxu0
  %v195 = vpop.f32.mrf.mxu0
  %v196 = vadd.f32 0.0, %v195
  %v197 = vpop.f32.mrf.mxu0
  %198 = vmatprep.mubr.bf16.mxu0 0
  %199 = vmatmul.mubr.bf16.gmra.mxu0 %v104
  %v200 = vpop.f32.mrf.mxu0
  %v201 = vadd.f32 0.0, %v200
  %v202 = vpop.f32.mrf.mxu0
  %v203 = vpop.f32.mrf.mxu0
  %v204 = vadd.f32 0.0, %v203
  %v205 = vpop.f32.mrf.mxu0
  %206 = vdwg.mxu0
  %v207 = vld [vmem:[%s1] sm:$0xf]
  %v208 = vld [vmem:[%s1 + $0x4] sm:$0xf]
  %v209 = vld [vmem:[%s1 + $0x8] sm:$0xf]
  %v210 = vld [vmem:[%s1 + $0xc] sm:$0xf]
  %v211 = vld [vmem:[%s3] sm:$0x3]
  %v216 = vunpack.c.l.b16 %v207
  %v217 = vunpack.c.l.b16 %v208
  %v218 = vunpack.c.l.b16 %v209
  %v219 = vunpack.c.l.b16 %v210
  %v220 = vpack.c.b16 %v217, %v216
  %v221 = vpack.c.b16 %v219, %v218
  %v223 = vsel %vm81, %v220, 0
  %v226 = vsel %vm81, %v221, 0
  %v229 = vsel %vm106, %v211, 0
  %231 = vmatprep.subr.bf16.mxu0 0
  %232 = vmatpush1.bf16.msra.mxu0 0
  %233 = vmatprep.subr.bf16.mxu0 0
  %234 = vmatpush1.bf16.msra.mxu0 0
  %235 = vmatprep.subr.bf16.mxu0 0
  %236 = vmatpush1.bf16.msra.mxu0 0
  %237 = vmatprep.subr.bf16.mxu0 0
  %238 = vmatpush1.bf16.msra.mxu0 0
  %239 = vmatprep.subr.bf16.mxu0 0
  %240 = vmatpush1.bf16.msra.mxu0 0
  %241 = vmatprep.subr.bf16.mxu0 0
  %242 = vmatpush1.bf16.msra.mxu0 0
  %243 = vmatprep.subr.bf16.mxu0 0
  %244 = vmatpush1.bf16.msra.mxu0 0
  %245 = vmatprep.subr.bf16.mxu0 0
  %246 = vmatpush1.bf16.msra.mxu0 %v229
  %247 = vmatprep.subr.bf16.mxu0 0
  %248 = vmatpush2.bf16.msra.mxu0 0
  %249 = vmatprep.subr.bf16.mxu0 0
  %250 = vmatpush2.bf16.msra.mxu0 0
  %251 = vmatprep.subr.bf16.mxu0 0
  %252 = vmatpush2.bf16.msra.mxu0 0
  %253 = vmatprep.subr.bf16.mxu0 0
  %254 = vmatpush2.bf16.msra.mxu0 0
  %255 = vmatprep.subr.bf16.mxu0 0
  %256 = vmatpush2.bf16.msra.mxu0 0
  %257 = vmatprep.subr.bf16.mxu0 0
  %258 = vmatpush2.bf16.msra.mxu0 0
  %259 = vmatprep.subr.bf16.mxu0 0
  %260 = vmatpush2.bf16.msra.mxu0 0
  %261 = vmatprep.subr.bf16.mxu0 0
  %262 = vmatpush2.bf16.msra.mxu0 0
  %263 = vmatprep.mubr.bf16.mxu0 0
  %264 = vmatmul.mubr.bf16.gmra.mxu0 %v223
  %v265 = vpop.f32.mrf.mxu0
  %v266 = vadd.f32 0.0, %v265
  %v267 = vpop.f32.mrf.mxu0
  %v268 = vpop.f32.mrf.mxu0
  %v269 = vadd.f32 0.0, %v268
  %v270 = vpop.f32.mrf.mxu0
  %271 = vmatprep.mubr.bf16.mxu0 0
  %272 = vmatmul.mubr.bf16.gmra.mxu0 %v226
  %v273 = vpop.f32.mrf.mxu0
  %v274 = vadd.f32 0.0, %v273
  %v275 = vpop.f32.mrf.mxu0
  %v276 = vpop.f32.mrf.mxu0
  %v277 = vadd.f32 0.0, %v276
  %v278 = vpop.f32.mrf.mxu0
  %279 = vdwg.mxu0
  %vm280 = vcmask 523264
  %v281 = vsel %vm280, %v145, -inf
  %v282 = vsel %vm280, %v161, -inf
  %v283 = vmax.f32 %v281, %v282
  %v284 = vsel %vm280, %v177, -inf
  %v285 = vmax.f32 %v283, %v284
  %v286 = vsel %vm280, %v193, -inf
  %v287 = vmax.f32 %v285, %v286
  %v288 = vsel %vm280, %v148, -inf
  %v289 = vsel %vm280, %v164, -inf
  %v290 = vmax.f32 %v288, %v289
  %v291 = vsel %vm280, %v180, -inf
  %v292 = vmax.f32 %v290, %v291
  %v293 = vsel %vm280, %v196, -inf
  %v294 = vmax.f32 %v292, %v293
  %v295 = vsel %vm280, %v153, -inf
  %v296 = vsel %vm280, %v169, -inf
  %v297 = vmax.f32 %v295, %v296
  %v298 = vsel %vm280, %v185, -inf
  %v299 = vmax.f32 %v297, %v298
  %v300 = vsel %vm280, %v201, -inf
  %v301 = vmax.f32 %v299, %v300
  %v302 = vsel %vm280, %v156, -inf
  %v303 = vsel %vm280, %v172, -inf
  %v304 = vmax.f32 %v302, %v303
  %v305 = vsel %vm280, %v188, -inf
  %v306 = vmax.f32 %v304, %v305
  %v307 = vsel %vm280, %v204, -inf
  %v308 = vmax.f32 %v306, %v307
  %v309 = vsel %vm280, %v145, inf
  %v310 = vsel %vm280, %v161, inf
  %v311 = vmin.f32 %v309, %v310
  %v312 = vsel %vm280, %v177, inf
  %v313 = vmin.f32 %v311, %v312
  %v314 = vsel %vm280, %v193, inf
  %v315 = vmin.f32 %v313, %v314
  %v316 = vsel %vm280, %v148, inf
  %v317 = vsel %vm280, %v164, inf
  %v318 = vmin.f32 %v316, %v317
  %v319 = vsel %vm280, %v180, inf
  %v320 = vmin.f32 %v318, %v319
  %v321 = vsel %vm280, %v196, inf
  %v322 = vmin.f32 %v320, %v321
  %v323 = vsel %vm280, %v153, inf
  %v324 = vsel %vm280, %v169, inf
  %v325 = vmin.f32 %v323, %v324
  %v326 = vsel %vm280, %v185, inf
  %v327 = vmin.f32 %v325, %v326
  %v328 = vsel %vm280, %v201, inf
  %v329 = vmin.f32 %v327, %v328
  %v330 = vsel %vm280, %v156, inf
  %v331 = vsel %vm280, %v172, inf
  %v332 = vmin.f32 %v330, %v331
  %v333 = vsel %vm280, %v188, inf
  %v334 = vmin.f32 %v332, %v333
  %v335 = vsel %vm280, %v204, inf
  %v336 = vmin.f32 %v334, %v335
  %v337 = vld [vmem:[%s4] sm:$0x1]
  %v338 = vld [vmem:[%s5] sm:$0x1]
  %vm339 = vcmp.ge.f32.partialorder %v337, 0.0
  %v340 = vsel %vm339, 1, 0
  %v341 = vlaneseq
  %v342 = vshrl.u32 %v341, 7
  %v343 = vsub.s32 0, %v342
  %v344 = vrot.slane %v340, %v343
  %vm345 = vcmp.eq.s32.totalorder %v344, 1
  %v346 = vsel %vm345, %v287, %v315
  %v347 = vsel %vm345, %v294, %v322
  %v348 = vsel %vm345, %v301, %v329
  %v349 = vsel %vm345, %v308, %v336
  %v350 = vadd.f32 %v346, %v266
  %v351 = vadd.f32 %v347, %v269
  %v352 = vadd.f32 %v348, %v274
  %v353 = vadd.f32 %v349, %v277
  %v355 = vlaneseq
  %v356 = vshrl.u32 %v355, 7
  %v357 = vsub.s32 0, %v356
  %v358 = vrot.slane %v337, %v357
  %v360 = vmul.f32 %v350, %v358
  %v361 = vmul.f32 %v351, %v358
  %v362 = vmul.f32 %v352, %v358
  %v363 = vmul.f32 %v353, %v358
  %v365 = vlaneseq
  %v366 = vshrl.u32 %v365, 7
  %v367 = vsub.s32 0, %v366
  %v368 = vrot.slane %v338, %v367
  %v370 = vadd.f32 %v360, %v368
  %v371 = vadd.f32 %v361, %v368
  %v372 = vadd.f32 %v362, %v368
  %v373 = vadd.f32 %v363, %v368
  %v374 = vtanh.pop %v370
  %v375 = vtanh.pop %v371
  %v376 = vtanh.pop %v372
  %v377 = vtanh.pop %v373
  %v378 = vpack.c.bf16 %v375, %v374
  %v379 = vpack.c.bf16 %v377, %v376
  %v382 = vunpack.c.l.b16 %v378
  %v383 = vunpack.c.h.b16 %v378
  %v384 = vunpack.c.l.b16 %v379
  %v385 = vunpack.c.h.b16 %v379
  %v386 = vpack.c.b16 %v382, %v382
  %v387 = vpack.c.b16 %v383, %v383
  %v388 = vpack.c.b16 %v384, %v384
  %v389 = vpack.c.b16 %v385, %v385
  %vm394 = vcmask 519168
  %395 = vst.msk [vmem:[%s6] sm:$0xf] %vm394, %v386
  %396 = vst.msk [vmem:[%s6 + $0x4] sm:$0xf] %vm394, %v387
  %397 = vst.msk [vmem:[%s6 + $0x8] sm:$0xf] %vm394, %v388
  %398 = vst.msk [vmem:[%s6 + $0xc] sm:$0xf] %vm394, %v389
  // Predicated region
  $region26: #{shared_module_gcn_forward.11} parent=0 // pred_check
    _
  $region27: #{shared_module_gcn_forward.11} parent=0 // pred_check_branch
    %400 = sbr.rel (0) target = $region29
  $region28: #{shared_module_gcn_forward.11} parent=0 // pred_region
    _
  $region29: #{shared_module_gcn_forward.11} parent=0 // pred_fallthru
    _
  // Predicated region
  $region30: #{shared_module_gcn_forward.11} parent=0 // pred_check
    _
  $region31: #{shared_module_gcn_forward.11} parent=0 // pred_check_branch
    %402 = sbr.rel (0) target = $region33
  $region32: #{shared_module_gcn_forward.11} parent=0 // pred_region
    _
  $region33: #{shared_module_gcn_forward.11} parent=0 // pred_fallthru
    _

// kernel: shared_module_gcn_forward.10
$region0: #{shared_module_gcn_forward.10}
  #allocation0 [shape = 'u32[]', space=smem, size = 0x4, offset = 0x4, fixed_abs, tag = 'smem constant byte address 0x4 - core index']
  #allocation1 [shape = 'u32[144,128]{1,0:T(1,128)}', space=vmem, size = 0x12000, scoped, tag = 'internal scratch']
  %s0 = inlined_call_operand.vmem [shape: bf16[4,32,4], index: 0, kind: input, shape index: {}]
  %s1 = inlined_call_operand.vmem [shape: bf16[32,4], index: 1, kind: input, shape index: {}]
  %s2 = inlined_call_operand.vmem [shape: bf16[4,64], index: 2, kind: input, shape index: {}]
  %s3 = inlined_call_operand.vmem [shape: bf16[4,64], index: 3, kind: input, shape index: {}]
  %s4 = inlined_call_operand.vmem [shape: f32[1,8,64], index: 4, kind: output, shape index: {0}]
  %s5 = inlined_call_operand.vmem [shape: f32[1,8,64], index: 5, kind: output, shape index: {1}]
  %6 = xla_tuple %s4, %s5
  %s7 = sld [smem:[#allocation0]]
  $region38: #{shared_module_gcn_forward.10} parent=0
    _
  %s9 = ssub.s32 1, %s7
  %s10 = scalar_select 0, %s9, %s7
  // Predicated region
  $region2: #{shared_module_gcn_forward.10} parent=0 // pred_check
    _
  $region3: #{shared_module_gcn_forward.10} parent=0 // pred_check_branch
    %12 = sbr.rel (0) target = $region5
  $region4: #{shared_module_gcn_forward.10} parent=0 // pred_region
    %s13 = sadd.s32 0, 0
    %s14 = smul.u32 4, %s13
    %p15 = scmp.lt.s32.totalorder %s14, 3
    %s16 = scalar_select %p15, %s14, 3
    %s17 = smul.addr %s16, 4
    %s18 = scalar_lea.vmem %s0, %s17
    %s19 = sadd.s32 0, 0
    %s20 = smul.u32 4, %s19
  $region5: #{shared_module_gcn_forward.10} parent=0 // pred_fallthru
    _
  // Predicated region
  $region6: #{shared_module_gcn_forward.10} parent=0 // pred_check
    _
  $region7: #{shared_module_gcn_forward.10} parent=0 // pred_check_branch
    %22 = sbr.rel (0) target = $region9
  $region8: #{shared_module_gcn_forward.10} parent=0 // pred_region
    %s23 = sadd.s32 0, 0
    %s24 = smul.u32 4, %s23
    %p25 = scmp.lt.s32.totalorder %s24, 3
    %s26 = scalar_select %p25, %s24, 3
    %s27 = smul.addr %s26, 4
    %s28 = scalar_lea.vmem %s1, %s27
    %s29 = sadd.s32 0, 0
    %s30 = smul.u32 4, %s29
  $region9: #{shared_module_gcn_forward.10} parent=0 // pred_fallthru
    _
  // Predicated region
  $region10: #{shared_module_gcn_forward.10} parent=0 // pred_check
    _
  $region11: #{shared_module_gcn_forward.10} parent=0 // pred_check_branch
    %32 = sbr.rel (0) target = $region13
  $region12: #{shared_module_gcn_forward.10} parent=0 // pred_region
    _
  $region13: #{shared_module_gcn_forward.10} parent=0 // pred_fallthru
    _
  // Predicated region
  $region14: #{shared_module_gcn_forward.10} parent=0 // pred_check
    _
  $region15: #{shared_module_gcn_forward.10} parent=0 // pred_check_branch
    %34 = sbr.rel (0) target = $region17
  $region16: #{shared_module_gcn_forward.10} parent=0 // pred_region
    _
  $region17: #{shared_module_gcn_forward.10} parent=0 // pred_fallthru
    _
  %s35 = sadd.s32 0, 0
  %s36 = smul.u32 4, %s35
  %p37 = scmp.lt.s32.totalorder %s36, 3
  %s38 = scalar_select %p37, %s36, 3
  %s39 = smul.addr %s38, 4
  %s40 = scalar_lea.vmem %s0, %s39
  %s41 = sadd.s32 0, 0
  %s42 = smul.u32 4, %s41
  %p43 = scmp.lt.s32.totalorder %s42, 3
  %s44 = scalar_select %p43, %s42, 3
  %s45 = smul.addr %s44, 4
  %s46 = scalar_lea.vmem %s1, %s45
  %s47 = sadd.s32 0, 0
  %s48 = smul.u32 4, %s47
  %p49 = scmp.lt.s32.totalorder %s48, 3
  %s50 = scalar_select %p49, %s48, 3
  %s51 = smul.addr %s50, 4
  %s52 = scalar_lea.vmem %s0, %s51
  %s53 = sadd.s32 0, 0
  %s54 = smul.u32 4, %s53
  %s55 = sadd.s32 0, 0
  %s56 = smul.u32 4, %s55
  %p57 = scmp.lt.s32.totalorder %s56, 3
  %s58 = scalar_select %p57, %s56, 3
  %s59 = smul.addr %s58, 4
  %s60 = scalar_lea.vmem %s1, %s59
  %s61 = sadd.s32 0, 0
  %s62 = smul.u32 4, %s61
  %p64 = scmp.eq.s32.totalorder 0, 0
  // Predicated region
  $region18: #{shared_module_gcn_forward.10} parent=0 // pred_check
    %p65 = pneg %p64
  $region19: #{shared_module_gcn_forward.10} parent=0 // pred_check_branch
    %67 = sbr.rel (%p65) target = $region21
  $region20: #{shared_module_gcn_forward.10} parent=0 // pred_region
    %vm68 = vcmask 523264
    %69 = vst.msk [vmem:[%s4] sm:$0xff] %vm68, 0.0
    %70 = vst.msk [vmem:[%s5] sm:$0xff] %vm68, 0.0
  $region21: #{shared_module_gcn_forward.10} parent=0 // pred_fallthru
    _
  %v71 = vld [vmem:[%s52] sm:$0xf]
  %v72 = vld [vmem:[%s52 + $0x4] sm:$0xf]
  %v73 = vld [vmem:[%s52 + $0x8] sm:$0xf]
  %v74 = vld [vmem:[%s52 + $0xc] sm:$0xf]
  %v75 = vld [vmem:[%s52 + $0x10] sm:$0xf]
  %v76 = vld [vmem:[%s52 + $0x14] sm:$0xf]
  %v77 = vld [vmem:[%s52 + $0x18] sm:$0xf]
  %v78 = vld [vmem:[%s52 + $0x1c] sm:$0xf]
  %v79 = vld [vmem:[%s52 + $0x20] sm:$0xf]
  %v80 = vld [vmem:[%s52 + $0x24] sm:$0xf]
  %v81 = vld [vmem:[%s52 + $0x28] sm:$0xf]
  %v82 = vld [vmem:[%s52 + $0x2c] sm:$0xf]
  %v83 = vld [vmem:[%s52 + $0x30] sm:$0xf]
  %v84 = vld [vmem:[%s52 + $0x34] sm:$0xf]
  %v85 = vld [vmem:[%s52 + $0x38] sm:$0xf]
  %v86 = vld [vmem:[%s52 + $0x3c] sm:$0xf]
  %v87 = vld [vmem:[%s2] sm:$0x3]
  %v104 = vunpack.c.l.b16 %v71
  %v105 = vunpack.c.l.b16 %v72
  %v106 = vunpack.c.l.b16 %v73
  %v107 = vunpack.c.l.b16 %v74
  %v108 = vunpack.c.l.b16 %v75
  %v109 = vunpack.c.l.b16 %v76
  %v110 = vunpack.c.l.b16 %v77
  %v111 = vunpack.c.l.b16 %v78
  %v112 = vunpack.c.l.b16 %v79
  %v113 = vunpack.c.l.b16 %v80
  %v114 = vunpack.c.l.b16 %v81
  %v115 = vunpack.c.l.b16 %v82
  %v116 = vunpack.c.l.b16 %v83
  %v117 = vunpack.c.l.b16 %v84
  %v118 = vunpack.c.l.b16 %v85
  %v119 = vunpack.c.l.b16 %v86
  %v120 = vpack.c.b16 %v105, %v104
  %v121 = vpack.c.b16 %v107, %v106
  %v122 = vpack.c.b16 %v109, %v108
  %v123 = vpack.c.b16 %v111, %v110
  %v124 = vpack.c.b16 %v113, %v112
  %v125 = vpack.c.b16 %v115, %v114
  %v126 = vpack.c.b16 %v117, %v116
  %v127 = vpack.c.b16 %v119, %v118
  %vm128 = vcmask 31744
  %v130 = vsel %vm128, %v120, 0
  %v133 = vsel %vm128, %v121, 0
  %v136 = vsel %vm128, %v122, 0
  %v139 = vsel %vm128, %v123, 0
  %v142 = vsel %vm128, %v124, 0
  %v145 = vsel %vm128, %v125, 0
  %v148 = vsel %vm128, %v126, 0
  %v151 = vsel %vm128, %v127, 0
  %vm153 = vcmask 1041408
  %v155 = vsel %vm153, %v87, 0
  %157 = vmatprep.subr.bf16.mxu0 0
  %158 = vmatpush1.bf16.msra.mxu0 0
  %159 = vmatprep.subr.bf16.mxu0 0
  %160 = vmatpush1.bf16.msra.mxu0 0
  %161 = vmatprep.subr.bf16.mxu0 0
  %162 = vmatpush1.bf16.msra.mxu0 0
  %163 = vmatprep.subr.bf16.mxu0 0
  %164 = vmatpush1.bf16.msra.mxu0 0
  %165 = vmatprep.subr.bf16.mxu0 0
  %166 = vmatpush1.bf16.msra.mxu0 0
  %167 = vmatprep.subr.bf16.mxu0 0
  %168 = vmatpush1.bf16.msra.mxu0 0
  %169 = vmatprep.subr.bf16.mxu0 0
  %170 = vmatpush1.bf16.msra.mxu0 0
  %171 = vmatprep.subr.bf16.mxu0 0
  %172 = vmatpush1.bf16.msra.mxu0 %v155
  %173 = vmatprep.subr.bf16.mxu0 0
  %174 = vmatpush2.bf16.msra.mxu0 0
  %175 = vmatprep.subr.bf16.mxu0 0
  %176 = vmatpush2.bf16.msra.mxu0 0
  %177 = vmatprep.subr.bf16.mxu0 0
  %178 = vmatpush2.bf16.msra.mxu0 0
  %179 = vmatprep.subr.bf16.mxu0 0
  %180 = vmatpush2.bf16.msra.mxu0 0
  %181 = vmatprep.subr.bf16.mxu0 0
  %182 = vmatpush2.bf16.msra.mxu0 0
  %183 = vmatprep.subr.bf16.mxu0 0
  %184 = vmatpush2.bf16.msra.mxu0 0
  %185 = vmatprep.subr.bf16.mxu0 0
  %186 = vmatpush2.bf16.msra.mxu0 0
  %187 = vmatprep.subr.bf16.mxu0 0
  %188 = vmatpush2.bf16.msra.mxu0 0
  %189 = vmatprep.mubr.bf16.mxu0 0
  %190 = vmatmul.mubr.bf16.gmra.mxu0 %v130
  %v191 = vpop.f32.mrf.mxu0
  %v192 = vadd.f32 0.0, %v191
  %v193 = vpop.f32.mrf.mxu0
  %v194 = vpop.f32.mrf.mxu0
  %v195 = vadd.f32 0.0, %v194
  %v196 = vpop.f32.mrf.mxu0
  %197 = vmatprep.mubr.bf16.mxu0 0
  %198 = vmatmul.mubr.bf16.gmra.mxu0 %v133
  %v199 = vpop.f32.mrf.mxu0
  %v200 = vadd.f32 0.0, %v199
  %v201 = vpop.f32.mrf.mxu0
  %v202 = vpop.f32.mrf.mxu0
  %v203 = vadd.f32 0.0, %v202
  %v204 = vpop.f32.mrf.mxu0
  %205 = vmatprep.mubr.bf16.mxu0 0
  %206 = vmatmul.mubr.bf16.gmra.mxu0 %v136
  %v207 = vpop.f32.mrf.mxu0
  %v208 = vadd.f32 0.0, %v207
  %v209 = vpop.f32.mrf.mxu0
  %v210 = vpop.f32.mrf.mxu0
  %v211 = vadd.f32 0.0, %v210
  %v212 = vpop.f32.mrf.mxu0
  %213 = vmatprep.mubr.bf16.mxu0 0
  %214 = vmatmul.mubr.bf16.gmra.mxu0 %v139
  %v215 = vpop.f32.mrf.mxu0
  %v216 = vadd.f32 0.0, %v215
  %v217 = vpop.f32.mrf.mxu0
  %v218 = vpop.f32.mrf.mxu0
  %v219 = vadd.f32 0.0, %v218
  %v220 = vpop.f32.mrf.mxu0
  %221 = vmatprep.mubr.bf16.mxu0 0
  %222 = vmatmul.mubr.bf16.gmra.mxu0 %v142
  %v223 = vpop.f32.mrf.mxu0
  %v224 = vadd.f32 0.0, %v223
  %v225 = vpop.f32.mrf.mxu0
  %v226 = vpop.f32.mrf.mxu0
  %v227 = vadd.f32 0.0, %v226
  %v228 = vpop.f32.mrf.mxu0
  %229 = vmatprep.mubr.bf16.mxu0 0
  %230 = vmatmul.mubr.bf16.gmra.mxu0 %v145
  %v231 = vpop.f32.mrf.mxu0
  %v232 = vadd.f32 0.0, %v231
  %v233 = vpop.f32.mrf.mxu0
  %v234 = vpop.f32.mrf.mxu0
  %v235 = vadd.f32 0.0, %v234
  %v236 = vpop.f32.mrf.mxu0
  %237 = vmatprep.mubr.bf16.mxu0 0
  %238 = vmatmul.mubr.bf16.gmra.mxu0 %v148
  %v239 = vpop.f32.mrf.mxu0
  %v240 = vadd.f32 0.0, %v239
  %v241 = vpop.f32.mrf.mxu0
  %v242 = vpop.f32.mrf.mxu0
  %v243 = vadd.f32 0.0, %v242
  %v244 = vpop.f32.mrf.mxu0
  %245 = vmatprep.mubr.bf16.mxu0 0
  %246 = vmatmul.mubr.bf16.gmra.mxu0 %v151
  %v247 = vpop.f32.mrf.mxu0
  %v248 = vadd.f32 0.0, %v247
  %v249 = vpop.f32.mrf.mxu0
  %v250 = vpop.f32.mrf.mxu0
  %v251 = vadd.f32 0.0, %v250
  %v252 = vpop.f32.mrf.mxu0
  %253 = vdwg.mxu0
  %v254 = vld [vmem:[%s60] sm:$0xf]
  %v255 = vld [vmem:[%s60 + $0x4] sm:$0xf]
  %v256 = vld [vmem:[%s60 + $0x8] sm:$0xf]
  %v257 = vld [vmem:[%s60 + $0xc] sm:$0xf]
  %v258 = vld [vmem:[%s3] sm:$0x3]
  %v263 = vunpack.c.l.b16 %v254
  %v264 = vunpack.c.l.b16 %v255
  %v265 = vunpack.c.l.b16 %v256
  %v266 = vunpack.c.l.b16 %v257
  %v267 = vpack.c.b16 %v264, %v263
  %v268 = vpack.c.b16 %v266, %v265
  %v270 = vsel %vm128, %v267, 0
  %v273 = vsel %vm128, %v268, 0
  %v276 = vsel %vm153, %v258, 0
  %278 = vmatprep.subr.bf16.mxu0 0
  %279 = vmatpush1.bf16.msra.mxu0 0
  %280 = vmatprep.subr.bf16.mxu0 0
  %281 = vmatpush1.bf16.msra.mxu0 0
  %282 = vmatprep.subr.bf16.mxu0 0
  %283 = vmatpush1.bf16.msra.mxu0 0
  %284 = vmatprep.subr.bf16.mxu0 0
  %285 = vmatpush1.bf16.msra.mxu0 0
  %286 = vmatprep.subr.bf16.mxu0 0
  %287 = vmatpush1.bf16.msra.mxu0 0
  %288 = vmatprep.subr.bf16.mxu0 0
  %289 = vmatpush1.bf16.msra.mxu0 0
  %290 = vmatprep.subr.bf16.mxu0 0
  %291 = vmatpush1.bf16.msra.mxu0 0
  %292 = vmatprep.subr.bf16.mxu0 0
  %293 = vmatpush1.bf16.msra.mxu0 %v276
  %294 = vmatprep.subr.bf16.mxu0 0
  %295 = vmatpush2.bf16.msra.mxu0 0
  %296 = vmatprep.subr.bf16.mxu0 0
  %297 = vmatpush2.bf16.msra.mxu0 0
  %298 = vmatprep.subr.bf16.mxu0 0
  %299 = vmatpush2.bf16.msra.mxu0 0
  %300 = vmatprep.subr.bf16.mxu0 0
  %301 = vmatpush2.bf16.msra.mxu0 0
  %302 = vmatprep.subr.bf16.mxu0 0
  %303 = vmatpush2.bf16.msra.mxu0 0
  %304 = vmatprep.subr.bf16.mxu0 0
  %305 = vmatpush2.bf16.msra.mxu0 0
  %306 = vmatprep.subr.bf16.mxu0 0
  %307 = vmatpush2.bf16.msra.mxu0 0
  %308 = vmatprep.subr.bf16.mxu0 0
  %309 = vmatpush2.bf16.msra.mxu0 0
  %310 = vmatprep.mubr.bf16.mxu0 0
  %311 = vmatmul.mubr.bf16.gmra.mxu0 %v270
  %v312 = vpop.f32.mrf.mxu0
  %v313 = vadd.f32 0.0, %v312
  %v314 = vpop.f32.mrf.mxu0
  %v315 = vpop.f32.mrf.mxu0
  %v316 = vadd.f32 0.0, %v315
  %v317 = vpop.f32.mrf.mxu0
  %318 = vmatprep.mubr.bf16.mxu0 0
  %319 = vmatmul.mubr.bf16.gmra.mxu0 %v273
  %v320 = vpop.f32.mrf.mxu0
  %v321 = vadd.f32 0.0, %v320
  %v322 = vpop.f32.mrf.mxu0
  %v323 = vpop.f32.mrf.mxu0
  %v324 = vadd.f32 0.0, %v323
  %v325 = vpop.f32.mrf.mxu0
  %326 = vdwg.mxu0
  %vm327 = vcmask 523264
  %v328 = vsel %vm327, %v192, 0.0
  %v329 = vsel %vm327, %v208, 0.0
  %v330 = vadd.f32 %v328, %v329
  %v331 = vsel %vm327, %v224, 0.0
  %v332 = vadd.f32 %v330, %v331
  %v333 = vsel %vm327, %v240, 0.0
  %v334 = vadd.f32 %v332, %v333
  %v335 = vsel %vm327, %v195, 0.0
  %v336 = vsel %vm327, %v211, 0.0
  %v337 = vadd.f32 %v335, %v336
  %v338 = vsel %vm327, %v227, 0.0
  %v339 = vadd.f32 %v337, %v338
  %v340 = vsel %vm327, %v243, 0.0
  %v341 = vadd.f32 %v339, %v340
  %v342 = vsel %vm327, %v200, 0.0
  %v343 = vsel %vm327, %v216, 0.0
  %v344 = vadd.f32 %v342, %v343
  %v345 = vsel %vm327, %v232, 0.0
  %v346 = vadd.f32 %v344, %v345
  %v347 = vsel %vm327, %v248, 0.0
  %v348 = vadd.f32 %v346, %v347
  %v349 = vsel %vm327, %v203, 0.0
  %v350 = vsel %vm327, %v219, 0.0
  %v351 = vadd.f32 %v349, %v350
  %v352 = vsel %vm327, %v235, 0.0
  %v353 = vadd.f32 %v351, %v352
  %v354 = vsel %vm327, %v251, 0.0
  %v355 = vadd.f32 %v353, %v354
  %v356 = vmul.f32 %v192, %v192
  %v357 = vmul.f32 %v195, %v195
  %v358 = vmul.f32 %v200, %v200
  %v359 = vmul.f32 %v203, %v203
  %v360 = vmul.f32 %v208, %v208
  %v361 = vmul.f32 %v211, %v211
  %v362 = vmul.f32 %v216, %v216
  %v363 = vmul.f32 %v219, %v219
  %v364 = vmul.f32 %v224, %v224
  %v365 = vmul.f32 %v227, %v227
  %v366 = vmul.f32 %v232, %v232
  %v367 = vmul.f32 %v235, %v235
  %v368 = vmul.f32 %v240, %v240
  %v369 = vmul.f32 %v243, %v243
  %v370 = vmul.f32 %v248, %v248
  %v371 = vmul.f32 %v251, %v251
  %v372 = vsel %vm327, %v356, 0.0
  %v373 = vsel %vm327, %v360, 0.0
  %v374 = vadd.f32 %v372, %v373
  %v375 = vsel %vm327, %v364, 0.0
  %v376 = vadd.f32 %v374, %v375
  %v377 = vsel %vm327, %v368, 0.0
  %v378 = vadd.f32 %v376, %v377
  %v379 = vsel %vm327, %v357, 0.0
  %v380 = vsel %vm327, %v361, 0.0
  %v381 = vadd.f32 %v379, %v380
  %v382 = vsel %vm327, %v365, 0.0
  %v383 = vadd.f32 %v381, %v382
  %v384 = vsel %vm327, %v369, 0.0
  %v385 = vadd.f32 %v383, %v384
  %v386 = vsel %vm327, %v358, 0.0
  %v387 = vsel %vm327, %v362, 0.0
  %v388 = vadd.f32 %v386, %v387
  %v389 = vsel %vm327, %v366, 0.0
  %v390 = vadd.f32 %v388, %v389
  %v391 = vsel %vm327, %v370, 0.0
  %v392 = vadd.f32 %v390, %v391
  %v393 = vsel %vm327, %v359, 0.0
  %v394 = vsel %vm327, %v363, 0.0
  %v395 = vadd.f32 %v393, %v394
  %v396 = vsel %vm327, %v367, 0.0
  %v397 = vadd.f32 %v395, %v396
  %v398 = vsel %vm327, %v371, 0.0
  %v399 = vadd.f32 %v397, %v398
  %v400 = vmul.f32 %v313, 4.0
  %v401 = vmul.f32 %v316, 4.0
  %v402 = vmul.f32 %v321, 4.0
  %v403 = vmul.f32 %v324, 4.0
  %v404 = vadd.f32 %v334, %v400
  %v405 = vadd.f32 %v341, %v401
  %v406 = vadd.f32 %v348, %v402
  %v407 = vadd.f32 %v355, %v403
  %v408 = vmul.f32 %v313, 2.0
  %v409 = vmul.f32 %v316, 2.0
  %v410 = vmul.f32 %v321, 2.0
  %v411 = vmul.f32 %v324, 2.0
  %v412 = vmul.f32 %v408, %v334
  %v413 = vmul.f32 %v409, %v341
  %v414 = vmul.f32 %v410, %v348
  %v415 = vmul.f32 %v411, %v355
  %v416 = vadd.f32 %v378, %v412
  %v417 = vadd.f32 %v385, %v413
  %v418 = vadd.f32 %v392, %v414
  %v419 = vadd.f32 %v399, %v415
  %v420 = vmul.f32 %v313, %v313
  %v421 = vmul.f32 %v316, %v316
  %v422 = vmul.f32 %v321, %v321
  %v423 = vmul.f32 %v324, %v324
  %v424 = vmul.f32 %v420, 4.0
  %v425 = vmul.f32 %v421, 4.0
  %v426 = vmul.f32 %v422, 4.0
  %v427 = vmul.f32 %v423, 4.0
  %v428 = vadd.f32 %v416, %v424
  %v429 = vadd.f32 %v417, %v425
  %v430 = vadd.f32 %v418, %v426
  %v431 = vadd.f32 %v419, %v427
  %v432 = vld [vmem:[%s4] sm:$0xff]
  %v433 = vsel %vm327, %v404, 0.0
  %v434 = vsel %vm327, %v405, 0.0
  %v435 = vadd.f32 %v433, %v434
  %v436 = vsel %vm327, %v406, 0.0
  %v437 = vadd.f32 %v435, %v436
  %v438 = vsel %vm327, %v407, 0.0
  %v439 = vadd.f32 %v437, %v438
  %v440 = vadd.f32 %v432, %v439
  %441 = vst.msk [vmem:[%s4] sm:$0xff] %vm327, %v440
  %v442 = vld [vmem:[%s5] sm:$0xff]
  %v443 = vsel %vm327, %v428, 0.0
  %v444 = vsel %vm327, %v429, 0.0
  %v445 = vadd.f32 %v443, %v444
  %v446 = vsel %vm327, %v430, 0.0
  %v447 = vadd.f32 %v445, %v446
  %v448 = vsel %vm327, %v431, 0.0
  %v449 = vadd.f32 %v447, %v448
  %v450 = vadd.f32 %v442, %v449
  %451 = vst.msk [vmem:[%s5] sm:$0xff] %vm327, %v450
  // Predicated region
  $region22: #{shared_module_gcn_forward.10} parent=0 // pred_check
    _
  $region23: #{shared_module_gcn_forward.10} parent=0 // pred_check_branch
    %453 = sbr.rel (0) target = $region25
  $region24: #{shared_module_gcn_forward.10} parent=0 // pred_region
    _
  $region25: #{shared_module_gcn_forward.10} parent=0 // pred_fallthru
    _
  // Predicated region
  $region26: #{shared_module_gcn_forward.10} parent=0 // pred_check
    _
  $region27: #{shared_module_gcn_forward.10} parent=0 // pred_check_branch
    %455 = sbr.rel (0) target = $region29
  $region28: #{shared_module_gcn_forward.10} parent=0 // pred_region
    _
  $region29: #{shared_module_gcn_forward.10} parent=0 // pred_fallthru
    _
  // Predicated region
  $region30: #{shared_module_gcn_forward.10} parent=0 // pred_check
    _
  $region31: #{shared_module_gcn_forward.10} parent=0 // pred_check_branch
    %457 = sbr.rel (0) target = $region33
  $region32: #{shared_module_gcn_forward.10} parent=0 // pred_region
    _
  $region33: #{shared_module_gcn_forward.10} parent=0 // pred_fallthru
    _
  // Predicated region
  $region34: #{shared_module_gcn_forward.10} parent=0 // pred_check
    _
  $region35: #{shared_module_gcn_forward.10} parent=0 // pred_check_branch
    %459 = sbr.rel (0) target = $region37
  $region36: #{shared_module_gcn_forward.10} parent=0 // pred_region
    _
  $region37: #{shared_module_gcn_forward.10} parent=0 // pred_fallthru
    _

// kernel: shared_module_gcn_forward.13
$region0: #{shared_module_gcn_forward.13}
  #allocation0 [shape = 'u32[]', space=smem, size = 0x4, offset = 0x4, fixed_abs, tag = 'smem constant byte address 0x4 - core index']
  #allocation1 [shape = 'u32[144,128]{1,0:T(1,128)}', space=vmem, size = 0x12000, scoped, tag = 'internal scratch']
  %s0 = inlined_call_operand.vmem [shape: bf16[4,32,64], index: 0, kind: input, shape index: {}]
  %s1 = inlined_call_operand.vmem [shape: bf16[32,64], index: 1, kind: input, shape index: {}]
  %s2 = inlined_call_operand.vmem [shape: bf16[64,64], index: 2, kind: input, shape index: {}]
  %s3 = inlined_call_operand.vmem [shape: bf16[64,64], index: 3, kind: input, shape index: {}]
  %s4 = inlined_call_operand.vmem [shape: f32[1,64], index: 4, kind: input, shape index: {}]
  %s5 = inlined_call_operand.vmem [shape: f32[1,64], index: 5, kind: input, shape index: {}]
  %s6 = inlined_call_operand.vmem [shape: bf16[32,64], index: 6, kind: output, shape index: {}]
  %s7 = sld [smem:[#allocation0]]
  $region34: #{shared_module_gcn_forward.13} parent=0
    _
  %s9 = ssub.s32 1, %s7
  %s10 = scalar_select 0, %s9, %s7
  // Predicated region
  $region2: #{shared_module_gcn_forward.13} parent=0 // pred_check
    _
  $region3: #{shared_module_gcn_forward.13} parent=0 // pred_check_branch
    %12 = sbr.rel (0) target = $region5
  $region4: #{shared_module_gcn_forward.13} parent=0 // pred_region
    _
  $region5: #{shared_module_gcn_forward.13} parent=0 // pred_fallthru
    _
  // Predicated region
  $region6: #{shared_module_gcn_forward.13} parent=0 // pred_check
    _
  $region7: #{shared_module_gcn_forward.13} parent=0 // pred_check_branch
    %14 = sbr.rel (0) target = $region9
  $region8: #{shared_module_gcn_forward.13} parent=0 // pred_region
    _
  $region9: #{shared_module_gcn_forward.13} parent=0 // pred_fallthru
    _
  // Predicated region
  $region10: #{shared_module_gcn_forward.13} parent=0 // pred_check
    _
  $region11: #{shared_module_gcn_forward.13} parent=0 // pred_check_branch
    %16 = sbr.rel (0) target = $region13
  $region12: #{shared_module_gcn_forward.13} parent=0 // pred_region
    _
  $region13: #{shared_module_gcn_forward.13} parent=0 // pred_fallthru
    _
  // Predicated region
  $region14: #{shared_module_gcn_forward.13} parent=0 // pred_check
    _
  $region15: #{shared_module_gcn_forward.13} parent=0 // pred_check_branch
    %18 = sbr.rel (0) target = $region17
  $region16: #{shared_module_gcn_forward.13} parent=0 // pred_region
    _
  $region17: #{shared_module_gcn_forward.13} parent=0 // pred_fallthru
    _
  // Predicated region
  $region18: #{shared_module_gcn_forward.13} parent=0 // pred_check
    _
  $region19: #{shared_module_gcn_forward.13} parent=0 // pred_check_branch
    %20 = sbr.rel (0) target = $region21
  $region20: #{shared_module_gcn_forward.13} parent=0 // pred_region
    _
  $region21: #{shared_module_gcn_forward.13} parent=0 // pred_fallthru
    _
  // Predicated region
  $region22: #{shared_module_gcn_forward.13} parent=0 // pred_check
    _
  $region23: #{shared_module_gcn_forward.13} parent=0 // pred_check_branch
    %22 = sbr.rel (0) target = $region25
  $region24: #{shared_module_gcn_forward.13} parent=0 // pred_region
    _
  $region25: #{shared_module_gcn_forward.13} parent=0 // pred_fallthru
    _
  %v24 = vld [vmem:[%s0] sm:$0xf]
  %v25 = vld [vmem:[%s0 + $0x4] sm:$0xf]
  %v26 = vld [vmem:[%s0 + $0x8] sm:$0xf]
  %v27 = vld [vmem:[%s0 + $0xc] sm:$0xf]
  %v28 = vld [vmem:[%s0 + $0x10] sm:$0xf]
  %v29 = vld [vmem:[%s0 + $0x14] sm:$0xf]
  %v30 = vld [vmem:[%s0 + $0x18] sm:$0xf]
  %v31 = vld [vmem:[%s0 + $0x1c] sm:$0xf]
  %v32 = vld [vmem:[%s0 + $0x20] sm:$0xf]
  %v33 = vld [vmem:[%s0 + $0x24] sm:$0xf]
  %v34 = vld [vmem:[%s0 + $0x28] sm:$0xf]
  %v35 = vld [vmem:[%s0 + $0x2c] sm:$0xf]
  %v36 = vld [vmem:[%s0 + $0x30] sm:$0xf]
  %v37 = vld [vmem:[%s0 + $0x34] sm:$0xf]
  %v38 = vld [vmem:[%s0 + $0x38] sm:$0xf]
  %v39 = vld [vmem:[%s0 + $0x3c] sm:$0xf]
  %v40 = vld [vmem:[%s2] sm:$0xf]
  %v41 = vld [vmem:[%s2 + $0x4] sm:$0xf]
  %v42 = vld [vmem:[%s2 + $0x8] sm:$0xf]
  %v43 = vld [vmem:[%s2 + $0xc] sm:$0xf]
  %v44 = vld [vmem:[%s2 + $0x10] sm:$0xf]
  %v45 = vld [vmem:[%s2 + $0x14] sm:$0xf]
  %v46 = vld [vmem:[%s2 + $0x18] sm:$0xf]
  %v47 = vld [vmem:[%s2 + $0x1c] sm:$0xf]
  %v64 = vunpack.c.l.b16 %v24
  %v65 = vunpack.c.l.b16 %v25
  %v66 = vunpack.c.l.b16 %v26
  %v67 = vunpack.c.l.b16 %v27
  %v68 = vunpack.c.l.b16 %v28
  %v69 = vunpack.c.l.b16 %v29
  %v70 = vunpack.c.l.b16 %v30
  %v71 = vunpack.c.l.b16 %v31
  %v72 = vunpack.c.l.b16 %v32
  %v73 = vunpack.c.l.b16 %v33
  %v74 = vunpack.c.l.b16 %v34
  %v75 = vunpack.c.l.b16 %v35
  %v76 = vunpack.c.l.b16 %v36
  %v77 = vunpack.c.l.b16 %v37
  %v78 = vunpack.c.l.b16 %v38
  %v79 = vunpack.c.l.b16 %v39
  %v80 = vpack.c.b16 %v65, %v64
  %v81 = vpack.c.b16 %v67, %v66
  %v82 = vpack.c.b16 %v69, %v68
  %v83 = vpack.c.b16 %v71, %v70
  %v84 = vpack.c.b16 %v73, %v72
  %v85 = vpack.c.b16 %v75, %v74
  %v86 = vpack.c.b16 %v77, %v76
  %v87 = vpack.c.b16 %v79, %v78
  %v96 = vunpack.c.l.b16 %v40
  %v97 = vunpack.c.l.b16 %v41
  %v98 = vunpack.c.l.b16 %v42
  %v99 = vunpack.c.l.b16 %v43
  %v100 = vunpack.c.l.b16 %v44
  %v101 = vunpack.c.l.b16 %v45
  %v102 = vunpack.c.l.b16 %v46
  %v103 = vunpack.c.l.b16 %v47
  %v104 = vpack.c.b16 %v97, %v96
  %v105 = vpack.c.b16 %v99, %v98
  %v106 = vpack.c.b16 %v101, %v100
  %v107 = vpack.c.b16 %v103, %v102
  %vm112 = vcmask 523264
  %v114 = vsel %vm112, %v80, 0
  %v117 = vsel %vm112, %v81, 0
  %v120 = vsel %vm112, %v82, 0
  %v123 = vsel %vm112, %v83, 0
  %v126 = vsel %vm112, %v84, 0
  %v129 = vsel %vm112, %v85, 0
  %v132 = vsel %vm112, %v86, 0
  %v135 = vsel %vm112, %v87, 0
  %137 = vmatprep.subr.bf16.mxu0 0
  %138 = vmatpush1.bf16.msra.mxu0 0
  %139 = vmatprep.subr.bf16.mxu0 0
  %140 = vmatpush1.bf16.msra.mxu0 0
  %141 = vmatprep.subr.bf16.mxu0 0
  %142 = vmatpush1.bf16.msra.mxu0 0
  %143 = vmatprep.subr.bf16.mxu0 0
  %144 = vmatpush1.bf16.msra.mxu0 0
  %145 = vmatprep.subr.bf16.mxu0 0
  %146 = vmatpush1.bf16.msra.mxu0 %v107
  %147 = vmatprep.subr.bf16.mxu0 0
  %148 = vmatpush1.bf16.msra.mxu0 %v106
  %149 = vmatprep.subr.bf16.mxu0 0
  %150 = vmatpush1.bf16.msra.mxu0 %v105
  %151 = vmatprep.subr.bf16.mxu0 0
  %152 = vmatpush1.bf16.msra.mxu0 %v104
  %153 = vmatprep.subr.bf16.mxu0 0
  %154 = vmatpush2.bf16.msra.mxu0 0
  %155 = vmatprep.subr.bf16.mxu0 0
  %156 = vmatpush2.bf16.msra.mxu0 0
  %157 = vmatprep.subr.bf16.mxu0 0
  %158 = vmatpush2.bf16.msra.mxu0 0
  %159 = vmatprep.subr.bf16.mxu0 0
  %160 = vmatpush2.bf16.msra.mxu0 0
  %161 = vmatprep.subr.bf16.mxu0 0
  %162 = vmatpush2.bf16.msra.mxu0 0
  %163 = vmatprep.subr.bf16.mxu0 0
  %164 = vmatpush2.bf16.msra.mxu0 0
  %165 = vmatprep.subr.bf16.mxu0 0
  %166 = vmatpush2.bf16.msra.mxu0 0
  %167 = vmatprep.subr.bf16.mxu0 0
  %168 = vmatpush2.bf16.msra.mxu0 0
  %169 = vmatprep.mubr.bf16.mxu0 0
  %170 = vmatmul.mubr.bf16.gmra.mxu0 %v114
  %v171 = vpop.f32.mrf.mxu0
  %v172 = vadd.f32 0.0, %v171
  %v173 = vpop.f32.mrf.mxu0
  %v174 = vpop.f32.mrf.mxu0
  %v175 = vadd.f32 0.0, %v174
  %v176 = vpop.f32.mrf.mxu0
  %177 = vmatprep.mubr.bf16.mxu0 0
  %178 = vmatmul.mubr.bf16.gmra.mxu0 %v117
  %v179 = vpop.f32.mrf.mxu0
  %v180 = vadd.f32 0.0, %v179
  %v181 = vpop.f32.mrf.mxu0
  %v182 = vpop.f32.mrf.mxu0
  %v183 = vadd.f32 0.0, %v182
  %v184 = vpop.f32.mrf.mxu0
  %185 = vmatprep.mubr.bf16.mxu0 0
  %186 = vmatmul.mubr.bf16.gmra.mxu0 %v120
  %v187 = vpop.f32.mrf.mxu0
  %v188 = vadd.f32 0.0, %v187
  %v189 = vpop.f32.mrf.mxu0
  %v190 = vpop.f32.mrf.mxu0
  %v191 = vadd.f32 0.0, %v190
  %v192 = vpop.f32.mrf.mxu0
  %193 = vmatprep.mubr.bf16.mxu0 0
  %194 = vmatmul.mubr.bf16.gmra.mxu0 %v123
  %v195 = vpop.f32.mrf.mxu0
  %v196 = vadd.f32 0.0, %v195
  %v197 = vpop.f32.mrf.mxu0
  %v198 = vpop.f32.mrf.mxu0
  %v199 = vadd.f32 0.0, %v198
  %v200 = vpop.f32.mrf.mxu0
  %201 = vmatprep.mubr.bf16.mxu0 0
  %202 = vmatmul.mubr.bf16.gmra.mxu0 %v126
  %v203 = vpop.f32.mrf.mxu0
  %v204 = vadd.f32 0.0, %v203
  %v205 = vpop.f32.mrf.mxu0
  %v206 = vpop.f32.mrf.mxu0
  %v207 = vadd.f32 0.0, %v206
  %v208 = vpop.f32.mrf.mxu0
  %209 = vmatprep.mubr.bf16.mxu0 0
  %210 = vmatmul.mubr.bf16.gmra.mxu0 %v129
  %v211 = vpop.f32.mrf.mxu0
  %v212 = vadd.f32 0.0, %v211
  %v213 = vpop.f32.mrf.mxu0
  %v214 = vpop.f32.mrf.mxu0
  %v215 = vadd.f32 0.0, %v214
  %v216 = vpop.f32.mrf.mxu0
  %217 = vmatprep.mubr.bf16.mxu0 0
  %218 = vmatmul.mubr.bf16.gmra.mxu0 %v132
  %v219 = vpop.f32.mrf.mxu0
  %v220 = vadd.f32 0.0, %v219
  %v221 = vpop.f32.mrf.mxu0
  %v222 = vpop.f32.mrf.mxu0
  %v223 = vadd.f32 0.0, %v222
  %v224 = vpop.f32.mrf.mxu0
  %225 = vmatprep.mubr.bf16.mxu0 0
  %226 = vmatmul.mubr.bf16.gmra.mxu0 %v135
  %v227 = vpop.f32.mrf.mxu0
  %v228 = vadd.f32 0.0, %v227
  %v229 = vpop.f32.mrf.mxu0
  %v230 = vpop.f32.mrf.mxu0
  %v231 = vadd.f32 0.0, %v230
  %v232 = vpop.f32.mrf.mxu0
  %233 = vdwg.mxu0
  %v234 = vld [vmem:[%s1] sm:$0xf]
  %v235 = vld [vmem:[%s1 + $0x4] sm:$0xf]
  %v236 = vld [vmem:[%s1 + $0x8] sm:$0xf]
  %v237 = vld [vmem:[%s1 + $0xc] sm:$0xf]
  %v238 = vld [vmem:[%s3] sm:$0xf]
  %v239 = vld [vmem:[%s3 + $0x4] sm:$0xf]
  %v240 = vld [vmem:[%s3 + $0x8] sm:$0xf]
  %v241 = vld [vmem:[%s3 + $0xc] sm:$0xf]
  %v242 = vld [vmem:[%s3 + $0x10] sm:$0xf]
  %v243 = vld [vmem:[%s3 + $0x14] sm:$0xf]
  %v244 = vld [vmem:[%s3 + $0x18] sm:$0xf]
  %v245 = vld [vmem:[%s3 + $0x1c] sm:$0xf]
  %v250 = vunpack.c.l.b16 %v234
  %v251 = vunpack.c.l.b16 %v235
  %v252 = vunpack.c.l.b16 %v236
  %v253 = vunpack.c.l.b16 %v237
  %v254 = vpack.c.b16 %v251, %v250
  %v255 = vpack.c.b16 %v253, %v252
  %v264 = vunpack.c.l.b16 %v238
  %v265 = vunpack.c.l.b16 %v239
  %v266 = vunpack.c.l.b16 %v240
  %v267 = vunpack.c.l.b16 %v241
  %v268 = vunpack.c.l.b16 %v242
  %v269 = vunpack.c.l.b16 %v243
  %v270 = vunpack.c.l.b16 %v244
  %v271 = vunpack.c.l.b16 %v245
  %v272 = vpack.c.b16 %v265, %v264
  %v273 = vpack.c.b16 %v267, %v266
  %v274 = vpack.c.b16 %v269, %v268
  %v275 = vpack.c.b16 %v271, %v270
  %v281 = vsel %vm112, %v254, 0
  %v284 = vsel %vm112, %v255, 0
  %286 = vmatprep.subr.bf16.mxu0 0
  %287 = vmatpush1.bf16.msra.mxu0 0
  %288 = vmatprep.subr.bf16.mxu0 0
  %289 = vmatpush1.bf16.msra.mxu0 0
  %290 = vmatprep.subr.bf16.mxu0 0
  %291 = vmatpush1.bf16.msra.mxu0 0
  %292 = vmatprep.subr.bf16.mxu0 0
  %293 = vmatpush1.bf16.msra.mxu0 0
  %294 = vmatprep.subr.bf16.mxu0 0
  %295 = vmatpush1.bf16.msra.mxu0 %v275
  %296 = vmatprep.subr.bf16.mxu0 0
  %297 = vmatpush1.bf16.msra.mxu0 %v274
  %298 = vmatprep.subr.bf16.mxu0 0
  %299 = vmatpush1.bf16.msra.mxu0 %v273
  %300 = vmatprep.subr.bf16.mxu0 0
  %301 = vmatpush1.bf16.msra.mxu0 %v272
  %302 = vmatprep.subr.bf16.mxu0 0
  %303 = vmatpush2.bf16.msra.mxu0 0
  %304 = vmatprep.subr.bf16.mxu0 0
  %305 = vmatpush2.bf16.msra.mxu0 0
  %306 = vmatprep.subr.bf16.mxu0 0
  %307 = vmatpush2.bf16.msra.mxu0 0
  %308 = vmatprep.subr.bf16.mxu0 0
  %309 = vmatpush2.bf16.msra.mxu0 0
  %310 = vmatprep.subr.bf16.mxu0 0
  %311 = vmatpush2.bf16.msra.mxu0 0
  %312 = vmatprep.subr.bf16.mxu0 0
  %313 = vmatpush2.bf16.msra.mxu0 0
  %314 = vmatprep.subr.bf16.mxu0 0
  %315 = vmatpush2.bf16.msra.mxu0 0
  %316 = vmatprep.subr.bf16.mxu0 0
  %317 = vmatpush2.bf16.msra.mxu0 0
  %318 = vmatprep.mubr.bf16.mxu0 0
  %319 = vmatmul.mubr.bf16.gmra.mxu0 %v281
  %v320 = vpop.f32.mrf.mxu0
  %v321 = vadd.f32 0.0, %v320
  %v322 = vpop.f32.mrf.mxu0
  %v323 = vpop.f32.mrf.mxu0
  %v324 = vadd.f32 0.0, %v323
  %v325 = vpop.f32.mrf.mxu0
  %326 = vmatprep.mubr.bf16.mxu0 0
  %327 = vmatmul.mubr.bf16.gmra.mxu0 %v284
  %v328 = vpop.f32.mrf.mxu0
  %v329 = vadd.f32 0.0, %v328
  %v330 = vpop.f32.mrf.mxu0
  %v331 = vpop.f32.mrf.mxu0
  %v332 = vadd.f32 0.0, %v331
  %v333 = vpop.f32.mrf.mxu0
  %334 = vdwg.mxu0
  %v335 = vsel %vm112, %v172, -inf
  %v336 = vsel %vm112, %v188, -inf
  %v337 = vmax.f32 %v335, %v336
  %v338 = vsel %vm112, %v204, -inf
  %v339 = vmax.f32 %v337, %v338
  %v340 = vsel %vm112, %v220, -inf
  %v341 = vmax.f32 %v339, %v340
  %v342 = vsel %vm112, %v175, -inf
  %v343 = vsel %vm112, %v191, -inf
  %v344 = vmax.f32 %v342, %v343
  %v345 = vsel %vm112, %v207, -inf
  %v346 = vmax.f32 %v344, %v345
  %v347 = vsel %vm112, %v223, -inf
  %v348 = vmax.f32 %v346, %v347
  %v349 = vsel %vm112, %v180, -inf
  %v350 = vsel %vm112, %v196, -inf
  %v351 = vmax.f32 %v349, %v350
  %v352 = vsel %vm112, %v212, -inf
  %v353 = vmax.f32 %v351, %v352
  %v354 = vsel %vm112, %v228, -inf
  %v355 = vmax.f32 %v353, %v354
  %v356 = vsel %vm112, %v183, -inf
  %v357 = vsel %vm112, %v199, -inf
  %v358 = vmax.f32 %v356, %v357
  %v359 = vsel %vm112, %v215, -inf
  %v360 = vmax.f32 %v358, %v359
  %v361 = vsel %vm112, %v231, -inf
  %v362 = vmax.f32 %v360, %v361
  %v363 = vsel %vm112, %v172, inf
  %v364 = vsel %vm112, %v188, inf
  %v365 = vmin.f32 %v363, %v364
  %v366 = vsel %vm112, %v204, inf
  %v367 = vmin.f32 %v365, %v366
  %v368 = vsel %vm112, %v220, inf
  %v369 = vmin.f32 %v367, %v368
  %v370 = vsel %vm112, %v175, inf
  %v371 = vsel %vm112, %v191, inf
  %v372 = vmin.f32 %v370, %v371
  %v373 = vsel %vm112, %v207, inf
  %v374 = vmin.f32 %v372, %v373
  %v375 = vsel %vm112, %v223, inf
  %v376 = vmin.f32 %v374, %v375
  %v377 = vsel %vm112, %v180, inf
  %v378 = vsel %vm112, %v196, inf
  %v379 = vmin.f32 %v377, %v378
  %v380 = vsel %vm112, %v212, inf
  %v381 = vmin.f32 %v379, %v380
  %v382 = vsel %vm112, %v228, inf
  %v383 = vmin.f32 %v381, %v382
  %v384 = vsel %vm112, %v183, inf
  %v385 = vsel %vm112, %v199, inf
  %v386 = vmin.f32 %v384, %v385
  %v387 = vsel %vm112, %v215, inf
  %v388 = vmin.f32 %v386, %v387
  %v389 = vsel %vm112, %v231, inf
  %v390 = vmin.f32 %v388, %v389
  %v391 = vld [vmem:[%s4] sm:$0x1]
  %v392 = vld [vmem:[%s5] sm:$0x1]
  %vm393 = vcmp.ge.f32.partialorder %v391, 0.0
  %v394 = vsel %vm393, 1, 0
  %v395 = vlaneseq
  %v396 = vshrl.u32 %v395, 7
  %v397 = vsub.s32 0, %v396
  %v398 = vrot.slane %v394, %v397
  %vm399 = vcmp.eq.s32.totalorder %v398, 1
  %v400 = vsel %vm399, %v341, %v369
  %v401 = vsel %vm399, %v348, %v376
  %v402 = vsel %vm399, %v355, %v383
  %v403 = vsel %vm399, %v362, %v390
  %v404 = vadd.f32 %v400, %v321
  %v405 = vadd.f32 %v401, %v324
  %v406 = vadd.f32 %v402, %v329
  %v407 = vadd.f32 %v403, %v332
  %v409 = vlaneseq
  %v410 = vshrl.u32 %v409, 7
  %v411 = vsub.s32 0, %v410
  %v412 = vrot.slane %v391, %v411
  %v414 = vmul.f32 %v404, %v412
  %v415 = vmul.f32 %v405, %v412
  %v416 = vmul.f32 %v406, %v412
  %v417 = vmul.f32 %v407, %v412
  %v419 = vlaneseq
  %v420 = vshrl.u32 %v419, 7
  %v421 = vsub.s32 0, %v420
  %v422 = vrot.slane %v392, %v421
  %v424 = vadd.f32 %v414, %v422
  %v425 = vadd.f32 %v415, %v422
  %v426 = vadd.f32 %v416, %v422
  %v427 = vadd.f32 %v417, %v422
  %v428 = vtanh.pop %v424
  %v429 = vtanh.pop %v425
  %v430 = vtanh.pop %v426
  %v431 = vtanh.pop %v427
  %v432 = vpack.c.bf16 %v429, %v428
  %v433 = vpack.c.bf16 %v431, %v430
  %v436 = vunpack.c.l.b16 %v432
  %v437 = vunpack.c.h.b16 %v432
  %v438 = vunpack.c.l.b16 %v433
  %v439 = vunpack.c.h.b16 %v433
  %v440 = vpack.c.b16 %v436, %v436
  %v441 = vpack.c.b16 %v437, %v437
  %v442 = vpack.c.b16 %v438, %v438
  %v443 = vpack.c.b16 %v439, %v439
  %vm448 = vcmask 519168
  %449 = vst.msk [vmem:[%s6] sm:$0xf] %vm448, %v440
  %450 = vst.msk [vmem:[%s6 + $0x4] sm:$0xf] %vm448, %v441
  %451 = vst.msk [vmem:[%s6 + $0x8] sm:$0xf] %vm448, %v442
  %452 = vst.msk [vmem:[%s6 + $0xc] sm:$0xf] %vm448, %v443
  // Predicated region
  $region26: #{shared_module_gcn_forward.13} parent=0 // pred_check
    _
  $region27: #{shared_module_gcn_forward.13} parent=0 // pred_check_branch
    %454 = sbr.rel (0) target = $region29
  $region28: #{shared_module_gcn_forward.13} parent=0 // pred_region
    _
  $region29: #{shared_module_gcn_forward.13} parent=0 // pred_fallthru
    _
  // Predicated region
  $region30: #{shared_module_gcn_forward.13} parent=0 // pred_check
    _
  $region31: #{shared_module_gcn_forward.13} parent=0 // pred_check_branch
    %456 = sbr.rel (0) target = $region33
  $region32: #{shared_module_gcn_forward.13} parent=0 // pred_region
    _
  $region33: #{shared_module_gcn_forward.13} parent=0 // pred_fallthru
    _

// kernel: shared_module_gcn_forward.12
$region0: #{shared_module_gcn_forward.12}
  #allocation0 [shape = 'u32[]', space=smem, size = 0x4, offset = 0x4, fixed_abs, tag = 'smem constant byte address 0x4 - core index']
  #allocation1 [shape = 'u32[144,128]{1,0:T(1,128)}', space=vmem, size = 0x12000, scoped, tag = 'internal scratch']
  %s0 = inlined_call_operand.vmem [shape: bf16[4,32,64], index: 0, kind: input, shape index: {}]
  %s1 = inlined_call_operand.vmem [shape: bf16[32,64], index: 1, kind: input, shape index: {}]
  %s2 = inlined_call_operand.vmem [shape: bf16[64,64], index: 2, kind: input, shape index: {}]
  %s3 = inlined_call_operand.vmem [shape: bf16[64,64], index: 3, kind: input, shape index: {}]
  %s4 = inlined_call_operand.vmem [shape: f32[1,8,64], index: 4, kind: output, shape index: {0}]
  %s5 = inlined_call_operand.vmem [shape: f32[1,8,64], index: 5, kind: output, shape index: {1}]
  %6 = xla_tuple %s4, %s5
  %s7 = sld [smem:[#allocation0]]
  $region38: #{shared_module_gcn_forward.12} parent=0
    _
  %s9 = ssub.s32 1, %s7
  %s10 = scalar_select 0, %s9, %s7
  // Predicated region
  $region2: #{shared_module_gcn_forward.12} parent=0 // pred_check
    _
  $region3: #{shared_module_gcn_forward.12} parent=0 // pred_check_branch
    %12 = sbr.rel (0) target = $region5
  $region4: #{shared_module_gcn_forward.12} parent=0 // pred_region
    %s13 = sadd.s32 0, 0
    %s14 = smul.u32 4, %s13
    %p15 = scmp.lt.s32.totalorder %s14, 3
    %s16 = scalar_select %p15, %s14, 3
    %s17 = smul.addr %s16, 4
    %s18 = scalar_lea.vmem %s0, %s17
    %s19 = sadd.s32 0, 0
    %s20 = smul.u32 4, %s19
  $region5: #{shared_module_gcn_forward.12} parent=0 // pred_fallthru
    _
  // Predicated region
  $region6: #{shared_module_gcn_forward.12} parent=0 // pred_check
    _
  $region7: #{shared_module_gcn_forward.12} parent=0 // pred_check_branch
    %22 = sbr.rel (0) target = $region9
  $region8: #{shared_module_gcn_forward.12} parent=0 // pred_region
    %s23 = sadd.s32 0, 0
    %s24 = smul.u32 4, %s23
    %p25 = scmp.lt.s32.totalorder %s24, 3
    %s26 = scalar_select %p25, %s24, 3
    %s27 = smul.addr %s26, 4
    %s28 = scalar_lea.vmem %s1, %s27
    %s29 = sadd.s32 0, 0
    %s30 = smul.u32 4, %s29
  $region9: #{shared_module_gcn_forward.12} parent=0 // pred_fallthru
    _
  // Predicated region
  $region10: #{shared_module_gcn_forward.12} parent=0 // pred_check
    _
  $region11: #{shared_module_gcn_forward.12} parent=0 // pred_check_branch
    %32 = sbr.rel (0) target = $region13
  $region12: #{shared_module_gcn_forward.12} parent=0 // pred_region
    _
  $region13: #{shared_module_gcn_forward.12} parent=0 // pred_fallthru
    _
  // Predicated region
  $region14: #{shared_module_gcn_forward.12} parent=0 // pred_check
    _
  $region15: #{shared_module_gcn_forward.12} parent=0 // pred_check_branch
    %34 = sbr.rel (0) target = $region17
  $region16: #{shared_module_gcn_forward.12} parent=0 // pred_region
    _
  $region17: #{shared_module_gcn_forward.12} parent=0 // pred_fallthru
    _
  %s35 = sadd.s32 0, 0
  %s36 = smul.u32 4, %s35
  %p37 = scmp.lt.s32.totalorder %s36, 3
  %s38 = scalar_select %p37, %s36, 3
  %s39 = smul.addr %s38, 4
  %s40 = scalar_lea.vmem %s0, %s39
  %s41 = sadd.s32 0, 0
  %s42 = smul.u32 4, %s41
  %p43 = scmp.lt.s32.totalorder %s42, 3
  %s44 = scalar_select %p43, %s42, 3
  %s45 = smul.addr %s44, 4
  %s46 = scalar_lea.vmem %s1, %s45
  %s47 = sadd.s32 0, 0
  %s48 = smul.u32 4, %s47
  %p49 = scmp.lt.s32.totalorder %s48, 3
  %s50 = scalar_select %p49, %s48, 3
  %s51 = smul.addr %s50, 4
  %s52 = scalar_lea.vmem %s0, %s51
  %s53 = sadd.s32 0, 0
  %s54 = smul.u32 4, %s53
  %s55 = sadd.s32 0, 0
  %s56 = smul.u32 4, %s55
  %p57 = scmp.lt.s32.totalorder %s56, 3
  %s58 = scalar_select %p57, %s56, 3
  %s59 = smul.addr %s58, 4
  %s60 = scalar_lea.vmem %s1, %s59
  %s61 = sadd.s32 0, 0
  %s62 = smul.u32 4, %s61
  %p64 = scmp.eq.s32.totalorder 0, 0
  // Predicated region
  $region18: #{shared_module_gcn_forward.12} parent=0 // pred_check
    %p65 = pneg %p64
  $region19: #{shared_module_gcn_forward.12} parent=0 // pred_check_branch
    %67 = sbr.rel (%p65) target = $region21
  $region20: #{shared_module_gcn_forward.12} parent=0 // pred_region
    %vm68 = vcmask 523264
    %69 = vst.msk [vmem:[%s4] sm:$0xff] %vm68, 0.0
    %70 = vst.msk [vmem:[%s5] sm:$0xff] %vm68, 0.0
  $region21: #{shared_module_gcn_forward.12} parent=0 // pred_fallthru
    _
  %v71 = vld [vmem:[%s52] sm:$0xf]
  %v72 = vld [vmem:[%s52 + $0x4] sm:$0xf]
  %v73 = vld [vmem:[%s52 + $0x8] sm:$0xf]
  %v74 = vld [vmem:[%s52 + $0xc] sm:$0xf]
  %v75 = vld [vmem:[%s52 + $0x10] sm:$0xf]
  %v76 = vld [vmem:[%s52 + $0x14] sm:$0xf]
  %v77 = vld [vmem:[%s52 + $0x18] sm:$0xf]
  %v78 = vld [vmem:[%s52 + $0x1c] sm:$0xf]
  %v79 = vld [vmem:[%s52 + $0x20] sm:$0xf]
  %v80 = vld [vmem:[%s52 + $0x24] sm:$0xf]
  %v81 = vld [vmem:[%s52 + $0x28] sm:$0xf]
  %v82 = vld [vmem:[%s52 + $0x2c] sm:$0xf]
  %v83 = vld [vmem:[%s52 + $0x30] sm:$0xf]
  %v84 = vld [vmem:[%s52 + $0x34] sm:$0xf]
  %v85 = vld [vmem:[%s52 + $0x38] sm:$0xf]
  %v86 = vld [vmem:[%s52 + $0x3c] sm:$0xf]
  %v87 = vld [vmem:[%s2] sm:$0xf]
  %v88 = vld [vmem:[%s2 + $0x4] sm:$0xf]
  %v89 = vld [vmem:[%s2 + $0x8] sm:$0xf]
  %v90 = vld [vmem:[%s2 + $0xc] sm:$0xf]
  %v91 = vld [vmem:[%s2 + $0x10] sm:$0xf]
  %v92 = vld [vmem:[%s2 + $0x14] sm:$0xf]
  %v93 = vld [vmem:[%s2 + $0x18] sm:$0xf]
  %v94 = vld [vmem:[%s2 + $0x1c] sm:$0xf]
  %v111 = vunpack.c.l.b16 %v71
  %v112 = vunpack.c.l.b16 %v72
  %v113 = vunpack.c.l.b16 %v73
  %v114 = vunpack.c.l.b16 %v74
  %v115 = vunpack.c.l.b16 %v75
  %v116 = vunpack.c.l.b16 %v76
  %v117 = vunpack.c.l.b16 %v77
  %v118 = vunpack.c.l.b16 %v78
  %v119 = vunpack.c.l.b16 %v79
  %v120 = vunpack.c.l.b16 %v80
  %v121 = vunpack.c.l.b16 %v81
  %v122 = vunpack.c.l.b16 %v82
  %v123 = vunpack.c.l.b16 %v83
  %v124 = vunpack.c.l.b16 %v84
  %v125 = vunpack.c.l.b16 %v85
  %v126 = vunpack.c.l.b16 %v86
  %v127 = vpack.c.b16 %v112, %v111
  %v128 = vpack.c.b16 %v114, %v113
  %v129 = vpack.c.b16 %v116, %v115
  %v130 = vpack.c.b16 %v118, %v117
  %v131 = vpack.c.b16 %v120, %v119
  %v132 = vpack.c.b16 %v122, %v121
  %v133 = vpack.c.b16 %v124, %v123
  %v134 = vpack.c.b16 %v126, %v125
  %v143 = vunpack.c.l.b16 %v87
  %v144 = vunpack.c.l.b16 %v88
  %v145 = vunpack.c.l.b16 %v89
  %v146 = vunpack.c.l.b16 %v90
  %v147 = vunpack.c.l.b16 %v91
  %v148 = vunpack.c.l.b16 %v92
  %v149 = vunpack.c.l.b16 %v93
  %v150 = vunpack.c.l.b16 %v94
  %v151 = vpack.c.b16 %v144, %v143
  %v152 = vpack.c.b16 %v146, %v145
  %v153 = vpack.c.b16 %v148, %v147
  %v154 = vpack.c.b16 %v150, %v149
  %vm159 = vcmask 523264
  %v161 = vsel %vm159, %v127, 0
  %v164 = vsel %vm159, %v128, 0
  %v167 = vsel %vm159, %v129, 0
  %v170 = vsel %vm159, %v130, 0
  %v173 = vsel %vm159, %v131, 0
  %v176 = vsel %vm159, %v132, 0
  %v179 = vsel %vm159, %v133, 0
  %v182 = vsel %vm159, %v134, 0
  %184 = vmatprep.subr.bf16.mxu0 0
  %185 = vmatpush1.bf16.msra.mxu0 0
  %186 = vmatprep.subr.bf16.mxu0 0
  %187 = vmatpush1.bf16.msra.mxu0 0
  %188 = vmatprep.subr.bf16.mxu0 0
  %189 = vmatpush1.bf16.msra.mxu0 0
  %190 = vmatprep.subr.bf16.mxu0 0
  %191 = vmatpush1.bf16.msra.mxu0 0
  %192 = vmatprep.subr.bf16.mxu0 0
  %193 = vmatpush1.bf16.msra.mxu0 %v154
  %194 = vmatprep.subr.bf16.mxu0 0
  %195 = vmatpush1.bf16.msra.mxu0 %v153
  %196 = vmatprep.subr.bf16.mxu0 0
  %197 = vmatpush1.bf16.msra.mxu0 %v152
  %198 = vmatprep.subr.bf16.mxu0 0
  %199 = vmatpush1.bf16.msra.mxu0 %v151
  %200 = vmatprep.subr.bf16.mxu0 0
  %201 = vmatpush2.bf16.msra.mxu0 0
  %202 = vmatprep.subr.bf16.mxu0 0
  %203 = vmatpush2.bf16.msra.mxu0 0
  %204 = vmatprep.subr.bf16.mxu0 0
  %205 = vmatpush2.bf16.msra.mxu0 0
  %206 = vmatprep.subr.bf16.mxu0 0
  %207 = vmatpush2.bf16.msra.mxu0 0
  %208 = vmatprep.subr.bf16.mxu0 0
  %209 = vmatpush2.bf16.msra.mxu0 0
  %210 = vmatprep.subr.bf16.mxu0 0
  %211 = vmatpush2.bf16.msra.mxu0 0
  %212 = vmatprep.subr.bf16.mxu0 0
  %213 = vmatpush2.bf16.msra.mxu0 0
  %214 = vmatprep.subr.bf16.mxu0 0
  %215 = vmatpush2.bf16.msra.mxu0 0
  %216 = vmatprep.mubr.bf16.mxu0 0
  %217 = vmatmul.mubr.bf16.gmra.mxu0 %v161
  %v218 = vpop.f32.mrf.mxu0
  %v219 = vadd.f32 0.0, %v218
  %v220 = vpop.f32.mrf.mxu0
  %v221 = vpop.f32.mrf.mxu0
  %v222 = vadd.f32 0.0, %v221
  %v223 = vpop.f32.mrf.mxu0
  %224 = vmatprep.mubr.bf16.mxu0 0
  %225 = vmatmul.mubr.bf16.gmra.mxu0 %v164
  %v226 = vpop.f32.mrf.mxu0
  %v227 = vadd.f32 0.0, %v226
  %v228 = vpop.f32.mrf.mxu0
  %v229 = vpop.f32.mrf.mxu0
  %v230 = vadd.f32 0.0, %v229
  %v231 = vpop.f32.mrf.mxu0
  %232 = vmatprep.mubr.bf16.mxu0 0
  %233 = vmatmul.mubr.bf16.gmra.mxu0 %v167
  %v234 = vpop.f32.mrf.mxu0
  %v235 = vadd.f32 0.0, %v234
  %v236 = vpop.f32.mrf.mxu0
  %v237 = vpop.f32.mrf.mxu0
  %v238 = vadd.f32 0.0, %v237
  %v239 = vpop.f32.mrf.mxu0
  %240 = vmatprep.mubr.bf16.mxu0 0
  %241 = vmatmul.mubr.bf16.gmra.mxu0 %v170
  %v242 = vpop.f32.mrf.mxu0
  %v243 = vadd.f32 0.0, %v242
  %v244 = vpop.f32.mrf.mxu0
  %v245 = vpop.f32.mrf.mxu0
  %v246 = vadd.f32 0.0, %v245
  %v247 = vpop.f32.mrf.mxu0
  %248 = vmatprep.mubr.bf16.mxu0 0
  %249 = vmatmul.mubr.bf16.gmra.mxu0 %v173
  %v250 = vpop.f32.mrf.mxu0
  %v251 = vadd.f32 0.0, %v250
  %v252 = vpop.f32.mrf.mxu0
  %v253 = vpop.f32.mrf.mxu0
  %v254 = vadd.f32 0.0, %v253
  %v255 = vpop.f32.mrf.mxu0
  %256 = vmatprep.mubr.bf16.mxu0 0
  %257 = vmatmul.mubr.bf16.gmra.mxu0 %v176
  %v258 = vpop.f32.mrf.mxu0
  %v259 = vadd.f32 0.0, %v258
  %v260 = vpop.f32.mrf.mxu0
  %v261 = vpop.f32.mrf.mxu0
  %v262 = vadd.f32 0.0, %v261
  %v263 = vpop.f32.mrf.mxu0
  %264 = vmatprep.mubr.bf16.mxu0 0
  %265 = vmatmul.mubr.bf16.gmra.mxu0 %v179
  %v266 = vpop.f32.mrf.mxu0
  %v267 = vadd.f32 0.0, %v266
  %v268 = vpop.f32.mrf.mxu0
  %v269 = vpop.f32.mrf.mxu0
  %v270 = vadd.f32 0.0, %v269
  %v271 = vpop.f32.mrf.mxu0
  %272 = vmatprep.mubr.bf16.mxu0 0
  %273 = vmatmul.mubr.bf16.gmra.mxu0 %v182
  %v274 = vpop.f32.mrf.mxu0
  %v275 = vadd.f32 0.0, %v274
  %v276 = vpop.f32.mrf.mxu0
  %v277 = vpop.f32.mrf.mxu0
  %v278 = vadd.f32 0.0, %v277
  %v279 = vpop.f32.mrf.mxu0
  %280 = vdwg.mxu0
  %v281 = vld [vmem:[%s60] sm:$0xf]
  %v282 = vld [vmem:[%s60 + $0x4] sm:$0xf]
  %v283 = vld [vmem:[%s60 + $0x8] sm:$0xf]
  %v284 = vld [vmem:[%s60 + $0xc] sm:$0xf]
  %v285 = vld [vmem:[%s3] sm:$0xf]
  %v286 = vld [vmem:[%s3 + $0x4] sm:$0xf]
  %v287 = vld [vmem:[%s3 + $0x8] sm:$0xf]
  %v288 = vld [vmem:[%s3 + $0xc] sm:$0xf]
  %v289 = vld [vmem:[%s3 + $0x10] sm:$0xf]
  %v290 = vld [vmem:[%s3 + $0x14] sm:$0xf]
  %v291 = vld [vmem:[%s3 + $0x18] sm:$0xf]
  %v292 = vld [vmem:[%s3 + $0x1c] sm:$0xf]
  %v297 = vunpack.c.l.b16 %v281
  %v298 = vunpack.c.l.b16 %v282
  %v299 = vunpack.c.l.b16 %v283
  %v300 = vunpack.c.l.b16 %v284
  %v301 = vpack.c.b16 %v298, %v297
  %v302 = vpack.c.b16 %v300, %v299
  %v311 = vunpack.c.l.b16 %v285
  %v312 = vunpack.c.l.b16 %v286
  %v313 = vunpack.c.l.b16 %v287
  %v314 = vunpack.c.l.b16 %v288
  %v315 = vunpack.c.l.b16 %v289
  %v316 = vunpack.c.l.b16 %v290
  %v317 = vunpack.c.l.b16 %v291
  %v318 = vunpack.c.l.b16 %v292
  %v319 = vpack.c.b16 %v312, %v311
  %v320 = vpack.c.b16 %v314, %v313
  %v321 = vpack.c.b16 %v316, %v315
  %v322 = vpack.c.b16 %v318, %v317
  %v328 = vsel %vm159, %v301, 0
  %v331 = vsel %vm159, %v302, 0
  %333 = vmatprep.subr.bf16.mxu0 0
  %334 = vmatpush1.bf16.msra.mxu0 0
  %335 = vmatprep.subr.bf16.mxu0 0
  %336 = vmatpush1.bf16.msra.mxu0 0
  %337 = vmatprep.subr.bf16.mxu0 0
  %338 = vmatpush1.bf16.msra.mxu0 0
  %339 = vmatprep.subr.bf16.mxu0 0
  %340 = vmatpush1.bf16.msra.mxu0 0
  %341 = vmatprep.subr.bf16.mxu0 0
  %342 = vmatpush1.bf16.msra.mxu0 %v322
  %343 = vmatprep.subr.bf16.mxu0 0
  %344 = vmatpush1.bf16.msra.mxu0 %v321
  %345 = vmatprep.subr.bf16.mxu0 0
  %346 = vmatpush1.bf16.msra.mxu0 %v320
  %347 = vmatprep.subr.bf16.mxu0 0
  %348 = vmatpush1.bf16.msra.mxu0 %v319
  %349 = vmatprep.subr.bf16.mxu0 0
  %350 = vmatpush2.bf16.msra.mxu0 0
  %351 = vmatprep.subr.bf16.mxu0 0
  %352 = vmatpush2.bf16.msra.mxu0 0
  %353 = vmatprep.subr.bf16.mxu0 0
  %354 = vmatpush2.bf16.msra.mxu0 0
  %355 = vmatprep.subr.bf16.mxu0 0
  %356 = vmatpush2.bf16.msra.mxu0 0
  %357 = vmatprep.subr.bf16.mxu0 0
  %358 = vmatpush2.bf16.msra.mxu0 0
  %359 = vmatprep.subr.bf16.mxu0 0
  %360 = vmatpush2.bf16.msra.mxu0 0
  %361 = vmatprep.subr.bf16.mxu0 0
  %362 = vmatpush2.bf16.msra.mxu0 0
  %363 = vmatprep.subr.bf16.mxu0 0
  %364 = vmatpush2.bf16.msra.mxu0 0
  %365 = vmatprep.mubr.bf16.mxu0 0
  %366 = vmatmul.mubr.bf16.gmra.mxu0 %v328
  %v367 = vpop.f32.mrf.mxu0
  %v368 = vadd.f32 0.0, %v367
  %v369 = vpop.f32.mrf.mxu0
  %v370 = vpop.f32.mrf.mxu0
  %v371 = vadd.f32 0.0, %v370
  %v372 = vpop.f32.mrf.mxu0
  %373 = vmatprep.mubr.bf16.mxu0 0
  %374 = vmatmul.mubr.bf16.gmra.mxu0 %v331
  %v375 = vpop.f32.mrf.mxu0
  %v376 = vadd.f32 0.0, %v375
  %v377 = vpop.f32.mrf.mxu0
  %v378 = vpop.f32.mrf.mxu0
  %v379 = vadd.f32 0.0, %v378
  %v380 = vpop.f32.mrf.mxu0
  %381 = vdwg.mxu0
  %v382 = vsel %vm159, %v219, 0.0
  %v383 = vsel %vm159, %v235, 0.0
  %v384 = vadd.f32 %v382, %v383
  %v385 = vsel %vm159, %v251, 0.0
  %v386 = vadd.f32 %v384, %v385
  %v387 = vsel %vm159, %v267, 0.0
  %v388 = vadd.f32 %v386, %v387
  %v389 = vsel %vm159, %v222, 0.0
  %v390 = vsel %vm159, %v238, 0.0
  %v391 = vadd.f32 %v389, %v390
  %v392 = vsel %vm159, %v254, 0.0
  %v393 = vadd.f32 %v391, %v392
  %v394 = vsel %vm159, %v270, 0.0
  %v395 = vadd.f32 %v393, %v394
  %v396 = vsel %vm159, %v227, 0.0
  %v397 = vsel %vm159, %v243, 0.0
  %v398 = vadd.f32 %v396, %v397
  %v399 = vsel %vm159, %v259, 0.0
  %v400 = vadd.f32 %v398, %v399
  %v401 = vsel %vm159, %v275, 0.0
  %v402 = vadd.f32 %v400, %v401
  %v403 = vsel %vm159, %v230, 0.0
  %v404 = vsel %vm159, %v246, 0.0
  %v405 = vadd.f32 %v403, %v404
  %v406 = vsel %vm159, %v262, 0.0
  %v407 = vadd.f32 %v405, %v406
  %v408 = vsel %vm159, %v278, 0.0
  %v409 = vadd.f32 %v407, %v408
  %v410 = vmul.f32 %v219, %v219
  %v411 = vmul.f32 %v222, %v222
  %v412 = vmul.f32 %v227, %v227
  %v413 = vmul.f32 %v230, %v230
  %v414 = vmul.f32 %v235, %v235
  %v415 = vmul.f32 %v238, %v238
  %v416 = vmul.f32 %v243, %v243
  %v417 = vmul.f32 %v246, %v246
  %v418 = vmul.f32 %v251, %v251
  %v419 = vmul.f32 %v254, %v254
  %v420 = vmul.f32 %v259, %v259
  %v421 = vmul.f32 %v262, %v262
  %v422 = vmul.f32 %v267, %v267
  %v423 = vmul.f32 %v270, %v270
  %v424 = vmul.f32 %v275, %v275
  %v425 = vmul.f32 %v278, %v278
  %v426 = vsel %vm159, %v410, 0.0
  %v427 = vsel %vm159, %v414, 0.0
  %v428 = vadd.f32 %v426, %v427
  %v429 = vsel %vm159, %v418, 0.0
  %v430 = vadd.f32 %v428, %v429
  %v431 = vsel %vm159, %v422, 0.0
  %v432 = vadd.f32 %v430, %v431
  %v433 = vsel %vm159, %v411, 0.0
  %v434 = vsel %vm159, %v415, 0.0
  %v435 = vadd.f32 %v433, %v434
  %v436 = vsel %vm159, %v419, 0.0
  %v437 = vadd.f32 %v435, %v436
  %v438 = vsel %vm159, %v423, 0.0
  %v439 = vadd.f32 %v437, %v438
  %v440 = vsel %vm159, %v412, 0.0
  %v441 = vsel %vm159, %v416, 0.0
  %v442 = vadd.f32 %v440, %v441
  %v443 = vsel %vm159, %v420, 0.0
  %v444 = vadd.f32 %v442, %v443
  %v445 = vsel %vm159, %v424, 0.0
  %v446 = vadd.f32 %v444, %v445
  %v447 = vsel %vm159, %v413, 0.0
  %v448 = vsel %vm159, %v417, 0.0
  %v449 = vadd.f32 %v447, %v448
  %v450 = vsel %vm159, %v421, 0.0
  %v451 = vadd.f32 %v449, %v450
  %v452 = vsel %vm159, %v425, 0.0
  %v453 = vadd.f32 %v451, %v452
  %v454 = vmul.f32 %v368, 4.0
  %v455 = vmul.f32 %v371, 4.0
  %v456 = vmul.f32 %v376, 4.0
  %v457 = vmul.f32 %v379, 4.0
  %v458 = vadd.f32 %v388, %v454
  %v459 = vadd.f32 %v395, %v455
  %v460 = vadd.f32 %v402, %v456
  %v461 = vadd.f32 %v409, %v457
  %v462 = vmul.f32 %v368, 2.0
  %v463 = vmul.f32 %v371, 2.0
  %v464 = vmul.f32 %v376, 2.0
  %v465 = vmul.f32 %v379, 2.0
  %v466 = vmul.f32 %v462, %v388
  %v467 = vmul.f32 %v463, %v395
  %v468 = vmul.f32 %v464, %v402
  %v469 = vmul.f32 %v465, %v409
  %v470 = vadd.f32 %v432, %v466
  %v471 = vadd.f32 %v439, %v467
  %v472 = vadd.f32 %v446, %v468
  %v473 = vadd.f32 %v453, %v469
  %v474 = vmul.f32 %v368, %v368
  %v475 = vmul.f32 %v371, %v371
  %v476 = vmul.f32 %v376, %v376
  %v477 = vmul.f32 %v379, %v379
  %v478 = vmul.f32 %v474, 4.0
  %v479 = vmul.f32 %v475, 4.0
  %v480 = vmul.f32 %v476, 4.0
  %v481 = vmul.f32 %v477, 4.0
  %v482 = vadd.f32 %v470, %v478
  %v483 = vadd.f32 %v471, %v479
  %v484 = vadd.f32 %v472, %v480
  %v485 = vadd.f32 %v473, %v481
  %v486 = vld [vmem:[%s4] sm:$0xff]
  %v487 = vsel %vm159, %v458, 0.0
  %v488 = vsel %vm159, %v459, 0.0
  %v489 = vadd.f32 %v487, %v488
  %v490 = vsel %vm159, %v460, 0.0
  %v491 = vadd.f32 %v489, %v490
  %v492 = vsel %vm159, %v461, 0.0
  %v493 = vadd.f32 %v491, %v492
  %v494 = vadd.f32 %v486, %v493
  %495 = vst.msk [vmem:[%s4] sm:$0xff] %vm159, %v494
  %v496 = vld [vmem:[%s5] sm:$0xff]
  %v497 = vsel %vm159, %v482, 0.0
  %v498 = vsel %vm159, %v483, 0.0
  %v499 = vadd.f32 %v497, %v498
  %v500 = vsel %vm159, %v484, 0.0
  %v501 = vadd.f32 %v499, %v500
  %v502 = vsel %vm159, %v485, 0.0
  %v503 = vadd.f32 %v501, %v502
  %v504 = vadd.f32 %v496, %v503
  %505 = vst.msk [vmem:[%s5] sm:$0xff] %vm159, %v504
  // Predicated region
  $region22: #{shared_module_gcn_forward.12} parent=0 // pred_check
    _
  $region23: #{shared_module_gcn_forward.12} parent=0 // pred_check_branch
    %507 = sbr.rel (0) target = $region25
  $region24: #{shared_module_gcn_forward.12} parent=0 // pred_region
    _
  $region25: #{shared_module_gcn_forward.12} parent=0 // pred_fallthru
    _
  // Predicated region
  $region26: #{shared_module_gcn_forward.12} parent=0 // pred_check
    _
  $region27: #{shared_module_gcn_forward.12} parent=0 // pred_check_branch
    %509 = sbr.rel (0) target = $region29
  $region28: #{shared_module_gcn_forward.12} parent=0 // pred_region
    _
  $region29: #{shared_module_gcn_forward.12} parent=0 // pred_fallthru
    _
  // Predicated region
  $region30: #{shared_module_gcn_forward.12} parent=0 // pred_check
    _
  $region31: #{shared_module_gcn_forward.12} parent=0 // pred_check_branch
    %511 = sbr.rel (0) target = $region33
  $region32: #{shared_module_gcn_forward.12} parent=0 // pred_region
    _
  $region33: #{shared_module_gcn_forward.12} parent=0 // pred_fallthru
    _
  // Predicated region
  $region34: #{shared_module_gcn_forward.12} parent=0 // pred_check
    _
  $region35: #{shared_module_gcn_forward.12} parent=0 // pred_check_branch
    %513 = sbr.rel (0) target = $region37
  $region36: #{shared_module_gcn_forward.12} parent=0 // pred_region
    _
  $region37: #{shared_module_gcn_forward.12} parent=0 // pred_fallthru
    _

// kernel: shared_module_gcn_forward.15
$region0: #{shared_module_gcn_forward.15}
  #allocation0 [shape = 'u32[]', space=smem, size = 0x4, offset = 0x4, fixed_abs, tag = 'smem constant byte address 0x4 - core index']
  #allocation1 [shape = 'u32[144,128]{1,0:T(1,128)}', space=vmem, size = 0x12000, scoped, tag = 'internal scratch']
  %s0 = inlined_call_operand.vmem [shape: bf16[4,32,64], index: 0, kind: input, shape index: {}]
  %s1 = inlined_call_operand.vmem [shape: bf16[32,64], index: 1, kind: input, shape index: {}]
  %s2 = inlined_call_operand.vmem [shape: bf16[64,128], index: 2, kind: input, shape index: {}]
  %s3 = inlined_call_operand.vmem [shape: bf16[64,128], index: 3, kind: input, shape index: {}]
  %s4 = inlined_call_operand.vmem [shape: f32[1,128], index: 4, kind: input, shape index: {}]
  %s5 = inlined_call_operand.vmem [shape: f32[1,128], index: 5, kind: input, shape index: {}]
  %s6 = inlined_call_operand.vmem [shape: bf16[32,128], index: 6, kind: output, shape index: {}]
  %s7 = sld [smem:[#allocation0]]
  $region34: #{shared_module_gcn_forward.15} parent=0
    _
  %s9 = ssub.s32 1, %s7
  %s10 = scalar_select 0, %s9, %s7
  // Predicated region
  $region2: #{shared_module_gcn_forward.15} parent=0 // pred_check
    _
  $region3: #{shared_module_gcn_forward.15} parent=0 // pred_check_branch
    %12 = sbr.rel (0) target = $region5
  $region4: #{shared_module_gcn_forward.15} parent=0 // pred_region
    _
  $region5: #{shared_module_gcn_forward.15} parent=0 // pred_fallthru
    _
  // Predicated region
  $region6: #{shared_module_gcn_forward.15} parent=0 // pred_check
    _
  $region7: #{shared_module_gcn_forward.15} parent=0 // pred_check_branch
    %14 = sbr.rel (0) target = $region9
  $region8: #{shared_module_gcn_forward.15} parent=0 // pred_region
    _
  $region9: #{shared_module_gcn_forward.15} parent=0 // pred_fallthru
    _
  // Predicated region
  $region10: #{shared_module_gcn_forward.15} parent=0 // pred_check
    _
  $region11: #{shared_module_gcn_forward.15} parent=0 // pred_check_branch
    %16 = sbr.rel (0) target = $region13
  $region12: #{shared_module_gcn_forward.15} parent=0 // pred_region
    _
  $region13: #{shared_module_gcn_forward.15} parent=0 // pred_fallthru
    _
  // Predicated region
  $region14: #{shared_module_gcn_forward.15} parent=0 // pred_check
    _
  $region15: #{shared_module_gcn_forward.15} parent=0 // pred_check_branch
    %18 = sbr.rel (0) target = $region17
  $region16: #{shared_module_gcn_forward.15} parent=0 // pred_region
    _
  $region17: #{shared_module_gcn_forward.15} parent=0 // pred_fallthru
    _
  // Predicated region
  $region18: #{shared_module_gcn_forward.15} parent=0 // pred_check
    _
  $region19: #{shared_module_gcn_forward.15} parent=0 // pred_check_branch
    %20 = sbr.rel (0) target = $region21
  $region20: #{shared_module_gcn_forward.15} parent=0 // pred_region
    _
  $region21: #{shared_module_gcn_forward.15} parent=0 // pred_fallthru
    _
  // Predicated region
  $region22: #{shared_module_gcn_forward.15} parent=0 // pred_check
    _
  $region23: #{shared_module_gcn_forward.15} parent=0 // pred_check_branch
    %22 = sbr.rel (0) target = $region25
  $region24: #{shared_module_gcn_forward.15} parent=0 // pred_region
    _
  $region25: #{shared_module_gcn_forward.15} parent=0 // pred_fallthru
    _
  %v24 = vld [vmem:[%s0] sm:$0xf]
  %v25 = vld [vmem:[%s0 + $0x4] sm:$0xf]
  %v26 = vld [vmem:[%s0 + $0x8] sm:$0xf]
  %v27 = vld [vmem:[%s0 + $0xc] sm:$0xf]
  %v28 = vld [vmem:[%s0 + $0x10] sm:$0xf]
  %v29 = vld [vmem:[%s0 + $0x14] sm:$0xf]
  %v30 = vld [vmem:[%s0 + $0x18] sm:$0xf]
  %v31 = vld [vmem:[%s0 + $0x1c] sm:$0xf]
  %v32 = vld [vmem:[%s0 + $0x20] sm:$0xf]
  %v33 = vld [vmem:[%s0 + $0x24] sm:$0xf]
  %v34 = vld [vmem:[%s0 + $0x28] sm:$0xf]
  %v35 = vld [vmem:[%s0 + $0x2c] sm:$0xf]
  %v36 = vld [vmem:[%s0 + $0x30] sm:$0xf]
  %v37 = vld [vmem:[%s0 + $0x34] sm:$0xf]
  %v38 = vld [vmem:[%s0 + $0x38] sm:$0xf]
  %v39 = vld [vmem:[%s0 + $0x3c] sm:$0xf]
  %v40 = vld [vmem:[%s2] sm:$0xf]
  %v41 = vld [vmem:[%s2 + $0x4] sm:$0xf]
  %v42 = vld [vmem:[%s2 + $0x8] sm:$0xf]
  %v43 = vld [vmem:[%s2 + $0xc] sm:$0xf]
  %v44 = vld [vmem:[%s2 + $0x10] sm:$0xf]
  %v45 = vld [vmem:[%s2 + $0x14] sm:$0xf]
  %v46 = vld [vmem:[%s2 + $0x18] sm:$0xf]
  %v47 = vld [vmem:[%s2 + $0x1c] sm:$0xf]
  %v64 = vunpack.c.l.b16 %v24
  %v65 = vunpack.c.l.b16 %v25
  %v66 = vunpack.c.l.b16 %v26
  %v67 = vunpack.c.l.b16 %v27
  %v68 = vunpack.c.l.b16 %v28
  %v69 = vunpack.c.l.b16 %v29
  %v70 = vunpack.c.l.b16 %v30
  %v71 = vunpack.c.l.b16 %v31
  %v72 = vunpack.c.l.b16 %v32
  %v73 = vunpack.c.l.b16 %v33
  %v74 = vunpack.c.l.b16 %v34
  %v75 = vunpack.c.l.b16 %v35
  %v76 = vunpack.c.l.b16 %v36
  %v77 = vunpack.c.l.b16 %v37
  %v78 = vunpack.c.l.b16 %v38
  %v79 = vunpack.c.l.b16 %v39
  %v80 = vpack.c.b16 %v65, %v64
  %v81 = vpack.c.b16 %v67, %v66
  %v82 = vpack.c.b16 %v69, %v68
  %v83 = vpack.c.b16 %v71, %v70
  %v84 = vpack.c.b16 %v73, %v72
  %v85 = vpack.c.b16 %v75, %v74
  %v86 = vpack.c.b16 %v77, %v76
  %v87 = vpack.c.b16 %v79, %v78
  %v96 = vunpack.c.l.b16 %v40
  %v97 = vunpack.c.l.b16 %v41
  %v98 = vunpack.c.l.b16 %v42
  %v99 = vunpack.c.l.b16 %v43
  %v100 = vunpack.c.l.b16 %v44
  %v101 = vunpack.c.l.b16 %v45
  %v102 = vunpack.c.l.b16 %v46
  %v103 = vunpack.c.l.b16 %v47
  %v104 = vpack.c.b16 %v97, %v96
  %v105 = vpack.c.b16 %v99, %v98
  %v106 = vpack.c.b16 %v101, %v100
  %v107 = vpack.c.b16 %v103, %v102
  %vm112 = vcmask 523264
  %v114 = vsel %vm112, %v80, 0
  %v117 = vsel %vm112, %v81, 0
  %v120 = vsel %vm112, %v82, 0
  %v123 = vsel %vm112, %v83, 0
  %v126 = vsel %vm112, %v84, 0
  %v129 = vsel %vm112, %v85, 0
  %v132 = vsel %vm112, %v86, 0
  %v135 = vsel %vm112, %v87, 0
  %137 = vmatprep.subr.bf16.mxu0 0
  %138 = vmatpush1.bf16.msra.mxu0 0
  %139 = vmatprep.subr.bf16.mxu0 0
  %140 = vmatpush1.bf16.msra.mxu0 0
  %141 = vmatprep.subr.bf16.mxu0 0
  %142 = vmatpush1.bf16.msra.mxu0 0
  %143 = vmatprep.subr.bf16.mxu0 0
  %144 = vmatpush1.bf16.msra.mxu0 0
  %145 = vmatprep.subr.bf16.mxu0 0
  %146 = vmatpush1.bf16.msra.mxu0 %v107
  %147 = vmatprep.subr.bf16.mxu0 0
  %148 = vmatpush1.bf16.msra.mxu0 %v106
  %149 = vmatprep.subr.bf16.mxu0 0
  %150 = vmatpush1.bf16.msra.mxu0 %v105
  %151 = vmatprep.subr.bf16.mxu0 0
  %152 = vmatpush1.bf16.msra.mxu0 %v104
  %153 = vmatprep.subr.bf16.mxu0 0
  %154 = vmatpush2.bf16.msra.mxu0 0
  %155 = vmatprep.subr.bf16.mxu0 0
  %156 = vmatpush2.bf16.msra.mxu0 0
  %157 = vmatprep.subr.bf16.mxu0 0
  %158 = vmatpush2.bf16.msra.mxu0 0
  %159 = vmatprep.subr.bf16.mxu0 0
  %160 = vmatpush2.bf16.msra.mxu0 0
  %161 = vmatprep.subr.bf16.mxu0 0
  %162 = vmatpush2.bf16.msra.mxu0 0
  %163 = vmatprep.subr.bf16.mxu0 0
  %164 = vmatpush2.bf16.msra.mxu0 0
  %165 = vmatprep.subr.bf16.mxu0 0
  %166 = vmatpush2.bf16.msra.mxu0 0
  %167 = vmatprep.subr.bf16.mxu0 0
  %168 = vmatpush2.bf16.msra.mxu0 0
  %169 = vmatprep.mubr.bf16.mxu0 0
  %170 = vmatmul.mubr.bf16.gmra.mxu0 %v114
  %v171 = vpop.f32.mrf.mxu0
  %v172 = vadd.f32 0.0, %v171
  %v173 = vpop.f32.mrf.mxu0
  %v174 = vpop.f32.mrf.mxu0
  %v175 = vadd.f32 0.0, %v174
  %v176 = vpop.f32.mrf.mxu0
  %177 = vmatprep.mubr.bf16.mxu0 0
  %178 = vmatmul.mubr.bf16.gmra.mxu0 %v117
  %v179 = vpop.f32.mrf.mxu0
  %v180 = vadd.f32 0.0, %v179
  %v181 = vpop.f32.mrf.mxu0
  %v182 = vpop.f32.mrf.mxu0
  %v183 = vadd.f32 0.0, %v182
  %v184 = vpop.f32.mrf.mxu0
  %185 = vmatprep.mubr.bf16.mxu0 0
  %186 = vmatmul.mubr.bf16.gmra.mxu0 %v120
  %v187 = vpop.f32.mrf.mxu0
  %v188 = vadd.f32 0.0, %v187
  %v189 = vpop.f32.mrf.mxu0
  %v190 = vpop.f32.mrf.mxu0
  %v191 = vadd.f32 0.0, %v190
  %v192 = vpop.f32.mrf.mxu0
  %193 = vmatprep.mubr.bf16.mxu0 0
  %194 = vmatmul.mubr.bf16.gmra.mxu0 %v123
  %v195 = vpop.f32.mrf.mxu0
  %v196 = vadd.f32 0.0, %v195
  %v197 = vpop.f32.mrf.mxu0
  %v198 = vpop.f32.mrf.mxu0
  %v199 = vadd.f32 0.0, %v198
  %v200 = vpop.f32.mrf.mxu0
  %201 = vmatprep.mubr.bf16.mxu0 0
  %202 = vmatmul.mubr.bf16.gmra.mxu0 %v126
  %v203 = vpop.f32.mrf.mxu0
  %v204 = vadd.f32 0.0, %v203
  %v205 = vpop.f32.mrf.mxu0
  %v206 = vpop.f32.mrf.mxu0
  %v207 = vadd.f32 0.0, %v206
  %v208 = vpop.f32.mrf.mxu0
  %209 = vmatprep.mubr.bf16.mxu0 0
  %210 = vmatmul.mubr.bf16.gmra.mxu0 %v129
  %v211 = vpop.f32.mrf.mxu0
  %v212 = vadd.f32 0.0, %v211
  %v213 = vpop.f32.mrf.mxu0
  %v214 = vpop.f32.mrf.mxu0
  %v215 = vadd.f32 0.0, %v214
  %v216 = vpop.f32.mrf.mxu0
  %217 = vmatprep.mubr.bf16.mxu0 0
  %218 = vmatmul.mubr.bf16.gmra.mxu0 %v132
  %v219 = vpop.f32.mrf.mxu0
  %v220 = vadd.f32 0.0, %v219
  %v221 = vpop.f32.mrf.mxu0
  %v222 = vpop.f32.mrf.mxu0
  %v223 = vadd.f32 0.0, %v222
  %v224 = vpop.f32.mrf.mxu0
  %225 = vmatprep.mubr.bf16.mxu0 0
  %226 = vmatmul.mubr.bf16.gmra.mxu0 %v135
  %v227 = vpop.f32.mrf.mxu0
  %v228 = vadd.f32 0.0, %v227
  %v229 = vpop.f32.mrf.mxu0
  %v230 = vpop.f32.mrf.mxu0
  %v231 = vadd.f32 0.0, %v230
  %v232 = vpop.f32.mrf.mxu0
  %233 = vdwg.mxu0
  %v234 = vld [vmem:[%s1] sm:$0xf]
  %v235 = vld [vmem:[%s1 + $0x4] sm:$0xf]
  %v236 = vld [vmem:[%s1 + $0x8] sm:$0xf]
  %v237 = vld [vmem:[%s1 + $0xc] sm:$0xf]
  %v238 = vld [vmem:[%s3] sm:$0xf]
  %v239 = vld [vmem:[%s3 + $0x4] sm:$0xf]
  %v240 = vld [vmem:[%s3 + $0x8] sm:$0xf]
  %v241 = vld [vmem:[%s3 + $0xc] sm:$0xf]
  %v242 = vld [vmem:[%s3 + $0x10] sm:$0xf]
  %v243 = vld [vmem:[%s3 + $0x14] sm:$0xf]
  %v244 = vld [vmem:[%s3 + $0x18] sm:$0xf]
  %v245 = vld [vmem:[%s3 + $0x1c] sm:$0xf]
  %v250 = vunpack.c.l.b16 %v234
  %v251 = vunpack.c.l.b16 %v235
  %v252 = vunpack.c.l.b16 %v236
  %v253 = vunpack.c.l.b16 %v237
  %v254 = vpack.c.b16 %v251, %v250
  %v255 = vpack.c.b16 %v253, %v252
  %v264 = vunpack.c.l.b16 %v238
  %v265 = vunpack.c.l.b16 %v239
  %v266 = vunpack.c.l.b16 %v240
  %v267 = vunpack.c.l.b16 %v241
  %v268 = vunpack.c.l.b16 %v242
  %v269 = vunpack.c.l.b16 %v243
  %v270 = vunpack.c.l.b16 %v244
  %v271 = vunpack.c.l.b16 %v245
  %v272 = vpack.c.b16 %v265, %v264
  %v273 = vpack.c.b16 %v267, %v266
  %v274 = vpack.c.b16 %v269, %v268
  %v275 = vpack.c.b16 %v271, %v270
  %v281 = vsel %vm112, %v254, 0
  %v284 = vsel %vm112, %v255, 0
  %286 = vmatprep.subr.bf16.mxu0 0
  %287 = vmatpush1.bf16.msra.mxu0 0
  %288 = vmatprep.subr.bf16.mxu0 0
  %289 = vmatpush1.bf16.msra.mxu0 0
  %290 = vmatprep.subr.bf16.mxu0 0
  %291 = vmatpush1.bf16.msra.mxu0 0
  %292 = vmatprep.subr.bf16.mxu0 0
  %293 = vmatpush1.bf16.msra.mxu0 0
  %294 = vmatprep.subr.bf16.mxu0 0
  %295 = vmatpush1.bf16.msra.mxu0 %v275
  %296 = vmatprep.subr.bf16.mxu0 0
  %297 = vmatpush1.bf16.msra.mxu0 %v274
  %298 = vmatprep.subr.bf16.mxu0 0
  %299 = vmatpush1.bf16.msra.mxu0 %v273
  %300 = vmatprep.subr.bf16.mxu0 0
  %301 = vmatpush1.bf16.msra.mxu0 %v272
  %302 = vmatprep.subr.bf16.mxu0 0
  %303 = vmatpush2.bf16.msra.mxu0 0
  %304 = vmatprep.subr.bf16.mxu0 0
  %305 = vmatpush2.bf16.msra.mxu0 0
  %306 = vmatprep.subr.bf16.mxu0 0
  %307 = vmatpush2.bf16.msra.mxu0 0
  %308 = vmatprep.subr.bf16.mxu0 0
  %309 = vmatpush2.bf16.msra.mxu0 0
  %310 = vmatprep.subr.bf16.mxu0 0
  %311 = vmatpush2.bf16.msra.mxu0 0
  %312 = vmatprep.subr.bf16.mxu0 0
  %313 = vmatpush2.bf16.msra.mxu0 0
  %314 = vmatprep.subr.bf16.mxu0 0
  %315 = vmatpush2.bf16.msra.mxu0 0
  %316 = vmatprep.subr.bf16.mxu0 0
  %317 = vmatpush2.bf16.msra.mxu0 0
  %318 = vmatprep.mubr.bf16.mxu0 0
  %319 = vmatmul.mubr.bf16.gmra.mxu0 %v281
  %v320 = vpop.f32.mrf.mxu0
  %v321 = vadd.f32 0.0, %v320
  %v322 = vpop.f32.mrf.mxu0
  %v323 = vpop.f32.mrf.mxu0
  %v324 = vadd.f32 0.0, %v323
  %v325 = vpop.f32.mrf.mxu0
  %326 = vmatprep.mubr.bf16.mxu0 0
  %327 = vmatmul.mubr.bf16.gmra.mxu0 %v284
  %v328 = vpop.f32.mrf.mxu0
  %v329 = vadd.f32 0.0, %v328
  %v330 = vpop.f32.mrf.mxu0
  %v331 = vpop.f32.mrf.mxu0
  %v332 = vadd.f32 0.0, %v331
  %v333 = vpop.f32.mrf.mxu0
  %334 = vdwg.mxu0
  %v335 = vmax.f32 %v172, %v188
  %v336 = vmax.f32 %v335, %v204
  %v337 = vmax.f32 %v336, %v220
  %v338 = vmax.f32 %v175, %v191
  %v339 = vmax.f32 %v338, %v207
  %v340 = vmax.f32 %v339, %v223
  %v341 = vmax.f32 %v180, %v196
  %v342 = vmax.f32 %v341, %v212
  %v343 = vmax.f32 %v342, %v228
  %v344 = vmax.f32 %v183, %v199
  %v345 = vmax.f32 %v344, %v215
  %v346 = vmax.f32 %v345, %v231
  %v347 = vmin.f32 %v172, %v188
  %v348 = vmin.f32 %v347, %v204
  %v349 = vmin.f32 %v348, %v220
  %v350 = vmin.f32 %v175, %v191
  %v351 = vmin.f32 %v350, %v207
  %v352 = vmin.f32 %v351, %v223
  %v353 = vmin.f32 %v180, %v196
  %v354 = vmin.f32 %v353, %v212
  %v355 = vmin.f32 %v354, %v228
  %v356 = vmin.f32 %v183, %v199
  %v357 = vmin.f32 %v356, %v215
  %v358 = vmin.f32 %v357, %v231
  %v359 = vld [vmem:[%s4] sm:$0x1]
  %v360 = vld [vmem:[%s5] sm:$0x1]
  %vm361 = vcmp.ge.f32.partialorder %v359, 0.0
  %v362 = vsel %vm361, 1, 0
  %v363 = vlaneseq
  %v364 = vshrl.u32 %v363, 7
  %v365 = vsub.s32 0, %v364
  %v366 = vrot.slane %v362, %v365
  %vm367 = vcmp.eq.s32.totalorder %v366, 1
  %v368 = vsel %vm367, %v337, %v349
  %v369 = vsel %vm367, %v340, %v352
  %v370 = vsel %vm367, %v343, %v355
  %v371 = vsel %vm367, %v346, %v358
  %v372 = vadd.f32 %v368, %v321
  %v373 = vadd.f32 %v369, %v324
  %v374 = vadd.f32 %v370, %v329
  %v375 = vadd.f32 %v371, %v332
  %v377 = vlaneseq
  %v378 = vshrl.u32 %v377, 7
  %v379 = vsub.s32 0, %v378
  %v380 = vrot.slane %v359, %v379
  %v382 = vmul.f32 %v372, %v380
  %v383 = vmul.f32 %v373, %v380
  %v384 = vmul.f32 %v374, %v380
  %v385 = vmul.f32 %v375, %v380
  %v387 = vlaneseq
  %v388 = vshrl.u32 %v387, 7
  %v389 = vsub.s32 0, %v388
  %v390 = vrot.slane %v360, %v389
  %v392 = vadd.f32 %v382, %v390
  %v393 = vadd.f32 %v383, %v390
  %v394 = vadd.f32 %v384, %v390
  %v395 = vadd.f32 %v385, %v390
  %v396 = vtanh.pop %v392
  %v397 = vtanh.pop %v393
  %v398 = vtanh.pop %v394
  %v399 = vtanh.pop %v395
  %v400 = vpack.c.bf16 %v397, %v396
  %v401 = vpack.c.bf16 %v399, %v398
  %v404 = vunpack.c.l.b16 %v400
  %v405 = vunpack.c.h.b16 %v400
  %v406 = vunpack.c.l.b16 %v401
  %v407 = vunpack.c.h.b16 %v401
  %v408 = vpack.c.b16 %v404, %v404
  %v409 = vpack.c.b16 %v405, %v405
  %v410 = vpack.c.b16 %v406, %v406
  %v411 = vpack.c.b16 %v407, %v407
  %416 = vst [vmem:[%s6] sm:$0xf] %v408
  %417 = vst [vmem:[%s6 + $0x4] sm:$0xf] %v409
  %418 = vst [vmem:[%s6 + $0x8] sm:$0xf] %v410
  %419 = vst [vmem:[%s6 + $0xc] sm:$0xf] %v411
  // Predicated region
  $region26: #{shared_module_gcn_forward.15} parent=0 // pred_check
    _
  $region27: #{shared_module_gcn_forward.15} parent=0 // pred_check_branch
    %421 = sbr.rel (0) target = $region29
  $region28: #{shared_module_gcn_forward.15} parent=0 // pred_region
    _
  $region29: #{shared_module_gcn_forward.15} parent=0 // pred_fallthru
    _
  // Predicated region
  $region30: #{shared_module_gcn_forward.15} parent=0 // pred_check
    _
  $region31: #{shared_module_gcn_forward.15} parent=0 // pred_check_branch
    %423 = sbr.rel (0) target = $region33
  $region32: #{shared_module_gcn_forward.15} parent=0 // pred_region
    _
  $region33: #{shared_module_gcn_forward.15} parent=0 // pred_fallthru
    _

// kernel: shared_module_gcn_forward.14
$region0: #{shared_module_gcn_forward.14}
  #allocation0 [shape = 'u32[]', space=smem, size = 0x4, offset = 0x4, fixed_abs, tag = 'smem constant byte address 0x4 - core index']
  #allocation1 [shape = 'u32[144,128]{1,0:T(1,128)}', space=vmem, size = 0x12000, scoped, tag = 'internal scratch']
  %s0 = inlined_call_operand.vmem [shape: bf16[4,32,64], index: 0, kind: input, shape index: {}]
  %s1 = inlined_call_operand.vmem [shape: bf16[32,64], index: 1, kind: input, shape index: {}]
  %s2 = inlined_call_operand.vmem [shape: bf16[64,128], index: 2, kind: input, shape index: {}]
  %s3 = inlined_call_operand.vmem [shape: bf16[64,128], index: 3, kind: input, shape index: {}]
  %s4 = inlined_call_operand.vmem [shape: f32[1,8,128], index: 4, kind: output, shape index: {0}]
  %s5 = inlined_call_operand.vmem [shape: f32[1,8,128], index: 5, kind: output, shape index: {1}]
  %6 = xla_tuple %s4, %s5
  %s7 = sld [smem:[#allocation0]]
  $region38: #{shared_module_gcn_forward.14} parent=0
    _
  %s9 = ssub.s32 1, %s7
  %s10 = scalar_select 0, %s9, %s7
  // Predicated region
  $region2: #{shared_module_gcn_forward.14} parent=0 // pred_check
    _
  $region3: #{shared_module_gcn_forward.14} parent=0 // pred_check_branch
    %12 = sbr.rel (0) target = $region5
  $region4: #{shared_module_gcn_forward.14} parent=0 // pred_region
    %s13 = sadd.s32 0, 0
    %s14 = smul.u32 4, %s13
    %p15 = scmp.lt.s32.totalorder %s14, 3
    %s16 = scalar_select %p15, %s14, 3
    %s17 = smul.addr %s16, 4
    %s18 = scalar_lea.vmem %s0, %s17
    %s19 = sadd.s32 0, 0
    %s20 = smul.u32 4, %s19
  $region5: #{shared_module_gcn_forward.14} parent=0 // pred_fallthru
    _
  // Predicated region
  $region6: #{shared_module_gcn_forward.14} parent=0 // pred_check
    _
  $region7: #{shared_module_gcn_forward.14} parent=0 // pred_check_branch
    %22 = sbr.rel (0) target = $region9
  $region8: #{shared_module_gcn_forward.14} parent=0 // pred_region
    %s23 = sadd.s32 0, 0
    %s24 = smul.u32 4, %s23
    %p25 = scmp.lt.s32.totalorder %s24, 3
    %s26 = scalar_select %p25, %s24, 3
    %s27 = smul.addr %s26, 4
    %s28 = scalar_lea.vmem %s1, %s27
    %s29 = sadd.s32 0, 0
    %s30 = smul.u32 4, %s29
  $region9: #{shared_module_gcn_forward.14} parent=0 // pred_fallthru
    _
  // Predicated region
  $region10: #{shared_module_gcn_forward.14} parent=0 // pred_check
    _
  $region11: #{shared_module_gcn_forward.14} parent=0 // pred_check_branch
    %32 = sbr.rel (0) target = $region13
  $region12: #{shared_module_gcn_forward.14} parent=0 // pred_region
    _
  $region13: #{shared_module_gcn_forward.14} parent=0 // pred_fallthru
    _
  // Predicated region
  $region14: #{shared_module_gcn_forward.14} parent=0 // pred_check
    _
  $region15: #{shared_module_gcn_forward.14} parent=0 // pred_check_branch
    %34 = sbr.rel (0) target = $region17
  $region16: #{shared_module_gcn_forward.14} parent=0 // pred_region
    _
  $region17: #{shared_module_gcn_forward.14} parent=0 // pred_fallthru
    _
  %s35 = sadd.s32 0, 0
  %s36 = smul.u32 4, %s35
  %p37 = scmp.lt.s32.totalorder %s36, 3
  %s38 = scalar_select %p37, %s36, 3
  %s39 = smul.addr %s38, 4
  %s40 = scalar_lea.vmem %s0, %s39
  %s41 = sadd.s32 0, 0
  %s42 = smul.u32 4, %s41
  %p43 = scmp.lt.s32.totalorder %s42, 3
  %s44 = scalar_select %p43, %s42, 3
  %s45 = smul.addr %s44, 4
  %s46 = scalar_lea.vmem %s1, %s45
  %s47 = sadd.s32 0, 0
  %s48 = smul.u32 4, %s47
  %p49 = scmp.lt.s32.totalorder %s48, 3
  %s50 = scalar_select %p49, %s48, 3
  %s51 = smul.addr %s50, 4
  %s52 = scalar_lea.vmem %s0, %s51
  %s53 = sadd.s32 0, 0
  %s54 = smul.u32 4, %s53
  %s55 = sadd.s32 0, 0
  %s56 = smul.u32 4, %s55
  %p57 = scmp.lt.s32.totalorder %s56, 3
  %s58 = scalar_select %p57, %s56, 3
  %s59 = smul.addr %s58, 4
  %s60 = scalar_lea.vmem %s1, %s59
  %s61 = sadd.s32 0, 0
  %s62 = smul.u32 4, %s61
  %p64 = scmp.eq.s32.totalorder 0, 0
  // Predicated region
  $region18: #{shared_module_gcn_forward.14} parent=0 // pred_check
    %p65 = pneg %p64
  $region19: #{shared_module_gcn_forward.14} parent=0 // pred_check_branch
    %67 = sbr.rel (%p65) target = $region21
  $region20: #{shared_module_gcn_forward.14} parent=0 // pred_region
    %68 = vst [vmem:[%s4] sm:$0xff] 0.0
    %69 = vst [vmem:[%s5] sm:$0xff] 0.0
  $region21: #{shared_module_gcn_forward.14} parent=0 // pred_fallthru
    _
  %v70 = vld [vmem:[%s52] sm:$0xf]
  %v71 = vld [vmem:[%s52 + $0x4] sm:$0xf]
  %v72 = vld [vmem:[%s52 + $0x8] sm:$0xf]
  %v73 = vld [vmem:[%s52 + $0xc] sm:$0xf]
  %v74 = vld [vmem:[%s52 + $0x10] sm:$0xf]
  %v75 = vld [vmem:[%s52 + $0x14] sm:$0xf]
  %v76 = vld [vmem:[%s52 + $0x18] sm:$0xf]
  %v77 = vld [vmem:[%s52 + $0x1c] sm:$0xf]
  %v78 = vld [vmem:[%s52 + $0x20] sm:$0xf]
  %v79 = vld [vmem:[%s52 + $0x24] sm:$0xf]
  %v80 = vld [vmem:[%s52 + $0x28] sm:$0xf]
  %v81 = vld [vmem:[%s52 + $0x2c] sm:$0xf]
  %v82 = vld [vmem:[%s52 + $0x30] sm:$0xf]
  %v83 = vld [vmem:[%s52 + $0x34] sm:$0xf]
  %v84 = vld [vmem:[%s52 + $0x38] sm:$0xf]
  %v85 = vld [vmem:[%s52 + $0x3c] sm:$0xf]
  %v86 = vld [vmem:[%s2] sm:$0xf]
  %v87 = vld [vmem:[%s2 + $0x4] sm:$0xf]
  %v88 = vld [vmem:[%s2 + $0x8] sm:$0xf]
  %v89 = vld [vmem:[%s2 + $0xc] sm:$0xf]
  %v90 = vld [vmem:[%s2 + $0x10] sm:$0xf]
  %v91 = vld [vmem:[%s2 + $0x14] sm:$0xf]
  %v92 = vld [vmem:[%s2 + $0x18] sm:$0xf]
  %v93 = vld [vmem:[%s2 + $0x1c] sm:$0xf]
  %v110 = vunpack.c.l.b16 %v70
  %v111 = vunpack.c.l.b16 %v71
  %v112 = vunpack.c.l.b16 %v72
  %v113 = vunpack.c.l.b16 %v73
  %v114 = vunpack.c.l.b16 %v74
  %v115 = vunpack.c.l.b16 %v75
  %v116 = vunpack.c.l.b16 %v76
  %v117 = vunpack.c.l.b16 %v77
  %v118 = vunpack.c.l.b16 %v78
  %v119 = vunpack.c.l.b16 %v79
  %v120 = vunpack.c.l.b16 %v80
  %v121 = vunpack.c.l.b16 %v81
  %v122 = vunpack.c.l.b16 %v82
  %v123 = vunpack.c.l.b16 %v83
  %v124 = vunpack.c.l.b16 %v84
  %v125 = vunpack.c.l.b16 %v85
  %v126 = vpack.c.b16 %v111, %v110
  %v127 = vpack.c.b16 %v113, %v112
  %v128 = vpack.c.b16 %v115, %v114
  %v129 = vpack.c.b16 %v117, %v116
  %v130 = vpack.c.b16 %v119, %v118
  %v131 = vpack.c.b16 %v121, %v120
  %v132 = vpack.c.b16 %v123, %v122
  %v133 = vpack.c.b16 %v125, %v124
  %v142 = vunpack.c.l.b16 %v86
  %v143 = vunpack.c.l.b16 %v87
  %v144 = vunpack.c.l.b16 %v88
  %v145 = vunpack.c.l.b16 %v89
  %v146 = vunpack.c.l.b16 %v90
  %v147 = vunpack.c.l.b16 %v91
  %v148 = vunpack.c.l.b16 %v92
  %v149 = vunpack.c.l.b16 %v93
  %v150 = vpack.c.b16 %v143, %v142
  %v151 = vpack.c.b16 %v145, %v144
  %v152 = vpack.c.b16 %v147, %v146
  %v153 = vpack.c.b16 %v149, %v148
  %vm158 = vcmask 523264
  %v160 = vsel %vm158, %v126, 0
  %v163 = vsel %vm158, %v127, 0
  %v166 = vsel %vm158, %v128, 0
  %v169 = vsel %vm158, %v129, 0
  %v172 = vsel %vm158, %v130, 0
  %v175 = vsel %vm158, %v131, 0
  %v178 = vsel %vm158, %v132, 0
  %v181 = vsel %vm158, %v133, 0
  %183 = vmatprep.subr.bf16.mxu0 0
  %184 = vmatpush1.bf16.msra.mxu0 0
  %185 = vmatprep.subr.bf16.mxu0 0
  %186 = vmatpush1.bf16.msra.mxu0 0
  %187 = vmatprep.subr.bf16.mxu0 0
  %188 = vmatpush1.bf16.msra.mxu0 0
  %189 = vmatprep.subr.bf16.mxu0 0
  %190 = vmatpush1.bf16.msra.mxu0 0
  %191 = vmatprep.subr.bf16.mxu0 0
  %192 = vmatpush1.bf16.msra.mxu0 %v153
  %193 = vmatprep.subr.bf16.mxu0 0
  %194 = vmatpush1.bf16.msra.mxu0 %v152
  %195 = vmatprep.subr.bf16.mxu0 0
  %196 = vmatpush1.bf16.msra.mxu0 %v151
  %197 = vmatprep.subr.bf16.mxu0 0
  %198 = vmatpush1.bf16.msra.mxu0 %v150
  %199 = vmatprep.subr.bf16.mxu0 0
  %200 = vmatpush2.bf16.msra.mxu0 0
  %201 = vmatprep.subr.bf16.mxu0 0
  %202 = vmatpush2.bf16.msra.mxu0 0
  %203 = vmatprep.subr.bf16.mxu0 0
  %204 = vmatpush2.bf16.msra.mxu0 0
  %205 = vmatprep.subr.bf16.mxu0 0
  %206 = vmatpush2.bf16.msra.mxu0 0
  %207 = vmatprep.subr.bf16.mxu0 0
  %208 = vmatpush2.bf16.msra.mxu0 0
  %209 = vmatprep.subr.bf16.mxu0 0
  %210 = vmatpush2.bf16.msra.mxu0 0
  %211 = vmatprep.subr.bf16.mxu0 0
  %212 = vmatpush2.bf16.msra.mxu0 0
  %213 = vmatprep.subr.bf16.mxu0 0
  %214 = vmatpush2.bf16.msra.mxu0 0
  %215 = vmatprep.mubr.bf16.mxu0 0
  %216 = vmatmul.mubr.bf16.gmra.mxu0 %v160
  %v217 = vpop.f32.mrf.mxu0
  %v218 = vadd.f32 0.0, %v217
  %v219 = vpop.f32.mrf.mxu0
  %v220 = vpop.f32.mrf.mxu0
  %v221 = vadd.f32 0.0, %v220
  %v222 = vpop.f32.mrf.mxu0
  %223 = vmatprep.mubr.bf16.mxu0 0
  %224 = vmatmul.mubr.bf16.gmra.mxu0 %v163
  %v225 = vpop.f32.mrf.mxu0
  %v226 = vadd.f32 0.0, %v225
  %v227 = vpop.f32.mrf.mxu0
  %v228 = vpop.f32.mrf.mxu0
  %v229 = vadd.f32 0.0, %v228
  %v230 = vpop.f32.mrf.mxu0
  %231 = vmatprep.mubr.bf16.mxu0 0
  %232 = vmatmul.mubr.bf16.gmra.mxu0 %v166
  %v233 = vpop.f32.mrf.mxu0
  %v234 = vadd.f32 0.0, %v233
  %v235 = vpop.f32.mrf.mxu0
  %v236 = vpop.f32.mrf.mxu0
  %v237 = vadd.f32 0.0, %v236
  %v238 = vpop.f32.mrf.mxu0
  %239 = vmatprep.mubr.bf16.mxu0 0
  %240 = vmatmul.mubr.bf16.gmra.mxu0 %v169
  %v241 = vpop.f32.mrf.mxu0
  %v242 = vadd.f32 0.0, %v241
  %v243 = vpop.f32.mrf.mxu0
  %v244 = vpop.f32.mrf.mxu0
  %v245 = vadd.f32 0.0, %v244
  %v246 = vpop.f32.mrf.mxu0
  %247 = vmatprep.mubr.bf16.mxu0 0
  %248 = vmatmul.mubr.bf16.gmra.mxu0 %v172
  %v249 = vpop.f32.mrf.mxu0
  %v250 = vadd.f32 0.0, %v249
  %v251 = vpop.f32.mrf.mxu0
  %v252 = vpop.f32.mrf.mxu0
  %v253 = vadd.f32 0.0, %v252
  %v254 = vpop.f32.mrf.mxu0
  %255 = vmatprep.mubr.bf16.mxu0 0
  %256 = vmatmul.mubr.bf16.gmra.mxu0 %v175
  %v257 = vpop.f32.mrf.mxu0
  %v258 = vadd.f32 0.0, %v257
  %v259 = vpop.f32.mrf.mxu0
  %v260 = vpop.f32.mrf.mxu0
  %v261 = vadd.f32 0.0, %v260
  %v262 = vpop.f32.mrf.mxu0
  %263 = vmatprep.mubr.bf16.mxu0 0
  %264 = vmatmul.mubr.bf16.gmra.mxu0 %v178
  %v265 = vpop.f32.mrf.mxu0
  %v266 = vadd.f32 0.0, %v265
  %v267 = vpop.f32.mrf.mxu0
  %v268 = vpop.f32.mrf.mxu0
  %v269 = vadd.f32 0.0, %v268
  %v270 = vpop.f32.mrf.mxu0
  %271 = vmatprep.mubr.bf16.mxu0 0
  %272 = vmatmul.mubr.bf16.gmra.mxu0 %v181
  %v273 = vpop.f32.mrf.mxu0
  %v274 = vadd.f32 0.0, %v273
  %v275 = vpop.f32.mrf.mxu0
  %v276 = vpop.f32.mrf.mxu0
  %v277 = vadd.f32 0.0, %v276
  %v278 = vpop.f32.mrf.mxu0
  %279 = vdwg.mxu0
  %v280 = vld [vmem:[%s60] sm:$0xf]
  %v281 = vld [vmem:[%s60 + $0x4] sm:$0xf]
  %v282 = vld [vmem:[%s60 + $0x8] sm:$0xf]
  %v283 = vld [vmem:[%s60 + $0xc] sm:$0xf]
  %v284 = vld [vmem:[%s3] sm:$0xf]
  %v285 = vld [vmem:[%s3 + $0x4] sm:$0xf]
  %v286 = vld [vmem:[%s3 + $0x8] sm:$0xf]
  %v287 = vld [vmem:[%s3 + $0xc] sm:$0xf]
  %v288 = vld [vmem:[%s3 + $0x10] sm:$0xf]
  %v289 = vld [vmem:[%s3 + $0x14] sm:$0xf]
  %v290 = vld [vmem:[%s3 + $0x18] sm:$0xf]
  %v291 = vld [vmem:[%s3 + $0x1c] sm:$0xf]
  %v296 = vunpack.c.l.b16 %v280
  %v297 = vunpack.c.l.b16 %v281
  %v298 = vunpack.c.l.b16 %v282
  %v299 = vunpack.c.l.b16 %v283
  %v300 = vpack.c.b16 %v297, %v296
  %v301 = vpack.c.b16 %v299, %v298
  %v310 = vunpack.c.l.b16 %v284
  %v311 = vunpack.c.l.b16 %v285
  %v312 = vunpack.c.l.b16 %v286
  %v313 = vunpack.c.l.b16 %v287
  %v314 = vunpack.c.l.b16 %v288
  %v315 = vunpack.c.l.b16 %v289
  %v316 = vunpack.c.l.b16 %v290
  %v317 = vunpack.c.l.b16 %v291
  %v318 = vpack.c.b16 %v311, %v310
  %v319 = vpack.c.b16 %v313, %v312
  %v320 = vpack.c.b16 %v315, %v314
  %v321 = vpack.c.b16 %v317, %v316
  %v327 = vsel %vm158, %v300, 0
  %v330 = vsel %vm158, %v301, 0
  %332 = vmatprep.subr.bf16.mxu0 0
  %333 = vmatpush1.bf16.msra.mxu0 0
  %334 = vmatprep.subr.bf16.mxu0 0
  %335 = vmatpush1.bf16.msra.mxu0 0
  %336 = vmatprep.subr.bf16.mxu0 0
  %337 = vmatpush1.bf16.msra.mxu0 0
  %338 = vmatprep.subr.bf16.mxu0 0
  %339 = vmatpush1.bf16.msra.mxu0 0
  %340 = vmatprep.subr.bf16.mxu0 0
  %341 = vmatpush1.bf16.msra.mxu0 %v321
  %342 = vmatprep.subr.bf16.mxu0 0
  %343 = vmatpush1.bf16.msra.mxu0 %v320
  %344 = vmatprep.subr.bf16.mxu0 0
  %345 = vmatpush1.bf16.msra.mxu0 %v319
  %346 = vmatprep.subr.bf16.mxu0 0
  %347 = vmatpush1.bf16.msra.mxu0 %v318
  %348 = vmatprep.subr.bf16.mxu0 0
  %349 = vmatpush2.bf16.msra.mxu0 0
  %350 = vmatprep.subr.bf16.mxu0 0
  %351 = vmatpush2.bf16.msra.mxu0 0
  %352 = vmatprep.subr.bf16.mxu0 0
  %353 = vmatpush2.bf16.msra.mxu0 0
  %354 = vmatprep.subr.bf16.mxu0 0
  %355 = vmatpush2.bf16.msra.mxu0 0
  %356 = vmatprep.subr.bf16.mxu0 0
  %357 = vmatpush2.bf16.msra.mxu0 0
  %358 = vmatprep.subr.bf16.mxu0 0
  %359 = vmatpush2.bf16.msra.mxu0 0
  %360 = vmatprep.subr.bf16.mxu0 0
  %361 = vmatpush2.bf16.msra.mxu0 0
  %362 = vmatprep.subr.bf16.mxu0 0
  %363 = vmatpush2.bf16.msra.mxu0 0
  %364 = vmatprep.mubr.bf16.mxu0 0
  %365 = vmatmul.mubr.bf16.gmra.mxu0 %v327
  %v366 = vpop.f32.mrf.mxu0
  %v367 = vadd.f32 0.0, %v366
  %v368 = vpop.f32.mrf.mxu0
  %v369 = vpop.f32.mrf.mxu0
  %v370 = vadd.f32 0.0, %v369
  %v371 = vpop.f32.mrf.mxu0
  %372 = vmatprep.mubr.bf16.mxu0 0
  %373 = vmatmul.mubr.bf16.gmra.mxu0 %v330
  %v374 = vpop.f32.mrf.mxu0
  %v375 = vadd.f32 0.0, %v374
  %v376 = vpop.f32.mrf.mxu0
  %v377 = vpop.f32.mrf.mxu0
  %v378 = vadd.f32 0.0, %v377
  %v379 = vpop.f32.mrf.mxu0
  %380 = vdwg.mxu0
  %v381 = vadd.f32 %v218, %v234
  %v382 = vadd.f32 %v381, %v250
  %v383 = vadd.f32 %v382, %v266
  %v384 = vadd.f32 %v221, %v237
  %v385 = vadd.f32 %v384, %v253
  %v386 = vadd.f32 %v385, %v269
  %v387 = vadd.f32 %v226, %v242
  %v388 = vadd.f32 %v387, %v258
  %v389 = vadd.f32 %v388, %v274
  %v390 = vadd.f32 %v229, %v245
  %v391 = vadd.f32 %v390, %v261
  %v392 = vadd.f32 %v391, %v277
  %v393 = vmul.f32 %v218, %v218
  %v394 = vmul.f32 %v221, %v221
  %v395 = vmul.f32 %v226, %v226
  %v396 = vmul.f32 %v229, %v229
  %v397 = vmul.f32 %v234, %v234
  %v398 = vmul.f32 %v237, %v237
  %v399 = vmul.f32 %v242, %v242
  %v400 = vmul.f32 %v245, %v245
  %v401 = vmul.f32 %v250, %v250
  %v402 = vmul.f32 %v253, %v253
  %v403 = vmul.f32 %v258, %v258
  %v404 = vmul.f32 %v261, %v261
  %v405 = vmul.f32 %v266, %v266
  %v406 = vmul.f32 %v269, %v269
  %v407 = vmul.f32 %v274, %v274
  %v408 = vmul.f32 %v277, %v277
  %v409 = vadd.f32 %v393, %v397
  %v410 = vadd.f32 %v409, %v401
  %v411 = vadd.f32 %v410, %v405
  %v412 = vadd.f32 %v394, %v398
  %v413 = vadd.f32 %v412, %v402
  %v414 = vadd.f32 %v413, %v406
  %v415 = vadd.f32 %v395, %v399
  %v416 = vadd.f32 %v415, %v403
  %v417 = vadd.f32 %v416, %v407
  %v418 = vadd.f32 %v396, %v400
  %v419 = vadd.f32 %v418, %v404
  %v420 = vadd.f32 %v419, %v408
  %v421 = vmul.f32 %v367, 4.0
  %v422 = vmul.f32 %v370, 4.0
  %v423 = vmul.f32 %v375, 4.0
  %v424 = vmul.f32 %v378, 4.0
  %v425 = vadd.f32 %v383, %v421
  %v426 = vadd.f32 %v386, %v422
  %v427 = vadd.f32 %v389, %v423
  %v428 = vadd.f32 %v392, %v424
  %v429 = vmul.f32 %v367, 2.0
  %v430 = vmul.f32 %v370, 2.0
  %v431 = vmul.f32 %v375, 2.0
  %v432 = vmul.f32 %v378, 2.0
  %v433 = vmul.f32 %v429, %v383
  %v434 = vmul.f32 %v430, %v386
  %v435 = vmul.f32 %v431, %v389
  %v436 = vmul.f32 %v432, %v392
  %v437 = vadd.f32 %v411, %v433
  %v438 = vadd.f32 %v414, %v434
  %v439 = vadd.f32 %v417, %v435
  %v440 = vadd.f32 %v420, %v436
  %v441 = vmul.f32 %v367, %v367
  %v442 = vmul.f32 %v370, %v370
  %v443 = vmul.f32 %v375, %v375
  %v444 = vmul.f32 %v378, %v378
  %v445 = vmul.f32 %v441, 4.0
  %v446 = vmul.f32 %v442, 4.0
  %v447 = vmul.f32 %v443, 4.0
  %v448 = vmul.f32 %v444, 4.0
  %v449 = vadd.f32 %v437, %v445
  %v450 = vadd.f32 %v438, %v446
  %v451 = vadd.f32 %v439, %v447
  %v452 = vadd.f32 %v440, %v448
  %v453 = vld [vmem:[%s4] sm:$0xff]
  %v454 = vadd.f32 %v425, %v426
  %v455 = vadd.f32 %v454, %v427
  %v456 = vadd.f32 %v455, %v428
  %v457 = vadd.f32 %v453, %v456
  %458 = vst [vmem:[%s4] sm:$0xff] %v457
  %v459 = vld [vmem:[%s5] sm:$0xff]
  %v460 = vadd.f32 %v449, %v450
  %v461 = vadd.f32 %v460, %v451
  %v462 = vadd.f32 %v461, %v452
  %v463 = vadd.f32 %v459, %v462
  %464 = vst [vmem:[%s5] sm:$0xff] %v463
  // Predicated region
  $region22: #{shared_module_gcn_forward.14} parent=0 // pred_check
    _
  $region23: #{shared_module_gcn_forward.14} parent=0 // pred_check_branch
    %466 = sbr.rel (0) target = $region25
  $region24: #{shared_module_gcn_forward.14} parent=0 // pred_region
    _
  $region25: #{shared_module_gcn_forward.14} parent=0 // pred_fallthru
    _
  // Predicated region
  $region26: #{shared_module_gcn_forward.14} parent=0 // pred_check
    _
  $region27: #{shared_module_gcn_forward.14} parent=0 // pred_check_branch
    %468 = sbr.rel (0) target = $region29
  $region28: #{shared_module_gcn_forward.14} parent=0 // pred_region
    _
  $region29: #{shared_module_gcn_forward.14} parent=0 // pred_fallthru
    _
  // Predicated region
  $region30: #{shared_module_gcn_forward.14} parent=0 // pred_check
    _
  $region31: #{shared_module_gcn_forward.14} parent=0 // pred_check_branch
    %470 = sbr.rel (0) target = $region33
  $region32: #{shared_module_gcn_forward.14} parent=0 // pred_region
    _
  $region33: #{shared_module_gcn_forward.14} parent=0 // pred_fallthru
    _
  // Predicated region
  $region34: #{shared_module_gcn_forward.14} parent=0 // pred_check
    _
  $region35: #{shared_module_gcn_forward.14} parent=0 // pred_check_branch
    %472 = sbr.rel (0) target = $region37
  $region36: #{shared_module_gcn_forward.14} parent=0 // pred_region
    _
  $region37: #{shared_module_gcn_forward.14} parent=0 // pred_fallthru
    _

// kernel: shared_module_gcn_forward.16
$region0: #{shared_module_gcn_forward.16}
  #allocation0 [shape = 'u32[]', space=smem, size = 0x4, offset = 0x4, fixed_abs, tag = 'smem constant byte address 0x4 - core index']
  #allocation1 [shape = 'u32[144,128]{1,0:T(1,128)}', space=vmem, size = 0x12000, scoped, tag = 'internal scratch']
  %s0 = inlined_call_operand.vmem [shape: bf16[4,32,128], index: 0, kind: input, shape index: {}]
  %s1 = inlined_call_operand.vmem [shape: bf16[32,128], index: 1, kind: input, shape index: {}]
  %s2 = inlined_call_operand.vmem [shape: bf16[128,256], index: 2, kind: input, shape index: {}]
  %s3 = inlined_call_operand.vmem [shape: bf16[128,256], index: 3, kind: input, shape index: {}]
  %s4 = inlined_call_operand.vmem [shape: f32[1,8,256], index: 4, kind: output, shape index: {0}]
  %s5 = inlined_call_operand.vmem [shape: f32[1,8,256], index: 5, kind: output, shape index: {1}]
  %6 = xla_tuple %s4, %s5
  %s7 = sld [smem:[#allocation0]]
  $region38: #{shared_module_gcn_forward.16} parent=0
    _
  %s9 = ssub.s32 1, %s7
  %s10 = scalar_select 0, %s9, %s7
  // Predicated region
  $region2: #{shared_module_gcn_forward.16} parent=0 // pred_check
    _
  $region3: #{shared_module_gcn_forward.16} parent=0 // pred_check_branch
    %12 = sbr.rel (0) target = $region5
  $region4: #{shared_module_gcn_forward.16} parent=0 // pred_region
    %s13 = sadd.s32 0, 0
    %s14 = smul.u32 4, %s13
    %p15 = scmp.lt.s32.totalorder %s14, 3
    %s16 = scalar_select %p15, %s14, 3
    %s17 = smul.addr %s16, 4
    %s18 = scalar_lea.vmem %s0, %s17
    %s19 = sadd.s32 0, 0
    %s20 = smul.u32 4, %s19
  $region5: #{shared_module_gcn_forward.16} parent=0 // pred_fallthru
    _
  // Predicated region
  $region6: #{shared_module_gcn_forward.16} parent=0 // pred_check
    _
  $region7: #{shared_module_gcn_forward.16} parent=0 // pred_check_branch
    %22 = sbr.rel (0) target = $region9
  $region8: #{shared_module_gcn_forward.16} parent=0 // pred_region
    %s23 = sadd.s32 0, 0
    %s24 = smul.u32 4, %s23
    %p25 = scmp.lt.s32.totalorder %s24, 3
    %s26 = scalar_select %p25, %s24, 3
    %s27 = smul.addr %s26, 4
    %s28 = scalar_lea.vmem %s1, %s27
    %s29 = sadd.s32 0, 0
    %s30 = smul.u32 4, %s29
  $region9: #{shared_module_gcn_forward.16} parent=0 // pred_fallthru
    _
  // Predicated region
  $region10: #{shared_module_gcn_forward.16} parent=0 // pred_check
    _
  $region11: #{shared_module_gcn_forward.16} parent=0 // pred_check_branch
    %32 = sbr.rel (0) target = $region13
  $region12: #{shared_module_gcn_forward.16} parent=0 // pred_region
    _
  $region13: #{shared_module_gcn_forward.16} parent=0 // pred_fallthru
    _
  // Predicated region
  $region14: #{shared_module_gcn_forward.16} parent=0 // pred_check
    _
  $region15: #{shared_module_gcn_forward.16} parent=0 // pred_check_branch
    %34 = sbr.rel (0) target = $region17
  $region16: #{shared_module_gcn_forward.16} parent=0 // pred_region
    _
  $region17: #{shared_module_gcn_forward.16} parent=0 // pred_fallthru
    _
  %s35 = sadd.s32 0, 0
  %s36 = smul.u32 4, %s35
  %p37 = scmp.lt.s32.totalorder %s36, 3
  %s38 = scalar_select %p37, %s36, 3
  %s39 = smul.addr %s38, 4
  %s40 = scalar_lea.vmem %s0, %s39
  %s41 = sadd.s32 0, 0
  %s42 = smul.u32 4, %s41
  %p43 = scmp.lt.s32.totalorder %s42, 3
  %s44 = scalar_select %p43, %s42, 3
  %s45 = smul.addr %s44, 4
  %s46 = scalar_lea.vmem %s1, %s45
  %s47 = sadd.s32 0, 0
  %s48 = smul.u32 4, %s47
  %p49 = scmp.lt.s32.totalorder %s48, 3
  %s50 = scalar_select %p49, %s48, 3
  %s51 = smul.addr %s50, 4
  %s52 = scalar_lea.vmem %s0, %s51
  %s53 = sadd.s32 0, 0
  %s54 = smul.u32 4, %s53
  %s55 = sadd.s32 0, 0
  %s56 = smul.u32 4, %s55
  %p57 = scmp.lt.s32.totalorder %s56, 3
  %s58 = scalar_select %p57, %s56, 3
  %s59 = smul.addr %s58, 4
  %s60 = scalar_lea.vmem %s1, %s59
  %s61 = sadd.s32 0, 0
  %s62 = smul.u32 4, %s61
  %p64 = scmp.eq.s32.totalorder 0, 0
  // Predicated region
  $region18: #{shared_module_gcn_forward.16} parent=0 // pred_check
    %p65 = pneg %p64
  $region19: #{shared_module_gcn_forward.16} parent=0 // pred_check_branch
    %67 = sbr.rel (%p65) target = $region21
  $region20: #{shared_module_gcn_forward.16} parent=0 // pred_region
    %68 = vst [vmem:[%s4] sm:$0xff] 0.0
    %69 = vst [vmem:[%s4 + $0x8] sm:$0xff] 0.0
    %70 = vst [vmem:[%s5] sm:$0xff] 0.0
    %71 = vst [vmem:[%s5 + $0x8] sm:$0xff] 0.0
  $region21: #{shared_module_gcn_forward.16} parent=0 // pred_fallthru
    _
  %v72 = vld [vmem:[%s52] sm:$0xf]
  %v73 = vld [vmem:[%s52 + $0x4] sm:$0xf]
  %v74 = vld [vmem:[%s52 + $0x8] sm:$0xf]
  %v75 = vld [vmem:[%s52 + $0xc] sm:$0xf]
  %v76 = vld [vmem:[%s52 + $0x10] sm:$0xf]
  %v77 = vld [vmem:[%s52 + $0x14] sm:$0xf]
  %v78 = vld [vmem:[%s52 + $0x18] sm:$0xf]
  %v79 = vld [vmem:[%s52 + $0x1c] sm:$0xf]
  %v80 = vld [vmem:[%s52 + $0x20] sm:$0xf]
  %v81 = vld [vmem:[%s52 + $0x24] sm:$0xf]
  %v82 = vld [vmem:[%s52 + $0x28] sm:$0xf]
  %v83 = vld [vmem:[%s52 + $0x2c] sm:$0xf]
  %v84 = vld [vmem:[%s52 + $0x30] sm:$0xf]
  %v85 = vld [vmem:[%s52 + $0x34] sm:$0xf]
  %v86 = vld [vmem:[%s52 + $0x38] sm:$0xf]
  %v87 = vld [vmem:[%s52 + $0x3c] sm:$0xf]
  %v88 = vld [vmem:[%s2] sm:$0xff]
  %v89 = vld [vmem:[%s2 + $0x8] sm:$0xff]
  %v90 = vld [vmem:[%s2 + $0x10] sm:$0xff]
  %v91 = vld [vmem:[%s2 + $0x18] sm:$0xff]
  %v92 = vld [vmem:[%s2 + $0x20] sm:$0xff]
  %v93 = vld [vmem:[%s2 + $0x28] sm:$0xff]
  %v94 = vld [vmem:[%s2 + $0x30] sm:$0xff]
  %v95 = vld [vmem:[%s2 + $0x38] sm:$0xff]
  %v96 = vld [vmem:[%s2 + $0x40] sm:$0xff]
  %v97 = vld [vmem:[%s2 + $0x48] sm:$0xff]
  %v98 = vld [vmem:[%s2 + $0x50] sm:$0xff]
  %v99 = vld [vmem:[%s2 + $0x58] sm:$0xff]
  %v100 = vld [vmem:[%s2 + $0x60] sm:$0xff]
  %v101 = vld [vmem:[%s2 + $0x68] sm:$0xff]
  %v102 = vld [vmem:[%s2 + $0x70] sm:$0xff]
  %v103 = vld [vmem:[%s2 + $0x78] sm:$0xff]
  %v120 = vunpack.c.l.b16 %v72
  %v121 = vunpack.c.l.b16 %v73
  %v122 = vunpack.c.l.b16 %v74
  %v123 = vunpack.c.l.b16 %v75
  %v124 = vunpack.c.l.b16 %v76
  %v125 = vunpack.c.l.b16 %v77
  %v126 = vunpack.c.l.b16 %v78
  %v127 = vunpack.c.l.b16 %v79
  %v128 = vunpack.c.l.b16 %v80
  %v129 = vunpack.c.l.b16 %v81
  %v130 = vunpack.c.l.b16 %v82
  %v131 = vunpack.c.l.b16 %v83
  %v132 = vunpack.c.l.b16 %v84
  %v133 = vunpack.c.l.b16 %v85
  %v134 = vunpack.c.l.b16 %v86
  %v135 = vunpack.c.l.b16 %v87
  %v136 = vpack.c.b16 %v121, %v120
  %v137 = vpack.c.b16 %v123, %v122
  %v138 = vpack.c.b16 %v125, %v124
  %v139 = vpack.c.b16 %v127, %v126
  %v140 = vpack.c.b16 %v129, %v128
  %v141 = vpack.c.b16 %v131, %v130
  %v142 = vpack.c.b16 %v133, %v132
  %v143 = vpack.c.b16 %v135, %v134
  %v168 = vunpack.c.l.b16 %v88
  %v169 = vunpack.c.h.b16 %v88
  %v170 = vunpack.c.l.b16 %v89
  %v171 = vunpack.c.h.b16 %v89
  %v172 = vunpack.c.l.b16 %v90
  %v173 = vunpack.c.h.b16 %v90
  %v174 = vunpack.c.l.b16 %v91
  %v175 = vunpack.c.h.b16 %v91
  %v176 = vunpack.c.l.b16 %v92
  %v177 = vunpack.c.h.b16 %v92
  %v178 = vunpack.c.l.b16 %v93
  %v179 = vunpack.c.h.b16 %v93
  %v180 = vunpack.c.l.b16 %v94
  %v181 = vunpack.c.h.b16 %v94
  %v182 = vunpack.c.l.b16 %v95
  %v183 = vunpack.c.h.b16 %v95
  %v184 = vunpack.c.l.b16 %v96
  %v185 = vunpack.c.h.b16 %v96
  %v186 = vunpack.c.l.b16 %v97
  %v187 = vunpack.c.h.b16 %v97
  %v188 = vunpack.c.l.b16 %v98
  %v189 = vunpack.c.h.b16 %v98
  %v190 = vunpack.c.l.b16 %v99
  %v191 = vunpack.c.h.b16 %v99
  %v192 = vunpack.c.l.b16 %v100
  %v193 = vunpack.c.h.b16 %v100
  %v194 = vunpack.c.l.b16 %v101
  %v195 = vunpack.c.h.b16 %v101
  %v196 = vunpack.c.l.b16 %v102
  %v197 = vunpack.c.h.b16 %v102
  %v198 = vunpack.c.l.b16 %v103
  %v199 = vunpack.c.h.b16 %v103
  %v200 = vpack.c.b16 %v170, %v168
  %v201 = vpack.c.b16 %v171, %v169
  %v202 = vpack.c.b16 %v174, %v172
  %v203 = vpack.c.b16 %v175, %v173
  %v204 = vpack.c.b16 %v178, %v176
  %v205 = vpack.c.b16 %v179, %v177
  %v206 = vpack.c.b16 %v182, %v180
  %v207 = vpack.c.b16 %v183, %v181
  %v208 = vpack.c.b16 %v186, %v184
  %v209 = vpack.c.b16 %v187, %v185
  %v210 = vpack.c.b16 %v190, %v188
  %v211 = vpack.c.b16 %v191, %v189
  %v212 = vpack.c.b16 %v194, %v192
  %v213 = vpack.c.b16 %v195, %v193
  %v214 = vpack.c.b16 %v198, %v196
  %v215 = vpack.c.b16 %v199, %v197
  %232 = vmatprep.subr.bf16.mxu0 %v215
  %233 = vmatpush1.bf16.msra.mxu0 %v214
  %234 = vmatprep.subr.bf16.mxu0 %v213
  %235 = vmatpush1.bf16.msra.mxu0 %v212
  %236 = vmatprep.subr.bf16.mxu0 %v211
  %237 = vmatpush1.bf16.msra.mxu0 %v210
  %238 = vmatprep.subr.bf16.mxu0 %v209
  %239 = vmatpush1.bf16.msra.mxu0 %v208
  %240 = vmatprep.subr.bf16.mxu0 %v207
  %241 = vmatpush1.bf16.msra.mxu0 %v206
  %242 = vmatprep.subr.bf16.mxu0 %v205
  %243 = vmatpush1.bf16.msra.mxu0 %v204
  %244 = vmatprep.subr.bf16.mxu0 %v203
  %245 = vmatpush1.bf16.msra.mxu0 %v202
  %246 = vmatprep.subr.bf16.mxu0 %v201
  %247 = vmatpush1.bf16.msra.mxu0 %v200
  %248 = vmatprep.subr.bf16.mxu0 0
  %249 = vmatpush2.bf16.msra.mxu0 0
  %250 = vmatprep.subr.bf16.mxu0 0
  %251 = vmatpush2.bf16.msra.mxu0 0
  %252 = vmatprep.subr.bf16.mxu0 0
  %253 = vmatpush2.bf16.msra.mxu0 0
  %254 = vmatprep.subr.bf16.mxu0 0
  %255 = vmatpush2.bf16.msra.mxu0 0
  %256 = vmatprep.subr.bf16.mxu0 0
  %257 = vmatpush2.bf16.msra.mxu0 0
  %258 = vmatprep.subr.bf16.mxu0 0
  %259 = vmatpush2.bf16.msra.mxu0 0
  %260 = vmatprep.subr.bf16.mxu0 0
  %261 = vmatpush2.bf16.msra.mxu0 0
  %262 = vmatprep.subr.bf16.mxu0 0
  %263 = vmatpush2.bf16.msra.mxu0 0
  %264 = vmatprep.mubr.bf16.mxu0 0
  %265 = vmatmul.mubr.bf16.gmra.mxu0 %v136
  %v266 = vpop.f32.mrf.mxu0
  %v267 = vadd.f32 0.0, %v266
  %v268 = vpop.f32.mrf.mxu0
  %v269 = vadd.f32 0.0, %v268
  %v270 = vpop.f32.mrf.mxu0
  %v271 = vadd.f32 0.0, %v270
  %v272 = vpop.f32.mrf.mxu0
  %v273 = vadd.f32 0.0, %v272
  %274 = vmatprep.mubr.bf16.mxu0 0
  %275 = vmatmul.mubr.bf16.gmra.mxu0 %v137
  %v276 = vpop.f32.mrf.mxu0
  %v277 = vadd.f32 0.0, %v276
  %v278 = vpop.f32.mrf.mxu0
  %v279 = vadd.f32 0.0, %v278
  %v280 = vpop.f32.mrf.mxu0
  %v281 = vadd.f32 0.0, %v280
  %v282 = vpop.f32.mrf.mxu0
  %v283 = vadd.f32 0.0, %v282
  %284 = vmatprep.mubr.bf16.mxu0 0
  %285 = vmatmul.mubr.bf16.gmra.mxu0 %v138
  %v286 = vpop.f32.mrf.mxu0
  %v287 = vadd.f32 0.0, %v286
  %v288 = vpop.f32.mrf.mxu0
  %v289 = vadd.f32 0.0, %v288
  %v290 = vpop.f32.mrf.mxu0
  %v291 = vadd.f32 0.0, %v290
  %v292 = vpop.f32.mrf.mxu0
  %v293 = vadd.f32 0.0, %v292
  %294 = vmatprep.mubr.bf16.mxu0 0
  %295 = vmatmul.mubr.bf16.gmra.mxu0 %v139
  %v296 = vpop.f32.mrf.mxu0
  %v297 = vadd.f32 0.0, %v296
  %v298 = vpop.f32.mrf.mxu0
  %v299 = vadd.f32 0.0, %v298
  %v300 = vpop.f32.mrf.mxu0
  %v301 = vadd.f32 0.0, %v300
  %v302 = vpop.f32.mrf.mxu0
  %v303 = vadd.f32 0.0, %v302
  %304 = vmatprep.mubr.bf16.mxu0 0
  %305 = vmatmul.mubr.bf16.gmra.mxu0 %v140
  %v306 = vpop.f32.mrf.mxu0
  %v307 = vadd.f32 0.0, %v306
  %v308 = vpop.f32.mrf.mxu0
  %v309 = vadd.f32 0.0, %v308
  %v310 = vpop.f32.mrf.mxu0
  %v311 = vadd.f32 0.0, %v310
  %v312 = vpop.f32.mrf.mxu0
  %v313 = vadd.f32 0.0, %v312
  %314 = vmatprep.mubr.bf16.mxu0 0
  %315 = vmatmul.mubr.bf16.gmra.mxu0 %v141
  %v316 = vpop.f32.mrf.mxu0
  %v317 = vadd.f32 0.0, %v316
  %v318 = vpop.f32.mrf.mxu0
  %v319 = vadd.f32 0.0, %v318
  %v320 = vpop.f32.mrf.mxu0
  %v321 = vadd.f32 0.0, %v320
  %v322 = vpop.f32.mrf.mxu0
  %v323 = vadd.f32 0.0, %v322
  %324 = vmatprep.mubr.bf16.mxu0 0
  %325 = vmatmul.mubr.bf16.gmra.mxu0 %v142
  %v326 = vpop.f32.mrf.mxu0
  %v327 = vadd.f32 0.0, %v326
  %v328 = vpop.f32.mrf.mxu0
  %v329 = vadd.f32 0.0, %v328
  %v330 = vpop.f32.mrf.mxu0
  %v331 = vadd.f32 0.0, %v330
  %v332 = vpop.f32.mrf.mxu0
  %v333 = vadd.f32 0.0, %v332
  %334 = vmatprep.mubr.bf16.mxu0 0
  %335 = vmatmul.mubr.bf16.gmra.mxu0 %v143
  %v336 = vpop.f32.mrf.mxu0
  %v337 = vadd.f32 0.0, %v336
  %v338 = vpop.f32.mrf.mxu0
  %v339 = vadd.f32 0.0, %v338
  %v340 = vpop.f32.mrf.mxu0
  %v341 = vadd.f32 0.0, %v340
  %v342 = vpop.f32.mrf.mxu0
  %v343 = vadd.f32 0.0, %v342
  %344 = vdwg.mxu0
  %v345 = vld [vmem:[%s60] sm:$0xf]
  %v346 = vld [vmem:[%s60 + $0x4] sm:$0xf]
  %v347 = vld [vmem:[%s60 + $0x8] sm:$0xf]
  %v348 = vld [vmem:[%s60 + $0xc] sm:$0xf]
  %v349 = vld [vmem:[%s3] sm:$0xff]
  %v350 = vld [vmem:[%s3 + $0x8] sm:$0xff]
  %v351 = vld [vmem:[%s3 + $0x10] sm:$0xff]
  %v352 = vld [vmem:[%s3 + $0x18] sm:$0xff]
  %v353 = vld [vmem:[%s3 + $0x20] sm:$0xff]
  %v354 = vld [vmem:[%s3 + $0x28] sm:$0xff]
  %v355 = vld [vmem:[%s3 + $0x30] sm:$0xff]
  %v356 = vld [vmem:[%s3 + $0x38] sm:$0xff]
  %v357 = vld [vmem:[%s3 + $0x40] sm:$0xff]
  %v358 = vld [vmem:[%s3 + $0x48] sm:$0xff]
  %v359 = vld [vmem:[%s3 + $0x50] sm:$0xff]
  %v360 = vld [vmem:[%s3 + $0x58] sm:$0xff]
  %v361 = vld [vmem:[%s3 + $0x60] sm:$0xff]
  %v362 = vld [vmem:[%s3 + $0x68] sm:$0xff]
  %v363 = vld [vmem:[%s3 + $0x70] sm:$0xff]
  %v364 = vld [vmem:[%s3 + $0x78] sm:$0xff]
  %v369 = vunpack.c.l.b16 %v345
  %v370 = vunpack.c.l.b16 %v346
  %v371 = vunpack.c.l.b16 %v347
  %v372 = vunpack.c.l.b16 %v348
  %v373 = vpack.c.b16 %v370, %v369
  %v374 = vpack.c.b16 %v372, %v371
  %v393 = vunpack.c.l.b16 %v349
  %v394 = vunpack.c.h.b16 %v349
  %v395 = vunpack.c.l.b16 %v350
  %v396 = vunpack.c.h.b16 %v350
  %v397 = vunpack.c.l.b16 %v351
  %v398 = vunpack.c.h.b16 %v351
  %v399 = vunpack.c.l.b16 %v352
  %v400 = vunpack.c.h.b16 %v352
  %v401 = vunpack.c.l.b16 %v353
  %v402 = vunpack.c.h.b16 %v353
  %v403 = vunpack.c.l.b16 %v354
  %v404 = vunpack.c.h.b16 %v354
  %v405 = vunpack.c.l.b16 %v355
  %v406 = vunpack.c.h.b16 %v355
  %v407 = vunpack.c.l.b16 %v356
  %v408 = vunpack.c.h.b16 %v356
  %v409 = vunpack.c.l.b16 %v357
  %v410 = vunpack.c.h.b16 %v357
  %v411 = vunpack.c.l.b16 %v358
  %v412 = vunpack.c.h.b16 %v358
  %v413 = vunpack.c.l.b16 %v359
  %v414 = vunpack.c.h.b16 %v359
  %v415 = vunpack.c.l.b16 %v360
  %v416 = vunpack.c.h.b16 %v360
  %v417 = vunpack.c.l.b16 %v361
  %v418 = vunpack.c.h.b16 %v361
  %v419 = vunpack.c.l.b16 %v362
  %v420 = vunpack.c.h.b16 %v362
  %v421 = vunpack.c.l.b16 %v363
  %v422 = vunpack.c.h.b16 %v363
  %v423 = vunpack.c.l.b16 %v364
  %v424 = vunpack.c.h.b16 %v364
  %v425 = vpack.c.b16 %v395, %v393
  %v426 = vpack.c.b16 %v396, %v394
  %v427 = vpack.c.b16 %v399, %v397
  %v428 = vpack.c.b16 %v400, %v398
  %v429 = vpack.c.b16 %v403, %v401
  %v430 = vpack.c.b16 %v404, %v402
  %v431 = vpack.c.b16 %v407, %v405
  %v432 = vpack.c.b16 %v408, %v406
  %v433 = vpack.c.b16 %v411, %v409
  %v434 = vpack.c.b16 %v412, %v410
  %v435 = vpack.c.b16 %v415, %v413
  %v436 = vpack.c.b16 %v416, %v414
  %v437 = vpack.c.b16 %v419, %v417
  %v438 = vpack.c.b16 %v420, %v418
  %v439 = vpack.c.b16 %v423, %v421
  %v440 = vpack.c.b16 %v424, %v422
  %457 = vmatprep.subr.bf16.mxu0 %v440
  %458 = vmatpush1.bf16.msra.mxu0 %v439
  %459 = vmatprep.subr.bf16.mxu0 %v438
  %460 = vmatpush1.bf16.msra.mxu0 %v437
  %461 = vmatprep.subr.bf16.mxu0 %v436
  %462 = vmatpush1.bf16.msra.mxu0 %v435
  %463 = vmatprep.subr.bf16.mxu0 %v434
  %464 = vmatpush1.bf16.msra.mxu0 %v433
  %465 = vmatprep.subr.bf16.mxu0 %v432
  %466 = vmatpush1.bf16.msra.mxu0 %v431
  %467 = vmatprep.subr.bf16.mxu0 %v430
  %468 = vmatpush1.bf16.msra.mxu0 %v429
  %469 = vmatprep.subr.bf16.mxu0 %v428
  %470 = vmatpush1.bf16.msra.mxu0 %v427
  %471 = vmatprep.subr.bf16.mxu0 %v426
  %472 = vmatpush1.bf16.msra.mxu0 %v425
  %473 = vmatprep.subr.bf16.mxu0 0
  %474 = vmatpush2.bf16.msra.mxu0 0
  %475 = vmatprep.subr.bf16.mxu0 0
  %476 = vmatpush2.bf16.msra.mxu0 0
  %477 = vmatprep.subr.bf16.mxu0 0
  %478 = vmatpush2.bf16.msra.mxu0 0
  %479 = vmatprep.subr.bf16.mxu0 0
  %480 = vmatpush2.bf16.msra.mxu0 0
  %481 = vmatprep.subr.bf16.mxu0 0
  %482 = vmatpush2.bf16.msra.mxu0 0
  %483 = vmatprep.subr.bf16.mxu0 0
  %484 = vmatpush2.bf16.msra.mxu0 0
  %485 = vmatprep.subr.bf16.mxu0 0
  %486 = vmatpush2.bf16.msra.mxu0 0
  %487 = vmatprep.subr.bf16.mxu0 0
  %488 = vmatpush2.bf16.msra.mxu0 0
  %489 = vmatprep.mubr.bf16.mxu0 0
  %490 = vmatmul.mubr.bf16.gmra.mxu0 %v373
  %v491 = vpop.f32.mrf.mxu0
  %v492 = vadd.f32 0.0, %v491
  %v493 = vpop.f32.mrf.mxu0
  %v494 = vadd.f32 0.0, %v493
  %v495 = vpop.f32.mrf.mxu0
  %v496 = vadd.f32 0.0, %v495
  %v497 = vpop.f32.mrf.mxu0
  %v498 = vadd.f32 0.0, %v497
  %499 = vmatprep.mubr.bf16.mxu0 0
  %500 = vmatmul.mubr.bf16.gmra.mxu0 %v374
  %v501 = vpop.f32.mrf.mxu0
  %v502 = vadd.f32 0.0, %v501
  %v503 = vpop.f32.mrf.mxu0
  %v504 = vadd.f32 0.0, %v503
  %v505 = vpop.f32.mrf.mxu0
  %v506 = vadd.f32 0.0, %v505
  %v507 = vpop.f32.mrf.mxu0
  %v508 = vadd.f32 0.0, %v507
  %509 = vdwg.mxu0
  %v510 = vadd.f32 %v267, %v287
  %v511 = vadd.f32 %v510, %v307
  %v512 = vadd.f32 %v511, %v327
  %v513 = vadd.f32 %v269, %v289
  %v514 = vadd.f32 %v513, %v309
  %v515 = vadd.f32 %v514, %v329
  %v516 = vadd.f32 %v271, %v291
  %v517 = vadd.f32 %v516, %v311
  %v518 = vadd.f32 %v517, %v331
  %v519 = vadd.f32 %v273, %v293
  %v520 = vadd.f32 %v519, %v313
  %v521 = vadd.f32 %v520, %v333
  %v522 = vadd.f32 %v277, %v297
  %v523 = vadd.f32 %v522, %v317
  %v524 = vadd.f32 %v523, %v337
  %v525 = vadd.f32 %v279, %v299
  %v526 = vadd.f32 %v525, %v319
  %v527 = vadd.f32 %v526, %v339
  %v528 = vadd.f32 %v281, %v301
  %v529 = vadd.f32 %v528, %v321
  %v530 = vadd.f32 %v529, %v341
  %v531 = vadd.f32 %v283, %v303
  %v532 = vadd.f32 %v531, %v323
  %v533 = vadd.f32 %v532, %v343
  %v534 = vmul.f32 %v267, %v267
  %v535 = vmul.f32 %v269, %v269
  %v536 = vmul.f32 %v271, %v271
  %v537 = vmul.f32 %v273, %v273
  %v538 = vmul.f32 %v277, %v277
  %v539 = vmul.f32 %v279, %v279
  %v540 = vmul.f32 %v281, %v281
  %v541 = vmul.f32 %v283, %v283
  %v542 = vmul.f32 %v287, %v287
  %v543 = vmul.f32 %v289, %v289
  %v544 = vmul.f32 %v291, %v291
  %v545 = vmul.f32 %v293, %v293
  %v546 = vmul.f32 %v297, %v297
  %v547 = vmul.f32 %v299, %v299
  %v548 = vmul.f32 %v301, %v301
  %v549 = vmul.f32 %v303, %v303
  %v550 = vmul.f32 %v307, %v307
  %v551 = vmul.f32 %v309, %v309
  %v552 = vmul.f32 %v311, %v311
  %v553 = vmul.f32 %v313, %v313
  %v554 = vmul.f32 %v317, %v317
  %v555 = vmul.f32 %v319, %v319
  %v556 = vmul.f32 %v321, %v321
  %v557 = vmul.f32 %v323, %v323
  %v558 = vmul.f32 %v327, %v327
  %v559 = vmul.f32 %v329, %v329
  %v560 = vmul.f32 %v331, %v331
  %v561 = vmul.f32 %v333, %v333
  %v562 = vmul.f32 %v337, %v337
  %v563 = vmul.f32 %v339, %v339
  %v564 = vmul.f32 %v341, %v341
  %v565 = vmul.f32 %v343, %v343
  %v566 = vadd.f32 %v534, %v542
  %v567 = vadd.f32 %v566, %v550
  %v568 = vadd.f32 %v567, %v558
  %v569 = vadd.f32 %v535, %v543
  %v570 = vadd.f32 %v569, %v551
  %v571 = vadd.f32 %v570, %v559
  %v572 = vadd.f32 %v536, %v544
  %v573 = vadd.f32 %v572, %v552
  %v574 = vadd.f32 %v573, %v560
  %v575 = vadd.f32 %v537, %v545
  %v576 = vadd.f32 %v575, %v553
  %v577 = vadd.f32 %v576, %v561
  %v578 = vadd.f32 %v538, %v546
  %v579 = vadd.f32 %v578, %v554
  %v580 = vadd.f32 %v579, %v562
  %v581 = vadd.f32 %v539, %v547
  %v582 = vadd.f32 %v581, %v555
  %v583 = vadd.f32 %v582, %v563
  %v584 = vadd.f32 %v540, %v548
  %v585 = vadd.f32 %v584, %v556
  %v586 = vadd.f32 %v585, %v564
  %v587 = vadd.f32 %v541, %v549
  %v588 = vadd.f32 %v587, %v557
  %v589 = vadd.f32 %v588, %v565
  %v590 = vmul.f32 %v492, 4.0
  %v591 = vmul.f32 %v494, 4.0
  %v592 = vmul.f32 %v496, 4.0
  %v593 = vmul.f32 %v498, 4.0
  %v594 = vmul.f32 %v502, 4.0
  %v595 = vmul.f32 %v504, 4.0
  %v596 = vmul.f32 %v506, 4.0
  %v597 = vmul.f32 %v508, 4.0
  %v598 = vadd.f32 %v512, %v590
  %v599 = vadd.f32 %v515, %v591
  %v600 = vadd.f32 %v518, %v592
  %v601 = vadd.f32 %v521, %v593
  %v602 = vadd.f32 %v524, %v594
  %v603 = vadd.f32 %v527, %v595
  %v604 = vadd.f32 %v530, %v596
  %v605 = vadd.f32 %v533, %v597
  %v606 = vmul.f32 %v492, 2.0
  %v607 = vmul.f32 %v494, 2.0
  %v608 = vmul.f32 %v496, 2.0
  %v609 = vmul.f32 %v498, 2.0
  %v610 = vmul.f32 %v502, 2.0
  %v611 = vmul.f32 %v504, 2.0
  %v612 = vmul.f32 %v506, 2.0
  %v613 = vmul.f32 %v508, 2.0
  %v614 = vmul.f32 %v606, %v512
  %v615 = vmul.f32 %v607, %v515
  %v616 = vmul.f32 %v608, %v518
  %v617 = vmul.f32 %v609, %v521
  %v618 = vmul.f32 %v610, %v524
  %v619 = vmul.f32 %v611, %v527
  %v620 = vmul.f32 %v612, %v530
  %v621 = vmul.f32 %v613, %v533
  %v622 = vadd.f32 %v568, %v614
  %v623 = vadd.f32 %v571, %v615
  %v624 = vadd.f32 %v574, %v616
  %v625 = vadd.f32 %v577, %v617
  %v626 = vadd.f32 %v580, %v618
  %v627 = vadd.f32 %v583, %v619
  %v628 = vadd.f32 %v586, %v620
  %v629 = vadd.f32 %v589, %v621
  %v630 = vmul.f32 %v492, %v492
  %v631 = vmul.f32 %v494, %v494
  %v632 = vmul.f32 %v496, %v496
  %v633 = vmul.f32 %v498, %v498
  %v634 = vmul.f32 %v502, %v502
  %v635 = vmul.f32 %v504, %v504
  %v636 = vmul.f32 %v506, %v506
  %v637 = vmul.f32 %v508, %v508
  %v638 = vmul.f32 %v630, 4.0
  %v639 = vmul.f32 %v631, 4.0
  %v640 = vmul.f32 %v632, 4.0
  %v641 = vmul.f32 %v633, 4.0
  %v642 = vmul.f32 %v634, 4.0
  %v643 = vmul.f32 %v635, 4.0
  %v644 = vmul.f32 %v636, 4.0
  %v645 = vmul.f32 %v637, 4.0
  %v646 = vadd.f32 %v622, %v638
  %v647 = vadd.f32 %v623, %v639
  %v648 = vadd.f32 %v624, %v640
  %v649 = vadd.f32 %v625, %v641
  %v650 = vadd.f32 %v626, %v642
  %v651 = vadd.f32 %v627, %v643
  %v652 = vadd.f32 %v628, %v644
  %v653 = vadd.f32 %v629, %v645
  %v654 = vld [vmem:[%s4] sm:$0xff]
  %v655 = vld [vmem:[%s4 + $0x8] sm:$0xff]
  %v656 = vadd.f32 %v598, %v600
  %v657 = vadd.f32 %v656, %v602
  %v658 = vadd.f32 %v657, %v604
  %v659 = vadd.f32 %v599, %v601
  %v660 = vadd.f32 %v659, %v603
  %v661 = vadd.f32 %v660, %v605
  %v662 = vadd.f32 %v654, %v658
  %v663 = vadd.f32 %v655, %v661
  %664 = vst [vmem:[%s4] sm:$0xff] %v662
  %665 = vst [vmem:[%s4 + $0x8] sm:$0xff] %v663
  %v666 = vld [vmem:[%s5] sm:$0xff]
  %v667 = vld [vmem:[%s5 + $0x8] sm:$0xff]
  %v668 = vadd.f32 %v646, %v648
  %v669 = vadd.f32 %v668, %v650
  %v670 = vadd.f32 %v669, %v652
  %v671 = vadd.f32 %v647, %v649
  %v672 = vadd.f32 %v671, %v651
  %v673 = vadd.f32 %v672, %v653
  %v674 = vadd.f32 %v666, %v670
  %v675 = vadd.f32 %v667, %v673
  %676 = vst [vmem:[%s5] sm:$0xff] %v674
  %677 = vst [vmem:[%s5 + $0x8] sm:$0xff] %v675
  // Predicated region
  $region22: #{shared_module_gcn_forward.16} parent=0 // pred_check
    _
  $region23: #{shared_module_gcn_forward.16} parent=0 // pred_check_branch
    %679 = sbr.rel (0) target = $region25
  $region24: #{shared_module_gcn_forward.16} parent=0 // pred_region
    _
  $region25: #{shared_module_gcn_forward.16} parent=0 // pred_fallthru
    _
  // Predicated region
  $region26: #{shared_module_gcn_forward.16} parent=0 // pred_check
    _
  $region27: #{shared_module_gcn_forward.16} parent=0 // pred_check_branch
    %681 = sbr.rel (0) target = $region29
  $region28: #{shared_module_gcn_forward.16} parent=0 // pred_region
    _
  $region29: #{shared_module_gcn_forward.16} parent=0 // pred_fallthru
    _
  // Predicated region
  $region30: #{shared_module_gcn_forward.16} parent=0 // pred_check
    _
  $region31: #{shared_module_gcn_forward.16} parent=0 // pred_check_branch
    %683 = sbr.rel (0) target = $region33
  $region32: #{shared_module_gcn_forward.16} parent=0 // pred_region
    _
  $region33: #{shared_module_gcn_forward.16} parent=0 // pred_fallthru
    _
  // Predicated region
  $region34: #{shared_module_gcn_forward.16} parent=0 // pred_check
    _
  $region35: #{shared_module_gcn_forward.16} parent=0 // pred_check_branch
    %685 = sbr.rel (0) target = $region37
  $region36: #{shared_module_gcn_forward.16} parent=0 // pred_region
    _
  $region37: #{shared_module_gcn_forward.16} parent=0 // pred_fallthru
    _

// kernel: shared_module_gcn_forward.18
$region0: #{shared_module_gcn_forward.18}
  #allocation0 [shape = 'u32[]', space=smem, size = 0x4, offset = 0x4, fixed_abs, tag = 'smem constant byte address 0x4 - core index']
  #allocation1 [shape = 'u32[144,128]{1,0:T(1,128)}', space=vmem, size = 0x12000, scoped, tag = 'internal scratch']
  %s0 = inlined_call_operand.vmem [shape: bf16[2,16,64], index: 0, kind: input, shape index: {}]
  %s1 = inlined_call_operand.vmem [shape: bf16[2,16,64], index: 1, kind: input, shape index: {}]
  %s2 = inlined_call_operand.vmem [shape: bf16[2,16,128], index: 2, kind: input, shape index: {}]
  %s3 = inlined_call_operand.vmem [shape: bf16[2,16,256], index: 3, kind: input, shape index: {}]
  %s4 = inlined_call_operand.vmem [shape: bf16[64,32], index: 4, kind: input, shape index: {}]
  %s5 = inlined_call_operand.vmem [shape: bf16[64,32], index: 5, kind: input, shape index: {}]
  %s6 = inlined_call_operand.vmem [shape: bf16[128,32], index: 6, kind: input, shape index: {}]
  %s7 = inlined_call_operand.vmem [shape: bf16[256,32], index: 7, kind: input, shape index: {}]
  %s8 = inlined_call_operand.vmem [shape: f32[2,8,32], index: 8, kind: output, shape index: {0}]
  %s9 = inlined_call_operand.vmem [shape: f32[2,8,32], index: 9, kind: output, shape index: {1}]
  %10 = xla_tuple %s8, %s9
  %s11 = sld [smem:[#allocation0]]
  $region77: #{shared_module_gcn_forward.18} parent=0
    _
  %s13 = ssub.s32 1, %s11
  %s14 = scalar_select 0, %s13, %s11
  loop: start=0, step=1, limit=4
  $region2: #{shared_module_gcn_forward.18} parent=0 // loop_pre_header
    _
  $region3: #{shared_module_gcn_forward.18} parent=0 // loop_header
    %s16 = sphi 0, %s20
    %p17 = scmp.ge.s32.totalorder %s16, 4
    %s23 = sphi 0, %s35
    %s24 = sphi 0, %s31
    %s25 = sphi 0, %s23
    %s26 = sphi 0, %s24
    %s27 = sphi 0, %s25
    %s28 = sphi 0, %s26
    %s40 = sphi 0, %s42
    %s43 = sphi 0, %s40
    %s44 = sphi 0, %s43
    %s60 = sphi 0, %s44
    %s68 = sphi 0, %s70
    %s71 = sphi 0, %s68
    %s72 = sphi 0, %s71
    %s88 = sphi 0, %s72
    %s96 = sphi 0, %s98
    %s99 = sphi 0, %s96
    %s100 = sphi 0, %s99
    %s116 = sphi 0, %s100
    %s124 = sphi 0, %s126
    %s127 = sphi 0, %s124
    %s128 = sphi 0, %s127
    %s144 = sphi 0, %s128
    %s148 = sphi 0, %s148
    %s150 = sphi 0, %s148
    %s151 = sphi 0, %s150
    %s165 = sphi 0, %s151
    %s169 = sphi 0, %s169
    %s171 = sphi 0, %s169
    %s172 = sphi 0, %s171
    %s186 = sphi 0, %s172
    %s190 = sphi 0, %s190
    %s192 = sphi 0, %s190
    %s193 = sphi 0, %s192
    %s207 = sphi 0, %s193
    %s211 = sphi 0, %s211
    %s213 = sphi 0, %s211
    %s214 = sphi 0, %s213
    %s228 = sphi 0, %s214
    %s234 = sphi 0, %s236
    %s237 = sphi 0, %s234
    %s238 = sphi 0, %s237
    %s254 = sphi 0, %s238
    %s260 = sphi 0, %s262
    %s263 = sphi 0, %s260
    %s264 = sphi 0, %s263
    %s280 = sphi 0, %s264
  $region4: #{shared_module_gcn_forward.18} parent=0 // loop_header_branch
    %19 = sbr.rel (%p17) target = $region8
  $region5: #{shared_module_gcn_forward.18} parent=0 // loop_body
    %s21 = ssub.s32 %s16, 1
    %s22 = ssub.s32 %s16, 2
    %s29 = sadd.s32 1, %s24
    %p30 = scmp.ge.s32.totalorder %s29, 1
    %s31 = scalar_select %p30, 0, %s29
    %s32 = sadd.s32 1, %s23
    %s33 = scalar_select %p30, %s32, %s23
    %p34 = scmp.ge.s32.totalorder %s33, 2
    %s35 = scalar_select %p34, 0, %s33
    %s36 = ssub.s32 %s23, %s35
    %s37 = ssub.s32 %s24, %s31
    %s38 = sor.u32 %s36, %s37
    %p39 = scmp.eq.s32.totalorder %s38, 0
    %s41 = sadd.s32 %s40, 1
    %s42 = scalar_select %p39, %s40, %s41
    %p45 = pneg %p39
    %p46 = scmp.eq.s32.totalorder %s16, 1
    %p47 = por %p45, %p46
    %p48 = scmp.ne.s32.totalorder %s40, %s43
    %p49 = scmp.eq.s32.totalorder %s16, 0
    %p50 = por %p48, %p49
    %p51 = scmp.ne.s32.totalorder %s40, %s43
    %p52 = scmp.eq.s32.totalorder %s21, 1
    %p53 = por %p51, %p52
    %p54 = scmp.ne.s32.totalorder %s43, %s44
    %p55 = scmp.eq.s32.totalorder %s21, 0
    %p56 = por %p54, %p55
    %p57 = scmp.ne.s32.totalorder %s43, %s44
    %p58 = scmp.eq.s32.totalorder %s22, 1
    %p59 = por %p57, %p58
    %p61 = scmp.ne.s32.totalorder %s44, %s60
    %p62 = scmp.eq.s32.totalorder %s22, 0
    %p63 = por %p61, %p62
    %s64 = ssub.s32 %s23, %s35
    %s65 = ssub.s32 %s24, %s31
    %s66 = sor.u32 %s64, %s65
    %p67 = scmp.eq.s32.totalorder %s66, 0
    %s69 = sadd.s32 %s68, 1
    %s70 = scalar_select %p67, %s68, %s69
    %p73 = pneg %p67
    %p74 = scmp.eq.s32.totalorder %s16, 1
    %p75 = por %p73, %p74
    %p76 = scmp.ne.s32.totalorder %s68, %s71
    %p77 = scmp.eq.s32.totalorder %s16, 0
    %p78 = por %p76, %p77
    %p79 = scmp.ne.s32.totalorder %s68, %s71
    %p80 = scmp.eq.s32.totalorder %s21, 1
    %p81 = por %p79, %p80
    %p82 = scmp.ne.s32.totalorder %s71, %s72
    %p83 = scmp.eq.s32.totalorder %s21, 0
    %p84 = por %p82, %p83
    %p85 = scmp.ne.s32.totalorder %s71, %s72
    %p86 = scmp.eq.s32.totalorder %s22, 1
    %p87 = por %p85, %p86
    %p89 = scmp.ne.s32.totalorder %s72, %s88
    %p90 = scmp.eq.s32.totalorder %s22, 0
    %p91 = por %p89, %p90
    %s92 = ssub.s32 %s23, %s35
    %s93 = ssub.s32 %s24, %s31
    %s94 = sor.u32 %s92, %s93
    %p95 = scmp.eq.s32.totalorder %s94, 0
    %s97 = sadd.s32 %s96, 1
    %s98 = scalar_select %p95, %s96, %s97
    %p101 = pneg %p95
    %p102 = scmp.eq.s32.totalorder %s16, 1
    %p103 = por %p101, %p102
    %p104 = scmp.ne.s32.totalorder %s96, %s99
    %p105 = scmp.eq.s32.totalorder %s16, 0
    %p106 = por %p104, %p105
    %p107 = scmp.ne.s32.totalorder %s96, %s99
    %p108 = scmp.eq.s32.totalorder %s21, 1
    %p109 = por %p107, %p108
    %p110 = scmp.ne.s32.totalorder %s99, %s100
    %p111 = scmp.eq.s32.totalorder %s21, 0
    %p112 = por %p110, %p111
    %p113 = scmp.ne.s32.totalorder %s99, %s100
    %p114 = scmp.eq.s32.totalorder %s22, 1
    %p115 = por %p113, %p114
    %p117 = scmp.ne.s32.totalorder %s100, %s116
    %p118 = scmp.eq.s32.totalorder %s22, 0
    %p119 = por %p117, %p118
    %s120 = ssub.s32 %s23, %s35
    %s121 = ssub.s32 %s24, %s31
    %s122 = sor.u32 %s120, %s121
    %p123 = scmp.eq.s32.totalorder %s122, 0
    %s125 = sadd.s32 %s124, 1
    %s126 = scalar_select %p123, %s124, %s125
    %p129 = pneg %p123
    %p130 = scmp.eq.s32.totalorder %s16, 1
    %p131 = por %p129, %p130
    %p132 = scmp.ne.s32.totalorder %s124, %s127
    %p133 = scmp.eq.s32.totalorder %s16, 0
    %p134 = por %p132, %p133
    %p135 = scmp.ne.s32.totalorder %s124, %s127
    %p136 = scmp.eq.s32.totalorder %s21, 1
    %p137 = por %p135, %p136
    %p138 = scmp.ne.s32.totalorder %s127, %s128
    %p139 = scmp.eq.s32.totalorder %s21, 0
    %p140 = por %p138, %p139
    %p141 = scmp.ne.s32.totalorder %s127, %s128
    %p142 = scmp.eq.s32.totalorder %s22, 1
    %p143 = por %p141, %p142
    %p145 = scmp.ne.s32.totalorder %s128, %s144
    %p146 = scmp.eq.s32.totalorder %s22, 0
    %p147 = por %p145, %p146
    %s149 = sadd.s32 %s148, 1
    %p152 = scmp.eq.s32.totalorder %s16, 1
    %p153 = scmp.ne.s32.totalorder %s148, %s150
    %p154 = scmp.eq.s32.totalorder %s16, 0
    %p155 = por %p153, %p154
    %p156 = scmp.ne.s32.totalorder %s148, %s150
    %p157 = scmp.eq.s32.totalorder %s21, 1
    %p158 = por %p156, %p157
    %p159 = scmp.ne.s32.totalorder %s150, %s151
    %p160 = scmp.eq.s32.totalorder %s21, 0
    %p161 = por %p159, %p160
    %p162 = scmp.ne.s32.totalorder %s150, %s151
    %p163 = scmp.eq.s32.totalorder %s22, 1
    %p164 = por %p162, %p163
    %p166 = scmp.ne.s32.totalorder %s151, %s165
    %p167 = scmp.eq.s32.totalorder %s22, 0
    %p168 = por %p166, %p167
    %s170 = sadd.s32 %s169, 1
    %p173 = scmp.eq.s32.totalorder %s16, 1
    %p174 = scmp.ne.s32.totalorder %s169, %s171
    %p175 = scmp.eq.s32.totalorder %s16, 0
    %p176 = por %p174, %p175
    %p177 = scmp.ne.s32.totalorder %s169, %s171
    %p178 = scmp.eq.s32.totalorder %s21, 1
    %p179 = por %p177, %p178
    %p180 = scmp.ne.s32.totalorder %s171, %s172
    %p181 = scmp.eq.s32.totalorder %s21, 0
    %p182 = por %p180, %p181
    %p183 = scmp.ne.s32.totalorder %s171, %s172
    %p184 = scmp.eq.s32.totalorder %s22, 1
    %p185 = por %p183, %p184
    %p187 = scmp.ne.s32.totalorder %s172, %s186
    %p188 = scmp.eq.s32.totalorder %s22, 0
    %p189 = por %p187, %p188
    %s191 = sadd.s32 %s190, 1
    %p194 = scmp.eq.s32.totalorder %s16, 1
    %p195 = scmp.ne.s32.totalorder %s190, %s192
    %p196 = scmp.eq.s32.totalorder %s16, 0
    %p197 = por %p195, %p196
    %p198 = scmp.ne.s32.totalorder %s190, %s192
    %p199 = scmp.eq.s32.totalorder %s21, 1
    %p200 = por %p198, %p199
    %p201 = scmp.ne.s32.totalorder %s192, %s193
    %p202 = scmp.eq.s32.totalorder %s21, 0
    %p203 = por %p201, %p202
    %p204 = scmp.ne.s32.totalorder %s192, %s193
    %p205 = scmp.eq.s32.totalorder %s22, 1
    %p206 = por %p204, %p205
    %p208 = scmp.ne.s32.totalorder %s193, %s207
    %p209 = scmp.eq.s32.totalorder %s22, 0
    %p210 = por %p208, %p209
    %s212 = sadd.s32 %s211, 1
    %p215 = scmp.eq.s32.totalorder %s16, 1
    %p216 = scmp.ne.s32.totalorder %s211, %s213
    %p217 = scmp.eq.s32.totalorder %s16, 0
    %p218 = por %p216, %p217
    %p219 = scmp.ne.s32.totalorder %s211, %s213
    %p220 = scmp.eq.s32.totalorder %s21, 1
    %p221 = por %p219, %p220
    %p222 = scmp.ne.s32.totalorder %s213, %s214
    %p223 = scmp.eq.s32.totalorder %s21, 0
    %p224 = por %p222, %p223
    %p225 = scmp.ne.s32.totalorder %s213, %s214
    %p226 = scmp.eq.s32.totalorder %s22, 1
    %p227 = por %p225, %p226
    %p229 = scmp.ne.s32.totalorder %s214, %s228
    %p230 = scmp.eq.s32.totalorder %s22, 0
    %p231 = por %p229, %p230
    %s232 = ssub.s32 %s23, %s35
    %p233 = scmp.eq.s32.totalorder %s232, 0
    %s235 = sadd.s32 %s234, 1
    %s236 = scalar_select %p233, %s234, %s235
    %p239 = pneg %p233
    %p240 = scmp.eq.s32.totalorder %s16, 1
    %p241 = por %p239, %p240
    %p242 = scmp.ne.s32.totalorder %s234, %s237
    %p243 = scmp.eq.s32.totalorder %s16, 0
    %p244 = por %p242, %p243
    %p245 = scmp.ne.s32.totalorder %s234, %s237
    %p246 = scmp.eq.s32.totalorder %s21, 1
    %p247 = por %p245, %p246
    %p248 = scmp.ne.s32.totalorder %s237, %s238
    %p249 = scmp.eq.s32.totalorder %s21, 0
    %p250 = por %p248, %p249
    %p251 = scmp.ne.s32.totalorder %s237, %s238
    %p252 = scmp.eq.s32.totalorder %s22, 1
    %p253 = por %p251, %p252
    %p255 = scmp.ne.s32.totalorder %s238, %s254
    %p256 = scmp.eq.s32.totalorder %s22, 0
    %p257 = por %p255, %p256
    %s258 = ssub.s32 %s23, %s35
    %p259 = scmp.eq.s32.totalorder %s258, 0
    %s261 = sadd.s32 %s260, 1
    %s262 = scalar_select %p259, %s260, %s261
    %p265 = pneg %p259
    %p266 = scmp.eq.s32.totalorder %s16, 1
    %p267 = por %p265, %p266
    %p268 = scmp.ne.s32.totalorder %s260, %s263
    %p269 = scmp.eq.s32.totalorder %s16, 0
    %p270 = por %p268, %p269
    %p271 = scmp.ne.s32.totalorder %s260, %s263
    %p272 = scmp.eq.s32.totalorder %s21, 1
    %p273 = por %p271, %p272
    %p274 = scmp.ne.s32.totalorder %s263, %s264
    %p275 = scmp.eq.s32.totalorder %s21, 0
    %p276 = por %p274, %p275
    %p277 = scmp.ne.s32.totalorder %s263, %s264
    %p278 = scmp.eq.s32.totalorder %s22, 1
    %p279 = por %p277, %p278
    %p281 = scmp.ne.s32.totalorder %s264, %s280
    %p282 = scmp.eq.s32.totalorder %s22, 0
    %p283 = por %p281, %p282
    %p284 = scmp.le.s32.totalorder 1, %s16
    %p285 = scmp.lt.s32.totalorder %s16, 3
    %p286 = pnand %p284, %p285
    %p287 = pneg %p286
    // Predicated region
    $region9: #{shared_module_gcn_forward.18} parent=5 // pred_check
      _
    $region10: #{shared_module_gcn_forward.18} parent=5 // pred_check_branch
      %289 = sbr.rel (%p286) target = $region12
    $region11: #{shared_module_gcn_forward.18} parent=5 // pred_region
      %s290 = ssub.s32 %s16, 1
      // Predicated region
      $region13: #{shared_module_gcn_forward.18} parent=11 // pred_check
        %p291 = pneg %p161
      $region14: #{shared_module_gcn_forward.18} parent=11 // pred_check_branch
        %293 = sbr.rel (%p291) target = $region16
      $region15: #{shared_module_gcn_forward.18} parent=11 // pred_region
        _
      $region16: #{shared_module_gcn_forward.18} parent=11 // pred_fallthru
        _
      // Predicated region
      $region17: #{shared_module_gcn_forward.18} parent=11 // pred_check
        %p294 = pneg %p182
      $region18: #{shared_module_gcn_forward.18} parent=11 // pred_check_branch
        %296 = sbr.rel (%p294) target = $region20
      $region19: #{shared_module_gcn_forward.18} parent=11 // pred_region
        _
      $region20: #{shared_module_gcn_forward.18} parent=11 // pred_fallthru
        _
      // Predicated region
      $region21: #{shared_module_gcn_forward.18} parent=11 // pred_check
        %p297 = pneg %p203
      $region22: #{shared_module_gcn_forward.18} parent=11 // pred_check_branch
        %299 = sbr.rel (%p297) target = $region24
      $region23: #{shared_module_gcn_forward.18} parent=11 // pred_region
        _
      $region24: #{shared_module_gcn_forward.18} parent=11 // pred_fallthru
        _
      // Predicated region
      $region25: #{shared_module_gcn_forward.18} parent=11 // pred_check
        %p300 = pneg %p224
      $region26: #{shared_module_gcn_forward.18} parent=11 // pred_check_branch
        %302 = sbr.rel (%p300) target = $region28
      $region27: #{shared_module_gcn_forward.18} parent=11 // pred_region
        _
      $region28: #{shared_module_gcn_forward.18} parent=11 // pred_fallthru
        _
    $region12: #{shared_module_gcn_forward.18} parent=5 // pred_fallthru
      _
    %p303 = scmp.lt.s32.totalorder %s16, 2
    // Predicated region
    $region29: #{shared_module_gcn_forward.18} parent=5 // pred_check
      %p304 = pneg %p303
    $region30: #{shared_module_gcn_forward.18} parent=5 // pred_check_branch
      %306 = sbr.rel (%p304) target = $region32
    $region31: #{shared_module_gcn_forward.18} parent=5 // pred_region
      // Predicated region
      $region33: #{shared_module_gcn_forward.18} parent=31 // pred_check
        %p307 = pneg %p50
      $region34: #{shared_module_gcn_forward.18} parent=31 // pred_check_branch
        %309 = sbr.rel (%p307) target = $region36
      $region35: #{shared_module_gcn_forward.18} parent=31 // pred_region
        %s310 = smul.u32 2, %s24
        %p311 = scmp.lt.s32.totalorder %s23, 1
        %s312 = scalar_select %p311, %s23, 1
        %p313 = scmp.lt.s32.totalorder %s310, 1
        %s314 = scalar_select %p313, %s310, 1
        %s315 = smul.addr %s312, 2
        %s316 = sadd.s32 %s314, %s315
        %s317 = smul.addr %s316, 4
        %s318 = scalar_lea.vmem %s0, %s317
        %s319 = smul.u32 2, %s24
      $region36: #{shared_module_gcn_forward.18} parent=31 // pred_fallthru
        _
      // Predicated region
      $region37: #{shared_module_gcn_forward.18} parent=31 // pred_check
        %p320 = pneg %p78
      $region38: #{shared_module_gcn_forward.18} parent=31 // pred_check_branch
        %322 = sbr.rel (%p320) target = $region40
      $region39: #{shared_module_gcn_forward.18} parent=31 // pred_region
        %s323 = smul.u32 2, %s24
        %p324 = scmp.lt.s32.totalorder %s23, 1
        %s325 = scalar_select %p324, %s23, 1
        %p326 = scmp.lt.s32.totalorder %s323, 1
        %s327 = scalar_select %p326, %s323, 1
        %s328 = smul.addr %s325, 2
        %s329 = sadd.s32 %s327, %s328
        %s330 = smul.addr %s329, 4
        %s331 = scalar_lea.vmem %s1, %s330
        %s332 = smul.u32 2, %s24
      $region40: #{shared_module_gcn_forward.18} parent=31 // pred_fallthru
        _
      // Predicated region
      $region41: #{shared_module_gcn_forward.18} parent=31 // pred_check
        %p333 = pneg %p106
      $region42: #{shared_module_gcn_forward.18} parent=31 // pred_check_branch
        %335 = sbr.rel (%p333) target = $region44
      $region43: #{shared_module_gcn_forward.18} parent=31 // pred_region
        %s336 = smul.u32 2, %s24
        %p337 = scmp.lt.s32.totalorder %s23, 1
        %s338 = scalar_select %p337, %s23, 1
        %p339 = scmp.lt.s32.totalorder %s336, 1
        %s340 = scalar_select %p339, %s336, 1
        %s341 = smul.addr %s338, 2
        %s342 = sadd.s32 %s340, %s341
        %s343 = smul.addr %s342, 4
        %s344 = scalar_lea.vmem %s2, %s343
        %s345 = smul.u32 2, %s24
      $region44: #{shared_module_gcn_forward.18} parent=31 // pred_fallthru
        _
      // Predicated region
      $region45: #{shared_module_gcn_forward.18} parent=31 // pred_check
        %p346 = pneg %p134
      $region46: #{shared_module_gcn_forward.18} parent=31 // pred_check_branch
        %348 = sbr.rel (%p346) target = $region48
      $region47: #{shared_module_gcn_forward.18} parent=31 // pred_region
        %s349 = smul.u32 2, %s24
        %p350 = scmp.lt.s32.totalorder %s23, 1
        %s351 = scalar_select %p350, %s23, 1
        %p352 = scmp.lt.s32.totalorder %s349, 1
        %s353 = scalar_select %p352, %s349, 1
        %s354 = smul.addr %s353, 2
        %s355 = smul.addr %s351, 4
        %s356 = sadd.s32 %s354, %s355
        %s357 = smul.addr %s356, 4
        %s358 = scalar_lea.vmem %s3, %s357
        %s359 = smul.u32 2, %s24
      $region48: #{shared_module_gcn_forward.18} parent=31 // pred_fallthru
        _
    $region32: #{shared_module_gcn_forward.18} parent=5 // pred_fallthru
      _
    %p360 = scmp.le.s32.totalorder 1, %s16
    %p361 = scmp.lt.s32.totalorder %s16, 3
    %p362 = pnand %p360, %p361
    %p363 = pneg %p362
    // Predicated region
    $region49: #{shared_module_gcn_forward.18} parent=5 // pred_check
      _
    $region50: #{shared_module_gcn_forward.18} parent=5 // pred_check_branch
      %365 = sbr.rel (%p362) target = $region52
    $region51: #{shared_module_gcn_forward.18} parent=5 // pred_region
      %s366 = ssub.s32 %s16, 1
      %s367 = smul.u32 2, %s26
      %p368 = scmp.lt.s32.totalorder %s25, 1
      %s369 = scalar_select %p368, %s25, 1
      %p370 = scmp.lt.s32.totalorder %s367, 1
      %s371 = scalar_select %p370, %s367, 1
      %s372 = smul.addr %s369, 2
      %s373 = sadd.s32 %s371, %s372
      %s374 = smul.addr %s373, 4
      %s375 = scalar_lea.vmem %s0, %s374
      %p376 = pneg %p56
      %p377 = pneg %p53
      %s378 = smul.u32 2, %s26
      %p379 = scmp.lt.s32.totalorder %s25, 1
      %s380 = scalar_select %p379, %s25, 1
      %p381 = scmp.lt.s32.totalorder %s378, 1
      %s382 = scalar_select %p381, %s378, 1
      %s383 = smul.addr %s380, 2
      %s384 = sadd.s32 %s382, %s383
      %s385 = smul.addr %s384, 4
      %s386 = scalar_lea.vmem %s1, %s385
      %p387 = pneg %p84
      %p388 = pneg %p81
      %s389 = smul.u32 2, %s26
      %p390 = scmp.lt.s32.totalorder %s25, 1
      %s391 = scalar_select %p390, %s25, 1
      %p392 = scmp.lt.s32.totalorder %s389, 1
      %s393 = scalar_select %p392, %s389, 1
      %s394 = smul.addr %s391, 2
      %s395 = sadd.s32 %s393, %s394
      %s396 = smul.addr %s395, 4
      %s397 = scalar_lea.vmem %s2, %s396
      %p398 = pneg %p112
      %p399 = pneg %p109
      %s400 = smul.u32 2, %s26
      %p401 = scmp.lt.s32.totalorder %s25, 1
      %s402 = scalar_select %p401, %s25, 1
      %p403 = scmp.lt.s32.totalorder %s400, 1
      %s404 = scalar_select %p403, %s400, 1
      %s405 = smul.addr %s404, 2
      %s406 = smul.addr %s402, 4
      %s407 = sadd.s32 %s405, %s406
      %s408 = smul.addr %s407, 4
      %s409 = scalar_lea.vmem %s3, %s408
      %p410 = pneg %p140
      %p411 = pneg %p137
      %p412 = pneg %p161
      %p413 = pneg %p158
      %p414 = pneg %p182
      %p415 = pneg %p179
      %p416 = pneg %p203
      %p417 = pneg %p200
      %p418 = pneg %p224
      %p419 = pneg %p221
      %p420 = pneg %p250
      %p421 = pneg %p247
      %p422 = scmp.lt.s32.totalorder %s25, 1
      %s423 = scalar_select %p422, %s25, 1
      %s424 = smul.addr %s423, 8
      %s425 = scalar_lea.vmem %s8, %s424
      %p426 = pneg %p276
      %p427 = pneg %p273
      %p428 = scmp.lt.s32.totalorder %s25, 1
      %s429 = scalar_select %p428, %s25, 1
      %s430 = smul.addr %s429, 8
      %s431 = scalar_lea.vmem %s9, %s430
      %s432 = smul.u32 2, %s26
      %p433 = scmp.lt.s32.totalorder %s25, 1
      %s434 = scalar_select %p433, %s25, 1
      %p435 = scmp.lt.s32.totalorder %s432, 1
      %s436 = scalar_select %p435, %s432, 1
      %s437 = smul.addr %s434, 2
      %s438 = sadd.s32 %s436, %s437
      %s439 = smul.addr %s438, 4
      %s440 = scalar_lea.vmem %s0, %s439
      %s441 = smul.u32 2, %s26
      %s442 = smul.u32 2, %s26
      %p443 = scmp.lt.s32.totalorder %s25, 1
      %s444 = scalar_select %p443, %s25, 1
      %p445 = scmp.lt.s32.totalorder %s442, 1
      %s446 = scalar_select %p445, %s442, 1
      %s447 = smul.addr %s444, 2
      %s448 = sadd.s32 %s446, %s447
      %s449 = smul.addr %s448, 4
      %s450 = scalar_lea.vmem %s1, %s449
      %s451 = smul.u32 2, %s26
      %s452 = smul.u32 2, %s26
      %p453 = scmp.lt.s32.totalorder %s25, 1
      %s454 = scalar_select %p453, %s25, 1
      %p455 = scmp.lt.s32.totalorder %s452, 1
      %s456 = scalar_select %p455, %s452, 1
      %s457 = smul.addr %s454, 2
      %s458 = sadd.s32 %s456, %s457
      %s459 = smul.addr %s458, 4
      %s460 = scalar_lea.vmem %s2, %s459
      %s461 = smul.u32 2, %s26
      %s462 = smul.u32 2, %s26
      %p463 = scmp.lt.s32.totalorder %s25, 1
      %s464 = scalar_select %p463, %s25, 1
      %p465 = scmp.lt.s32.totalorder %s462, 1
      %s466 = scalar_select %p465, %s462, 1
      %s467 = smul.addr %s466, 2
      %s468 = smul.addr %s464, 4
      %s469 = sadd.s32 %s467, %s468
      %s470 = smul.addr %s469, 4
      %s471 = scalar_lea.vmem %s3, %s470
      %s472 = smul.u32 2, %s26
      %p473 = scmp.lt.s32.totalorder %s25, 1
      %s474 = scalar_select %p473, %s25, 1
      %s475 = smul.addr %s474, 8
      %s476 = scalar_lea.vmem %s8, %s475
      %p477 = scmp.lt.s32.totalorder %s25, 1
      %s478 = scalar_select %p477, %s25, 1
      %s479 = smul.addr %s478, 8
      %s480 = scalar_lea.vmem %s9, %s479
      %p482 = scmp.eq.s32.totalorder %s26, 0
      // Predicated region
      $region53: #{shared_module_gcn_forward.18} parent=51 // pred_check
        %p483 = pneg %p482
      $region54: #{shared_module_gcn_forward.18} parent=51 // pred_check_branch
        %485 = sbr.rel (%p483) target = $region56
      $region55: #{shared_module_gcn_forward.18} parent=51 // pred_region
        %vm486 = vcmask 261120
        %487 = vst.msk [vmem:[%s476] sm:$0xff] %vm486, 0.0
        %488 = vst.msk [vmem:[%s480] sm:$0xff] %vm486, 0.0
      $region56: #{shared_module_gcn_forward.18} parent=51 // pred_fallthru
        _
      %v489 = vld [vmem:[%s440] sm:$0xf]
      %v490 = vld [vmem:[%s440 + $0x4] sm:$0xf]
      %v491 = vld [vmem:[%s4] sm:$0xf]
      %v492 = vld [vmem:[%s4 + $0x4] sm:$0xf]
      %v493 = vld [vmem:[%s4 + $0x8] sm:$0xf]
      %v494 = vld [vmem:[%s4 + $0xc] sm:$0xf]
      %v495 = vld [vmem:[%s4 + $0x10] sm:$0xf]
      %v496 = vld [vmem:[%s4 + $0x14] sm:$0xf]
      %v497 = vld [vmem:[%s4 + $0x18] sm:$0xf]
      %v498 = vld [vmem:[%s4 + $0x1c] sm:$0xf]
      %v499 = vld [vmem:[%s450] sm:$0xf]
      %v500 = vld [vmem:[%s450 + $0x4] sm:$0xf]
      %v501 = vld [vmem:[%s5] sm:$0xf]
      %v502 = vld [vmem:[%s5 + $0x4] sm:$0xf]
      %v503 = vld [vmem:[%s5 + $0x8] sm:$0xf]
      %v504 = vld [vmem:[%s5 + $0xc] sm:$0xf]
      %v505 = vld [vmem:[%s5 + $0x10] sm:$0xf]
      %v506 = vld [vmem:[%s5 + $0x14] sm:$0xf]
      %v507 = vld [vmem:[%s5 + $0x18] sm:$0xf]
      %v508 = vld [vmem:[%s5 + $0x1c] sm:$0xf]
      %v511 = vunpack.c.l.b16 %v499
      %v512 = vunpack.c.l.b16 %v500
      %v513 = vpack.c.b16 %v512, %v511
      %v522 = vunpack.c.l.b16 %v501
      %v523 = vunpack.c.l.b16 %v502
      %v524 = vunpack.c.l.b16 %v503
      %v525 = vunpack.c.l.b16 %v504
      %v526 = vunpack.c.l.b16 %v505
      %v527 = vunpack.c.l.b16 %v506
      %v528 = vunpack.c.l.b16 %v507
      %v529 = vunpack.c.l.b16 %v508
      %v530 = vpack.c.b16 %v523, %v522
      %v531 = vpack.c.b16 %v525, %v524
      %v532 = vpack.c.b16 %v527, %v526
      %v533 = vpack.c.b16 %v529, %v528
      %vm538 = vcmask 523264
      %v540 = vsel %vm538, %v513, 0
      %542 = vmatprep.subr.bf16.mxu0 0
      %543 = vmatpush1.bf16.msra.mxu0 0
      %544 = vmatprep.subr.bf16.mxu0 0
      %545 = vmatpush1.bf16.msra.mxu0 0
      %546 = vmatprep.subr.bf16.mxu0 0
      %547 = vmatpush1.bf16.msra.mxu0 0
      %548 = vmatprep.subr.bf16.mxu0 0
      %549 = vmatpush1.bf16.msra.mxu0 0
      %550 = vmatprep.subr.bf16.mxu0 0
      %551 = vmatpush1.bf16.msra.mxu0 %v533
      %552 = vmatprep.subr.bf16.mxu0 0
      %553 = vmatpush1.bf16.msra.mxu0 %v532
      %554 = vmatprep.subr.bf16.mxu0 0
      %555 = vmatpush1.bf16.msra.mxu0 %v531
      %556 = vmatprep.subr.bf16.mxu0 0
      %557 = vmatpush1.bf16.msra.mxu0 %v530
      %558 = vmatprep.subr.bf16.mxu0 0
      %559 = vmatpush2.bf16.msra.mxu0 0
      %560 = vmatprep.subr.bf16.mxu0 0
      %561 = vmatpush2.bf16.msra.mxu0 0
      %562 = vmatprep.subr.bf16.mxu0 0
      %563 = vmatpush2.bf16.msra.mxu0 0
      %564 = vmatprep.subr.bf16.mxu0 0
      %565 = vmatpush2.bf16.msra.mxu0 0
      %566 = vmatprep.subr.bf16.mxu0 0
      %567 = vmatpush2.bf16.msra.mxu0 0
      %568 = vmatprep.subr.bf16.mxu0 0
      %569 = vmatpush2.bf16.msra.mxu0 0
      %570 = vmatprep.subr.bf16.mxu0 0
      %571 = vmatpush2.bf16.msra.mxu0 0
      %572 = vmatprep.subr.bf16.mxu0 0
      %573 = vmatpush2.bf16.msra.mxu0 0
      %574 = vmatprep.mubr.bf16.mxu0 0
      %575 = vmatmul.mubr.bf16.gmra.mxu0 %v540
      %v576 = vpop.f32.mrf.mxu0
      %v577 = vadd.f32 0.0, %v576
      %v578 = vpop.f32.mrf.mxu0
      %v579 = vpop.f32.mrf.mxu0
      %v580 = vadd.f32 0.0, %v579
      %v581 = vpop.f32.mrf.mxu0
      %582 = vdwg.mxu0
      %v585 = vunpack.c.l.b16 %v489
      %v586 = vunpack.c.l.b16 %v490
      %v587 = vpack.c.b16 %v586, %v585
      %v596 = vunpack.c.l.b16 %v491
      %v597 = vunpack.c.l.b16 %v492
      %v598 = vunpack.c.l.b16 %v493
      %v599 = vunpack.c.l.b16 %v494
      %v600 = vunpack.c.l.b16 %v495
      %v601 = vunpack.c.l.b16 %v496
      %v602 = vunpack.c.l.b16 %v497
      %v603 = vunpack.c.l.b16 %v498
      %v604 = vpack.c.b16 %v597, %v596
      %v605 = vpack.c.b16 %v599, %v598
      %v606 = vpack.c.b16 %v601, %v600
      %v607 = vpack.c.b16 %v603, %v602
      %v613 = vsel %vm538, %v587, 0
      %615 = vmatprep.subr.bf16.mxu0 0
      %616 = vmatpush1.bf16.msra.mxu0 0
      %617 = vmatprep.subr.bf16.mxu0 0
      %618 = vmatpush1.bf16.msra.mxu0 0
      %619 = vmatprep.subr.bf16.mxu0 0
      %620 = vmatpush1.bf16.msra.mxu0 0
      %621 = vmatprep.subr.bf16.mxu0 0
      %622 = vmatpush1.bf16.msra.mxu0 0
      %623 = vmatprep.subr.bf16.mxu0 0
      %624 = vmatpush1.bf16.msra.mxu0 %v607
      %625 = vmatprep.subr.bf16.mxu0 0
      %626 = vmatpush1.bf16.msra.mxu0 %v606
      %627 = vmatprep.subr.bf16.mxu0 0
      %628 = vmatpush1.bf16.msra.mxu0 %v605
      %629 = vmatprep.subr.bf16.mxu0 0
      %630 = vmatpush1.bf16.msra.mxu0 %v604
      %631 = vmatprep.subr.bf16.mxu0 0
      %632 = vmatpush2.bf16.msra.mxu0 0
      %633 = vmatprep.subr.bf16.mxu0 0
      %634 = vmatpush2.bf16.msra.mxu0 0
      %635 = vmatprep.subr.bf16.mxu0 0
      %636 = vmatpush2.bf16.msra.mxu0 0
      %637 = vmatprep.subr.bf16.mxu0 0
      %638 = vmatpush2.bf16.msra.mxu0 0
      %639 = vmatprep.subr.bf16.mxu0 0
      %640 = vmatpush2.bf16.msra.mxu0 0
      %641 = vmatprep.subr.bf16.mxu0 0
      %642 = vmatpush2.bf16.msra.mxu0 0
      %643 = vmatprep.subr.bf16.mxu0 0
      %644 = vmatpush2.bf16.msra.mxu0 0
      %645 = vmatprep.subr.bf16.mxu0 0
      %646 = vmatpush2.bf16.msra.mxu0 0
      %647 = vmatprep.mubr.bf16.mxu0 0
      %648 = vmatmul.mubr.bf16.gmra.mxu0 %v613
      %v649 = vpop.f32.mrf.mxu0
      %v650 = vadd.f32 %v577, %v649
      %v651 = vpop.f32.mrf.mxu0
      %v652 = vpop.f32.mrf.mxu0
      %v653 = vadd.f32 %v580, %v652
      %v654 = vpop.f32.mrf.mxu0
      %655 = vdwg.mxu0
      %v656 = vld [vmem:[%s460] sm:$0xf]
      %v657 = vld [vmem:[%s460 + $0x4] sm:$0xf]
      %v658 = vld [vmem:[%s6] sm:$0xf]
      %v659 = vld [vmem:[%s6 + $0x4] sm:$0xf]
      %v660 = vld [vmem:[%s6 + $0x8] sm:$0xf]
      %v661 = vld [vmem:[%s6 + $0xc] sm:$0xf]
      %v662 = vld [vmem:[%s6 + $0x10] sm:$0xf]
      %v663 = vld [vmem:[%s6 + $0x14] sm:$0xf]
      %v664 = vld [vmem:[%s6 + $0x18] sm:$0xf]
      %v665 = vld [vmem:[%s6 + $0x1c] sm:$0xf]
      %v666 = vld [vmem:[%s6 + $0x20] sm:$0xf]
      %v667 = vld [vmem:[%s6 + $0x24] sm:$0xf]
      %v668 = vld [vmem:[%s6 + $0x28] sm:$0xf]
      %v669 = vld [vmem:[%s6 + $0x2c] sm:$0xf]
      %v670 = vld [vmem:[%s6 + $0x30] sm:$0xf]
      %v671 = vld [vmem:[%s6 + $0x34] sm:$0xf]
      %v672 = vld [vmem:[%s6 + $0x38] sm:$0xf]
      %v673 = vld [vmem:[%s6 + $0x3c] sm:$0xf]
      %v676 = vunpack.c.l.b16 %v656
      %v677 = vunpack.c.l.b16 %v657
      %v678 = vpack.c.b16 %v677, %v676
      %v696 = vunpack.c.l.b16 %v658
      %v697 = vunpack.c.l.b16 %v659
      %v698 = vunpack.c.l.b16 %v660
      %v699 = vunpack.c.l.b16 %v661
      %v700 = vunpack.c.l.b16 %v662
      %v701 = vunpack.c.l.b16 %v663
      %v702 = vunpack.c.l.b16 %v664
      %v703 = vunpack.c.l.b16 %v665
      %v704 = vunpack.c.l.b16 %v666
      %v705 = vunpack.c.l.b16 %v667
      %v706 = vunpack.c.l.b16 %v668
      %v707 = vunpack.c.l.b16 %v669
      %v708 = vunpack.c.l.b16 %v670
      %v709 = vunpack.c.l.b16 %v671
      %v710 = vunpack.c.l.b16 %v672
      %v711 = vunpack.c.l.b16 %v673
      %v712 = vpack.c.b16 %v697, %v696
      %v713 = vpack.c.b16 %v699, %v698
      %v714 = vpack.c.b16 %v701, %v700
      %v715 = vpack.c.b16 %v703, %v702
      %v716 = vpack.c.b16 %v705, %v704
      %v717 = vpack.c.b16 %v707, %v706
      %v718 = vpack.c.b16 %v709, %v708
      %v719 = vpack.c.b16 %v711, %v710
      %728 = vmatprep.subr.bf16.mxu0 0
      %729 = vmatpush1.bf16.msra.mxu0 %v719
      %730 = vmatprep.subr.bf16.mxu0 0
      %731 = vmatpush1.bf16.msra.mxu0 %v718
      %732 = vmatprep.subr.bf16.mxu0 0
      %733 = vmatpush1.bf16.msra.mxu0 %v717
      %734 = vmatprep.subr.bf16.mxu0 0
      %735 = vmatpush1.bf16.msra.mxu0 %v716
      %736 = vmatprep.subr.bf16.mxu0 0
      %737 = vmatpush1.bf16.msra.mxu0 %v715
      %738 = vmatprep.subr.bf16.mxu0 0
      %739 = vmatpush1.bf16.msra.mxu0 %v714
      %740 = vmatprep.subr.bf16.mxu0 0
      %741 = vmatpush1.bf16.msra.mxu0 %v713
      %742 = vmatprep.subr.bf16.mxu0 0
      %743 = vmatpush1.bf16.msra.mxu0 %v712
      %744 = vmatprep.subr.bf16.mxu0 0
      %745 = vmatpush2.bf16.msra.mxu0 0
      %746 = vmatprep.subr.bf16.mxu0 0
      %747 = vmatpush2.bf16.msra.mxu0 0
      %748 = vmatprep.subr.bf16.mxu0 0
      %749 = vmatpush2.bf16.msra.mxu0 0
      %750 = vmatprep.subr.bf16.mxu0 0
      %751 = vmatpush2.bf16.msra.mxu0 0
      %752 = vmatprep.subr.bf16.mxu0 0
      %753 = vmatpush2.bf16.msra.mxu0 0
      %754 = vmatprep.subr.bf16.mxu0 0
      %755 = vmatpush2.bf16.msra.mxu0 0
      %756 = vmatprep.subr.bf16.mxu0 0
      %757 = vmatpush2.bf16.msra.mxu0 0
      %758 = vmatprep.subr.bf16.mxu0 0
      %759 = vmatpush2.bf16.msra.mxu0 0
      %760 = vmatprep.mubr.bf16.mxu0 0
      %761 = vmatmul.mubr.bf16.gmra.mxu0 %v678
      %v762 = vpop.f32.mrf.mxu0
      %v763 = vadd.f32 0.0, %v762
      %v764 = vpop.f32.mrf.mxu0
      %v765 = vpop.f32.mrf.mxu0
      %v766 = vadd.f32 0.0, %v765
      %v767 = vpop.f32.mrf.mxu0
      %768 = vdwg.mxu0
      %v769 = vadd.f32 %v650, %v763
      %v770 = vadd.f32 %v653, %v766
      %v771 = vld [vmem:[%s471] sm:$0xff]
      %v772 = vld [vmem:[%s471 + $0x8] sm:$0xff]
      %v773 = vld [vmem:[%s7] sm:$0xf]
      %v774 = vld [vmem:[%s7 + $0x4] sm:$0xf]
      %v775 = vld [vmem:[%s7 + $0x8] sm:$0xf]
      %v776 = vld [vmem:[%s7 + $0xc] sm:$0xf]
      %v777 = vld [vmem:[%s7 + $0x10] sm:$0xf]
      %v778 = vld [vmem:[%s7 + $0x14] sm:$0xf]
      %v779 = vld [vmem:[%s7 + $0x18] sm:$0xf]
      %v780 = vld [vmem:[%s7 + $0x1c] sm:$0xf]
      %v781 = vld [vmem:[%s7 + $0x20] sm:$0xf]
      %v782 = vld [vmem:[%s7 + $0x24] sm:$0xf]
      %v783 = vld [vmem:[%s7 + $0x28] sm:$0xf]
      %v784 = vld [vmem:[%s7 + $0x2c] sm:$0xf]
      %v785 = vld [vmem:[%s7 + $0x30] sm:$0xf]
      %v786 = vld [vmem:[%s7 + $0x34] sm:$0xf]
      %v787 = vld [vmem:[%s7 + $0x38] sm:$0xf]
      %v788 = vld [vmem:[%s7 + $0x3c] sm:$0xf]
      %v789 = vld [vmem:[%s7 + $0x40] sm:$0xf]
      %v790 = vld [vmem:[%s7 + $0x44] sm:$0xf]
      %v791 = vld [vmem:[%s7 + $0x48] sm:$0xf]
      %v792 = vld [vmem:[%s7 + $0x4c] sm:$0xf]
      %v793 = vld [vmem:[%s7 + $0x50] sm:$0xf]
      %v794 = vld [vmem:[%s7 + $0x54] sm:$0xf]
      %v795 = vld [vmem:[%s7 + $0x58] sm:$0xf]
      %v796 = vld [vmem:[%s7 + $0x5c] sm:$0xf]
      %v797 = vld [vmem:[%s7 + $0x60] sm:$0xf]
      %v798 = vld [vmem:[%s7 + $0x64] sm:$0xf]
      %v799 = vld [vmem:[%s7 + $0x68] sm:$0xf]
      %v800 = vld [vmem:[%s7 + $0x6c] sm:$0xf]
      %v801 = vld [vmem:[%s7 + $0x70] sm:$0xf]
      %v802 = vld [vmem:[%s7 + $0x74] sm:$0xf]
      %v803 = vld [vmem:[%s7 + $0x78] sm:$0xf]
      %v804 = vld [vmem:[%s7 + $0x7c] sm:$0xf]
      %v807 = vunpack.c.l.b16 %v771
      %v808 = vunpack.c.h.b16 %v771
      %v809 = vunpack.c.l.b16 %v772
      %v810 = vunpack.c.h.b16 %v772
      %v811 = vpack.c.b16 %v809, %v807
      %v812 = vpack.c.b16 %v810, %v808
      %v847 = vunpack.c.l.b16 %v773
      %v848 = vunpack.c.l.b16 %v774
      %v849 = vunpack.c.l.b16 %v775
      %v850 = vunpack.c.l.b16 %v776
      %v851 = vunpack.c.l.b16 %v777
      %v852 = vunpack.c.l.b16 %v778
      %v853 = vunpack.c.l.b16 %v779
      %v854 = vunpack.c.l.b16 %v780
      %v855 = vunpack.c.l.b16 %v781
      %v856 = vunpack.c.l.b16 %v782
      %v857 = vunpack.c.l.b16 %v783
      %v858 = vunpack.c.l.b16 %v784
      %v859 = vunpack.c.l.b16 %v785
      %v860 = vunpack.c.l.b16 %v786
      %v861 = vunpack.c.l.b16 %v787
      %v862 = vunpack.c.l.b16 %v788
      %v863 = vunpack.c.l.b16 %v789
      %v864 = vunpack.c.l.b16 %v790
      %v865 = vunpack.c.l.b16 %v791
      %v866 = vunpack.c.l.b16 %v792
      %v867 = vunpack.c.l.b16 %v793
      %v868 = vunpack.c.l.b16 %v794
      %v869 = vunpack.c.l.b16 %v795
      %v870 = vunpack.c.l.b16 %v796
      %v871 = vunpack.c.l.b16 %v797
      %v872 = vunpack.c.l.b16 %v798
      %v873 = vunpack.c.l.b16 %v799
      %v874 = vunpack.c.l.b16 %v800
      %v875 = vunpack.c.l.b16 %v801
      %v876 = vunpack.c.l.b16 %v802
      %v877 = vunpack.c.l.b16 %v803
      %v878 = vunpack.c.l.b16 %v804
      %v879 = vpack.c.b16 %v848, %v847
      %v880 = vpack.c.b16 %v850, %v849
      %v881 = vpack.c.b16 %v852, %v851
      %v882 = vpack.c.b16 %v854, %v853
      %v883 = vpack.c.b16 %v856, %v855
      %v884 = vpack.c.b16 %v858, %v857
      %v885 = vpack.c.b16 %v860, %v859
      %v886 = vpack.c.b16 %v862, %v861
      %v887 = vpack.c.b16 %v864, %v863
      %v888 = vpack.c.b16 %v866, %v865
      %v889 = vpack.c.b16 %v868, %v867
      %v890 = vpack.c.b16 %v870, %v869
      %v891 = vpack.c.b16 %v872, %v871
      %v892 = vpack.c.b16 %v874, %v873
      %v893 = vpack.c.b16 %v876, %v875
      %v894 = vpack.c.b16 %v878, %v877
      %911 = vmatprep.subr.bf16.mxu0 0
      %912 = vmatpush1.bf16.msra.mxu0 %v886
      %913 = vmatprep.subr.bf16.mxu0 0
      %914 = vmatpush1.bf16.msra.mxu0 %v885
      %915 = vmatprep.subr.bf16.mxu0 0
      %916 = vmatpush1.bf16.msra.mxu0 %v884
      %917 = vmatprep.subr.bf16.mxu0 0
      %918 = vmatpush1.bf16.msra.mxu0 %v883
      %919 = vmatprep.subr.bf16.mxu0 0
      %920 = vmatpush1.bf16.msra.mxu0 %v882
      %921 = vmatprep.subr.bf16.mxu0 0
      %922 = vmatpush1.bf16.msra.mxu0 %v881
      %923 = vmatprep.subr.bf16.mxu0 0
      %924 = vmatpush1.bf16.msra.mxu0 %v880
      %925 = vmatprep.subr.bf16.mxu0 0
      %926 = vmatpush1.bf16.msra.mxu0 %v879
      %927 = vmatprep.subr.bf16.mxu0 0
      %928 = vmatpush2.bf16.msra.mxu0 %v894
      %929 = vmatprep.subr.bf16.mxu0 0
      %930 = vmatpush2.bf16.msra.mxu0 %v893
      %931 = vmatprep.subr.bf16.mxu0 0
      %932 = vmatpush2.bf16.msra.mxu0 %v892
      %933 = vmatprep.subr.bf16.mxu0 0
      %934 = vmatpush2.bf16.msra.mxu0 %v891
      %935 = vmatprep.subr.bf16.mxu0 0
      %936 = vmatpush2.bf16.msra.mxu0 %v890
      %937 = vmatprep.subr.bf16.mxu0 0
      %938 = vmatpush2.bf16.msra.mxu0 %v889
      %939 = vmatprep.subr.bf16.mxu0 0
      %940 = vmatpush2.bf16.msra.mxu0 %v888
      %941 = vmatprep.subr.bf16.mxu0 0
      %942 = vmatpush2.bf16.msra.mxu0 %v887
      %943 = vmatprep.mubr.bf16.mxu0 %v812
      %944 = vmatmul.mubr.bf16.gmra.mxu0 %v811
      %v945 = vpop.f32.mrf.mxu0
      %v946 = vadd.f32 0.0, %v945
      %v947 = vpop.f32.mrf.mxu0
      %v948 = vpop.f32.mrf.mxu0
      %v949 = vadd.f32 0.0, %v948
      %v950 = vpop.f32.mrf.mxu0
      %951 = vdwg.mxu0
      %v952 = vadd.f32 %v769, %v946
      %v953 = vadd.f32 %v770, %v949
      %v954 = vld [vmem:[%s476] sm:$0xff]
      %vm955 = vcmask 261120
      %v956 = vsel %vm955, %v952, 0.0
      %v957 = vsel %vm955, %v953, 0.0
      %v958 = vadd.f32 %v956, %v957
      %v959 = vadd.f32 %v954, %v958
      %960 = vst.msk [vmem:[%s476] sm:$0xff] %vm955, %v959
      %v961 = vld [vmem:[%s480] sm:$0xff]
      %v962 = vmul.f32 %v952, %v952
      %v963 = vmul.f32 %v953, %v953
      %v964 = vsel %vm955, %v962, 0.0
      %v965 = vsel %vm955, %v963, 0.0
      %v966 = vadd.f32 %v964, %v965
      %v967 = vadd.f32 %v961, %v966
      %968 = vst.msk [vmem:[%s480] sm:$0xff] %vm955, %v967
      %p969 = scmp.lt.s32.totalorder %s25, 1
      %s970 = scalar_select %p969, %s25, 1
      %s971 = smul.addr %s970, 8
      %s972 = scalar_lea.vmem %s8, %s971
      %p973 = scmp.lt.s32.totalorder %s25, 1
      %s974 = scalar_select %p973, %s25, 1
      %s975 = smul.addr %s974, 8
      %s976 = scalar_lea.vmem %s9, %s975
      // Predicated region
      $region57: #{shared_module_gcn_forward.18} parent=51 // pred_check
        %p977 = pneg %p247
      $region58: #{shared_module_gcn_forward.18} parent=51 // pred_check_branch
        %979 = sbr.rel (%p977) target = $region60
      $region59: #{shared_module_gcn_forward.18} parent=51 // pred_region
        _
      $region60: #{shared_module_gcn_forward.18} parent=51 // pred_fallthru
        _
      // Predicated region
      $region61: #{shared_module_gcn_forward.18} parent=51 // pred_check
        %p980 = pneg %p273
      $region62: #{shared_module_gcn_forward.18} parent=51 // pred_check_branch
        %982 = sbr.rel (%p980) target = $region64
      $region63: #{shared_module_gcn_forward.18} parent=51 // pred_region
        _
      $region64: #{shared_module_gcn_forward.18} parent=51 // pred_fallthru
        _
    $region52: #{shared_module_gcn_forward.18} parent=5 // pred_fallthru
      _
    %p983 = scmp.le.s32.totalorder 2, %s16
    // Predicated region
    $region65: #{shared_module_gcn_forward.18} parent=5 // pred_check
      %p984 = pneg %p983
    $region66: #{shared_module_gcn_forward.18} parent=5 // pred_check_branch
      %986 = sbr.rel (%p984) target = $region68
    $region67: #{shared_module_gcn_forward.18} parent=5 // pred_region
      %s987 = ssub.s32 %s16, 2
      // Predicated region
      $region69: #{shared_module_gcn_forward.18} parent=67 // pred_check
        %p988 = pneg %p253
      $region70: #{shared_module_gcn_forward.18} parent=67 // pred_check_branch
        %990 = sbr.rel (%p988) target = $region72
      $region71: #{shared_module_gcn_forward.18} parent=67 // pred_region
        %p991 = scmp.lt.s32.totalorder %s27, 1
        %s992 = scalar_select %p991, %s27, 1
        %s993 = smul.addr %s992, 8
        %s994 = scalar_lea.vmem %s8, %s993
      $region72: #{shared_module_gcn_forward.18} parent=67 // pred_fallthru
        _
      // Predicated region
      $region73: #{shared_module_gcn_forward.18} parent=67 // pred_check
        %p995 = pneg %p279
      $region74: #{shared_module_gcn_forward.18} parent=67 // pred_check_branch
        %997 = sbr.rel (%p995) target = $region76
      $region75: #{shared_module_gcn_forward.18} parent=67 // pred_region
        %p998 = scmp.lt.s32.totalorder %s27, 1
        %s999 = scalar_select %p998, %s27, 1
        %s1000 = smul.addr %s999, 8
        %s1001 = scalar_lea.vmem %s9, %s1000
      $region76: #{shared_module_gcn_forward.18} parent=67 // pred_fallthru
        _
    $region68: #{shared_module_gcn_forward.18} parent=5 // pred_fallthru
      _
  $region6: #{shared_module_gcn_forward.18} parent=0 // loop_footer
    %s20 = sadd.s32 1, %s16
  $region7: #{shared_module_gcn_forward.18} parent=0 // loop_footer_branch
    %15 = sbr.rel target = $region3
  $region8: #{shared_module_gcn_forward.18} parent=0 // loop_exit
    _

// kernel: shared_module_gcn_forward.17
$region0: #{shared_module_gcn_forward.17}
  #allocation0 [shape = 'u32[]', space=smem, size = 0x4, offset = 0x4, fixed_abs, tag = 'smem constant byte address 0x4 - core index']
  #allocation1 [shape = 'u32[144,128]{1,0:T(1,128)}', space=vmem, size = 0x12000, scoped, tag = 'internal scratch']
  %s0 = inlined_call_operand.vmem [shape: bf16[4,32,128], index: 0, kind: input, shape index: {}]
  %s1 = inlined_call_operand.vmem [shape: bf16[32,128], index: 1, kind: input, shape index: {}]
  %s2 = inlined_call_operand.vmem [shape: bf16[128,256], index: 2, kind: input, shape index: {}]
  %s3 = inlined_call_operand.vmem [shape: bf16[128,256], index: 3, kind: input, shape index: {}]
  %s4 = inlined_call_operand.vmem [shape: f32[1,256], index: 4, kind: input, shape index: {}]
  %s5 = inlined_call_operand.vmem [shape: f32[1,256], index: 5, kind: input, shape index: {}]
  %s6 = inlined_call_operand.vmem [shape: bf16[32,256], index: 6, kind: output, shape index: {}]
  %s7 = sld [smem:[#allocation0]]
  $region34: #{shared_module_gcn_forward.17} parent=0
    _
  %s9 = ssub.s32 1, %s7
  %s10 = scalar_select 0, %s9, %s7
  // Predicated region
  $region2: #{shared_module_gcn_forward.17} parent=0 // pred_check
    _
  $region3: #{shared_module_gcn_forward.17} parent=0 // pred_check_branch
    %12 = sbr.rel (0) target = $region5
  $region4: #{shared_module_gcn_forward.17} parent=0 // pred_region
    _
  $region5: #{shared_module_gcn_forward.17} parent=0 // pred_fallthru
    _
  // Predicated region
  $region6: #{shared_module_gcn_forward.17} parent=0 // pred_check
    _
  $region7: #{shared_module_gcn_forward.17} parent=0 // pred_check_branch
    %14 = sbr.rel (0) target = $region9
  $region8: #{shared_module_gcn_forward.17} parent=0 // pred_region
    _
  $region9: #{shared_module_gcn_forward.17} parent=0 // pred_fallthru
    _
  // Predicated region
  $region10: #{shared_module_gcn_forward.17} parent=0 // pred_check
    _
  $region11: #{shared_module_gcn_forward.17} parent=0 // pred_check_branch
    %16 = sbr.rel (0) target = $region13
  $region12: #{shared_module_gcn_forward.17} parent=0 // pred_region
    _
  $region13: #{shared_module_gcn_forward.17} parent=0 // pred_fallthru
    _
  // Predicated region
  $region14: #{shared_module_gcn_forward.17} parent=0 // pred_check
    _
  $region15: #{shared_module_gcn_forward.17} parent=0 // pred_check_branch
    %18 = sbr.rel (0) target = $region17
  $region16: #{shared_module_gcn_forward.17} parent=0 // pred_region
    _
  $region17: #{shared_module_gcn_forward.17} parent=0 // pred_fallthru
    _
  // Predicated region
  $region18: #{shared_module_gcn_forward.17} parent=0 // pred_check
    _
  $region19: #{shared_module_gcn_forward.17} parent=0 // pred_check_branch
    %20 = sbr.rel (0) target = $region21
  $region20: #{shared_module_gcn_forward.17} parent=0 // pred_region
    _
  $region21: #{shared_module_gcn_forward.17} parent=0 // pred_fallthru
    _
  // Predicated region
  $region22: #{shared_module_gcn_forward.17} parent=0 // pred_check
    _
  $region23: #{shared_module_gcn_forward.17} parent=0 // pred_check_branch
    %22 = sbr.rel (0) target = $region25
  $region24: #{shared_module_gcn_forward.17} parent=0 // pred_region
    _
  $region25: #{shared_module_gcn_forward.17} parent=0 // pred_fallthru
    _
  %v24 = vld [vmem:[%s0] sm:$0xf]
  %v25 = vld [vmem:[%s0 + $0x4] sm:$0xf]
  %v26 = vld [vmem:[%s0 + $0x8] sm:$0xf]
  %v27 = vld [vmem:[%s0 + $0xc] sm:$0xf]
  %v28 = vld [vmem:[%s0 + $0x10] sm:$0xf]
  %v29 = vld [vmem:[%s0 + $0x14] sm:$0xf]
  %v30 = vld [vmem:[%s0 + $0x18] sm:$0xf]
  %v31 = vld [vmem:[%s0 + $0x1c] sm:$0xf]
  %v32 = vld [vmem:[%s0 + $0x20] sm:$0xf]
  %v33 = vld [vmem:[%s0 + $0x24] sm:$0xf]
  %v34 = vld [vmem:[%s0 + $0x28] sm:$0xf]
  %v35 = vld [vmem:[%s0 + $0x2c] sm:$0xf]
  %v36 = vld [vmem:[%s0 + $0x30] sm:$0xf]
  %v37 = vld [vmem:[%s0 + $0x34] sm:$0xf]
  %v38 = vld [vmem:[%s0 + $0x38] sm:$0xf]
  %v39 = vld [vmem:[%s0 + $0x3c] sm:$0xf]
  %v40 = vld [vmem:[%s2] sm:$0xff]
  %v41 = vld [vmem:[%s2 + $0x8] sm:$0xff]
  %v42 = vld [vmem:[%s2 + $0x10] sm:$0xff]
  %v43 = vld [vmem:[%s2 + $0x18] sm:$0xff]
  %v44 = vld [vmem:[%s2 + $0x20] sm:$0xff]
  %v45 = vld [vmem:[%s2 + $0x28] sm:$0xff]
  %v46 = vld [vmem:[%s2 + $0x30] sm:$0xff]
  %v47 = vld [vmem:[%s2 + $0x38] sm:$0xff]
  %v48 = vld [vmem:[%s2 + $0x40] sm:$0xff]
  %v49 = vld [vmem:[%s2 + $0x48] sm:$0xff]
  %v50 = vld [vmem:[%s2 + $0x50] sm:$0xff]
  %v51 = vld [vmem:[%s2 + $0x58] sm:$0xff]
  %v52 = vld [vmem:[%s2 + $0x60] sm:$0xff]
  %v53 = vld [vmem:[%s2 + $0x68] sm:$0xff]
  %v54 = vld [vmem:[%s2 + $0x70] sm:$0xff]
  %v55 = vld [vmem:[%s2 + $0x78] sm:$0xff]
  %v72 = vunpack.c.l.b16 %v24
  %v73 = vunpack.c.l.b16 %v25
  %v74 = vunpack.c.l.b16 %v26
  %v75 = vunpack.c.l.b16 %v27
  %v76 = vunpack.c.l.b16 %v28
  %v77 = vunpack.c.l.b16 %v29
  %v78 = vunpack.c.l.b16 %v30
  %v79 = vunpack.c.l.b16 %v31
  %v80 = vunpack.c.l.b16 %v32
  %v81 = vunpack.c.l.b16 %v33
  %v82 = vunpack.c.l.b16 %v34
  %v83 = vunpack.c.l.b16 %v35
  %v84 = vunpack.c.l.b16 %v36
  %v85 = vunpack.c.l.b16 %v37
  %v86 = vunpack.c.l.b16 %v38
  %v87 = vunpack.c.l.b16 %v39
  %v88 = vpack.c.b16 %v73, %v72
  %v89 = vpack.c.b16 %v75, %v74
  %v90 = vpack.c.b16 %v77, %v76
  %v91 = vpack.c.b16 %v79, %v78
  %v92 = vpack.c.b16 %v81, %v80
  %v93 = vpack.c.b16 %v83, %v82
  %v94 = vpack.c.b16 %v85, %v84
  %v95 = vpack.c.b16 %v87, %v86
  %v120 = vunpack.c.l.b16 %v40
  %v121 = vunpack.c.h.b16 %v40
  %v122 = vunpack.c.l.b16 %v41
  %v123 = vunpack.c.h.b16 %v41
  %v124 = vunpack.c.l.b16 %v42
  %v125 = vunpack.c.h.b16 %v42
  %v126 = vunpack.c.l.b16 %v43
  %v127 = vunpack.c.h.b16 %v43
  %v128 = vunpack.c.l.b16 %v44
  %v129 = vunpack.c.h.b16 %v44
  %v130 = vunpack.c.l.b16 %v45
  %v131 = vunpack.c.h.b16 %v45
  %v132 = vunpack.c.l.b16 %v46
  %v133 = vunpack.c.h.b16 %v46
  %v134 = vunpack.c.l.b16 %v47
  %v135 = vunpack.c.h.b16 %v47
  %v136 = vunpack.c.l.b16 %v48
  %v137 = vunpack.c.h.b16 %v48
  %v138 = vunpack.c.l.b16 %v49
  %v139 = vunpack.c.h.b16 %v49
  %v140 = vunpack.c.l.b16 %v50
  %v141 = vunpack.c.h.b16 %v50
  %v142 = vunpack.c.l.b16 %v51
  %v143 = vunpack.c.h.b16 %v51
  %v144 = vunpack.c.l.b16 %v52
  %v145 = vunpack.c.h.b16 %v52
  %v146 = vunpack.c.l.b16 %v53
  %v147 = vunpack.c.h.b16 %v53
  %v148 = vunpack.c.l.b16 %v54
  %v149 = vunpack.c.h.b16 %v54
  %v150 = vunpack.c.l.b16 %v55
  %v151 = vunpack.c.h.b16 %v55
  %v152 = vpack.c.b16 %v122, %v120
  %v153 = vpack.c.b16 %v123, %v121
  %v154 = vpack.c.b16 %v126, %v124
  %v155 = vpack.c.b16 %v127, %v125
  %v156 = vpack.c.b16 %v130, %v128
  %v157 = vpack.c.b16 %v131, %v129
  %v158 = vpack.c.b16 %v134, %v132
  %v159 = vpack.c.b16 %v135, %v133
  %v160 = vpack.c.b16 %v138, %v136
  %v161 = vpack.c.b16 %v139, %v137
  %v162 = vpack.c.b16 %v142, %v140
  %v163 = vpack.c.b16 %v143, %v141
  %v164 = vpack.c.b16 %v146, %v144
  %v165 = vpack.c.b16 %v147, %v145
  %v166 = vpack.c.b16 %v150, %v148
  %v167 = vpack.c.b16 %v151, %v149
  %184 = vmatprep.subr.bf16.mxu0 %v167
  %185 = vmatpush1.bf16.msra.mxu0 %v166
  %186 = vmatprep.subr.bf16.mxu0 %v165
  %187 = vmatpush1.bf16.msra.mxu0 %v164
  %188 = vmatprep.subr.bf16.mxu0 %v163
  %189 = vmatpush1.bf16.msra.mxu0 %v162
  %190 = vmatprep.subr.bf16.mxu0 %v161
  %191 = vmatpush1.bf16.msra.mxu0 %v160
  %192 = vmatprep.subr.bf16.mxu0 %v159
  %193 = vmatpush1.bf16.msra.mxu0 %v158
  %194 = vmatprep.subr.bf16.mxu0 %v157
  %195 = vmatpush1.bf16.msra.mxu0 %v156
  %196 = vmatprep.subr.bf16.mxu0 %v155
  %197 = vmatpush1.bf16.msra.mxu0 %v154
  %198 = vmatprep.subr.bf16.mxu0 %v153
  %199 = vmatpush1.bf16.msra.mxu0 %v152
  %200 = vmatprep.subr.bf16.mxu0 0
  %201 = vmatpush2.bf16.msra.mxu0 0
  %202 = vmatprep.subr.bf16.mxu0 0
  %203 = vmatpush2.bf16.msra.mxu0 0
  %204 = vmatprep.subr.bf16.mxu0 0
  %205 = vmatpush2.bf16.msra.mxu0 0
  %206 = vmatprep.subr.bf16.mxu0 0
  %207 = vmatpush2.bf16.msra.mxu0 0
  %208 = vmatprep.subr.bf16.mxu0 0
  %209 = vmatpush2.bf16.msra.mxu0 0
  %210 = vmatprep.subr.bf16.mxu0 0
  %211 = vmatpush2.bf16.msra.mxu0 0
  %212 = vmatprep.subr.bf16.mxu0 0
  %213 = vmatpush2.bf16.msra.mxu0 0
  %214 = vmatprep.subr.bf16.mxu0 0
  %215 = vmatpush2.bf16.msra.mxu0 0
  %216 = vmatprep.mubr.bf16.mxu0 0
  %217 = vmatmul.mubr.bf16.gmra.mxu0 %v88
  %v218 = vpop.f32.mrf.mxu0
  %v219 = vadd.f32 0.0, %v218
  %v220 = vpop.f32.mrf.mxu0
  %v221 = vadd.f32 0.0, %v220
  %v222 = vpop.f32.mrf.mxu0
  %v223 = vadd.f32 0.0, %v222
  %v224 = vpop.f32.mrf.mxu0
  %v225 = vadd.f32 0.0, %v224
  %226 = vmatprep.mubr.bf16.mxu0 0
  %227 = vmatmul.mubr.bf16.gmra.mxu0 %v89
  %v228 = vpop.f32.mrf.mxu0
  %v229 = vadd.f32 0.0, %v228
  %v230 = vpop.f32.mrf.mxu0
  %v231 = vadd.f32 0.0, %v230
  %v232 = vpop.f32.mrf.mxu0
  %v233 = vadd.f32 0.0, %v232
  %v234 = vpop.f32.mrf.mxu0
  %v235 = vadd.f32 0.0, %v234
  %236 = vmatprep.mubr.bf16.mxu0 0
  %237 = vmatmul.mubr.bf16.gmra.mxu0 %v90
  %v238 = vpop.f32.mrf.mxu0
  %v239 = vadd.f32 0.0, %v238
  %v240 = vpop.f32.mrf.mxu0
  %v241 = vadd.f32 0.0, %v240
  %v242 = vpop.f32.mrf.mxu0
  %v243 = vadd.f32 0.0, %v242
  %v244 = vpop.f32.mrf.mxu0
  %v245 = vadd.f32 0.0, %v244
  %246 = vmatprep.mubr.bf16.mxu0 0
  %247 = vmatmul.mubr.bf16.gmra.mxu0 %v91
  %v248 = vpop.f32.mrf.mxu0
  %v249 = vadd.f32 0.0, %v248
  %v250 = vpop.f32.mrf.mxu0
  %v251 = vadd.f32 0.0, %v250
  %v252 = vpop.f32.mrf.mxu0
  %v253 = vadd.f32 0.0, %v252
  %v254 = vpop.f32.mrf.mxu0
  %v255 = vadd.f32 0.0, %v254
  %256 = vmatprep.mubr.bf16.mxu0 0
  %257 = vmatmul.mubr.bf16.gmra.mxu0 %v92
  %v258 = vpop.f32.mrf.mxu0
  %v259 = vadd.f32 0.0, %v258
  %v260 = vpop.f32.mrf.mxu0
  %v261 = vadd.f32 0.0, %v260
  %v262 = vpop.f32.mrf.mxu0
  %v263 = vadd.f32 0.0, %v262
  %v264 = vpop.f32.mrf.mxu0
  %v265 = vadd.f32 0.0, %v264
  %266 = vmatprep.mubr.bf16.mxu0 0
  %267 = vmatmul.mubr.bf16.gmra.mxu0 %v93
  %v268 = vpop.f32.mrf.mxu0
  %v269 = vadd.f32 0.0, %v268
  %v270 = vpop.f32.mrf.mxu0
  %v271 = vadd.f32 0.0, %v270
  %v272 = vpop.f32.mrf.mxu0
  %v273 = vadd.f32 0.0, %v272
  %v274 = vpop.f32.mrf.mxu0
  %v275 = vadd.f32 0.0, %v274
  %276 = vmatprep.mubr.bf16.mxu0 0
  %277 = vmatmul.mubr.bf16.gmra.mxu0 %v94
  %v278 = vpop.f32.mrf.mxu0
  %v279 = vadd.f32 0.0, %v278
  %v280 = vpop.f32.mrf.mxu0
  %v281 = vadd.f32 0.0, %v280
  %v282 = vpop.f32.mrf.mxu0
  %v283 = vadd.f32 0.0, %v282
  %v284 = vpop.f32.mrf.mxu0
  %v285 = vadd.f32 0.0, %v284
  %286 = vmatprep.mubr.bf16.mxu0 0
  %287 = vmatmul.mubr.bf16.gmra.mxu0 %v95
  %v288 = vpop.f32.mrf.mxu0
  %v289 = vadd.f32 0.0, %v288
  %v290 = vpop.f32.mrf.mxu0
  %v291 = vadd.f32 0.0, %v290
  %v292 = vpop.f32.mrf.mxu0
  %v293 = vadd.f32 0.0, %v292
  %v294 = vpop.f32.mrf.mxu0
  %v295 = vadd.f32 0.0, %v294
  %296 = vdwg.mxu0
  %v297 = vld [vmem:[%s1] sm:$0xf]
  %v298 = vld [vmem:[%s1 + $0x4] sm:$0xf]
  %v299 = vld [vmem:[%s1 + $0x8] sm:$0xf]
  %v300 = vld [vmem:[%s1 + $0xc] sm:$0xf]
  %v301 = vld [vmem:[%s3] sm:$0xff]
  %v302 = vld [vmem:[%s3 + $0x8] sm:$0xff]
  %v303 = vld [vmem:[%s3 + $0x10] sm:$0xff]
  %v304 = vld [vmem:[%s3 + $0x18] sm:$0xff]
  %v305 = vld [vmem:[%s3 + $0x20] sm:$0xff]
  %v306 = vld [vmem:[%s3 + $0x28] sm:$0xff]
  %v307 = vld [vmem:[%s3 + $0x30] sm:$0xff]
  %v308 = vld [vmem:[%s3 + $0x38] sm:$0xff]
  %v309 = vld [vmem:[%s3 + $0x40] sm:$0xff]
  %v310 = vld [vmem:[%s3 + $0x48] sm:$0xff]
  %v311 = vld [vmem:[%s3 + $0x50] sm:$0xff]
  %v312 = vld [vmem:[%s3 + $0x58] sm:$0xff]
  %v313 = vld [vmem:[%s3 + $0x60] sm:$0xff]
  %v314 = vld [vmem:[%s3 + $0x68] sm:$0xff]
  %v315 = vld [vmem:[%s3 + $0x70] sm:$0xff]
  %v316 = vld [vmem:[%s3 + $0x78] sm:$0xff]
  %v321 = vunpack.c.l.b16 %v297
  %v322 = vunpack.c.l.b16 %v298
  %v323 = vunpack.c.l.b16 %v299
  %v324 = vunpack.c.l.b16 %v300
  %v325 = vpack.c.b16 %v322, %v321
  %v326 = vpack.c.b16 %v324, %v323
  %v345 = vunpack.c.l.b16 %v301
  %v346 = vunpack.c.h.b16 %v301
  %v347 = vunpack.c.l.b16 %v302
  %v348 = vunpack.c.h.b16 %v302
  %v349 = vunpack.c.l.b16 %v303
  %v350 = vunpack.c.h.b16 %v303
  %v351 = vunpack.c.l.b16 %v304
  %v352 = vunpack.c.h.b16 %v304
  %v353 = vunpack.c.l.b16 %v305
  %v354 = vunpack.c.h.b16 %v305
  %v355 = vunpack.c.l.b16 %v306
  %v356 = vunpack.c.h.b16 %v306
  %v357 = vunpack.c.l.b16 %v307
  %v358 = vunpack.c.h.b16 %v307
  %v359 = vunpack.c.l.b16 %v308
  %v360 = vunpack.c.h.b16 %v308
  %v361 = vunpack.c.l.b16 %v309
  %v362 = vunpack.c.h.b16 %v309
  %v363 = vunpack.c.l.b16 %v310
  %v364 = vunpack.c.h.b16 %v310
  %v365 = vunpack.c.l.b16 %v311
  %v366 = vunpack.c.h.b16 %v311
  %v367 = vunpack.c.l.b16 %v312
  %v368 = vunpack.c.h.b16 %v312
  %v369 = vunpack.c.l.b16 %v313
  %v370 = vunpack.c.h.b16 %v313
  %v371 = vunpack.c.l.b16 %v314
  %v372 = vunpack.c.h.b16 %v314
  %v373 = vunpack.c.l.b16 %v315
  %v374 = vunpack.c.h.b16 %v315
  %v375 = vunpack.c.l.b16 %v316
  %v376 = vunpack.c.h.b16 %v316
  %v377 = vpack.c.b16 %v347, %v345
  %v378 = vpack.c.b16 %v348, %v346
  %v379 = vpack.c.b16 %v351, %v349
  %v380 = vpack.c.b16 %v352, %v350
  %v381 = vpack.c.b16 %v355, %v353
  %v382 = vpack.c.b16 %v356, %v354
  %v383 = vpack.c.b16 %v359, %v357
  %v384 = vpack.c.b16 %v360, %v358
  %v385 = vpack.c.b16 %v363, %v361
  %v386 = vpack.c.b16 %v364, %v362
  %v387 = vpack.c.b16 %v367, %v365
  %v388 = vpack.c.b16 %v368, %v366
  %v389 = vpack.c.b16 %v371, %v369
  %v390 = vpack.c.b16 %v372, %v370
  %v391 = vpack.c.b16 %v375, %v373
  %v392 = vpack.c.b16 %v376, %v374
  %409 = vmatprep.subr.bf16.mxu0 %v392
  %410 = vmatpush1.bf16.msra.mxu0 %v391
  %411 = vmatprep.subr.bf16.mxu0 %v390
  %412 = vmatpush1.bf16.msra.mxu0 %v389
  %413 = vmatprep.subr.bf16.mxu0 %v388
  %414 = vmatpush1.bf16.msra.mxu0 %v387
  %415 = vmatprep.subr.bf16.mxu0 %v386
  %416 = vmatpush1.bf16.msra.mxu0 %v385
  %417 = vmatprep.subr.bf16.mxu0 %v384
  %418 = vmatpush1.bf16.msra.mxu0 %v383
  %419 = vmatprep.subr.bf16.mxu0 %v382
  %420 = vmatpush1.bf16.msra.mxu0 %v381
  %421 = vmatprep.subr.bf16.mxu0 %v380
  %422 = vmatpush1.bf16.msra.mxu0 %v379
  %423 = vmatprep.subr.bf16.mxu0 %v378
  %424 = vmatpush1.bf16.msra.mxu0 %v377
  %425 = vmatprep.subr.bf16.mxu0 0
  %426 = vmatpush2.bf16.msra.mxu0 0
  %427 = vmatprep.subr.bf16.mxu0 0
  %428 = vmatpush2.bf16.msra.mxu0 0
  %429 = vmatprep.subr.bf16.mxu0 0
  %430 = vmatpush2.bf16.msra.mxu0 0
  %431 = vmatprep.subr.bf16.mxu0 0
  %432 = vmatpush2.bf16.msra.mxu0 0
  %433 = vmatprep.subr.bf16.mxu0 0
  %434 = vmatpush2.bf16.msra.mxu0 0
  %435 = vmatprep.subr.bf16.mxu0 0
  %436 = vmatpush2.bf16.msra.mxu0 0
  %437 = vmatprep.subr.bf16.mxu0 0
  %438 = vmatpush2.bf16.msra.mxu0 0
  %439 = vmatprep.subr.bf16.mxu0 0
  %440 = vmatpush2.bf16.msra.mxu0 0
  %441 = vmatprep.mubr.bf16.mxu0 0
  %442 = vmatmul.mubr.bf16.gmra.mxu0 %v325
  %v443 = vpop.f32.mrf.mxu0
  %v444 = vadd.f32 0.0, %v443
  %v445 = vpop.f32.mrf.mxu0
  %v446 = vadd.f32 0.0, %v445
  %v447 = vpop.f32.mrf.mxu0
  %v448 = vadd.f32 0.0, %v447
  %v449 = vpop.f32.mrf.mxu0
  %v450 = vadd.f32 0.0, %v449
  %451 = vmatprep.mubr.bf16.mxu0 0
  %452 = vmatmul.mubr.bf16.gmra.mxu0 %v326
  %v453 = vpop.f32.mrf.mxu0
  %v454 = vadd.f32 0.0, %v453
  %v455 = vpop.f32.mrf.mxu0
  %v456 = vadd.f32 0.0, %v455
  %v457 = vpop.f32.mrf.mxu0
  %v458 = vadd.f32 0.0, %v457
  %v459 = vpop.f32.mrf.mxu0
  %v460 = vadd.f32 0.0, %v459
  %461 = vdwg.mxu0
  %v462 = vmax.f32 %v219, %v239
  %v463 = vmax.f32 %v462, %v259
  %v464 = vmax.f32 %v463, %v279
  %v465 = vmax.f32 %v221, %v241
  %v466 = vmax.f32 %v465, %v261
  %v467 = vmax.f32 %v466, %v281
  %v468 = vmax.f32 %v223, %v243
  %v469 = vmax.f32 %v468, %v263
  %v470 = vmax.f32 %v469, %v283
  %v471 = vmax.f32 %v225, %v245
  %v472 = vmax.f32 %v471, %v265
  %v473 = vmax.f32 %v472, %v285
  %v474 = vmax.f32 %v229, %v249
  %v475 = vmax.f32 %v474, %v269
  %v476 = vmax.f32 %v475, %v289
  %v477 = vmax.f32 %v231, %v251
  %v478 = vmax.f32 %v477, %v271
  %v479 = vmax.f32 %v478, %v291
  %v480 = vmax.f32 %v233, %v253
  %v481 = vmax.f32 %v480, %v273
  %v482 = vmax.f32 %v481, %v293
  %v483 = vmax.f32 %v235, %v255
  %v484 = vmax.f32 %v483, %v275
  %v485 = vmax.f32 %v484, %v295
  %v486 = vmin.f32 %v219, %v239
  %v487 = vmin.f32 %v486, %v259
  %v488 = vmin.f32 %v487, %v279
  %v489 = vmin.f32 %v221, %v241
  %v490 = vmin.f32 %v489, %v261
  %v491 = vmin.f32 %v490, %v281
  %v492 = vmin.f32 %v223, %v243
  %v493 = vmin.f32 %v492, %v263
  %v494 = vmin.f32 %v493, %v283
  %v495 = vmin.f32 %v225, %v245
  %v496 = vmin.f32 %v495, %v265
  %v497 = vmin.f32 %v496, %v285
  %v498 = vmin.f32 %v229, %v249
  %v499 = vmin.f32 %v498, %v269
  %v500 = vmin.f32 %v499, %v289
  %v501 = vmin.f32 %v231, %v251
  %v502 = vmin.f32 %v501, %v271
  %v503 = vmin.f32 %v502, %v291
  %v504 = vmin.f32 %v233, %v253
  %v505 = vmin.f32 %v504, %v273
  %v506 = vmin.f32 %v505, %v293
  %v507 = vmin.f32 %v235, %v255
  %v508 = vmin.f32 %v507, %v275
  %v509 = vmin.f32 %v508, %v295
  %v510 = vld [vmem:[%s4] sm:$0x3]
  %v511 = vld [vmem:[%s5] sm:$0x3]
  %vm512 = vcmp.ge.f32.partialorder %v510, 0.0
  %v513 = vsel %vm512, 1, 0
  %v514 = vlaneseq
  %v515 = vshrl.u32 %v514, 7
  %v516 = vsub.s32 0, %v515
  %v517 = vrot.slane %v513, %v516
  %v518 = vlaneseq
  %v519 = vshrl.u32 %v518, 7
  %v520 = vsub.s32 1, %v519
  %v521 = vrot.slane %v513, %v520
  %vm522 = vcmp.eq.s32.totalorder %v517, 1
  %vm523 = vcmp.eq.s32.totalorder %v521, 1
  %v524 = vsel %vm522, %v464, %v488
  %v525 = vsel %vm523, %v467, %v491
  %v526 = vsel %vm522, %v470, %v494
  %v527 = vsel %vm523, %v473, %v497
  %v528 = vsel %vm522, %v476, %v500
  %v529 = vsel %vm523, %v479, %v503
  %v530 = vsel %vm522, %v482, %v506
  %v531 = vsel %vm523, %v485, %v509
  %v532 = vadd.f32 %v524, %v444
  %v533 = vadd.f32 %v525, %v446
  %v534 = vadd.f32 %v526, %v448
  %v535 = vadd.f32 %v527, %v450
  %v536 = vadd.f32 %v528, %v454
  %v537 = vadd.f32 %v529, %v456
  %v538 = vadd.f32 %v530, %v458
  %v539 = vadd.f32 %v531, %v460
  %v541 = vlaneseq
  %v542 = vshrl.u32 %v541, 7
  %v543 = vsub.s32 0, %v542
  %v544 = vrot.slane %v510, %v543
  %v545 = vlaneseq
  %v546 = vshrl.u32 %v545, 7
  %v547 = vsub.s32 1, %v546
  %v548 = vrot.slane %v510, %v547
  %v551 = vmul.f32 %v532, %v544
  %v552 = vmul.f32 %v533, %v548
  %v553 = vmul.f32 %v534, %v544
  %v554 = vmul.f32 %v535, %v548
  %v555 = vmul.f32 %v536, %v544
  %v556 = vmul.f32 %v537, %v548
  %v557 = vmul.f32 %v538, %v544
  %v558 = vmul.f32 %v539, %v548
  %v560 = vlaneseq
  %v561 = vshrl.u32 %v560, 7
  %v562 = vsub.s32 0, %v561
  %v563 = vrot.slane %v511, %v562
  %v564 = vlaneseq
  %v565 = vshrl.u32 %v564, 7
  %v566 = vsub.s32 1, %v565
  %v567 = vrot.slane %v511, %v566
  %v570 = vadd.f32 %v551, %v563
  %v571 = vadd.f32 %v552, %v567
  %v572 = vadd.f32 %v553, %v563
  %v573 = vadd.f32 %v554, %v567
  %v574 = vadd.f32 %v555, %v563
  %v575 = vadd.f32 %v556, %v567
  %v576 = vadd.f32 %v557, %v563
  %v577 = vadd.f32 %v558, %v567
  %v578 = vtanh.pop %v570
  %v579 = vtanh.pop %v571
  %v580 = vtanh.pop %v572
  %v581 = vtanh.pop %v573
  %v582 = vtanh.pop %v574
  %v583 = vtanh.pop %v575
  %v584 = vtanh.pop %v576
  %v585 = vtanh.pop %v577
  %v586 = vpack.c.bf16 %v580, %v578
  %v587 = vpack.c.bf16 %v581, %v579
  %v588 = vpack.c.bf16 %v584, %v582
  %v589 = vpack.c.bf16 %v585, %v583
  %v594 = vunpack.c.l.b16 %v586
  %v595 = vunpack.c.l.b16 %v587
  %v596 = vunpack.c.h.b16 %v586
  %v597 = vunpack.c.h.b16 %v587
  %v598 = vunpack.c.l.b16 %v588
  %v599 = vunpack.c.l.b16 %v589
  %v600 = vunpack.c.h.b16 %v588
  %v601 = vunpack.c.h.b16 %v589
  %v602 = vpack.c.b16 %v595, %v594
  %v603 = vpack.c.b16 %v597, %v596
  %v604 = vpack.c.b16 %v599, %v598
  %v605 = vpack.c.b16 %v601, %v600
  %610 = vst [vmem:[%s6] sm:$0xff] %v602
  %611 = vst [vmem:[%s6 + $0x8] sm:$0xff] %v603
  %612 = vst [vmem:[%s6 + $0x10] sm:$0xff] %v604
  %613 = vst [vmem:[%s6 + $0x18] sm:$0xff] %v605
  // Predicated region
  $region26: #{shared_module_gcn_forward.17} parent=0 // pred_check
    _
  $region27: #{shared_module_gcn_forward.17} parent=0 // pred_check_branch
    %615 = sbr.rel (0) target = $region29
  $region28: #{shared_module_gcn_forward.17} parent=0 // pred_region
    _
  $region29: #{shared_module_gcn_forward.17} parent=0 // pred_fallthru
    _
  // Predicated region
  $region30: #{shared_module_gcn_forward.17} parent=0 // pred_check
    _
  $region31: #{shared_module_gcn_forward.17} parent=0 // pred_check_branch
    %617 = sbr.rel (0) target = $region33
  $region32: #{shared_module_gcn_forward.17} parent=0 // pred_region
    _
  $region33: #{shared_module_gcn_forward.17} parent=0 // pred_fallthru
    _

// kernel: shared_module_gcn_forward.19
$region0: #{shared_module_gcn_forward.19}
  #allocation0 [shape = 'u32[]', space=smem, size = 0x4, offset = 0x4, fixed_abs, tag = 'smem constant byte address 0x4 - core index']
  #allocation1 [shape = 'u32[144,128]{1,0:T(1,128)}', space=vmem, size = 0x12000, scoped, tag = 'internal scratch']
  %s0 = inlined_call_operand.vmem [shape: bf16[2,16,64], index: 0, kind: input, shape index: {}]
  %s1 = inlined_call_operand.vmem [shape: bf16[2,16,64], index: 1, kind: input, shape index: {}]
  %s2 = inlined_call_operand.vmem [shape: bf16[2,16,128], index: 2, kind: input, shape index: {}]
  %s3 = inlined_call_operand.vmem [shape: bf16[2,16,256], index: 3, kind: input, shape index: {}]
  %s4 = inlined_call_operand.vmem [shape: bf16[64,32], index: 4, kind: input, shape index: {}]
  %s5 = inlined_call_operand.vmem [shape: bf16[64,32], index: 5, kind: input, shape index: {}]
  %s6 = inlined_call_operand.vmem [shape: bf16[128,32], index: 6, kind: input, shape index: {}]
  %s7 = inlined_call_operand.vmem [shape: bf16[256,32], index: 7, kind: input, shape index: {}]
  %s8 = inlined_call_operand.vmem [shape: f32[1,32], index: 8, kind: input, shape index: {}]
  %s9 = inlined_call_operand.vmem [shape: f32[1,32], index: 9, kind: input, shape index: {}]
  %s10 = inlined_call_operand.vmem [shape: f32[2,1,32], index: 10, kind: output, shape index: {0}]
  %s11 = inlined_call_operand.vmem [shape: f32[2,1,32], index: 11, kind: output, shape index: {1}]
  %12 = xla_tuple %s10, %s11
  %s13 = sld [smem:[#allocation0]]
  $region89: #{shared_module_gcn_forward.19} parent=0
    _
  %s15 = ssub.s32 1, %s13
  %s16 = scalar_select 0, %s15, %s13
  loop: start=0, step=1, limit=4
  $region2: #{shared_module_gcn_forward.19} parent=0 // loop_pre_header
    _
  $region3: #{shared_module_gcn_forward.19} parent=0 // loop_header
    %s18 = sphi 0, %s22
    %p19 = scmp.ge.s32.totalorder %s18, 4
    %s25 = sphi 0, %s37
    %s26 = sphi 0, %s33
    %s27 = sphi 0, %s25
    %s28 = sphi 0, %s26
    %s29 = sphi 0, %s27
    %s30 = sphi 0, %s28
    %s42 = sphi 0, %s44
    %s45 = sphi 0, %s42
    %s46 = sphi 0, %s45
    %s62 = sphi 0, %s46
    %s70 = sphi 0, %s72
    %s73 = sphi 0, %s70
    %s74 = sphi 0, %s73
    %s90 = sphi 0, %s74
    %s98 = sphi 0, %s100
    %s101 = sphi 0, %s98
    %s102 = sphi 0, %s101
    %s118 = sphi 0, %s102
    %s126 = sphi 0, %s128
    %s129 = sphi 0, %s126
    %s130 = sphi 0, %s129
    %s146 = sphi 0, %s130
    %s150 = sphi 0, %s150
    %s152 = sphi 0, %s150
    %s153 = sphi 0, %s152
    %s167 = sphi 0, %s153
    %s171 = sphi 0, %s171
    %s173 = sphi 0, %s171
    %s174 = sphi 0, %s173
    %s188 = sphi 0, %s174
    %s192 = sphi 0, %s192
    %s194 = sphi 0, %s192
    %s195 = sphi 0, %s194
    %s209 = sphi 0, %s195
    %s213 = sphi 0, %s213
    %s215 = sphi 0, %s213
    %s216 = sphi 0, %s215
    %s230 = sphi 0, %s216
    %s234 = sphi 0, %s234
    %s236 = sphi 0, %s234
    %s237 = sphi 0, %s236
    %s251 = sphi 0, %s237
    %s255 = sphi 0, %s255
    %s257 = sphi 0, %s255
    %s258 = sphi 0, %s257
    %s272 = sphi 0, %s258
    %s278 = sphi 0, %s280
    %s281 = sphi 0, %s278
    %s282 = sphi 0, %s281
    %s298 = sphi 0, %s282
    %s304 = sphi 0, %s306
    %s307 = sphi 0, %s304
    %s308 = sphi 0, %s307
    %s324 = sphi 0, %s308
  $region4: #{shared_module_gcn_forward.19} parent=0 // loop_header_branch
    %21 = sbr.rel (%p19) target = $region8
  $region5: #{shared_module_gcn_forward.19} parent=0 // loop_body
    %s23 = ssub.s32 %s18, 1
    %s24 = ssub.s32 %s18, 2
    %s31 = sadd.s32 1, %s26
    %p32 = scmp.ge.s32.totalorder %s31, 1
    %s33 = scalar_select %p32, 0, %s31
    %s34 = sadd.s32 1, %s25
    %s35 = scalar_select %p32, %s34, %s25
    %p36 = scmp.ge.s32.totalorder %s35, 2
    %s37 = scalar_select %p36, 0, %s35
    %s38 = ssub.s32 %s25, %s37
    %s39 = ssub.s32 %s26, %s33
    %s40 = sor.u32 %s38, %s39
    %p41 = scmp.eq.s32.totalorder %s40, 0
    %s43 = sadd.s32 %s42, 1
    %s44 = scalar_select %p41, %s42, %s43
    %p47 = pneg %p41
    %p48 = scmp.eq.s32.totalorder %s18, 1
    %p49 = por %p47, %p48
    %p50 = scmp.ne.s32.totalorder %s42, %s45
    %p51 = scmp.eq.s32.totalorder %s18, 0
    %p52 = por %p50, %p51
    %p53 = scmp.ne.s32.totalorder %s42, %s45
    %p54 = scmp.eq.s32.totalorder %s23, 1
    %p55 = por %p53, %p54
    %p56 = scmp.ne.s32.totalorder %s45, %s46
    %p57 = scmp.eq.s32.totalorder %s23, 0
    %p58 = por %p56, %p57
    %p59 = scmp.ne.s32.totalorder %s45, %s46
    %p60 = scmp.eq.s32.totalorder %s24, 1
    %p61 = por %p59, %p60
    %p63 = scmp.ne.s32.totalorder %s46, %s62
    %p64 = scmp.eq.s32.totalorder %s24, 0
    %p65 = por %p63, %p64
    %s66 = ssub.s32 %s25, %s37
    %s67 = ssub.s32 %s26, %s33
    %s68 = sor.u32 %s66, %s67
    %p69 = scmp.eq.s32.totalorder %s68, 0
    %s71 = sadd.s32 %s70, 1
    %s72 = scalar_select %p69, %s70, %s71
    %p75 = pneg %p69
    %p76 = scmp.eq.s32.totalorder %s18, 1
    %p77 = por %p75, %p76
    %p78 = scmp.ne.s32.totalorder %s70, %s73
    %p79 = scmp.eq.s32.totalorder %s18, 0
    %p80 = por %p78, %p79
    %p81 = scmp.ne.s32.totalorder %s70, %s73
    %p82 = scmp.eq.s32.totalorder %s23, 1
    %p83 = por %p81, %p82
    %p84 = scmp.ne.s32.totalorder %s73, %s74
    %p85 = scmp.eq.s32.totalorder %s23, 0
    %p86 = por %p84, %p85
    %p87 = scmp.ne.s32.totalorder %s73, %s74
    %p88 = scmp.eq.s32.totalorder %s24, 1
    %p89 = por %p87, %p88
    %p91 = scmp.ne.s32.totalorder %s74, %s90
    %p92 = scmp.eq.s32.totalorder %s24, 0
    %p93 = por %p91, %p92
    %s94 = ssub.s32 %s25, %s37
    %s95 = ssub.s32 %s26, %s33
    %s96 = sor.u32 %s94, %s95
    %p97 = scmp.eq.s32.totalorder %s96, 0
    %s99 = sadd.s32 %s98, 1
    %s100 = scalar_select %p97, %s98, %s99
    %p103 = pneg %p97
    %p104 = scmp.eq.s32.totalorder %s18, 1
    %p105 = por %p103, %p104
    %p106 = scmp.ne.s32.totalorder %s98, %s101
    %p107 = scmp.eq.s32.totalorder %s18, 0
    %p108 = por %p106, %p107
    %p109 = scmp.ne.s32.totalorder %s98, %s101
    %p110 = scmp.eq.s32.totalorder %s23, 1
    %p111 = por %p109, %p110
    %p112 = scmp.ne.s32.totalorder %s101, %s102
    %p113 = scmp.eq.s32.totalorder %s23, 0
    %p114 = por %p112, %p113
    %p115 = scmp.ne.s32.totalorder %s101, %s102
    %p116 = scmp.eq.s32.totalorder %s24, 1
    %p117 = por %p115, %p116
    %p119 = scmp.ne.s32.totalorder %s102, %s118
    %p120 = scmp.eq.s32.totalorder %s24, 0
    %p121 = por %p119, %p120
    %s122 = ssub.s32 %s25, %s37
    %s123 = ssub.s32 %s26, %s33
    %s124 = sor.u32 %s122, %s123
    %p125 = scmp.eq.s32.totalorder %s124, 0
    %s127 = sadd.s32 %s126, 1
    %s128 = scalar_select %p125, %s126, %s127
    %p131 = pneg %p125
    %p132 = scmp.eq.s32.totalorder %s18, 1
    %p133 = por %p131, %p132
    %p134 = scmp.ne.s32.totalorder %s126, %s129
    %p135 = scmp.eq.s32.totalorder %s18, 0
    %p136 = por %p134, %p135
    %p137 = scmp.ne.s32.totalorder %s126, %s129
    %p138 = scmp.eq.s32.totalorder %s23, 1
    %p139 = por %p137, %p138
    %p140 = scmp.ne.s32.totalorder %s129, %s130
    %p141 = scmp.eq.s32.totalorder %s23, 0
    %p142 = por %p140, %p141
    %p143 = scmp.ne.s32.totalorder %s129, %s130
    %p144 = scmp.eq.s32.totalorder %s24, 1
    %p145 = por %p143, %p144
    %p147 = scmp.ne.s32.totalorder %s130, %s146
    %p148 = scmp.eq.s32.totalorder %s24, 0
    %p149 = por %p147, %p148
    %s151 = sadd.s32 %s150, 1
    %p154 = scmp.eq.s32.totalorder %s18, 1
    %p155 = scmp.ne.s32.totalorder %s150, %s152
    %p156 = scmp.eq.s32.totalorder %s18, 0
    %p157 = por %p155, %p156
    %p158 = scmp.ne.s32.totalorder %s150, %s152
    %p159 = scmp.eq.s32.totalorder %s23, 1
    %p160 = por %p158, %p159
    %p161 = scmp.ne.s32.totalorder %s152, %s153
    %p162 = scmp.eq.s32.totalorder %s23, 0
    %p163 = por %p161, %p162
    %p164 = scmp.ne.s32.totalorder %s152, %s153
    %p165 = scmp.eq.s32.totalorder %s24, 1
    %p166 = por %p164, %p165
    %p168 = scmp.ne.s32.totalorder %s153, %s167
    %p169 = scmp.eq.s32.totalorder %s24, 0
    %p170 = por %p168, %p169
    %s172 = sadd.s32 %s171, 1
    %p175 = scmp.eq.s32.totalorder %s18, 1
    %p176 = scmp.ne.s32.totalorder %s171, %s173
    %p177 = scmp.eq.s32.totalorder %s18, 0
    %p178 = por %p176, %p177
    %p179 = scmp.ne.s32.totalorder %s171, %s173
    %p180 = scmp.eq.s32.totalorder %s23, 1
    %p181 = por %p179, %p180
    %p182 = scmp.ne.s32.totalorder %s173, %s174
    %p183 = scmp.eq.s32.totalorder %s23, 0
    %p184 = por %p182, %p183
    %p185 = scmp.ne.s32.totalorder %s173, %s174
    %p186 = scmp.eq.s32.totalorder %s24, 1
    %p187 = por %p185, %p186
    %p189 = scmp.ne.s32.totalorder %s174, %s188
    %p190 = scmp.eq.s32.totalorder %s24, 0
    %p191 = por %p189, %p190
    %s193 = sadd.s32 %s192, 1
    %p196 = scmp.eq.s32.totalorder %s18, 1
    %p197 = scmp.ne.s32.totalorder %s192, %s194
    %p198 = scmp.eq.s32.totalorder %s18, 0
    %p199 = por %p197, %p198
    %p200 = scmp.ne.s32.totalorder %s192, %s194
    %p201 = scmp.eq.s32.totalorder %s23, 1
    %p202 = por %p200, %p201
    %p203 = scmp.ne.s32.totalorder %s194, %s195
    %p204 = scmp.eq.s32.totalorder %s23, 0
    %p205 = por %p203, %p204
    %p206 = scmp.ne.s32.totalorder %s194, %s195
    %p207 = scmp.eq.s32.totalorder %s24, 1
    %p208 = por %p206, %p207
    %p210 = scmp.ne.s32.totalorder %s195, %s209
    %p211 = scmp.eq.s32.totalorder %s24, 0
    %p212 = por %p210, %p211
    %s214 = sadd.s32 %s213, 1
    %p217 = scmp.eq.s32.totalorder %s18, 1
    %p218 = scmp.ne.s32.totalorder %s213, %s215
    %p219 = scmp.eq.s32.totalorder %s18, 0
    %p220 = por %p218, %p219
    %p221 = scmp.ne.s32.totalorder %s213, %s215
    %p222 = scmp.eq.s32.totalorder %s23, 1
    %p223 = por %p221, %p222
    %p224 = scmp.ne.s32.totalorder %s215, %s216
    %p225 = scmp.eq.s32.totalorder %s23, 0
    %p226 = por %p224, %p225
    %p227 = scmp.ne.s32.totalorder %s215, %s216
    %p228 = scmp.eq.s32.totalorder %s24, 1
    %p229 = por %p227, %p228
    %p231 = scmp.ne.s32.totalorder %s216, %s230
    %p232 = scmp.eq.s32.totalorder %s24, 0
    %p233 = por %p231, %p232
    %s235 = sadd.s32 %s234, 1
    %p238 = scmp.eq.s32.totalorder %s18, 1
    %p239 = scmp.ne.s32.totalorder %s234, %s236
    %p240 = scmp.eq.s32.totalorder %s18, 0
    %p241 = por %p239, %p240
    %p242 = scmp.ne.s32.totalorder %s234, %s236
    %p243 = scmp.eq.s32.totalorder %s23, 1
    %p244 = por %p242, %p243
    %p245 = scmp.ne.s32.totalorder %s236, %s237
    %p246 = scmp.eq.s32.totalorder %s23, 0
    %p247 = por %p245, %p246
    %p248 = scmp.ne.s32.totalorder %s236, %s237
    %p249 = scmp.eq.s32.totalorder %s24, 1
    %p250 = por %p248, %p249
    %p252 = scmp.ne.s32.totalorder %s237, %s251
    %p253 = scmp.eq.s32.totalorder %s24, 0
    %p254 = por %p252, %p253
    %s256 = sadd.s32 %s255, 1
    %p259 = scmp.eq.s32.totalorder %s18, 1
    %p260 = scmp.ne.s32.totalorder %s255, %s257
    %p261 = scmp.eq.s32.totalorder %s18, 0
    %p262 = por %p260, %p261
    %p263 = scmp.ne.s32.totalorder %s255, %s257
    %p264 = scmp.eq.s32.totalorder %s23, 1
    %p265 = por %p263, %p264
    %p266 = scmp.ne.s32.totalorder %s257, %s258
    %p267 = scmp.eq.s32.totalorder %s23, 0
    %p268 = por %p266, %p267
    %p269 = scmp.ne.s32.totalorder %s257, %s258
    %p270 = scmp.eq.s32.totalorder %s24, 1
    %p271 = por %p269, %p270
    %p273 = scmp.ne.s32.totalorder %s258, %s272
    %p274 = scmp.eq.s32.totalorder %s24, 0
    %p275 = por %p273, %p274
    %s276 = ssub.s32 %s25, %s37
    %p277 = scmp.eq.s32.totalorder %s276, 0
    %s279 = sadd.s32 %s278, 1
    %s280 = scalar_select %p277, %s278, %s279
    %p283 = pneg %p277
    %p284 = scmp.eq.s32.totalorder %s18, 1
    %p285 = por %p283, %p284
    %p286 = scmp.ne.s32.totalorder %s278, %s281
    %p287 = scmp.eq.s32.totalorder %s18, 0
    %p288 = por %p286, %p287
    %p289 = scmp.ne.s32.totalorder %s278, %s281
    %p290 = scmp.eq.s32.totalorder %s23, 1
    %p291 = por %p289, %p290
    %p292 = scmp.ne.s32.totalorder %s281, %s282
    %p293 = scmp.eq.s32.totalorder %s23, 0
    %p294 = por %p292, %p293
    %p295 = scmp.ne.s32.totalorder %s281, %s282
    %p296 = scmp.eq.s32.totalorder %s24, 1
    %p297 = por %p295, %p296
    %p299 = scmp.ne.s32.totalorder %s282, %s298
    %p300 = scmp.eq.s32.totalorder %s24, 0
    %p301 = por %p299, %p300
    %s302 = ssub.s32 %s25, %s37
    %p303 = scmp.eq.s32.totalorder %s302, 0
    %s305 = sadd.s32 %s304, 1
    %s306 = scalar_select %p303, %s304, %s305
    %p309 = pneg %p303
    %p310 = scmp.eq.s32.totalorder %s18, 1
    %p311 = por %p309, %p310
    %p312 = scmp.ne.s32.totalorder %s304, %s307
    %p313 = scmp.eq.s32.totalorder %s18, 0
    %p314 = por %p312, %p313
    %p315 = scmp.ne.s32.totalorder %s304, %s307
    %p316 = scmp.eq.s32.totalorder %s23, 1
    %p317 = por %p315, %p316
    %p318 = scmp.ne.s32.totalorder %s307, %s308
    %p319 = scmp.eq.s32.totalorder %s23, 0
    %p320 = por %p318, %p319
    %p321 = scmp.ne.s32.totalorder %s307, %s308
    %p322 = scmp.eq.s32.totalorder %s24, 1
    %p323 = por %p321, %p322
    %p325 = scmp.ne.s32.totalorder %s308, %s324
    %p326 = scmp.eq.s32.totalorder %s24, 0
    %p327 = por %p325, %p326
    %p328 = scmp.le.s32.totalorder 1, %s18
    %p329 = scmp.lt.s32.totalorder %s18, 3
    %p330 = pnand %p328, %p329
    %p331 = pneg %p330
    // Predicated region
    $region9: #{shared_module_gcn_forward.19} parent=5 // pred_check
      _
    $region10: #{shared_module_gcn_forward.19} parent=5 // pred_check_branch
      %333 = sbr.rel (%p330) target = $region12
    $region11: #{shared_module_gcn_forward.19} parent=5 // pred_region
      %s334 = ssub.s32 %s18, 1
      // Predicated region
      $region13: #{shared_module_gcn_forward.19} parent=11 // pred_check
        %p335 = pneg %p163
      $region14: #{shared_module_gcn_forward.19} parent=11 // pred_check_branch
        %337 = sbr.rel (%p335) target = $region16
      $region15: #{shared_module_gcn_forward.19} parent=11 // pred_region
        _
      $region16: #{shared_module_gcn_forward.19} parent=11 // pred_fallthru
        _
      // Predicated region
      $region17: #{shared_module_gcn_forward.19} parent=11 // pred_check
        %p338 = pneg %p184
      $region18: #{shared_module_gcn_forward.19} parent=11 // pred_check_branch
        %340 = sbr.rel (%p338) target = $region20
      $region19: #{shared_module_gcn_forward.19} parent=11 // pred_region
        _
      $region20: #{shared_module_gcn_forward.19} parent=11 // pred_fallthru
        _
      // Predicated region
      $region21: #{shared_module_gcn_forward.19} parent=11 // pred_check
        %p341 = pneg %p205
      $region22: #{shared_module_gcn_forward.19} parent=11 // pred_check_branch
        %343 = sbr.rel (%p341) target = $region24
      $region23: #{shared_module_gcn_forward.19} parent=11 // pred_region
        _
      $region24: #{shared_module_gcn_forward.19} parent=11 // pred_fallthru
        _
      // Predicated region
      $region25: #{shared_module_gcn_forward.19} parent=11 // pred_check
        %p344 = pneg %p226
      $region26: #{shared_module_gcn_forward.19} parent=11 // pred_check_branch
        %346 = sbr.rel (%p344) target = $region28
      $region27: #{shared_module_gcn_forward.19} parent=11 // pred_region
        _
      $region28: #{shared_module_gcn_forward.19} parent=11 // pred_fallthru
        _
      // Predicated region
      $region29: #{shared_module_gcn_forward.19} parent=11 // pred_check
        %p347 = pneg %p247
      $region30: #{shared_module_gcn_forward.19} parent=11 // pred_check_branch
        %349 = sbr.rel (%p347) target = $region32
      $region31: #{shared_module_gcn_forward.19} parent=11 // pred_region
        _
      $region32: #{shared_module_gcn_forward.19} parent=11 // pred_fallthru
        _
      // Predicated region
      $region33: #{shared_module_gcn_forward.19} parent=11 // pred_check
        %p350 = pneg %p268
      $region34: #{shared_module_gcn_forward.19} parent=11 // pred_check_branch
        %352 = sbr.rel (%p350) target = $region36
      $region35: #{shared_module_gcn_forward.19} parent=11 // pred_region
        _
      $region36: #{shared_module_gcn_forward.19} parent=11 // pred_fallthru
        _
    $region12: #{shared_module_gcn_forward.19} parent=5 // pred_fallthru
      _
    %p353 = scmp.lt.s32.totalorder %s18, 2
    // Predicated region
    $region37: #{shared_module_gcn_forward.19} parent=5 // pred_check
      %p354 = pneg %p353
    $region38: #{shared_module_gcn_forward.19} parent=5 // pred_check_branch
      %356 = sbr.rel (%p354) target = $region40
    $region39: #{shared_module_gcn_forward.19} parent=5 // pred_region
      // Predicated region
      $region41: #{shared_module_gcn_forward.19} parent=39 // pred_check
        %p357 = pneg %p52
      $region42: #{shared_module_gcn_forward.19} parent=39 // pred_check_branch
        %359 = sbr.rel (%p357) target = $region44
      $region43: #{shared_module_gcn_forward.19} parent=39 // pred_region
        %s360 = smul.u32 2, %s26
        %p361 = scmp.lt.s32.totalorder %s25, 1
        %s362 = scalar_select %p361, %s25, 1
        %p363 = scmp.lt.s32.totalorder %s360, 1
        %s364 = scalar_select %p363, %s360, 1
        %s365 = smul.addr %s362, 2
        %s366 = sadd.s32 %s364, %s365
        %s367 = smul.addr %s366, 4
        %s368 = scalar_lea.vmem %s0, %s367
        %s369 = smul.u32 2, %s26
      $region44: #{shared_module_gcn_forward.19} parent=39 // pred_fallthru
        _
      // Predicated region
      $region45: #{shared_module_gcn_forward.19} parent=39 // pred_check
        %p370 = pneg %p80
      $region46: #{shared_module_gcn_forward.19} parent=39 // pred_check_branch
        %372 = sbr.rel (%p370) target = $region48
      $region47: #{shared_module_gcn_forward.19} parent=39 // pred_region
        %s373 = smul.u32 2, %s26
        %p374 = scmp.lt.s32.totalorder %s25, 1
        %s375 = scalar_select %p374, %s25, 1
        %p376 = scmp.lt.s32.totalorder %s373, 1
        %s377 = scalar_select %p376, %s373, 1
        %s378 = smul.addr %s375, 2
        %s379 = sadd.s32 %s377, %s378
        %s380 = smul.addr %s379, 4
        %s381 = scalar_lea.vmem %s1, %s380
        %s382 = smul.u32 2, %s26
      $region48: #{shared_module_gcn_forward.19} parent=39 // pred_fallthru
        _
      // Predicated region
      $region49: #{shared_module_gcn_forward.19} parent=39 // pred_check
        %p383 = pneg %p108
      $region50: #{shared_module_gcn_forward.19} parent=39 // pred_check_branch
        %385 = sbr.rel (%p383) target = $region52
      $region51: #{shared_module_gcn_forward.19} parent=39 // pred_region
        %s386 = smul.u32 2, %s26
        %p387 = scmp.lt.s32.totalorder %s25, 1
        %s388 = scalar_select %p387, %s25, 1
        %p389 = scmp.lt.s32.totalorder %s386, 1
        %s390 = scalar_select %p389, %s386, 1
        %s391 = smul.addr %s388, 2
        %s392 = sadd.s32 %s390, %s391
        %s393 = smul.addr %s392, 4
        %s394 = scalar_lea.vmem %s2, %s393
        %s395 = smul.u32 2, %s26
      $region52: #{shared_module_gcn_forward.19} parent=39 // pred_fallthru
        _
      // Predicated region
      $region53: #{shared_module_gcn_forward.19} parent=39 // pred_check
        %p396 = pneg %p136
      $region54: #{shared_module_gcn_forward.19} parent=39 // pred_check_branch
        %398 = sbr.rel (%p396) target = $region56
      $region55: #{shared_module_gcn_forward.19} parent=39 // pred_region
        %s399 = smul.u32 2, %s26
        %p400 = scmp.lt.s32.totalorder %s25, 1
        %s401 = scalar_select %p400, %s25, 1
        %p402 = scmp.lt.s32.totalorder %s399, 1
        %s403 = scalar_select %p402, %s399, 1
        %s404 = smul.addr %s403, 2
        %s405 = smul.addr %s401, 4
        %s406 = sadd.s32 %s404, %s405
        %s407 = smul.addr %s406, 4
        %s408 = scalar_lea.vmem %s3, %s407
        %s409 = smul.u32 2, %s26
      $region56: #{shared_module_gcn_forward.19} parent=39 // pred_fallthru
        _
    $region40: #{shared_module_gcn_forward.19} parent=5 // pred_fallthru
      _
    %p410 = scmp.le.s32.totalorder 1, %s18
    %p411 = scmp.lt.s32.totalorder %s18, 3
    %p412 = pnand %p410, %p411
    %p413 = pneg %p412
    // Predicated region
    $region57: #{shared_module_gcn_forward.19} parent=5 // pred_check
      _
    $region58: #{shared_module_gcn_forward.19} parent=5 // pred_check_branch
      %415 = sbr.rel (%p412) target = $region60
    $region59: #{shared_module_gcn_forward.19} parent=5 // pred_region
      %s416 = ssub.s32 %s18, 1
      %s417 = smul.u32 2, %s28
      %p418 = scmp.lt.s32.totalorder %s27, 1
      %s419 = scalar_select %p418, %s27, 1
      %p420 = scmp.lt.s32.totalorder %s417, 1
      %s421 = scalar_select %p420, %s417, 1
      %s422 = smul.addr %s419, 2
      %s423 = sadd.s32 %s421, %s422
      %s424 = smul.addr %s423, 4
      %s425 = scalar_lea.vmem %s0, %s424
      %p426 = pneg %p58
      %p427 = pneg %p55
      %s428 = smul.u32 2, %s28
      %p429 = scmp.lt.s32.totalorder %s27, 1
      %s430 = scalar_select %p429, %s27, 1
      %p431 = scmp.lt.s32.totalorder %s428, 1
      %s432 = scalar_select %p431, %s428, 1
      %s433 = smul.addr %s430, 2
      %s434 = sadd.s32 %s432, %s433
      %s435 = smul.addr %s434, 4
      %s436 = scalar_lea.vmem %s1, %s435
      %p437 = pneg %p86
      %p438 = pneg %p83
      %s439 = smul.u32 2, %s28
      %p440 = scmp.lt.s32.totalorder %s27, 1
      %s441 = scalar_select %p440, %s27, 1
      %p442 = scmp.lt.s32.totalorder %s439, 1
      %s443 = scalar_select %p442, %s439, 1
      %s444 = smul.addr %s441, 2
      %s445 = sadd.s32 %s443, %s444
      %s446 = smul.addr %s445, 4
      %s447 = scalar_lea.vmem %s2, %s446
      %p448 = pneg %p114
      %p449 = pneg %p111
      %s450 = smul.u32 2, %s28
      %p451 = scmp.lt.s32.totalorder %s27, 1
      %s452 = scalar_select %p451, %s27, 1
      %p453 = scmp.lt.s32.totalorder %s450, 1
      %s454 = scalar_select %p453, %s450, 1
      %s455 = smul.addr %s454, 2
      %s456 = smul.addr %s452, 4
      %s457 = sadd.s32 %s455, %s456
      %s458 = smul.addr %s457, 4
      %s459 = scalar_lea.vmem %s3, %s458
      %p460 = pneg %p142
      %p461 = pneg %p139
      %p462 = pneg %p163
      %p463 = pneg %p160
      %p464 = pneg %p184
      %p465 = pneg %p181
      %p466 = pneg %p205
      %p467 = pneg %p202
      %p468 = pneg %p226
      %p469 = pneg %p223
      %p470 = pneg %p247
      %p471 = pneg %p244
      %p472 = pneg %p268
      %p473 = pneg %p265
      %p474 = pneg %p294
      %p475 = pneg %p291
      %p476 = scmp.lt.s32.totalorder %s27, 1
      %s477 = scalar_select %p476, %s27, 1
      %s478 = scalar_lea.vmem %s10, %s477
      %p479 = pneg %p320
      %p480 = pneg %p317
      %p481 = scmp.lt.s32.totalorder %s27, 1
      %s482 = scalar_select %p481, %s27, 1
      %s483 = scalar_lea.vmem %s11, %s482
      %s484 = smul.u32 2, %s28
      %p485 = scmp.lt.s32.totalorder %s27, 1
      %s486 = scalar_select %p485, %s27, 1
      %p487 = scmp.lt.s32.totalorder %s484, 1
      %s488 = scalar_select %p487, %s484, 1
      %s489 = smul.addr %s486, 2
      %s490 = sadd.s32 %s488, %s489
      %s491 = smul.addr %s490, 4
      %s492 = scalar_lea.vmem %s0, %s491
      %s493 = smul.u32 2, %s28
      %s494 = smul.u32 2, %s28
      %p495 = scmp.lt.s32.totalorder %s27, 1
      %s496 = scalar_select %p495, %s27, 1
      %p497 = scmp.lt.s32.totalorder %s494, 1
      %s498 = scalar_select %p497, %s494, 1
      %s499 = smul.addr %s496, 2
      %s500 = sadd.s32 %s498, %s499
      %s501 = smul.addr %s500, 4
      %s502 = scalar_lea.vmem %s1, %s501
      %s503 = smul.u32 2, %s28
      %s504 = smul.u32 2, %s28
      %p505 = scmp.lt.s32.totalorder %s27, 1
      %s506 = scalar_select %p505, %s27, 1
      %p507 = scmp.lt.s32.totalorder %s504, 1
      %s508 = scalar_select %p507, %s504, 1
      %s509 = smul.addr %s506, 2
      %s510 = sadd.s32 %s508, %s509
      %s511 = smul.addr %s510, 4
      %s512 = scalar_lea.vmem %s2, %s511
      %s513 = smul.u32 2, %s28
      %s514 = smul.u32 2, %s28
      %p515 = scmp.lt.s32.totalorder %s27, 1
      %s516 = scalar_select %p515, %s27, 1
      %p517 = scmp.lt.s32.totalorder %s514, 1
      %s518 = scalar_select %p517, %s514, 1
      %s519 = smul.addr %s518, 2
      %s520 = smul.addr %s516, 4
      %s521 = sadd.s32 %s519, %s520
      %s522 = smul.addr %s521, 4
      %s523 = scalar_lea.vmem %s3, %s522
      %s524 = smul.u32 2, %s28
      %p525 = scmp.lt.s32.totalorder %s27, 1
      %s526 = scalar_select %p525, %s27, 1
      %s527 = scalar_lea.vmem %s10, %s526
      %p528 = scmp.lt.s32.totalorder %s27, 1
      %s529 = scalar_select %p528, %s27, 1
      %s530 = scalar_lea.vmem %s11, %s529
      %p532 = scmp.eq.s32.totalorder %s28, 0
      // Predicated region
      $region61: #{shared_module_gcn_forward.19} parent=59 // pred_check
        %p533 = pneg %p532
      $region62: #{shared_module_gcn_forward.19} parent=59 // pred_check_branch
        %535 = sbr.rel (%p533) target = $region64
      $region63: #{shared_module_gcn_forward.19} parent=59 // pred_region
        %vm536 = vcmask 253952
        %537 = vst.msk [vmem:[%s527] sm:$0x1] %vm536, -inf
        %538 = vst.msk [vmem:[%s530] sm:$0x1] %vm536, 0.0
      $region64: #{shared_module_gcn_forward.19} parent=59 // pred_fallthru
        _
      %v539 = vld [vmem:[%s492] sm:$0xf]
      %v540 = vld [vmem:[%s492 + $0x4] sm:$0xf]
      %v541 = vld [vmem:[%s4] sm:$0xf]
      %v542 = vld [vmem:[%s4 + $0x4] sm:$0xf]
      %v543 = vld [vmem:[%s4 + $0x8] sm:$0xf]
      %v544 = vld [vmem:[%s4 + $0xc] sm:$0xf]
      %v545 = vld [vmem:[%s4 + $0x10] sm:$0xf]
      %v546 = vld [vmem:[%s4 + $0x14] sm:$0xf]
      %v547 = vld [vmem:[%s4 + $0x18] sm:$0xf]
      %v548 = vld [vmem:[%s4 + $0x1c] sm:$0xf]
      %v549 = vld [vmem:[%s502] sm:$0xf]
      %v550 = vld [vmem:[%s502 + $0x4] sm:$0xf]
      %v551 = vld [vmem:[%s5] sm:$0xf]
      %v552 = vld [vmem:[%s5 + $0x4] sm:$0xf]
      %v553 = vld [vmem:[%s5 + $0x8] sm:$0xf]
      %v554 = vld [vmem:[%s5 + $0xc] sm:$0xf]
      %v555 = vld [vmem:[%s5 + $0x10] sm:$0xf]
      %v556 = vld [vmem:[%s5 + $0x14] sm:$0xf]
      %v557 = vld [vmem:[%s5 + $0x18] sm:$0xf]
      %v558 = vld [vmem:[%s5 + $0x1c] sm:$0xf]
      %v561 = vunpack.c.l.b16 %v549
      %v562 = vunpack.c.l.b16 %v550
      %v563 = vpack.c.b16 %v562, %v561
      %v572 = vunpack.c.l.b16 %v551
      %v573 = vunpack.c.l.b16 %v552
      %v574 = vunpack.c.l.b16 %v553
      %v575 = vunpack.c.l.b16 %v554
      %v576 = vunpack.c.l.b16 %v555
      %v577 = vunpack.c.l.b16 %v556
      %v578 = vunpack.c.l.b16 %v557
      %v579 = vunpack.c.l.b16 %v558
      %v580 = vpack.c.b16 %v573, %v572
      %v581 = vpack.c.b16 %v575, %v574
      %v582 = vpack.c.b16 %v577, %v576
      %v583 = vpack.c.b16 %v579, %v578
      %vm588 = vcmask 523264
      %v590 = vsel %vm588, %v563, 0
      %592 = vmatprep.subr.bf16.mxu0 0
      %593 = vmatpush1.bf16.msra.mxu0 0
      %594 = vmatprep.subr.bf16.mxu0 0
      %595 = vmatpush1.bf16.msra.mxu0 0
      %596 = vmatprep.subr.bf16.mxu0 0
      %597 = vmatpush1.bf16.msra.mxu0 0
      %598 = vmatprep.subr.bf16.mxu0 0
      %599 = vmatpush1.bf16.msra.mxu0 0
      %600 = vmatprep.subr.bf16.mxu0 0
      %601 = vmatpush1.bf16.msra.mxu0 %v583
      %602 = vmatprep.subr.bf16.mxu0 0
      %603 = vmatpush1.bf16.msra.mxu0 %v582
      %604 = vmatprep.subr.bf16.mxu0 0
      %605 = vmatpush1.bf16.msra.mxu0 %v581
      %606 = vmatprep.subr.bf16.mxu0 0
      %607 = vmatpush1.bf16.msra.mxu0 %v580
      %608 = vmatprep.subr.bf16.mxu0 0
      %609 = vmatpush2.bf16.msra.mxu0 0
      %610 = vmatprep.subr.bf16.mxu0 0
      %611 = vmatpush2.bf16.msra.mxu0 0
      %612 = vmatprep.subr.bf16.mxu0 0
      %613 = vmatpush2.bf16.msra.mxu0 0
      %614 = vmatprep.subr.bf16.mxu0 0
      %615 = vmatpush2.bf16.msra.mxu0 0
      %616 = vmatprep.subr.bf16.mxu0 0
      %617 = vmatpush2.bf16.msra.mxu0 0
      %618 = vmatprep.subr.bf16.mxu0 0
      %619 = vmatpush2.bf16.msra.mxu0 0
      %620 = vmatprep.subr.bf16.mxu0 0
      %621 = vmatpush2.bf16.msra.mxu0 0
      %622 = vmatprep.subr.bf16.mxu0 0
      %623 = vmatpush2.bf16.msra.mxu0 0
      %624 = vmatprep.mubr.bf16.mxu0 0
      %625 = vmatmul.mubr.bf16.gmra.mxu0 %v590
      %v626 = vpop.f32.mrf.mxu0
      %v627 = vadd.f32 0.0, %v626
      %v628 = vpop.f32.mrf.mxu0
      %v629 = vpop.f32.mrf.mxu0
      %v630 = vadd.f32 0.0, %v629
      %v631 = vpop.f32.mrf.mxu0
      %632 = vdwg.mxu0
      %v635 = vunpack.c.l.b16 %v539
      %v636 = vunpack.c.l.b16 %v540
      %v637 = vpack.c.b16 %v636, %v635
      %v646 = vunpack.c.l.b16 %v541
      %v647 = vunpack.c.l.b16 %v542
      %v648 = vunpack.c.l.b16 %v543
      %v649 = vunpack.c.l.b16 %v544
      %v650 = vunpack.c.l.b16 %v545
      %v651 = vunpack.c.l.b16 %v546
      %v652 = vunpack.c.l.b16 %v547
      %v653 = vunpack.c.l.b16 %v548
      %v654 = vpack.c.b16 %v647, %v646
      %v655 = vpack.c.b16 %v649, %v648
      %v656 = vpack.c.b16 %v651, %v650
      %v657 = vpack.c.b16 %v653, %v652
      %v663 = vsel %vm588, %v637, 0
      %665 = vmatprep.subr.bf16.mxu0 0
      %666 = vmatpush1.bf16.msra.mxu0 0
      %667 = vmatprep.subr.bf16.mxu0 0
      %668 = vmatpush1.bf16.msra.mxu0 0
      %669 = vmatprep.subr.bf16.mxu0 0
      %670 = vmatpush1.bf16.msra.mxu0 0
      %671 = vmatprep.subr.bf16.mxu0 0
      %672 = vmatpush1.bf16.msra.mxu0 0
      %673 = vmatprep.subr.bf16.mxu0 0
      %674 = vmatpush1.bf16.msra.mxu0 %v657
      %675 = vmatprep.subr.bf16.mxu0 0
      %676 = vmatpush1.bf16.msra.mxu0 %v656
      %677 = vmatprep.subr.bf16.mxu0 0
      %678 = vmatpush1.bf16.msra.mxu0 %v655
      %679 = vmatprep.subr.bf16.mxu0 0
      %680 = vmatpush1.bf16.msra.mxu0 %v654
      %681 = vmatprep.subr.bf16.mxu0 0
      %682 = vmatpush2.bf16.msra.mxu0 0
      %683 = vmatprep.subr.bf16.mxu0 0
      %684 = vmatpush2.bf16.msra.mxu0 0
      %685 = vmatprep.subr.bf16.mxu0 0
      %686 = vmatpush2.bf16.msra.mxu0 0
      %687 = vmatprep.subr.bf16.mxu0 0
      %688 = vmatpush2.bf16.msra.mxu0 0
      %689 = vmatprep.subr.bf16.mxu0 0
      %690 = vmatpush2.bf16.msra.mxu0 0
      %691 = vmatprep.subr.bf16.mxu0 0
      %692 = vmatpush2.bf16.msra.mxu0 0
      %693 = vmatprep.subr.bf16.mxu0 0
      %694 = vmatpush2.bf16.msra.mxu0 0
      %695 = vmatprep.subr.bf16.mxu0 0
      %696 = vmatpush2.bf16.msra.mxu0 0
      %697 = vmatprep.mubr.bf16.mxu0 0
      %698 = vmatmul.mubr.bf16.gmra.mxu0 %v663
      %v699 = vpop.f32.mrf.mxu0
      %v700 = vadd.f32 %v627, %v699
      %v701 = vpop.f32.mrf.mxu0
      %v702 = vpop.f32.mrf.mxu0
      %v703 = vadd.f32 %v630, %v702
      %v704 = vpop.f32.mrf.mxu0
      %705 = vdwg.mxu0
      %v706 = vld [vmem:[%s512] sm:$0xf]
      %v707 = vld [vmem:[%s512 + $0x4] sm:$0xf]
      %v708 = vld [vmem:[%s6] sm:$0xf]
      %v709 = vld [vmem:[%s6 + $0x4] sm:$0xf]
      %v710 = vld [vmem:[%s6 + $0x8] sm:$0xf]
      %v711 = vld [vmem:[%s6 + $0xc] sm:$0xf]
      %v712 = vld [vmem:[%s6 + $0x10] sm:$0xf]
      %v713 = vld [vmem:[%s6 + $0x14] sm:$0xf]
      %v714 = vld [vmem:[%s6 + $0x18] sm:$0xf]
      %v715 = vld [vmem:[%s6 + $0x1c] sm:$0xf]
      %v716 = vld [vmem:[%s6 + $0x20] sm:$0xf]
      %v717 = vld [vmem:[%s6 + $0x24] sm:$0xf]
      %v718 = vld [vmem:[%s6 + $0x28] sm:$0xf]
      %v719 = vld [vmem:[%s6 + $0x2c] sm:$0xf]
      %v720 = vld [vmem:[%s6 + $0x30] sm:$0xf]
      %v721 = vld [vmem:[%s6 + $0x34] sm:$0xf]
      %v722 = vld [vmem:[%s6 + $0x38] sm:$0xf]
      %v723 = vld [vmem:[%s6 + $0x3c] sm:$0xf]
      %v726 = vunpack.c.l.b16 %v706
      %v727 = vunpack.c.l.b16 %v707
      %v728 = vpack.c.b16 %v727, %v726
      %v746 = vunpack.c.l.b16 %v708
      %v747 = vunpack.c.l.b16 %v709
      %v748 = vunpack.c.l.b16 %v710
      %v749 = vunpack.c.l.b16 %v711
      %v750 = vunpack.c.l.b16 %v712
      %v751 = vunpack.c.l.b16 %v713
      %v752 = vunpack.c.l.b16 %v714
      %v753 = vunpack.c.l.b16 %v715
      %v754 = vunpack.c.l.b16 %v716
      %v755 = vunpack.c.l.b16 %v717
      %v756 = vunpack.c.l.b16 %v718
      %v757 = vunpack.c.l.b16 %v719
      %v758 = vunpack.c.l.b16 %v720
      %v759 = vunpack.c.l.b16 %v721
      %v760 = vunpack.c.l.b16 %v722
      %v761 = vunpack.c.l.b16 %v723
      %v762 = vpack.c.b16 %v747, %v746
      %v763 = vpack.c.b16 %v749, %v748
      %v764 = vpack.c.b16 %v751, %v750
      %v765 = vpack.c.b16 %v753, %v752
      %v766 = vpack.c.b16 %v755, %v754
      %v767 = vpack.c.b16 %v757, %v756
      %v768 = vpack.c.b16 %v759, %v758
      %v769 = vpack.c.b16 %v761, %v760
      %778 = vmatprep.subr.bf16.mxu0 0
      %779 = vmatpush1.bf16.msra.mxu0 %v769
      %780 = vmatprep.subr.bf16.mxu0 0
      %781 = vmatpush1.bf16.msra.mxu0 %v768
      %782 = vmatprep.subr.bf16.mxu0 0
      %783 = vmatpush1.bf16.msra.mxu0 %v767
      %784 = vmatprep.subr.bf16.mxu0 0
      %785 = vmatpush1.bf16.msra.mxu0 %v766
      %786 = vmatprep.subr.bf16.mxu0 0
      %787 = vmatpush1.bf16.msra.mxu0 %v765
      %788 = vmatprep.subr.bf16.mxu0 0
      %789 = vmatpush1.bf16.msra.mxu0 %v764
      %790 = vmatprep.subr.bf16.mxu0 0
      %791 = vmatpush1.bf16.msra.mxu0 %v763
      %792 = vmatprep.subr.bf16.mxu0 0
      %793 = vmatpush1.bf16.msra.mxu0 %v762
      %794 = vmatprep.subr.bf16.mxu0 0
      %795 = vmatpush2.bf16.msra.mxu0 0
      %796 = vmatprep.subr.bf16.mxu0 0
      %797 = vmatpush2.bf16.msra.mxu0 0
      %798 = vmatprep.subr.bf16.mxu0 0
      %799 = vmatpush2.bf16.msra.mxu0 0
      %800 = vmatprep.subr.bf16.mxu0 0
      %801 = vmatpush2.bf16.msra.mxu0 0
      %802 = vmatprep.subr.bf16.mxu0 0
      %803 = vmatpush2.bf16.msra.mxu0 0
      %804 = vmatprep.subr.bf16.mxu0 0
      %805 = vmatpush2.bf16.msra.mxu0 0
      %806 = vmatprep.subr.bf16.mxu0 0
      %807 = vmatpush2.bf16.msra.mxu0 0
      %808 = vmatprep.subr.bf16.mxu0 0
      %809 = vmatpush2.bf16.msra.mxu0 0
      %810 = vmatprep.mubr.bf16.mxu0 0
      %811 = vmatmul.mubr.bf16.gmra.mxu0 %v728
      %v812 = vpop.f32.mrf.mxu0
      %v813 = vadd.f32 0.0, %v812
      %v814 = vpop.f32.mrf.mxu0
      %v815 = vpop.f32.mrf.mxu0
      %v816 = vadd.f32 0.0, %v815
      %v817 = vpop.f32.mrf.mxu0
      %818 = vdwg.mxu0
      %v819 = vadd.f32 %v700, %v813
      %v820 = vadd.f32 %v703, %v816
      %v821 = vld [vmem:[%s523] sm:$0xff]
      %v822 = vld [vmem:[%s523 + $0x8] sm:$0xff]
      %v823 = vld [vmem:[%s7] sm:$0xf]
      %v824 = vld [vmem:[%s7 + $0x4] sm:$0xf]
      %v825 = vld [vmem:[%s7 + $0x8] sm:$0xf]
      %v826 = vld [vmem:[%s7 + $0xc] sm:$0xf]
      %v827 = vld [vmem:[%s7 + $0x10] sm:$0xf]
      %v828 = vld [vmem:[%s7 + $0x14] sm:$0xf]
      %v829 = vld [vmem:[%s7 + $0x18] sm:$0xf]
      %v830 = vld [vmem:[%s7 + $0x1c] sm:$0xf]
      %v831 = vld [vmem:[%s7 + $0x20] sm:$0xf]
      %v832 = vld [vmem:[%s7 + $0x24] sm:$0xf]
      %v833 = vld [vmem:[%s7 + $0x28] sm:$0xf]
      %v834 = vld [vmem:[%s7 + $0x2c] sm:$0xf]
      %v835 = vld [vmem:[%s7 + $0x30] sm:$0xf]
      %v836 = vld [vmem:[%s7 + $0x34] sm:$0xf]
      %v837 = vld [vmem:[%s7 + $0x38] sm:$0xf]
      %v838 = vld [vmem:[%s7 + $0x3c] sm:$0xf]
      %v839 = vld [vmem:[%s7 + $0x40] sm:$0xf]
      %v840 = vld [vmem:[%s7 + $0x44] sm:$0xf]
      %v841 = vld [vmem:[%s7 + $0x48] sm:$0xf]
      %v842 = vld [vmem:[%s7 + $0x4c] sm:$0xf]
      %v843 = vld [vmem:[%s7 + $0x50] sm:$0xf]
      %v844 = vld [vmem:[%s7 + $0x54] sm:$0xf]
      %v845 = vld [vmem:[%s7 + $0x58] sm:$0xf]
      %v846 = vld [vmem:[%s7 + $0x5c] sm:$0xf]
      %v847 = vld [vmem:[%s7 + $0x60] sm:$0xf]
      %v848 = vld [vmem:[%s7 + $0x64] sm:$0xf]
      %v849 = vld [vmem:[%s7 + $0x68] sm:$0xf]
      %v850 = vld [vmem:[%s7 + $0x6c] sm:$0xf]
      %v851 = vld [vmem:[%s7 + $0x70] sm:$0xf]
      %v852 = vld [vmem:[%s7 + $0x74] sm:$0xf]
      %v853 = vld [vmem:[%s7 + $0x78] sm:$0xf]
      %v854 = vld [vmem:[%s7 + $0x7c] sm:$0xf]
      %v857 = vunpack.c.l.b16 %v821
      %v858 = vunpack.c.h.b16 %v821
      %v859 = vunpack.c.l.b16 %v822
      %v860 = vunpack.c.h.b16 %v822
      %v861 = vpack.c.b16 %v859, %v857
      %v862 = vpack.c.b16 %v860, %v858
      %v897 = vunpack.c.l.b16 %v823
      %v898 = vunpack.c.l.b16 %v824
      %v899 = vunpack.c.l.b16 %v825
      %v900 = vunpack.c.l.b16 %v826
      %v901 = vunpack.c.l.b16 %v827
      %v902 = vunpack.c.l.b16 %v828
      %v903 = vunpack.c.l.b16 %v829
      %v904 = vunpack.c.l.b16 %v830
      %v905 = vunpack.c.l.b16 %v831
      %v906 = vunpack.c.l.b16 %v832
      %v907 = vunpack.c.l.b16 %v833
      %v908 = vunpack.c.l.b16 %v834
      %v909 = vunpack.c.l.b16 %v835
      %v910 = vunpack.c.l.b16 %v836
      %v911 = vunpack.c.l.b16 %v837
      %v912 = vunpack.c.l.b16 %v838
      %v913 = vunpack.c.l.b16 %v839
      %v914 = vunpack.c.l.b16 %v840
      %v915 = vunpack.c.l.b16 %v841
      %v916 = vunpack.c.l.b16 %v842
      %v917 = vunpack.c.l.b16 %v843
      %v918 = vunpack.c.l.b16 %v844
      %v919 = vunpack.c.l.b16 %v845
      %v920 = vunpack.c.l.b16 %v846
      %v921 = vunpack.c.l.b16 %v847
      %v922 = vunpack.c.l.b16 %v848
      %v923 = vunpack.c.l.b16 %v849
      %v924 = vunpack.c.l.b16 %v850
      %v925 = vunpack.c.l.b16 %v851
      %v926 = vunpack.c.l.b16 %v852
      %v927 = vunpack.c.l.b16 %v853
      %v928 = vunpack.c.l.b16 %v854
      %v929 = vpack.c.b16 %v898, %v897
      %v930 = vpack.c.b16 %v900, %v899
      %v931 = vpack.c.b16 %v902, %v901
      %v932 = vpack.c.b16 %v904, %v903
      %v933 = vpack.c.b16 %v906, %v905
      %v934 = vpack.c.b16 %v908, %v907
      %v935 = vpack.c.b16 %v910, %v909
      %v936 = vpack.c.b16 %v912, %v911
      %v937 = vpack.c.b16 %v914, %v913
      %v938 = vpack.c.b16 %v916, %v915
      %v939 = vpack.c.b16 %v918, %v917
      %v940 = vpack.c.b16 %v920, %v919
      %v941 = vpack.c.b16 %v922, %v921
      %v942 = vpack.c.b16 %v924, %v923
      %v943 = vpack.c.b16 %v926, %v925
      %v944 = vpack.c.b16 %v928, %v927
      %961 = vmatprep.subr.bf16.mxu0 0
      %962 = vmatpush1.bf16.msra.mxu0 %v936
      %963 = vmatprep.subr.bf16.mxu0 0
      %964 = vmatpush1.bf16.msra.mxu0 %v935
      %965 = vmatprep.subr.bf16.mxu0 0
      %966 = vmatpush1.bf16.msra.mxu0 %v934
      %967 = vmatprep.subr.bf16.mxu0 0
      %968 = vmatpush1.bf16.msra.mxu0 %v933
      %969 = vmatprep.subr.bf16.mxu0 0
      %970 = vmatpush1.bf16.msra.mxu0 %v932
      %971 = vmatprep.subr.bf16.mxu0 0
      %972 = vmatpush1.bf16.msra.mxu0 %v931
      %973 = vmatprep.subr.bf16.mxu0 0
      %974 = vmatpush1.bf16.msra.mxu0 %v930
      %975 = vmatprep.subr.bf16.mxu0 0
      %976 = vmatpush1.bf16.msra.mxu0 %v929
      %977 = vmatprep.subr.bf16.mxu0 0
      %978 = vmatpush2.bf16.msra.mxu0 %v944
      %979 = vmatprep.subr.bf16.mxu0 0
      %980 = vmatpush2.bf16.msra.mxu0 %v943
      %981 = vmatprep.subr.bf16.mxu0 0
      %982 = vmatpush2.bf16.msra.mxu0 %v942
      %983 = vmatprep.subr.bf16.mxu0 0
      %984 = vmatpush2.bf16.msra.mxu0 %v941
      %985 = vmatprep.subr.bf16.mxu0 0
      %986 = vmatpush2.bf16.msra.mxu0 %v940
      %987 = vmatprep.subr.bf16.mxu0 0
      %988 = vmatpush2.bf16.msra.mxu0 %v939
      %989 = vmatprep.subr.bf16.mxu0 0
      %990 = vmatpush2.bf16.msra.mxu0 %v938
      %991 = vmatprep.subr.bf16.mxu0 0
      %992 = vmatpush2.bf16.msra.mxu0 %v937
      %993 = vmatprep.mubr.bf16.mxu0 %v862
      %994 = vmatmul.mubr.bf16.gmra.mxu0 %v861
      %v995 = vpop.f32.mrf.mxu0
      %v996 = vadd.f32 0.0, %v995
      %v997 = vpop.f32.mrf.mxu0
      %v998 = vpop.f32.mrf.mxu0
      %v999 = vadd.f32 0.0, %v998
      %v1000 = vpop.f32.mrf.mxu0
      %1001 = vdwg.mxu0
      %v1002 = vadd.f32 %v819, %v996
      %v1003 = vadd.f32 %v820, %v999
      %v1004 = vld [vmem:[%s8] sm:$0x1]
      %v1006 = vlaneseq
      %v1007 = vshrl.u32 %v1006, 7
      %v1008 = vsub.s32 0, %v1007
      %v1009 = vrot.slane %v1004, %v1008
      %v1011 = vmul.f32 %v1002, %v1009
      %v1012 = vmul.f32 %v1003, %v1009
      %v1013 = vld [vmem:[%s9] sm:$0x1]
      %v1015 = vlaneseq
      %v1016 = vshrl.u32 %v1015, 7
      %v1017 = vsub.s32 0, %v1016
      %v1018 = vrot.slane %v1013, %v1017
      %v1020 = vadd.f32 %v1011, %v1018
      %v1021 = vadd.f32 %v1012, %v1018
      %v1022 = vtanh.pop %v1020
      %v1023 = vtanh.pop %v1021
      %s1024 = smul.u32 %s28, 16
      %v1025 = vlaneseq
      %v1026 = vshrl.u32 %v1025, 7
      %v1027 = vadd.s32 %v1026, 8
      %v1028 = vstv %s1024
      %v1029 = vadd.s32 %v1028, %v1026
      %v1030 = vadd.s32 %v1028, %v1027
      %vm1031 = vcmp.lt.s32.totalorder %v1029, 16
      %vm1032 = vcmp.lt.s32.totalorder %v1030, 16
      %v1033 = vsel %vm1031, 1, 0
      %v1034 = vsel %vm1032, 1, 0
      %vm1035 = vcmp.eq.s32.totalorder %v1033, 1
      %vm1036 = vcmp.eq.s32.totalorder %v1034, 1
      %v1037 = vsel %vm1035, %v1022, -inf
      %v1038 = vsel %vm1036, %v1023, -inf
      %v1039 = vsel %vm1035, %v1022, 0.0
      %v1040 = vsel %vm1036, %v1023, 0.0
      %v1041 = vld [vmem:[%s527] sm:$0x1]
      %vm1042 = vcmask 261120
      %v1043 = vsel %vm1042, %v1037, -inf
      %v1044 = vsel %vm1042, %v1038, -inf
      %v1045 = vmax.f32 %v1043, %v1044
      %v1046 = vrot.slane %v1045, 4
      %v1047 = vmax.f32 %v1045, %v1046
      %v1048 = vrot.slane %v1047, 2
      %v1049 = vmax.f32 %v1047, %v1048
      %v1050 = vrot.slane %v1049, 1
      %v1051 = vmax.f32 %v1049, %v1050
      %v1052 = vmax.f32 %v1041, %v1051
      %vm1053 = vcmask 253952
      %1054 = vst.msk [vmem:[%s527] sm:$0x1] %vm1053, %v1052
      %v1055 = vld [vmem:[%s530] sm:$0x1]
      %v1056 = vsel %vm1042, %v1039, 0.0
      %v1057 = vsel %vm1042, %v1040, 0.0
      %v1058 = vadd.f32 %v1056, %v1057
      %v1059 = vrot.slane %v1058, 4
      %v1060 = vadd.f32 %v1058, %v1059
      %v1061 = vrot.slane %v1060, 2
      %v1062 = vadd.f32 %v1060, %v1061
      %v1063 = vrot.slane %v1062, 1
      %v1064 = vadd.f32 %v1062, %v1063
      %v1065 = vadd.f32 %v1055, %v1064
      %1066 = vst.msk [vmem:[%s530] sm:$0x1] %vm1053, %v1065
      // Predicated region
      $region65: #{shared_module_gcn_forward.19} parent=59 // pred_check
        %p1067 = pneg %p532
      $region66: #{shared_module_gcn_forward.19} parent=59 // pred_check_branch
        %1069 = sbr.rel (%p1067) target = $region68
      $region67: #{shared_module_gcn_forward.19} parent=59 // pred_region
        %v1070 = vld [vmem:[%s530] sm:$0x1]
        %v1071 = vmul.f32 %v1070, 0.0625
        %1072 = vst.msk [vmem:[%s530] sm:$0x1] %vm1053, %v1071
      $region68: #{shared_module_gcn_forward.19} parent=59 // pred_fallthru
        _
      %p1073 = scmp.lt.s32.totalorder %s27, 1
      %s1074 = scalar_select %p1073, %s27, 1
      %s1075 = scalar_lea.vmem %s10, %s1074
      %p1076 = scmp.lt.s32.totalorder %s27, 1
      %s1077 = scalar_select %p1076, %s27, 1
      %s1078 = scalar_lea.vmem %s11, %s1077
      // Predicated region
      $region69: #{shared_module_gcn_forward.19} parent=59 // pred_check
        %p1079 = pneg %p291
      $region70: #{shared_module_gcn_forward.19} parent=59 // pred_check_branch
        %1081 = sbr.rel (%p1079) target = $region72
      $region71: #{shared_module_gcn_forward.19} parent=59 // pred_region
        _
      $region72: #{shared_module_gcn_forward.19} parent=59 // pred_fallthru
        _
      // Predicated region
      $region73: #{shared_module_gcn_forward.19} parent=59 // pred_check
        %p1082 = pneg %p317
      $region74: #{shared_module_gcn_forward.19} parent=59 // pred_check_branch
        %1084 = sbr.rel (%p1082) target = $region76
      $region75: #{shared_module_gcn_forward.19} parent=59 // pred_region
        _
      $region76: #{shared_module_gcn_forward.19} parent=59 // pred_fallthru
        _
    $region60: #{shared_module_gcn_forward.19} parent=5 // pred_fallthru
      _
    %p1085 = scmp.le.s32.totalorder 2, %s18
    // Predicated region
    $region77: #{shared_module_gcn_forward.19} parent=5 // pred_check
      %p1086 = pneg %p1085
    $region78: #{shared_module_gcn_forward.19} parent=5 // pred_check_branch
      %1088 = sbr.rel (%p1086) target = $region80
    $region79: #{shared_module_gcn_forward.19} parent=5 // pred_region
      %s1089 = ssub.s32 %s18, 2
      // Predicated region
      $region81: #{shared_module_gcn_forward.19} parent=79 // pred_check
        %p1090 = pneg %p297
      $region82: #{shared_module_gcn_forward.19} parent=79 // pred_check_branch
        %1092 = sbr.rel (%p1090) target = $region84
      $region83: #{shared_module_gcn_forward.19} parent=79 // pred_region
        %p1093 = scmp.lt.s32.totalorder %s29, 1
        %s1094 = scalar_select %p1093, %s29, 1
        %s1095 = scalar_lea.vmem %s10, %s1094
      $region84: #{shared_module_gcn_forward.19} parent=79 // pred_fallthru
        _
      // Predicated region
      $region85: #{shared_module_gcn_forward.19} parent=79 // pred_check
        %p1096 = pneg %p323
      $region86: #{shared_module_gcn_forward.19} parent=79 // pred_check_branch
        %1098 = sbr.rel (%p1096) target = $region88
      $region87: #{shared_module_gcn_forward.19} parent=79 // pred_region
        %p1099 = scmp.lt.s32.totalorder %s29, 1
        %s1100 = scalar_select %p1099, %s29, 1
        %s1101 = scalar_lea.vmem %s11, %s1100
      $region88: #{shared_module_gcn_forward.19} parent=79 // pred_fallthru
        _
    $region80: #{shared_module_gcn_forward.19} parent=5 // pred_fallthru
      _
  $region6: #{shared_module_gcn_forward.19} parent=0 // loop_footer
    %s22 = sadd.s32 1, %s18
  $region7: #{shared_module_gcn_forward.19} parent=0 // loop_footer_branch
    %17 = sbr.rel target = $region3
  $region8: #{shared_module_gcn_forward.19} parent=0 // loop_exit
    _

</llo_original>
